<compile_context>
chip_gen: v7x
topology: tpu7x:2x2x1
jax: 0.10.0
libtpu: 0.0.40
codegen_flags: <defaults>
</compile_context>

<pallas_src>
import math
import functools

import jax
import jax.numpy as jnp
from jax.experimental import pallas as pl
from jax.experimental.pallas import tpu as pltpu

# ----------------------------- config ---------------------------------------
BATCH = 2
SEQ = 100            # tokenizer max_length=100
SEQ_PAD = 128        # lane-aligned padded sequence length
HIDDEN = 32
INTER = 64
NUM_HEADS = 4
HEAD_DIM = HIDDEN // NUM_HEADS
NUM_LAYERS = 2
VOCAB = 128
MAX_POS = 100
LN_EPS = 1e-12


# --------------------------- kernel helpers ----------------------------------
def _layernorm(x, gamma, beta):
    mu = jnp.mean(x, axis=-1, keepdims=True)
    var = jnp.mean((x - mu) ** 2, axis=-1, keepdims=True)
    return (x - mu) * jax.lax.rsqrt(var + LN_EPS) * gamma + beta


def _gelu(x):
    # TODO(synk): HF BERT uses the exact erf-based GELU; tanh approximation is
    # used here (erf has no guaranteed Mosaic lowering) -- numerically close.
    c = math.sqrt(2.0 / math.pi)
    return 0.5 * x * (1.0 + jnp.tanh(c * (x + 0.044715 * x * x * x)))


# ------------------------------ fused kernel ---------------------------------
def bert_encoder_kernel(emb_ref, bias_ref, emb_g_ref, emb_b_ref,
                        wq_ref, bq_ref, wk_ref, bk_ref, wv_ref, bv_ref,
                        wo_ref, bo_ref, ln1_g_ref, ln1_b_ref,
                        w1_ref, b1_ref, w2_ref, b2_ref,
                        ln2_g_ref, ln2_b_ref, o_ref,
                        *, num_layers, num_heads):
    S = emb_ref.shape[1]          # padded sequence length (128)
    H = emb_ref.shape[2]          # hidden (32)
    dh = wq_ref.shape[2]          # head dim (8)
    scale = 1.0 / math.sqrt(dh)

    # Embedding LayerNorm fused into the same kernel.
    x = _layernorm(emb_ref[0], emb_g_ref[...], emb_b_ref[...])

    # Hoist the additive-mask broadcast (1,S)->(S,S) out of ALL loops
    # (constant across layers/heads; JAX does not CSE broadcast_in_dim).
    bias_full = jnp.broadcast_to(bias_ref[0], (S, S))

    # Layers / heads are statically unrolled (tiny trip counts: 2 and 4) so the
    # LLO scheduler sees straight-line code; weights stay stacked on a leading
    # axis, so for larger NUM_LAYERS this becomes a lax.fori_loop with dynamic
    # first-axis ref indexing with no other change.
    for l in range(num_layers):
        x_bf = x.astype(jnp.bfloat16)

        # ---- self attention: per-head weights indexed on the leading axis,
        # so no lane slicing of Q/K/V and no concatenate over heads.
        attn_out = jnp.zeros((S, H), jnp.float32)
        for h in range(num_heads):
            idx = l * num_heads + h
            qh = jnp.dot(x_bf, wq_ref[idx],
                         preferred_element_type=jnp.float32) + bq_ref[idx]
            kh = jnp.dot(x_bf, wk_ref[idx],
                         preferred_element_type=jnp.float32) + bk_ref[idx]
            vh = jnp.dot(x_bf, wv_ref[idx],
                         preferred_element_type=jnp.float32) + bv_ref[idx]
            # scores = qh @ kh^T  (contract head dim, no explicit transpose)
            s = jax.lax.dot_general(
                qh.astype(jnp.bfloat16), kh.astype(jnp.bfloat16),
                (((1,), (1,)), ((), ())),
                preferred_element_type=jnp.float32)          # (S, S)
            s = s * scale + bias_full
            s = s - jnp.max(s, axis=-1, keepdims=True)
            p = jnp.exp(s)
            p = p * pl.reciprocal(jnp.sum(p, axis=-1, keepdims=True),
                                  approx=True)
            ctx = jnp.dot(p.astype(jnp.bfloat16), vh.astype(jnp.bfloat16),
                          preferred_element_type=jnp.float32)  # (S, dh)
            # accumulate through this head's slice of the output projection
            attn_out = attn_out + jnp.dot(ctx.astype(jnp.bfloat16), wo_ref[idx],
                                          preferred_element_type=jnp.float32)
        attn_out = attn_out + bo_ref[l]
        x = _layernorm(x + attn_out, ln1_g_ref[l], ln1_b_ref[l])

        # ---- feed forward (GELU) + residual LayerNorm.
        x_bf = x.astype(jnp.bfloat16)
        hdn = jnp.dot(x_bf, w1_ref[l],
                      preferred_element_type=jnp.float32) + b1_ref[l]
        hdn = _gelu(hdn)
        y = jnp.dot(hdn.astype(jnp.bfloat16), w2_ref[l],
                    preferred_element_type=jnp.float32) + b2_ref[l]
        x = _layernorm(x + y, ln2_g_ref[l], ln2_b_ref[l])

    o_ref[0] = x


# --------------------------- pallas_call wrapper ------------------------------
def _full_spec(shape):
    return pl.BlockSpec(shape, lambda b: tuple(0 for _ in shape))


def make_fused_encoder(B, S_pad, H, I, L, NH, dh):
    kern = functools.partial(bert_encoder_kernel, num_layers=L, num_heads=NH)
    act_spec = pl.BlockSpec((1, S_pad, H), lambda b: (b, 0, 0))
    bias_spec = pl.BlockSpec((1, 1, S_pad), lambda b: (b, 0, 0))
    return pl.pallas_call(
        kern,
        out_shape=jax.ShapeDtypeStruct((B, S_pad, H), jnp.float32),
        grid=(B,),
        in_specs=[
            act_spec, bias_spec,
            _full_spec((1, H)), _full_spec((1, H)),                  # emb LN
            _full_spec((L * NH, H, dh)), _full_spec((L * NH, 1, dh)),  # Wq,bq
            _full_spec((L * NH, H, dh)), _full_spec((L * NH, 1, dh)),  # Wk,bk
            _full_spec((L * NH, H, dh)), _full_spec((L * NH, 1, dh)),  # Wv,bv
            _full_spec((L * NH, dh, H)), _full_spec((L, 1, H)),        # Wo,bo
            _full_spec((L, 1, H)), _full_spec((L, 1, H)),              # LN1
            _full_spec((L, H, I)), _full_spec((L, 1, I)),              # W1,b1
            _full_spec((L, I, H)), _full_spec((L, 1, H)),              # W2,b2
            _full_spec((L, 1, H)), _full_spec((L, 1, H)),              # LN2
        ],
        out_specs=act_spec,
        compiler_params=pltpu.CompilerParams(
            dimension_semantics=("parallel",)),   # batch across v7x megacore
    )


# ------------------------------- params ---------------------------------------
def init_bert_params(key):
    std = 0.02
    L, H, I = NUM_LAYERS, HIDDEN, INTER
    keys = jax.random.split(key, 3 + 6 * L)
    nrm = lambda k, s: jax.random.normal(k, s, jnp.float32) * std
    return {
        'word_emb': nrm(keys[0], (VOCAB, H)),
        'pos_emb': nrm(keys[1], (MAX_POS, H)),
        'type_emb': nrm(keys[2], (2, H)),
        'emb_ln_g': jnp.ones((1, H), jnp.float32),
        'emb_ln_b': jnp.zeros((1, H), jnp.float32),
        'wq': jnp.stack([nrm(keys[3 + 6 * l + 0], (H, H)) for l in range(L)]),
        'wk': jnp.stack([nrm(keys[3 + 6 * l + 1], (H, H)) for l in range(L)]),
        'wv': jnp.stack([nrm(keys[3 + 6 * l + 2], (H, H)) for l in range(L)]),
        'wo': jnp.stack([nrm(keys[3 + 6 * l + 3], (H, H)) for l in range(L)]),
        'w1': jnp.stack([nrm(keys[3 + 6 * l + 4], (H, I)) for l in range(L)]),
        'w2': jnp.stack([nrm(keys[3 + 6 * l + 5], (I, H)) for l in range(L)]),
        'bq': jnp.zeros((L, 1, H), jnp.float32),
        'bk': jnp.zeros((L, 1, H), jnp.float32),
        'bv': jnp.zeros((L, 1, H), jnp.float32),
        'bo': jnp.zeros((L, 1, H), jnp.float32),
        'b1': jnp.zeros((L, 1, I), jnp.float32),
        'b2': jnp.zeros((L, 1, H), jnp.float32),
        'ln1_g': jnp.ones((L, 1, H), jnp.float32),
        'ln1_b': jnp.zeros((L, 1, H), jnp.float32),
        'ln2_g': jnp.ones((L, 1, H), jnp.float32),
        'ln2_b': jnp.zeros((L, 1, H), jnp.float32),
    }


def prepare_encoder_params(params):
    """Split Q/K/V/O per head on a leading (layer*head) axis and cast matmul
    operands to bf16 (accumulation stays f32 inside the kernel)."""
    L, H, NH, dh = NUM_LAYERS, HIDDEN, NUM_HEADS, HEAD_DIM
    bf = jnp.bfloat16

    def per_head_in(w):     # (L,H,H) -> (L*NH, H, dh): output columns of head h
        return w.reshape(L, H, NH, dh).transpose(0, 2, 1, 3).reshape(L * NH, H, dh)

    def per_head_bias(b):   # (L,1,H) -> (L*NH, 1, dh)
        return b.reshape(L, 1, NH, dh).transpose(0, 2, 1, 3).reshape(L * NH, 1, dh)

    def per_head_out(w):    # (L,H,H) -> (L*NH, dh, H): input rows of head h
        return w.reshape(L, NH, dh, H).reshape(L * NH, dh, H)

    return dict(
        emb_g=params['emb_ln_g'], emb_b=params['emb_ln_b'],
        wq=per_head_in(params['wq']).astype(bf), bq=per_head_bias(params['bq']),
        wk=per_head_in(params['wk']).astype(bf), bk=per_head_bias(params['bk']),
        wv=per_head_in(params['wv']).astype(bf), bv=per_head_bias(params['bv']),
        wo=per_head_out(params['wo']).astype(bf), bo=params['bo'],
        ln1_g=params['ln1_g'], ln1_b=params['ln1_b'],
        w1=params['w1'].astype(bf), b1=params['b1'],
        w2=params['w2'].astype(bf), b2=params['b2'],
        ln2_g=params['ln2_g'], ln2_b=params['ln2_b'],
    )


# ------------------------------- forward ---------------------------------------
@jax.jit
def bert_forward(params, enc, input_ids, attention_mask):
    """Returns (embeddings=last_hidden_state [B,S,H] f32, masks [B,S] i32)."""
    B, S = input_ids.shape
    # Embedding lookup (gather) is glue done in plain JAX.
    emb = (params['word_emb'][input_ids]
           + params['pos_emb'][jnp.arange(S)][None, :, :]
           + params['type_emb'][0][None, None, :]).astype(jnp.float32)
    # Pad sequence to 128 for full (8,128) tiles inside the kernel.
    emb = jnp.pad(emb, ((0, 0), (0, SEQ_PAD - S), (0, 0)))
    mask_pad = jnp.pad(attention_mask.astype(jnp.float32),
                       ((0, 0), (0, SEQ_PAD - S)))
    attn_bias = (1.0 - mask_pad)[:, None, :] * -1e4          # (B, 1, S_pad)

    fused = make_fused_encoder(B, SEQ_PAD, HIDDEN, INTER, NUM_LAYERS,
                               NUM_HEADS, HEAD_DIM)
    out = fused(emb, attn_bias,
                enc['emb_g'], enc['emb_b'],
                enc['wq'], enc['bq'], enc['wk'], enc['bk'],
                enc['wv'], enc['bv'], enc['wo'], enc['bo'],
                enc['ln1_g'], enc['ln1_b'],
                enc['w1'], enc['b1'], enc['w2'], enc['b2'],
                enc['ln2_g'], enc['ln2_b'])
    return out[:, :S, :], attention_mask


# -------------------------------- main ----------------------------------------
if __name__ == "__main__":
    key = jax.random.PRNGKey(0)
    k_params, k_ids = jax.random.split(key)

    params = init_bert_params(k_params)
    enc_params = prepare_encoder_params(params)

    # TODO(synk): real string tokenization (AutoTokenizer) has no Pallas/JAX
    # equivalent; deterministic synthetic token ids + padding mask stand in.
    lengths = jnp.array([60, 100], dtype=jnp.int32)
    attention_mask = (jnp.arange(SEQ)[None, :] < lengths[:, None]).astype(jnp.int32)
    input_ids = jax.random.randint(k_ids, (BATCH, SEQ), 1, VOCAB, dtype=jnp.int32)
    input_ids = input_ids * attention_mask                   # pad id = 0

    embeddings, masks = bert_forward(params, enc_params, input_ids, attention_mask)
    jax.block_until_ready((embeddings, masks))

    assert embeddings.shape == (BATCH, SEQ, HIDDEN)
    assert masks.shape == (BATCH, SEQ)
    assert bool(jnp.all(jnp.isfinite(embeddings)))
    print("KERNEL_OK")
</pallas_src>

<mosaic_0001>
module attributes {stable_mosaic.version = 11 : i64} {
  func.func @bert_encoder_kernel(%arg0: i32, %arg1: memref<1x128x32xf32, #tpu.memory_space<vmem>>, %arg2: memref<1x1x128xf32, #tpu.memory_space<vmem>>, %arg3: memref<1x32xf32, #tpu.memory_space<vmem>>, %arg4: memref<1x32xf32, #tpu.memory_space<vmem>>, %arg5: memref<8x32x8xbf16, #tpu.memory_space<vmem>>, %arg6: memref<8x1x8xf32, #tpu.memory_space<vmem>>, %arg7: memref<8x32x8xbf16, #tpu.memory_space<vmem>>, %arg8: memref<8x1x8xf32, #tpu.memory_space<vmem>>, %arg9: memref<8x32x8xbf16, #tpu.memory_space<vmem>>, %arg10: memref<8x1x8xf32, #tpu.memory_space<vmem>>, %arg11: memref<8x8x32xbf16, #tpu.memory_space<vmem>>, %arg12: memref<2x1x32xf32, #tpu.memory_space<vmem>>, %arg13: memref<2x1x32xf32, #tpu.memory_space<vmem>>, %arg14: memref<2x1x32xf32, #tpu.memory_space<vmem>>, %arg15: memref<2x32x64xbf16, #tpu.memory_space<vmem>>, %arg16: memref<2x1x64xf32, #tpu.memory_space<vmem>>, %arg17: memref<2x64x32xbf16, #tpu.memory_space<vmem>>, %arg18: memref<2x1x32xf32, #tpu.memory_space<vmem>>, %arg19: memref<2x1x32xf32, #tpu.memory_space<vmem>>, %arg20: memref<2x1x32xf32, #tpu.memory_space<vmem>>, %arg21: memref<1x128x32xf32, #tpu.memory_space<vmem>>) attributes {dimension_semantics = [#tpu.dimension_semantics<parallel>], iteration_bounds = array<i64: 2>, scalar_prefetch = 0 : i64, scratch_operands = 0 : i64, tpu.core_type = #tpu.core_type<tc>, window_params = [{transform_indices = @transform_0, window_bounds = array<i64: 1, 128, 32>}, {transform_indices = @transform_1, window_bounds = array<i64: 1, 1, 128>}, {pipeline_mode = #tpu.pipeline_mode<synchronous>, transform_indices = @transform_2, window_bounds = array<i64: 1, 32>}, {pipeline_mode = #tpu.pipeline_mode<synchronous>, transform_indices = @transform_3, window_bounds = array<i64: 1, 32>}, {pipeline_mode = #tpu.pipeline_mode<synchronous>, transform_indices = @transform_4, window_bounds = array<i64: 8, 32, 8>}, {pipeline_mode = #tpu.pipeline_mode<synchronous>, transform_indices = @transform_5, window_bounds = array<i64: 8, 1, 8>}, {pipeline_mode = #tpu.pipeline_mode<synchronous>, transform_indices = @transform_6, window_bounds = array<i64: 8, 32, 8>}, {pipeline_mode = #tpu.pipeline_mode<synchronous>, transform_indices = @transform_7, window_bounds = array<i64: 8, 1, 8>}, {pipeline_mode = #tpu.pipeline_mode<synchronous>, transform_indices = @transform_8, window_bounds = array<i64: 8, 32, 8>}, {pipeline_mode = #tpu.pipeline_mode<synchronous>, transform_indices = @transform_9, window_bounds = array<i64: 8, 1, 8>}, {pipeline_mode = #tpu.pipeline_mode<synchronous>, transform_indices = @transform_10, window_bounds = array<i64: 8, 8, 32>}, {pipeline_mode = #tpu.pipeline_mode<synchronous>, transform_indices = @transform_11, window_bounds = array<i64: 2, 1, 32>}, {pipeline_mode = #tpu.pipeline_mode<synchronous>, transform_indices = @transform_12, window_bounds = array<i64: 2, 1, 32>}, {pipeline_mode = #tpu.pipeline_mode<synchronous>, transform_indices = @transform_13, window_bounds = array<i64: 2, 1, 32>}, {pipeline_mode = #tpu.pipeline_mode<synchronous>, transform_indices = @transform_14, window_bounds = array<i64: 2, 32, 64>}, {pipeline_mode = #tpu.pipeline_mode<synchronous>, transform_indices = @transform_15, window_bounds = array<i64: 2, 1, 64>}, {pipeline_mode = #tpu.pipeline_mode<synchronous>, transform_indices = @transform_16, window_bounds = array<i64: 2, 64, 32>}, {pipeline_mode = #tpu.pipeline_mode<synchronous>, transform_indices = @transform_17, window_bounds = array<i64: 2, 1, 32>}, {pipeline_mode = #tpu.pipeline_mode<synchronous>, transform_indices = @transform_18, window_bounds = array<i64: 2, 1, 32>}, {pipeline_mode = #tpu.pipeline_mode<synchronous>, transform_indices = @transform_19, window_bounds = array<i64: 2, 1, 32>}, {transform_indices = @transform_20, window_bounds = array<i64: 1, 128, 32>}]} {
    %c0 = arith.constant 0 : index
    %c0_0 = arith.constant 0 : index
    %c0_1 = arith.constant 0 : index
    %0 = vector.load %arg1[%c0, %c0_0, %c0_1] : memref<1x128x32xf32, #tpu.memory_space<vmem>>, vector<1x128x32xf32>
    %1 = vector.shape_cast %0 : vector<1x128x32xf32> to vector<128x32xf32>
    %c0_2 = arith.constant 0 : index
    %c0_3 = arith.constant 0 : index
    %2 = vector.load %arg3[%c0_2, %c0_3] : memref<1x32xf32, #tpu.memory_space<vmem>>, vector<1x32xf32>
    %c0_4 = arith.constant 0 : index
    %c0_5 = arith.constant 0 : index
    %3 = vector.load %arg4[%c0_4, %c0_5] : memref<1x32xf32, #tpu.memory_space<vmem>>, vector<1x32xf32>
    %cst = arith.constant dense<0.000000e+00> : vector<128xf32>
    %4 = vector.multi_reduction <add>, %1, %cst [1] : vector<128x32xf32> to vector<128xf32>
    %5 = vector.shape_cast %4 : vector<128xf32> to vector<128x1xf32>
    %cst_6 = arith.constant 3.200000e+01 : f32
    %6 = vector.broadcast %cst_6 : f32 to vector<128x1xf32>
    %7 = arith.divf %5, %6 : vector<128x1xf32>
    %8 = vector.broadcast %7 : vector<128x1xf32> to vector<128x32xf32>
    %9 = arith.subf %1, %8 : vector<128x32xf32>
    %10 = arith.mulf %9, %9 : vector<128x32xf32>
    %cst_7 = arith.constant dense<0.000000e+00> : vector<128xf32>
    %11 = vector.multi_reduction <add>, %10, %cst_7 [1] : vector<128x32xf32> to vector<128xf32>
    %12 = vector.shape_cast %11 : vector<128xf32> to vector<128x1xf32>
    %cst_8 = arith.constant 3.200000e+01 : f32
    %13 = vector.broadcast %cst_8 : f32 to vector<128x1xf32>
    %14 = arith.divf %12, %13 : vector<128x1xf32>
    %15 = vector.broadcast %7 : vector<128x1xf32> to vector<128x32xf32>
    %16 = arith.subf %1, %15 : vector<128x32xf32>
    %cst_9 = arith.constant 9.99999996E-13 : f32
    %17 = vector.broadcast %cst_9 : f32 to vector<128x1xf32>
    %18 = arith.addf %14, %17 : vector<128x1xf32>
    %19 = math.rsqrt %18 : vector<128x1xf32>
    %20 = vector.broadcast %19 : vector<128x1xf32> to vector<128x32xf32>
    %21 = arith.mulf %16, %20 : vector<128x32xf32>
    %22 = vector.broadcast %2 : vector<1x32xf32> to vector<128x32xf32>
    %23 = arith.mulf %21, %22 : vector<128x32xf32>
    %24 = vector.broadcast %3 : vector<1x32xf32> to vector<128x32xf32>
    %25 = arith.addf %23, %24 : vector<128x32xf32>
    %c0_10 = arith.constant 0 : index
    %c0_11 = arith.constant 0 : index
    %c0_12 = arith.constant 0 : index
    %26 = vector.load %arg2[%c0_10, %c0_11, %c0_12] : memref<1x1x128xf32, #tpu.memory_space<vmem>>, vector<1x1x128xf32>
    %27 = vector.shape_cast %26 : vector<1x1x128xf32> to vector<1x128xf32>
    %28 = vector.shape_cast %27 : vector<1x128xf32> to vector<1x128xf32>
    %29 = vector.broadcast %28 : vector<1x128xf32> to vector<128x128xf32>
    %30 = arith.truncf %25 : vector<128x32xf32> to vector<128x32xbf16>
    %cst_13 = arith.constant 0.000000e+00 : f32
    %31 = vector.broadcast %cst_13 : f32 to vector<128x32xf32>
    %c0_14 = arith.constant 0 : index
    %c0_15 = arith.constant 0 : index
    %c0_16 = arith.constant 0 : index
    %32 = vector.load %arg5[%c0_14, %c0_15, %c0_16] : memref<8x32x8xbf16, #tpu.memory_space<vmem>>, vector<1x32x8xbf16>
    %33 = vector.shape_cast %32 : vector<1x32x8xbf16> to vector<32x8xbf16>
    %cst_17 = arith.constant dense<0.000000e+00> : vector<128x8xf32>
    %34 = tpu.matmul %30, %33, %cst_17 {dimension_numbers = #tpu.dot_dimension_numbers<[1], [0], [0], [1], [0, 0, 1, 1], [], []>} : vector<128x32xbf16>, vector<32x8xbf16>, vector<128x8xf32> -> vector<128x8xf32>
    %c0_18 = arith.constant 0 : index
    %c0_19 = arith.constant 0 : index
    %c0_20 = arith.constant 0 : index
    %35 = vector.load %arg6[%c0_18, %c0_19, %c0_20] : memref<8x1x8xf32, #tpu.memory_space<vmem>>, vector<1x1x8xf32>
    %36 = vector.shape_cast %35 : vector<1x1x8xf32> to vector<1x8xf32>
    %37 = vector.broadcast %36 : vector<1x8xf32> to vector<128x8xf32>
    %38 = arith.addf %34, %37 : vector<128x8xf32>
    %c0_21 = arith.constant 0 : index
    %c0_22 = arith.constant 0 : index
    %c0_23 = arith.constant 0 : index
    %39 = vector.load %arg7[%c0_21, %c0_22, %c0_23] : memref<8x32x8xbf16, #tpu.memory_space<vmem>>, vector<1x32x8xbf16>
    %40 = vector.shape_cast %39 : vector<1x32x8xbf16> to vector<32x8xbf16>
    %cst_24 = arith.constant dense<0.000000e+00> : vector<128x8xf32>
    %41 = tpu.matmul %30, %40, %cst_24 {dimension_numbers = #tpu.dot_dimension_numbers<[1], [0], [0], [1], [0, 0, 1, 1], [], []>} : vector<128x32xbf16>, vector<32x8xbf16>, vector<128x8xf32> -> vector<128x8xf32>
    %c0_25 = arith.constant 0 : index
    %c0_26 = arith.constant 0 : index
    %c0_27 = arith.constant 0 : index
    %42 = vector.load %arg8[%c0_25, %c0_26, %c0_27] : memref<8x1x8xf32, #tpu.memory_space<vmem>>, vector<1x1x8xf32>
    %43 = vector.shape_cast %42 : vector<1x1x8xf32> to vector<1x8xf32>
    %44 = vector.broadcast %43 : vector<1x8xf32> to vector<128x8xf32>
    %45 = arith.addf %41, %44 : vector<128x8xf32>
    %c0_28 = arith.constant 0 : index
    %c0_29 = arith.constant 0 : index
    %c0_30 = arith.constant 0 : index
    %46 = vector.load %arg9[%c0_28, %c0_29, %c0_30] : memref<8x32x8xbf16, #tpu.memory_space<vmem>>, vector<1x32x8xbf16>
    %47 = vector.shape_cast %46 : vector<1x32x8xbf16> to vector<32x8xbf16>
    %cst_31 = arith.constant dense<0.000000e+00> : vector<128x8xf32>
    %48 = tpu.matmul %30, %47, %cst_31 {dimension_numbers = #tpu.dot_dimension_numbers<[1], [0], [0], [1], [0, 0, 1, 1], [], []>} : vector<128x32xbf16>, vector<32x8xbf16>, vector<128x8xf32> -> vector<128x8xf32>
    %c0_32 = arith.constant 0 : index
    %c0_33 = arith.constant 0 : index
    %c0_34 = arith.constant 0 : index
    %49 = vector.load %arg10[%c0_32, %c0_33, %c0_34] : memref<8x1x8xf32, #tpu.memory_space<vmem>>, vector<1x1x8xf32>
    %50 = vector.shape_cast %49 : vector<1x1x8xf32> to vector<1x8xf32>
    %51 = vector.broadcast %50 : vector<1x8xf32> to vector<128x8xf32>
    %52 = arith.addf %48, %51 : vector<128x8xf32>
    %53 = arith.truncf %38 : vector<128x8xf32> to vector<128x8xbf16>
    %54 = arith.truncf %45 : vector<128x8xf32> to vector<128x8xbf16>
    %cst_35 = arith.constant dense<0.000000e+00> : vector<128x128xf32>
    %55 = tpu.matmul %53, %54, %cst_35 {dimension_numbers = #tpu.dot_dimension_numbers<[1], [1], [0], [0], [0, 0, 1, 0], [], []>} : vector<128x8xbf16>, vector<128x8xbf16>, vector<128x128xf32> -> vector<128x128xf32>
    %cst_36 = arith.constant 0.353553385 : f32
    %56 = vector.broadcast %cst_36 : f32 to vector<128x128xf32>
    %57 = arith.mulf %55, %56 : vector<128x128xf32>
    %58 = arith.addf %57, %29 : vector<128x128xf32>
    %cst_37 = arith.constant dense<0xFF800000> : vector<128xf32>
    %59 = vector.multi_reduction <maximumf>, %58, %cst_37 [1] : vector<128x128xf32> to vector<128xf32>
    %60 = vector.shape_cast %59 : vector<128xf32> to vector<128x1xf32>
    %61 = vector.broadcast %60 : vector<128x1xf32> to vector<128x128xf32>
    %62 = arith.subf %58, %61 : vector<128x128xf32>
    %63 = math.exp %62 : vector<128x128xf32>
    %cst_38 = arith.constant dense<0.000000e+00> : vector<128xf32>
    %64 = vector.multi_reduction <add>, %63, %cst_38 [1] : vector<128x128xf32> to vector<128xf32>
    %65 = vector.shape_cast %64 : vector<128xf32> to vector<128x1xf32>
    %66 = tpu.reciprocal %65 {approx = true} : vector<128x1xf32> -> vector<128x1xf32>
    %67 = vector.broadcast %66 : vector<128x1xf32> to vector<128x128xf32>
    %68 = arith.mulf %63, %67 : vector<128x128xf32>
    %69 = arith.truncf %68 : vector<128x128xf32> to vector<128x128xbf16>
    %70 = arith.truncf %52 : vector<128x8xf32> to vector<128x8xbf16>
    %cst_39 = arith.constant dense<0.000000e+00> : vector<128x8xf32>
    %71 = tpu.matmul %69, %70, %cst_39 {dimension_numbers = #tpu.dot_dimension_numbers<[1], [0], [0], [1], [0, 0, 1, 1], [], []>} : vector<128x128xbf16>, vector<128x8xbf16>, vector<128x8xf32> -> vector<128x8xf32>
    %72 = arith.truncf %71 : vector<128x8xf32> to vector<128x8xbf16>
    %c0_40 = arith.constant 0 : index
    %c0_41 = arith.constant 0 : index
    %c0_42 = arith.constant 0 : index
    %73 = vector.load %arg11[%c0_40, %c0_41, %c0_42] : memref<8x8x32xbf16, #tpu.memory_space<vmem>>, vector<1x8x32xbf16>
    %74 = vector.shape_cast %73 : vector<1x8x32xbf16> to vector<8x32xbf16>
    %cst_43 = arith.constant dense<0.000000e+00> : vector<128x32xf32>
    %75 = tpu.matmul %72, %74, %cst_43 {dimension_numbers = #tpu.dot_dimension_numbers<[1], [0], [0], [1], [0, 0, 1, 1], [], []>} : vector<128x8xbf16>, vector<8x32xbf16>, vector<128x32xf32> -> vector<128x32xf32>
    %76 = arith.addf %31, %75 : vector<128x32xf32>
    %c1 = arith.constant 1 : index
    %c0_44 = arith.constant 0 : index
    %c0_45 = arith.constant 0 : index
    %77 = vector.load %arg5[%c1, %c0_44, %c0_45] : memref<8x32x8xbf16, #tpu.memory_space<vmem>>, vector<1x32x8xbf16>
    %78 = vector.shape_cast %77 : vector<1x32x8xbf16> to vector<32x8xbf16>
    %cst_46 = arith.constant dense<0.000000e+00> : vector<128x8xf32>
    %79 = tpu.matmul %30, %78, %cst_46 {dimension_numbers = #tpu.dot_dimension_numbers<[1], [0], [0], [1], [0, 0, 1, 1], [], []>} : vector<128x32xbf16>, vector<32x8xbf16>, vector<128x8xf32> -> vector<128x8xf32>
    %c1_47 = arith.constant 1 : index
    %c0_48 = arith.constant 0 : index
    %c0_49 = arith.constant 0 : index
    %80 = vector.load %arg6[%c1_47, %c0_48, %c0_49] : memref<8x1x8xf32, #tpu.memory_space<vmem>>, vector<1x1x8xf32>
    %81 = vector.shape_cast %80 : vector<1x1x8xf32> to vector<1x8xf32>
    %82 = vector.broadcast %81 : vector<1x8xf32> to vector<128x8xf32>
    %83 = arith.addf %79, %82 : vector<128x8xf32>
    %c1_50 = arith.constant 1 : index
    %c0_51 = arith.constant 0 : index
    %c0_52 = arith.constant 0 : index
    %84 = vector.load %arg7[%c1_50, %c0_51, %c0_52] : memref<8x32x8xbf16, #tpu.memory_space<vmem>>, vector<1x32x8xbf16>
    %85 = vector.shape_cast %84 : vector<1x32x8xbf16> to vector<32x8xbf16>
    %cst_53 = arith.constant dense<0.000000e+00> : vector<128x8xf32>
    %86 = tpu.matmul %30, %85, %cst_53 {dimension_numbers = #tpu.dot_dimension_numbers<[1], [0], [0], [1], [0, 0, 1, 1], [], []>} : vector<128x32xbf16>, vector<32x8xbf16>, vector<128x8xf32> -> vector<128x8xf32>
    %c1_54 = arith.constant 1 : index
    %c0_55 = arith.constant 0 : index
    %c0_56 = arith.constant 0 : index
    %87 = vector.load %arg8[%c1_54, %c0_55, %c0_56] : memref<8x1x8xf32, #tpu.memory_space<vmem>>, vector<1x1x8xf32>
    %88 = vector.shape_cast %87 : vector<1x1x8xf32> to vector<1x8xf32>
    %89 = vector.broadcast %88 : vector<1x8xf32> to vector<128x8xf32>
    %90 = arith.addf %86, %89 : vector<128x8xf32>
    %c1_57 = arith.constant 1 : index
    %c0_58 = arith.constant 0 : index
    %c0_59 = arith.constant 0 : index
    %91 = vector.load %arg9[%c1_57, %c0_58, %c0_59] : memref<8x32x8xbf16, #tpu.memory_space<vmem>>, vector<1x32x8xbf16>
    %92 = vector.shape_cast %91 : vector<1x32x8xbf16> to vector<32x8xbf16>
    %cst_60 = arith.constant dense<0.000000e+00> : vector<128x8xf32>
    %93 = tpu.matmul %30, %92, %cst_60 {dimension_numbers = #tpu.dot_dimension_numbers<[1], [0], [0], [1], [0, 0, 1, 1], [], []>} : vector<128x32xbf16>, vector<32x8xbf16>, vector<128x8xf32> -> vector<128x8xf32>
    %c1_61 = arith.constant 1 : index
    %c0_62 = arith.constant 0 : index
    %c0_63 = arith.constant 0 : index
    %94 = vector.load %arg10[%c1_61, %c0_62, %c0_63] : memref<8x1x8xf32, #tpu.memory_space<vmem>>, vector<1x1x8xf32>
    %95 = vector.shape_cast %94 : vector<1x1x8xf32> to vector<1x8xf32>
    %96 = vector.broadcast %95 : vector<1x8xf32> to vector<128x8xf32>
    %97 = arith.addf %93, %96 : vector<128x8xf32>
    %98 = arith.truncf %83 : vector<128x8xf32> to vector<128x8xbf16>
    %99 = arith.truncf %90 : vector<128x8xf32> to vector<128x8xbf16>
    %cst_64 = arith.constant dense<0.000000e+00> : vector<128x128xf32>
    %100 = tpu.matmul %98, %99, %cst_64 {dimension_numbers = #tpu.dot_dimension_numbers<[1], [1], [0], [0], [0, 0, 1, 0], [], []>} : vector<128x8xbf16>, vector<128x8xbf16>, vector<128x128xf32> -> vector<128x128xf32>
    %cst_65 = arith.constant 0.353553385 : f32
    %101 = vector.broadcast %cst_65 : f32 to vector<128x128xf32>
    %102 = arith.mulf %100, %101 : vector<128x128xf32>
    %103 = arith.addf %102, %29 : vector<128x128xf32>
    %cst_66 = arith.constant dense<0xFF800000> : vector<128xf32>
    %104 = vector.multi_reduction <maximumf>, %103, %cst_66 [1] : vector<128x128xf32> to vector<128xf32>
    %105 = vector.shape_cast %104 : vector<128xf32> to vector<128x1xf32>
    %106 = vector.broadcast %105 : vector<128x1xf32> to vector<128x128xf32>
    %107 = arith.subf %103, %106 : vector<128x128xf32>
    %108 = math.exp %107 : vector<128x128xf32>
    %cst_67 = arith.constant dense<0.000000e+00> : vector<128xf32>
    %109 = vector.multi_reduction <add>, %108, %cst_67 [1] : vector<128x128xf32> to vector<128xf32>
    %110 = vector.shape_cast %109 : vector<128xf32> to vector<128x1xf32>
    %111 = tpu.reciprocal %110 {approx = true} : vector<128x1xf32> -> vector<128x1xf32>
    %112 = vector.broadcast %111 : vector<128x1xf32> to vector<128x128xf32>
    %113 = arith.mulf %108, %112 : vector<128x128xf32>
    %114 = arith.truncf %113 : vector<128x128xf32> to vector<128x128xbf16>
    %115 = arith.truncf %97 : vector<128x8xf32> to vector<128x8xbf16>
    %cst_68 = arith.constant dense<0.000000e+00> : vector<128x8xf32>
    %116 = tpu.matmul %114, %115, %cst_68 {dimension_numbers = #tpu.dot_dimension_numbers<[1], [0], [0], [1], [0, 0, 1, 1], [], []>} : vector<128x128xbf16>, vector<128x8xbf16>, vector<128x8xf32> -> vector<128x8xf32>
    %117 = arith.truncf %116 : vector<128x8xf32> to vector<128x8xbf16>
    %c1_69 = arith.constant 1 : index
    %c0_70 = arith.constant 0 : index
    %c0_71 = arith.constant 0 : index
    %118 = vector.load %arg11[%c1_69, %c0_70, %c0_71] : memref<8x8x32xbf16, #tpu.memory_space<vmem>>, vector<1x8x32xbf16>
    %119 = vector.shape_cast %118 : vector<1x8x32xbf16> to vector<8x32xbf16>
    %cst_72 = arith.constant dense<0.000000e+00> : vector<128x32xf32>
    %120 = tpu.matmul %117, %119, %cst_72 {dimension_numbers = #tpu.dot_dimension_numbers<[1], [0], [0], [1], [0, 0, 1, 1], [], []>} : vector<128x8xbf16>, vector<8x32xbf16>, vector<128x32xf32> -> vector<128x32xf32>
    %121 = arith.addf %76, %120 : vector<128x32xf32>
    %c2 = arith.constant 2 : index
    %c0_73 = arith.constant 0 : index
    %c0_74 = arith.constant 0 : index
    %122 = vector.load %arg5[%c2, %c0_73, %c0_74] : memref<8x32x8xbf16, #tpu.memory_space<vmem>>, vector<1x32x8xbf16>
    %123 = vector.shape_cast %122 : vector<1x32x8xbf16> to vector<32x8xbf16>
    %cst_75 = arith.constant dense<0.000000e+00> : vector<128x8xf32>
    %124 = tpu.matmul %30, %123, %cst_75 {dimension_numbers = #tpu.dot_dimension_numbers<[1], [0], [0], [1], [0, 0, 1, 1], [], []>} : vector<128x32xbf16>, vector<32x8xbf16>, vector<128x8xf32> -> vector<128x8xf32>
    %c2_76 = arith.constant 2 : index
    %c0_77 = arith.constant 0 : index
    %c0_78 = arith.constant 0 : index
    %125 = vector.load %arg6[%c2_76, %c0_77, %c0_78] : memref<8x1x8xf32, #tpu.memory_space<vmem>>, vector<1x1x8xf32>
    %126 = vector.shape_cast %125 : vector<1x1x8xf32> to vector<1x8xf32>
    %127 = vector.broadcast %126 : vector<1x8xf32> to vector<128x8xf32>
    %128 = arith.addf %124, %127 : vector<128x8xf32>
    %c2_79 = arith.constant 2 : index
    %c0_80 = arith.constant 0 : index
    %c0_81 = arith.constant 0 : index
    %129 = vector.load %arg7[%c2_79, %c0_80, %c0_81] : memref<8x32x8xbf16, #tpu.memory_space<vmem>>, vector<1x32x8xbf16>
    %130 = vector.shape_cast %129 : vector<1x32x8xbf16> to vector<32x8xbf16>
    %cst_82 = arith.constant dense<0.000000e+00> : vector<128x8xf32>
    %131 = tpu.matmul %30, %130, %cst_82 {dimension_numbers = #tpu.dot_dimension_numbers<[1], [0], [0], [1], [0, 0, 1, 1], [], []>} : vector<128x32xbf16>, vector<32x8xbf16>, vector<128x8xf32> -> vector<128x8xf32>
    %c2_83 = arith.constant 2 : index
    %c0_84 = arith.constant 0 : index
    %c0_85 = arith.constant 0 : index
    %132 = vector.load %arg8[%c2_83, %c0_84, %c0_85] : memref<8x1x8xf32, #tpu.memory_space<vmem>>, vector<1x1x8xf32>
    %133 = vector.shape_cast %132 : vector<1x1x8xf32> to vector<1x8xf32>
    %134 = vector.broadcast %133 : vector<1x8xf32> to vector<128x8xf32>
    %135 = arith.addf %131, %134 : vector<128x8xf32>
    %c2_86 = arith.constant 2 : index
    %c0_87 = arith.constant 0 : index
    %c0_88 = arith.constant 0 : index
    %136 = vector.load %arg9[%c2_86, %c0_87, %c0_88] : memref<8x32x8xbf16, #tpu.memory_space<vmem>>, vector<1x32x8xbf16>
    %137 = vector.shape_cast %136 : vector<1x32x8xbf16> to vector<32x8xbf16>
    %cst_89 = arith.constant dense<0.000000e+00> : vector<128x8xf32>
    %138 = tpu.matmul %30, %137, %cst_89 {dimension_numbers = #tpu.dot_dimension_numbers<[1], [0], [0], [1], [0, 0, 1, 1], [], []>} : vector<128x32xbf16>, vector<32x8xbf16>, vector<128x8xf32> -> vector<128x8xf32>
    %c2_90 = arith.constant 2 : index
    %c0_91 = arith.constant 0 : index
    %c0_92 = arith.constant 0 : index
    %139 = vector.load %arg10[%c2_90, %c0_91, %c0_92] : memref<8x1x8xf32, #tpu.memory_space<vmem>>, vector<1x1x8xf32>
    %140 = vector.shape_cast %139 : vector<1x1x8xf32> to vector<1x8xf32>
    %141 = vector.broadcast %140 : vector<1x8xf32> to vector<128x8xf32>
    %142 = arith.addf %138, %141 : vector<128x8xf32>
    %143 = arith.truncf %128 : vector<128x8xf32> to vector<128x8xbf16>
    %144 = arith.truncf %135 : vector<128x8xf32> to vector<128x8xbf16>
    %cst_93 = arith.constant dense<0.000000e+00> : vector<128x128xf32>
    %145 = tpu.matmul %143, %144, %cst_93 {dimension_numbers = #tpu.dot_dimension_numbers<[1], [1], [0], [0], [0, 0, 1, 0], [], []>} : vector<128x8xbf16>, vector<128x8xbf16>, vector<128x128xf32> -> vector<128x128xf32>
    %cst_94 = arith.constant 0.353553385 : f32
    %146 = vector.broadcast %cst_94 : f32 to vector<128x128xf32>
    %147 = arith.mulf %145, %146 : vector<128x128xf32>
    %148 = arith.addf %147, %29 : vector<128x128xf32>
    %cst_95 = arith.constant dense<0xFF800000> : vector<128xf32>
    %149 = vector.multi_reduction <maximumf>, %148, %cst_95 [1] : vector<128x128xf32> to vector<128xf32>
    %150 = vector.shape_cast %149 : vector<128xf32> to vector<128x1xf32>
    %151 = vector.broadcast %150 : vector<128x1xf32> to vector<128x128xf32>
    %152 = arith.subf %148, %151 : vector<128x128xf32>
    %153 = math.exp %152 : vector<128x128xf32>
    %cst_96 = arith.constant dense<0.000000e+00> : vector<128xf32>
    %154 = vector.multi_reduction <add>, %153, %cst_96 [1] : vector<128x128xf32> to vector<128xf32>
    %155 = vector.shape_cast %154 : vector<128xf32> to vector<128x1xf32>
    %156 = tpu.reciprocal %155 {approx = true} : vector<128x1xf32> -> vector<128x1xf32>
    %157 = vector.broadcast %156 : vector<128x1xf32> to vector<128x128xf32>
    %158 = arith.mulf %153, %157 : vector<128x128xf32>
    %159 = arith.truncf %158 : vector<128x128xf32> to vector<128x128xbf16>
    %160 = arith.truncf %142 : vector<128x8xf32> to vector<128x8xbf16>
    %cst_97 = arith.constant dense<0.000000e+00> : vector<128x8xf32>
    %161 = tpu.matmul %159, %160, %cst_97 {dimension_numbers = #tpu.dot_dimension_numbers<[1], [0], [0], [1], [0, 0, 1, 1], [], []>} : vector<128x128xbf16>, vector<128x8xbf16>, vector<128x8xf32> -> vector<128x8xf32>
    %162 = arith.truncf %161 : vector<128x8xf32> to vector<128x8xbf16>
    %c2_98 = arith.constant 2 : index
    %c0_99 = arith.constant 0 : index
    %c0_100 = arith.constant 0 : index
    %163 = vector.load %arg11[%c2_98, %c0_99, %c0_100] : memref<8x8x32xbf16, #tpu.memory_space<vmem>>, vector<1x8x32xbf16>
    %164 = vector.shape_cast %163 : vector<1x8x32xbf16> to vector<8x32xbf16>
    %cst_101 = arith.constant dense<0.000000e+00> : vector<128x32xf32>
    %165 = tpu.matmul %162, %164, %cst_101 {dimension_numbers = #tpu.dot_dimension_numbers<[1], [0], [0], [1], [0, 0, 1, 1], [], []>} : vector<128x8xbf16>, vector<8x32xbf16>, vector<128x32xf32> -> vector<128x32xf32>
    %166 = arith.addf %121, %165 : vector<128x32xf32>
    %c3 = arith.constant 3 : index
    %c0_102 = arith.constant 0 : index
    %c0_103 = arith.constant 0 : index
    %167 = vector.load %arg5[%c3, %c0_102, %c0_103] : memref<8x32x8xbf16, #tpu.memory_space<vmem>>, vector<1x32x8xbf16>
    %168 = vector.shape_cast %167 : vector<1x32x8xbf16> to vector<32x8xbf16>
    %cst_104 = arith.constant dense<0.000000e+00> : vector<128x8xf32>
    %169 = tpu.matmul %30, %168, %cst_104 {dimension_numbers = #tpu.dot_dimension_numbers<[1], [0], [0], [1], [0, 0, 1, 1], [], []>} : vector<128x32xbf16>, vector<32x8xbf16>, vector<128x8xf32> -> vector<128x8xf32>
    %c3_105 = arith.constant 3 : index
    %c0_106 = arith.constant 0 : index
    %c0_107 = arith.constant 0 : index
    %170 = vector.load %arg6[%c3_105, %c0_106, %c0_107] : memref<8x1x8xf32, #tpu.memory_space<vmem>>, vector<1x1x8xf32>
    %171 = vector.shape_cast %170 : vector<1x1x8xf32> to vector<1x8xf32>
    %172 = vector.broadcast %171 : vector<1x8xf32> to vector<128x8xf32>
    %173 = arith.addf %169, %172 : vector<128x8xf32>
    %c3_108 = arith.constant 3 : index
    %c0_109 = arith.constant 0 : index
    %c0_110 = arith.constant 0 : index
    %174 = vector.load %arg7[%c3_108, %c0_109, %c0_110] : memref<8x32x8xbf16, #tpu.memory_space<vmem>>, vector<1x32x8xbf16>
    %175 = vector.shape_cast %174 : vector<1x32x8xbf16> to vector<32x8xbf16>
    %cst_111 = arith.constant dense<0.000000e+00> : vector<128x8xf32>
    %176 = tpu.matmul %30, %175, %cst_111 {dimension_numbers = #tpu.dot_dimension_numbers<[1], [0], [0], [1], [0, 0, 1, 1], [], []>} : vector<128x32xbf16>, vector<32x8xbf16>, vector<128x8xf32> -> vector<128x8xf32>
    %c3_112 = arith.constant 3 : index
    %c0_113 = arith.constant 0 : index
    %c0_114 = arith.constant 0 : index
    %177 = vector.load %arg8[%c3_112, %c0_113, %c0_114] : memref<8x1x8xf32, #tpu.memory_space<vmem>>, vector<1x1x8xf32>
    %178 = vector.shape_cast %177 : vector<1x1x8xf32> to vector<1x8xf32>
    %179 = vector.broadcast %178 : vector<1x8xf32> to vector<128x8xf32>
    %180 = arith.addf %176, %179 : vector<128x8xf32>
    %c3_115 = arith.constant 3 : index
    %c0_116 = arith.constant 0 : index
    %c0_117 = arith.constant 0 : index
    %181 = vector.load %arg9[%c3_115, %c0_116, %c0_117] : memref<8x32x8xbf16, #tpu.memory_space<vmem>>, vector<1x32x8xbf16>
    %182 = vector.shape_cast %181 : vector<1x32x8xbf16> to vector<32x8xbf16>
    %cst_118 = arith.constant dense<0.000000e+00> : vector<128x8xf32>
    %183 = tpu.matmul %30, %182, %cst_118 {dimension_numbers = #tpu.dot_dimension_numbers<[1], [0], [0], [1], [0, 0, 1, 1], [], []>} : vector<128x32xbf16>, vector<32x8xbf16>, vector<128x8xf32> -> vector<128x8xf32>
    %c3_119 = arith.constant 3 : index
    %c0_120 = arith.constant 0 : index
    %c0_121 = arith.constant 0 : index
    %184 = vector.load %arg10[%c3_119, %c0_120, %c0_121] : memref<8x1x8xf32, #tpu.memory_space<vmem>>, vector<1x1x8xf32>
    %185 = vector.shape_cast %184 : vector<1x1x8xf32> to vector<1x8xf32>
    %186 = vector.broadcast %185 : vector<1x8xf32> to vector<128x8xf32>
    %187 = arith.addf %183, %186 : vector<128x8xf32>
    %188 = arith.truncf %173 : vector<128x8xf32> to vector<128x8xbf16>
    %189 = arith.truncf %180 : vector<128x8xf32> to vector<128x8xbf16>
    %cst_122 = arith.constant dense<0.000000e+00> : vector<128x128xf32>
    %190 = tpu.matmul %188, %189, %cst_122 {dimension_numbers = #tpu.dot_dimension_numbers<[1], [1], [0], [0], [0, 0, 1, 0], [], []>} : vector<128x8xbf16>, vector<128x8xbf16>, vector<128x128xf32> -> vector<128x128xf32>
    %cst_123 = arith.constant 0.353553385 : f32
    %191 = vector.broadcast %cst_123 : f32 to vector<128x128xf32>
    %192 = arith.mulf %190, %191 : vector<128x128xf32>
    %193 = arith.addf %192, %29 : vector<128x128xf32>
    %cst_124 = arith.constant dense<0xFF800000> : vector<128xf32>
    %194 = vector.multi_reduction <maximumf>, %193, %cst_124 [1] : vector<128x128xf32> to vector<128xf32>
    %195 = vector.shape_cast %194 : vector<128xf32> to vector<128x1xf32>
    %196 = vector.broadcast %195 : vector<128x1xf32> to vector<128x128xf32>
    %197 = arith.subf %193, %196 : vector<128x128xf32>
    %198 = math.exp %197 : vector<128x128xf32>
    %cst_125 = arith.constant dense<0.000000e+00> : vector<128xf32>
    %199 = vector.multi_reduction <add>, %198, %cst_125 [1] : vector<128x128xf32> to vector<128xf32>
    %200 = vector.shape_cast %199 : vector<128xf32> to vector<128x1xf32>
    %201 = tpu.reciprocal %200 {approx = true} : vector<128x1xf32> -> vector<128x1xf32>
    %202 = vector.broadcast %201 : vector<128x1xf32> to vector<128x128xf32>
    %203 = arith.mulf %198, %202 : vector<128x128xf32>
    %204 = arith.truncf %203 : vector<128x128xf32> to vector<128x128xbf16>
    %205 = arith.truncf %187 : vector<128x8xf32> to vector<128x8xbf16>
    %cst_126 = arith.constant dense<0.000000e+00> : vector<128x8xf32>
    %206 = tpu.matmul %204, %205, %cst_126 {dimension_numbers = #tpu.dot_dimension_numbers<[1], [0], [0], [1], [0, 0, 1, 1], [], []>} : vector<128x128xbf16>, vector<128x8xbf16>, vector<128x8xf32> -> vector<128x8xf32>
    %207 = arith.truncf %206 : vector<128x8xf32> to vector<128x8xbf16>
    %c3_127 = arith.constant 3 : index
    %c0_128 = arith.constant 0 : index
    %c0_129 = arith.constant 0 : index
    %208 = vector.load %arg11[%c3_127, %c0_128, %c0_129] : memref<8x8x32xbf16, #tpu.memory_space<vmem>>, vector<1x8x32xbf16>
    %209 = vector.shape_cast %208 : vector<1x8x32xbf16> to vector<8x32xbf16>
    %cst_130 = arith.constant dense<0.000000e+00> : vector<128x32xf32>
    %210 = tpu.matmul %207, %209, %cst_130 {dimension_numbers = #tpu.dot_dimension_numbers<[1], [0], [0], [1], [0, 0, 1, 1], [], []>} : vector<128x8xbf16>, vector<8x32xbf16>, vector<128x32xf32> -> vector<128x32xf32>
    %211 = arith.addf %166, %210 : vector<128x32xf32>
    %c0_131 = arith.constant 0 : index
    %c0_132 = arith.constant 0 : index
    %c0_133 = arith.constant 0 : index
    %212 = vector.load %arg12[%c0_131, %c0_132, %c0_133] : memref<2x1x32xf32, #tpu.memory_space<vmem>>, vector<1x1x32xf32>
    %213 = vector.shape_cast %212 : vector<1x1x32xf32> to vector<1x32xf32>
    %214 = vector.broadcast %213 : vector<1x32xf32> to vector<128x32xf32>
    %215 = arith.addf %211, %214 : vector<128x32xf32>
    %216 = arith.addf %25, %215 : vector<128x32xf32>
    %c0_134 = arith.constant 0 : index
    %c0_135 = arith.constant 0 : index
    %c0_136 = arith.constant 0 : index
    %217 = vector.load %arg13[%c0_134, %c0_135, %c0_136] : memref<2x1x32xf32, #tpu.memory_space<vmem>>, vector<1x1x32xf32>
    %218 = vector.shape_cast %217 : vector<1x1x32xf32> to vector<1x32xf32>
    %c0_137 = arith.constant 0 : index
    %c0_138 = arith.constant 0 : index
    %c0_139 = arith.constant 0 : index
    %219 = vector.load %arg14[%c0_137, %c0_138, %c0_139] : memref<2x1x32xf32, #tpu.memory_space<vmem>>, vector<1x1x32xf32>
    %220 = vector.shape_cast %219 : vector<1x1x32xf32> to vector<1x32xf32>
    %cst_140 = arith.constant dense<0.000000e+00> : vector<128xf32>
    %221 = vector.multi_reduction <add>, %216, %cst_140 [1] : vector<128x32xf32> to vector<128xf32>
    %222 = vector.shape_cast %221 : vector<128xf32> to vector<128x1xf32>
    %cst_141 = arith.constant 3.200000e+01 : f32
    %223 = vector.broadcast %cst_141 : f32 to vector<128x1xf32>
    %224 = arith.divf %222, %223 : vector<128x1xf32>
    %225 = vector.broadcast %224 : vector<128x1xf32> to vector<128x32xf32>
    %226 = arith.subf %216, %225 : vector<128x32xf32>
    %227 = arith.mulf %226, %226 : vector<128x32xf32>
    %cst_142 = arith.constant dense<0.000000e+00> : vector<128xf32>
    %228 = vector.multi_reduction <add>, %227, %cst_142 [1] : vector<128x32xf32> to vector<128xf32>
    %229 = vector.shape_cast %228 : vector<128xf32> to vector<128x1xf32>
    %cst_143 = arith.constant 3.200000e+01 : f32
    %230 = vector.broadcast %cst_143 : f32 to vector<128x1xf32>
    %231 = arith.divf %229, %230 : vector<128x1xf32>
    %232 = vector.broadcast %224 : vector<128x1xf32> to vector<128x32xf32>
    %233 = arith.subf %216, %232 : vector<128x32xf32>
    %cst_144 = arith.constant 9.99999996E-13 : f32
    %234 = vector.broadcast %cst_144 : f32 to vector<128x1xf32>
    %235 = arith.addf %231, %234 : vector<128x1xf32>
    %236 = math.rsqrt %235 : vector<128x1xf32>
    %237 = vector.broadcast %236 : vector<128x1xf32> to vector<128x32xf32>
    %238 = arith.mulf %233, %237 : vector<128x32xf32>
    %239 = vector.broadcast %218 : vector<1x32xf32> to vector<128x32xf32>
    %240 = arith.mulf %238, %239 : vector<128x32xf32>
    %241 = vector.broadcast %220 : vector<1x32xf32> to vector<128x32xf32>
    %242 = arith.addf %240, %241 : vector<128x32xf32>
    %243 = arith.truncf %242 : vector<128x32xf32> to vector<128x32xbf16>
    %c0_145 = arith.constant 0 : index
    %c0_146 = arith.constant 0 : index
    %c0_147 = arith.constant 0 : index
    %244 = vector.load %arg15[%c0_145, %c0_146, %c0_147] : memref<2x32x64xbf16, #tpu.memory_space<vmem>>, vector<1x32x64xbf16>
    %245 = vector.shape_cast %244 : vector<1x32x64xbf16> to vector<32x64xbf16>
    %cst_148 = arith.constant dense<0.000000e+00> : vector<128x64xf32>
    %246 = tpu.matmul %243, %245, %cst_148 {dimension_numbers = #tpu.dot_dimension_numbers<[1], [0], [0], [1], [0, 0, 1, 1], [], []>} : vector<128x32xbf16>, vector<32x64xbf16>, vector<128x64xf32> -> vector<128x64xf32>
    %c0_149 = arith.constant 0 : index
    %c0_150 = arith.constant 0 : index
    %c0_151 = arith.constant 0 : index
    %247 = vector.load %arg16[%c0_149, %c0_150, %c0_151] : memref<2x1x64xf32, #tpu.memory_space<vmem>>, vector<1x1x64xf32>
    %248 = vector.shape_cast %247 : vector<1x1x64xf32> to vector<1x64xf32>
    %249 = vector.broadcast %248 : vector<1x64xf32> to vector<128x64xf32>
    %250 = arith.addf %246, %249 : vector<128x64xf32>
    %cst_152 = arith.constant 5.000000e-01 : f32
    %251 = vector.broadcast %cst_152 : f32 to vector<128x64xf32>
    %252 = arith.mulf %251, %250 : vector<128x64xf32>
    %cst_153 = arith.constant 4.471500e-02 : f32
    %253 = vector.broadcast %cst_153 : f32 to vector<128x64xf32>
    %254 = arith.mulf %253, %250 : vector<128x64xf32>
    %255 = arith.mulf %254, %250 : vector<128x64xf32>
    %256 = arith.mulf %255, %250 : vector<128x64xf32>
    %257 = arith.addf %250, %256 : vector<128x64xf32>
    %cst_154 = arith.constant 0.797884583 : f32
    %258 = vector.broadcast %cst_154 : f32 to vector<128x64xf32>
    %259 = arith.mulf %258, %257 : vector<128x64xf32>
    %260 = math.tanh %259 : vector<128x64xf32>
    %cst_155 = arith.constant 1.000000e+00 : f32
    %261 = vector.broadcast %cst_155 : f32 to vector<128x64xf32>
    %262 = arith.addf %261, %260 : vector<128x64xf32>
    %263 = arith.mulf %252, %262 : vector<128x64xf32>
    %264 = arith.truncf %263 : vector<128x64xf32> to vector<128x64xbf16>
    %c0_156 = arith.constant 0 : index
    %c0_157 = arith.constant 0 : index
    %c0_158 = arith.constant 0 : index
    %265 = vector.load %arg17[%c0_156, %c0_157, %c0_158] : memref<2x64x32xbf16, #tpu.memory_space<vmem>>, vector<1x64x32xbf16>
    %266 = vector.shape_cast %265 : vector<1x64x32xbf16> to vector<64x32xbf16>
    %cst_159 = arith.constant dense<0.000000e+00> : vector<128x32xf32>
    %267 = tpu.matmul %264, %266, %cst_159 {dimension_numbers = #tpu.dot_dimension_numbers<[1], [0], [0], [1], [0, 0, 1, 1], [], []>} : vector<128x64xbf16>, vector<64x32xbf16>, vector<128x32xf32> -> vector<128x32xf32>
    %c0_160 = arith.constant 0 : index
    %c0_161 = arith.constant 0 : index
    %c0_162 = arith.constant 0 : index
    %268 = vector.load %arg18[%c0_160, %c0_161, %c0_162] : memref<2x1x32xf32, #tpu.memory_space<vmem>>, vector<1x1x32xf32>
    %269 = vector.shape_cast %268 : vector<1x1x32xf32> to vector<1x32xf32>
    %270 = vector.broadcast %269 : vector<1x32xf32> to vector<128x32xf32>
    %271 = arith.addf %267, %270 : vector<128x32xf32>
    %272 = arith.addf %242, %271 : vector<128x32xf32>
    %c0_163 = arith.constant 0 : index
    %c0_164 = arith.constant 0 : index
    %c0_165 = arith.constant 0 : index
    %273 = vector.load %arg19[%c0_163, %c0_164, %c0_165] : memref<2x1x32xf32, #tpu.memory_space<vmem>>, vector<1x1x32xf32>
    %274 = vector.shape_cast %273 : vector<1x1x32xf32> to vector<1x32xf32>
    %c0_166 = arith.constant 0 : index
    %c0_167 = arith.constant 0 : index
    %c0_168 = arith.constant 0 : index
    %275 = vector.load %arg20[%c0_166, %c0_167, %c0_168] : memref<2x1x32xf32, #tpu.memory_space<vmem>>, vector<1x1x32xf32>
    %276 = vector.shape_cast %275 : vector<1x1x32xf32> to vector<1x32xf32>
    %cst_169 = arith.constant dense<0.000000e+00> : vector<128xf32>
    %277 = vector.multi_reduction <add>, %272, %cst_169 [1] : vector<128x32xf32> to vector<128xf32>
    %278 = vector.shape_cast %277 : vector<128xf32> to vector<128x1xf32>
    %cst_170 = arith.constant 3.200000e+01 : f32
    %279 = vector.broadcast %cst_170 : f32 to vector<128x1xf32>
    %280 = arith.divf %278, %279 : vector<128x1xf32>
    %281 = vector.broadcast %280 : vector<128x1xf32> to vector<128x32xf32>
    %282 = arith.subf %272, %281 : vector<128x32xf32>
    %283 = arith.mulf %282, %282 : vector<128x32xf32>
    %cst_171 = arith.constant dense<0.000000e+00> : vector<128xf32>
    %284 = vector.multi_reduction <add>, %283, %cst_171 [1] : vector<128x32xf32> to vector<128xf32>
    %285 = vector.shape_cast %284 : vector<128xf32> to vector<128x1xf32>
    %cst_172 = arith.constant 3.200000e+01 : f32
    %286 = vector.broadcast %cst_172 : f32 to vector<128x1xf32>
    %287 = arith.divf %285, %286 : vector<128x1xf32>
    %288 = vector.broadcast %280 : vector<128x1xf32> to vector<128x32xf32>
    %289 = arith.subf %272, %288 : vector<128x32xf32>
    %cst_173 = arith.constant 9.99999996E-13 : f32
    %290 = vector.broadcast %cst_173 : f32 to vector<128x1xf32>
    %291 = arith.addf %287, %290 : vector<128x1xf32>
    %292 = math.rsqrt %291 : vector<128x1xf32>
    %293 = vector.broadcast %292 : vector<128x1xf32> to vector<128x32xf32>
    %294 = arith.mulf %289, %293 : vector<128x32xf32>
    %295 = vector.broadcast %274 : vector<1x32xf32> to vector<128x32xf32>
    %296 = arith.mulf %294, %295 : vector<128x32xf32>
    %297 = vector.broadcast %276 : vector<1x32xf32> to vector<128x32xf32>
    %298 = arith.addf %296, %297 : vector<128x32xf32>
    %299 = arith.truncf %298 : vector<128x32xf32> to vector<128x32xbf16>
    %cst_174 = arith.constant 0.000000e+00 : f32
    %300 = vector.broadcast %cst_174 : f32 to vector<128x32xf32>
    %c4 = arith.constant 4 : index
    %c0_175 = arith.constant 0 : index
    %c0_176 = arith.constant 0 : index
    %301 = vector.load %arg5[%c4, %c0_175, %c0_176] : memref<8x32x8xbf16, #tpu.memory_space<vmem>>, vector<1x32x8xbf16>
    %302 = vector.shape_cast %301 : vector<1x32x8xbf16> to vector<32x8xbf16>
    %cst_177 = arith.constant dense<0.000000e+00> : vector<128x8xf32>
    %303 = tpu.matmul %299, %302, %cst_177 {dimension_numbers = #tpu.dot_dimension_numbers<[1], [0], [0], [1], [0, 0, 1, 1], [], []>} : vector<128x32xbf16>, vector<32x8xbf16>, vector<128x8xf32> -> vector<128x8xf32>
    %c4_178 = arith.constant 4 : index
    %c0_179 = arith.constant 0 : index
    %c0_180 = arith.constant 0 : index
    %304 = vector.load %arg6[%c4_178, %c0_179, %c0_180] : memref<8x1x8xf32, #tpu.memory_space<vmem>>, vector<1x1x8xf32>
    %305 = vector.shape_cast %304 : vector<1x1x8xf32> to vector<1x8xf32>
    %306 = vector.broadcast %305 : vector<1x8xf32> to vector<128x8xf32>
    %307 = arith.addf %303, %306 : vector<128x8xf32>
    %c4_181 = arith.constant 4 : index
    %c0_182 = arith.constant 0 : index
    %c0_183 = arith.constant 0 : index
    %308 = vector.load %arg7[%c4_181, %c0_182, %c0_183] : memref<8x32x8xbf16, #tpu.memory_space<vmem>>, vector<1x32x8xbf16>
    %309 = vector.shape_cast %308 : vector<1x32x8xbf16> to vector<32x8xbf16>
    %cst_184 = arith.constant dense<0.000000e+00> : vector<128x8xf32>
    %310 = tpu.matmul %299, %309, %cst_184 {dimension_numbers = #tpu.dot_dimension_numbers<[1], [0], [0], [1], [0, 0, 1, 1], [], []>} : vector<128x32xbf16>, vector<32x8xbf16>, vector<128x8xf32> -> vector<128x8xf32>
    %c4_185 = arith.constant 4 : index
    %c0_186 = arith.constant 0 : index
    %c0_187 = arith.constant 0 : index
    %311 = vector.load %arg8[%c4_185, %c0_186, %c0_187] : memref<8x1x8xf32, #tpu.memory_space<vmem>>, vector<1x1x8xf32>
    %312 = vector.shape_cast %311 : vector<1x1x8xf32> to vector<1x8xf32>
    %313 = vector.broadcast %312 : vector<1x8xf32> to vector<128x8xf32>
    %314 = arith.addf %310, %313 : vector<128x8xf32>
    %c4_188 = arith.constant 4 : index
    %c0_189 = arith.constant 0 : index
    %c0_190 = arith.constant 0 : index
    %315 = vector.load %arg9[%c4_188, %c0_189, %c0_190] : memref<8x32x8xbf16, #tpu.memory_space<vmem>>, vector<1x32x8xbf16>
    %316 = vector.shape_cast %315 : vector<1x32x8xbf16> to vector<32x8xbf16>
    %cst_191 = arith.constant dense<0.000000e+00> : vector<128x8xf32>
    %317 = tpu.matmul %299, %316, %cst_191 {dimension_numbers = #tpu.dot_dimension_numbers<[1], [0], [0], [1], [0, 0, 1, 1], [], []>} : vector<128x32xbf16>, vector<32x8xbf16>, vector<128x8xf32> -> vector<128x8xf32>
    %c4_192 = arith.constant 4 : index
    %c0_193 = arith.constant 0 : index
    %c0_194 = arith.constant 0 : index
    %318 = vector.load %arg10[%c4_192, %c0_193, %c0_194] : memref<8x1x8xf32, #tpu.memory_space<vmem>>, vector<1x1x8xf32>
    %319 = vector.shape_cast %318 : vector<1x1x8xf32> to vector<1x8xf32>
    %320 = vector.broadcast %319 : vector<1x8xf32> to vector<128x8xf32>
    %321 = arith.addf %317, %320 : vector<128x8xf32>
    %322 = arith.truncf %307 : vector<128x8xf32> to vector<128x8xbf16>
    %323 = arith.truncf %314 : vector<128x8xf32> to vector<128x8xbf16>
    %cst_195 = arith.constant dense<0.000000e+00> : vector<128x128xf32>
    %324 = tpu.matmul %322, %323, %cst_195 {dimension_numbers = #tpu.dot_dimension_numbers<[1], [1], [0], [0], [0, 0, 1, 0], [], []>} : vector<128x8xbf16>, vector<128x8xbf16>, vector<128x128xf32> -> vector<128x128xf32>
    %cst_196 = arith.constant 0.353553385 : f32
    %325 = vector.broadcast %cst_196 : f32 to vector<128x128xf32>
    %326 = arith.mulf %324, %325 : vector<128x128xf32>
    %327 = arith.addf %326, %29 : vector<128x128xf32>
    %cst_197 = arith.constant dense<0xFF800000> : vector<128xf32>
    %328 = vector.multi_reduction <maximumf>, %327, %cst_197 [1] : vector<128x128xf32> to vector<128xf32>
    %329 = vector.shape_cast %328 : vector<128xf32> to vector<128x1xf32>
    %330 = vector.broadcast %329 : vector<128x1xf32> to vector<128x128xf32>
    %331 = arith.subf %327, %330 : vector<128x128xf32>
    %332 = math.exp %331 : vector<128x128xf32>
    %cst_198 = arith.constant dense<0.000000e+00> : vector<128xf32>
    %333 = vector.multi_reduction <add>, %332, %cst_198 [1] : vector<128x128xf32> to vector<128xf32>
    %334 = vector.shape_cast %333 : vector<128xf32> to vector<128x1xf32>
    %335 = tpu.reciprocal %334 {approx = true} : vector<128x1xf32> -> vector<128x1xf32>
    %336 = vector.broadcast %335 : vector<128x1xf32> to vector<128x128xf32>
    %337 = arith.mulf %332, %336 : vector<128x128xf32>
    %338 = arith.truncf %337 : vector<128x128xf32> to vector<128x128xbf16>
    %339 = arith.truncf %321 : vector<128x8xf32> to vector<128x8xbf16>
    %cst_199 = arith.constant dense<0.000000e+00> : vector<128x8xf32>
    %340 = tpu.matmul %338, %339, %cst_199 {dimension_numbers = #tpu.dot_dimension_numbers<[1], [0], [0], [1], [0, 0, 1, 1], [], []>} : vector<128x128xbf16>, vector<128x8xbf16>, vector<128x8xf32> -> vector<128x8xf32>
    %341 = arith.truncf %340 : vector<128x8xf32> to vector<128x8xbf16>
    %c4_200 = arith.constant 4 : index
    %c0_201 = arith.constant 0 : index
    %c0_202 = arith.constant 0 : index
    %342 = vector.load %arg11[%c4_200, %c0_201, %c0_202] : memref<8x8x32xbf16, #tpu.memory_space<vmem>>, vector<1x8x32xbf16>
    %343 = vector.shape_cast %342 : vector<1x8x32xbf16> to vector<8x32xbf16>
    %cst_203 = arith.constant dense<0.000000e+00> : vector<128x32xf32>
    %344 = tpu.matmul %341, %343, %cst_203 {dimension_numbers = #tpu.dot_dimension_numbers<[1], [0], [0], [1], [0, 0, 1, 1], [], []>} : vector<128x8xbf16>, vector<8x32xbf16>, vector<128x32xf32> -> vector<128x32xf32>
    %345 = arith.addf %300, %344 : vector<128x32xf32>
    %c5 = arith.constant 5 : index
    %c0_204 = arith.constant 0 : index
    %c0_205 = arith.constant 0 : index
    %346 = vector.load %arg5[%c5, %c0_204, %c0_205] : memref<8x32x8xbf16, #tpu.memory_space<vmem>>, vector<1x32x8xbf16>
    %347 = vector.shape_cast %346 : vector<1x32x8xbf16> to vector<32x8xbf16>
    %cst_206 = arith.constant dense<0.000000e+00> : vector<128x8xf32>
    %348 = tpu.matmul %299, %347, %cst_206 {dimension_numbers = #tpu.dot_dimension_numbers<[1], [0], [0], [1], [0, 0, 1, 1], [], []>} : vector<128x32xbf16>, vector<32x8xbf16>, vector<128x8xf32> -> vector<128x8xf32>
    %c5_207 = arith.constant 5 : index
    %c0_208 = arith.constant 0 : index
    %c0_209 = arith.constant 0 : index
    %349 = vector.load %arg6[%c5_207, %c0_208, %c0_209] : memref<8x1x8xf32, #tpu.memory_space<vmem>>, vector<1x1x8xf32>
    %350 = vector.shape_cast %349 : vector<1x1x8xf32> to vector<1x8xf32>
    %351 = vector.broadcast %350 : vector<1x8xf32> to vector<128x8xf32>
    %352 = arith.addf %348, %351 : vector<128x8xf32>
    %c5_210 = arith.constant 5 : index
    %c0_211 = arith.constant 0 : index
    %c0_212 = arith.constant 0 : index
    %353 = vector.load %arg7[%c5_210, %c0_211, %c0_212] : memref<8x32x8xbf16, #tpu.memory_space<vmem>>, vector<1x32x8xbf16>
    %354 = vector.shape_cast %353 : vector<1x32x8xbf16> to vector<32x8xbf16>
    %cst_213 = arith.constant dense<0.000000e+00> : vector<128x8xf32>
    %355 = tpu.matmul %299, %354, %cst_213 {dimension_numbers = #tpu.dot_dimension_numbers<[1], [0], [0], [1], [0, 0, 1, 1], [], []>} : vector<128x32xbf16>, vector<32x8xbf16>, vector<128x8xf32> -> vector<128x8xf32>
    %c5_214 = arith.constant 5 : index
    %c0_215 = arith.constant 0 : index
    %c0_216 = arith.constant 0 : index
    %356 = vector.load %arg8[%c5_214, %c0_215, %c0_216] : memref<8x1x8xf32, #tpu.memory_space<vmem>>, vector<1x1x8xf32>
    %357 = vector.shape_cast %356 : vector<1x1x8xf32> to vector<1x8xf32>
    %358 = vector.broadcast %357 : vector<1x8xf32> to vector<128x8xf32>
    %359 = arith.addf %355, %358 : vector<128x8xf32>
    %c5_217 = arith.constant 5 : index
    %c0_218 = arith.constant 0 : index
    %c0_219 = arith.constant 0 : index
    %360 = vector.load %arg9[%c5_217, %c0_218, %c0_219] : memref<8x32x8xbf16, #tpu.memory_space<vmem>>, vector<1x32x8xbf16>
    %361 = vector.shape_cast %360 : vector<1x32x8xbf16> to vector<32x8xbf16>
    %cst_220 = arith.constant dense<0.000000e+00> : vector<128x8xf32>
    %362 = tpu.matmul %299, %361, %cst_220 {dimension_numbers = #tpu.dot_dimension_numbers<[1], [0], [0], [1], [0, 0, 1, 1], [], []>} : vector<128x32xbf16>, vector<32x8xbf16>, vector<128x8xf32> -> vector<128x8xf32>
    %c5_221 = arith.constant 5 : index
    %c0_222 = arith.constant 0 : index
    %c0_223 = arith.constant 0 : index
    %363 = vector.load %arg10[%c5_221, %c0_222, %c0_223] : memref<8x1x8xf32, #tpu.memory_space<vmem>>, vector<1x1x8xf32>
    %364 = vector.shape_cast %363 : vector<1x1x8xf32> to vector<1x8xf32>
    %365 = vector.broadcast %364 : vector<1x8xf32> to vector<128x8xf32>
    %366 = arith.addf %362, %365 : vector<128x8xf32>
    %367 = arith.truncf %352 : vector<128x8xf32> to vector<128x8xbf16>
    %368 = arith.truncf %359 : vector<128x8xf32> to vector<128x8xbf16>
    %cst_224 = arith.constant dense<0.000000e+00> : vector<128x128xf32>
    %369 = tpu.matmul %367, %368, %cst_224 {dimension_numbers = #tpu.dot_dimension_numbers<[1], [1], [0], [0], [0, 0, 1, 0], [], []>} : vector<128x8xbf16>, vector<128x8xbf16>, vector<128x128xf32> -> vector<128x128xf32>
    %cst_225 = arith.constant 0.353553385 : f32
    %370 = vector.broadcast %cst_225 : f32 to vector<128x128xf32>
    %371 = arith.mulf %369, %370 : vector<128x128xf32>
    %372 = arith.addf %371, %29 : vector<128x128xf32>
    %cst_226 = arith.constant dense<0xFF800000> : vector<128xf32>
    %373 = vector.multi_reduction <maximumf>, %372, %cst_226 [1] : vector<128x128xf32> to vector<128xf32>
    %374 = vector.shape_cast %373 : vector<128xf32> to vector<128x1xf32>
    %375 = vector.broadcast %374 : vector<128x1xf32> to vector<128x128xf32>
    %376 = arith.subf %372, %375 : vector<128x128xf32>
    %377 = math.exp %376 : vector<128x128xf32>
    %cst_227 = arith.constant dense<0.000000e+00> : vector<128xf32>
    %378 = vector.multi_reduction <add>, %377, %cst_227 [1] : vector<128x128xf32> to vector<128xf32>
    %379 = vector.shape_cast %378 : vector<128xf32> to vector<128x1xf32>
    %380 = tpu.reciprocal %379 {approx = true} : vector<128x1xf32> -> vector<128x1xf32>
    %381 = vector.broadcast %380 : vector<128x1xf32> to vector<128x128xf32>
    %382 = arith.mulf %377, %381 : vector<128x128xf32>
    %383 = arith.truncf %382 : vector<128x128xf32> to vector<128x128xbf16>
    %384 = arith.truncf %366 : vector<128x8xf32> to vector<128x8xbf16>
    %cst_228 = arith.constant dense<0.000000e+00> : vector<128x8xf32>
    %385 = tpu.matmul %383, %384, %cst_228 {dimension_numbers = #tpu.dot_dimension_numbers<[1], [0], [0], [1], [0, 0, 1, 1], [], []>} : vector<128x128xbf16>, vector<128x8xbf16>, vector<128x8xf32> -> vector<128x8xf32>
    %386 = arith.truncf %385 : vector<128x8xf32> to vector<128x8xbf16>
    %c5_229 = arith.constant 5 : index
    %c0_230 = arith.constant 0 : index
    %c0_231 = arith.constant 0 : index
    %387 = vector.load %arg11[%c5_229, %c0_230, %c0_231] : memref<8x8x32xbf16, #tpu.memory_space<vmem>>, vector<1x8x32xbf16>
    %388 = vector.shape_cast %387 : vector<1x8x32xbf16> to vector<8x32xbf16>
    %cst_232 = arith.constant dense<0.000000e+00> : vector<128x32xf32>
    %389 = tpu.matmul %386, %388, %cst_232 {dimension_numbers = #tpu.dot_dimension_numbers<[1], [0], [0], [1], [0, 0, 1, 1], [], []>} : vector<128x8xbf16>, vector<8x32xbf16>, vector<128x32xf32> -> vector<128x32xf32>
    %390 = arith.addf %345, %389 : vector<128x32xf32>
    %c6 = arith.constant 6 : index
    %c0_233 = arith.constant 0 : index
    %c0_234 = arith.constant 0 : index
    %391 = vector.load %arg5[%c6, %c0_233, %c0_234] : memref<8x32x8xbf16, #tpu.memory_space<vmem>>, vector<1x32x8xbf16>
    %392 = vector.shape_cast %391 : vector<1x32x8xbf16> to vector<32x8xbf16>
    %cst_235 = arith.constant dense<0.000000e+00> : vector<128x8xf32>
    %393 = tpu.matmul %299, %392, %cst_235 {dimension_numbers = #tpu.dot_dimension_numbers<[1], [0], [0], [1], [0, 0, 1, 1], [], []>} : vector<128x32xbf16>, vector<32x8xbf16>, vector<128x8xf32> -> vector<128x8xf32>
    %c6_236 = arith.constant 6 : index
    %c0_237 = arith.constant 0 : index
    %c0_238 = arith.constant 0 : index
    %394 = vector.load %arg6[%c6_236, %c0_237, %c0_238] : memref<8x1x8xf32, #tpu.memory_space<vmem>>, vector<1x1x8xf32>
    %395 = vector.shape_cast %394 : vector<1x1x8xf32> to vector<1x8xf32>
    %396 = vector.broadcast %395 : vector<1x8xf32> to vector<128x8xf32>
    %397 = arith.addf %393, %396 : vector<128x8xf32>
    %c6_239 = arith.constant 6 : index
    %c0_240 = arith.constant 0 : index
    %c0_241 = arith.constant 0 : index
    %398 = vector.load %arg7[%c6_239, %c0_240, %c0_241] : memref<8x32x8xbf16, #tpu.memory_space<vmem>>, vector<1x32x8xbf16>
    %399 = vector.shape_cast %398 : vector<1x32x8xbf16> to vector<32x8xbf16>
    %cst_242 = arith.constant dense<0.000000e+00> : vector<128x8xf32>
    %400 = tpu.matmul %299, %399, %cst_242 {dimension_numbers = #tpu.dot_dimension_numbers<[1], [0], [0], [1], [0, 0, 1, 1], [], []>} : vector<128x32xbf16>, vector<32x8xbf16>, vector<128x8xf32> -> vector<128x8xf32>
    %c6_243 = arith.constant 6 : index
    %c0_244 = arith.constant 0 : index
    %c0_245 = arith.constant 0 : index
    %401 = vector.load %arg8[%c6_243, %c0_244, %c0_245] : memref<8x1x8xf32, #tpu.memory_space<vmem>>, vector<1x1x8xf32>
    %402 = vector.shape_cast %401 : vector<1x1x8xf32> to vector<1x8xf32>
    %403 = vector.broadcast %402 : vector<1x8xf32> to vector<128x8xf32>
    %404 = arith.addf %400, %403 : vector<128x8xf32>
    %c6_246 = arith.constant 6 : index
    %c0_247 = arith.constant 0 : index
    %c0_248 = arith.constant 0 : index
    %405 = vector.load %arg9[%c6_246, %c0_247, %c0_248] : memref<8x32x8xbf16, #tpu.memory_space<vmem>>, vector<1x32x8xbf16>
    %406 = vector.shape_cast %405 : vector<1x32x8xbf16> to vector<32x8xbf16>
    %cst_249 = arith.constant dense<0.000000e+00> : vector<128x8xf32>
    %407 = tpu.matmul %299, %406, %cst_249 {dimension_numbers = #tpu.dot_dimension_numbers<[1], [0], [0], [1], [0, 0, 1, 1], [], []>} : vector<128x32xbf16>, vector<32x8xbf16>, vector<128x8xf32> -> vector<128x8xf32>
    %c6_250 = arith.constant 6 : index
    %c0_251 = arith.constant 0 : index
    %c0_252 = arith.constant 0 : index
    %408 = vector.load %arg10[%c6_250, %c0_251, %c0_252] : memref<8x1x8xf32, #tpu.memory_space<vmem>>, vector<1x1x8xf32>
    %409 = vector.shape_cast %408 : vector<1x1x8xf32> to vector<1x8xf32>
    %410 = vector.broadcast %409 : vector<1x8xf32> to vector<128x8xf32>
    %411 = arith.addf %407, %410 : vector<128x8xf32>
    %412 = arith.truncf %397 : vector<128x8xf32> to vector<128x8xbf16>
    %413 = arith.truncf %404 : vector<128x8xf32> to vector<128x8xbf16>
    %cst_253 = arith.constant dense<0.000000e+00> : vector<128x128xf32>
    %414 = tpu.matmul %412, %413, %cst_253 {dimension_numbers = #tpu.dot_dimension_numbers<[1], [1], [0], [0], [0, 0, 1, 0], [], []>} : vector<128x8xbf16>, vector<128x8xbf16>, vector<128x128xf32> -> vector<128x128xf32>
    %cst_254 = arith.constant 0.353553385 : f32
    %415 = vector.broadcast %cst_254 : f32 to vector<128x128xf32>
    %416 = arith.mulf %414, %415 : vector<128x128xf32>
    %417 = arith.addf %416, %29 : vector<128x128xf32>
    %cst_255 = arith.constant dense<0xFF800000> : vector<128xf32>
    %418 = vector.multi_reduction <maximumf>, %417, %cst_255 [1] : vector<128x128xf32> to vector<128xf32>
    %419 = vector.shape_cast %418 : vector<128xf32> to vector<128x1xf32>
    %420 = vector.broadcast %419 : vector<128x1xf32> to vector<128x128xf32>
    %421 = arith.subf %417, %420 : vector<128x128xf32>
    %422 = math.exp %421 : vector<128x128xf32>
    %cst_256 = arith.constant dense<0.000000e+00> : vector<128xf32>
    %423 = vector.multi_reduction <add>, %422, %cst_256 [1] : vector<128x128xf32> to vector<128xf32>
    %424 = vector.shape_cast %423 : vector<128xf32> to vector<128x1xf32>
    %425 = tpu.reciprocal %424 {approx = true} : vector<128x1xf32> -> vector<128x1xf32>
    %426 = vector.broadcast %425 : vector<128x1xf32> to vector<128x128xf32>
    %427 = arith.mulf %422, %426 : vector<128x128xf32>
    %428 = arith.truncf %427 : vector<128x128xf32> to vector<128x128xbf16>
    %429 = arith.truncf %411 : vector<128x8xf32> to vector<128x8xbf16>
    %cst_257 = arith.constant dense<0.000000e+00> : vector<128x8xf32>
    %430 = tpu.matmul %428, %429, %cst_257 {dimension_numbers = #tpu.dot_dimension_numbers<[1], [0], [0], [1], [0, 0, 1, 1], [], []>} : vector<128x128xbf16>, vector<128x8xbf16>, vector<128x8xf32> -> vector<128x8xf32>
    %431 = arith.truncf %430 : vector<128x8xf32> to vector<128x8xbf16>
    %c6_258 = arith.constant 6 : index
    %c0_259 = arith.constant 0 : index
    %c0_260 = arith.constant 0 : index
    %432 = vector.load %arg11[%c6_258, %c0_259, %c0_260] : memref<8x8x32xbf16, #tpu.memory_space<vmem>>, vector<1x8x32xbf16>
    %433 = vector.shape_cast %432 : vector<1x8x32xbf16> to vector<8x32xbf16>
    %cst_261 = arith.constant dense<0.000000e+00> : vector<128x32xf32>
    %434 = tpu.matmul %431, %433, %cst_261 {dimension_numbers = #tpu.dot_dimension_numbers<[1], [0], [0], [1], [0, 0, 1, 1], [], []>} : vector<128x8xbf16>, vector<8x32xbf16>, vector<128x32xf32> -> vector<128x32xf32>
    %435 = arith.addf %390, %434 : vector<128x32xf32>
    %c7 = arith.constant 7 : index
    %c0_262 = arith.constant 0 : index
    %c0_263 = arith.constant 0 : index
    %436 = vector.load %arg5[%c7, %c0_262, %c0_263] : memref<8x32x8xbf16, #tpu.memory_space<vmem>>, vector<1x32x8xbf16>
    %437 = vector.shape_cast %436 : vector<1x32x8xbf16> to vector<32x8xbf16>
    %cst_264 = arith.constant dense<0.000000e+00> : vector<128x8xf32>
    %438 = tpu.matmul %299, %437, %cst_264 {dimension_numbers = #tpu.dot_dimension_numbers<[1], [0], [0], [1], [0, 0, 1, 1], [], []>} : vector<128x32xbf16>, vector<32x8xbf16>, vector<128x8xf32> -> vector<128x8xf32>
    %c7_265 = arith.constant 7 : index
    %c0_266 = arith.constant 0 : index
    %c0_267 = arith.constant 0 : index
    %439 = vector.load %arg6[%c7_265, %c0_266, %c0_267] : memref<8x1x8xf32, #tpu.memory_space<vmem>>, vector<1x1x8xf32>
    %440 = vector.shape_cast %439 : vector<1x1x8xf32> to vector<1x8xf32>
    %441 = vector.broadcast %440 : vector<1x8xf32> to vector<128x8xf32>
    %442 = arith.addf %438, %441 : vector<128x8xf32>
    %c7_268 = arith.constant 7 : index
    %c0_269 = arith.constant 0 : index
    %c0_270 = arith.constant 0 : index
    %443 = vector.load %arg7[%c7_268, %c0_269, %c0_270] : memref<8x32x8xbf16, #tpu.memory_space<vmem>>, vector<1x32x8xbf16>
    %444 = vector.shape_cast %443 : vector<1x32x8xbf16> to vector<32x8xbf16>
    %cst_271 = arith.constant dense<0.000000e+00> : vector<128x8xf32>
    %445 = tpu.matmul %299, %444, %cst_271 {dimension_numbers = #tpu.dot_dimension_numbers<[1], [0], [0], [1], [0, 0, 1, 1], [], []>} : vector<128x32xbf16>, vector<32x8xbf16>, vector<128x8xf32> -> vector<128x8xf32>
    %c7_272 = arith.constant 7 : index
    %c0_273 = arith.constant 0 : index
    %c0_274 = arith.constant 0 : index
    %446 = vector.load %arg8[%c7_272, %c0_273, %c0_274] : memref<8x1x8xf32, #tpu.memory_space<vmem>>, vector<1x1x8xf32>
    %447 = vector.shape_cast %446 : vector<1x1x8xf32> to vector<1x8xf32>
    %448 = vector.broadcast %447 : vector<1x8xf32> to vector<128x8xf32>
    %449 = arith.addf %445, %448 : vector<128x8xf32>
    %c7_275 = arith.constant 7 : index
    %c0_276 = arith.constant 0 : index
    %c0_277 = arith.constant 0 : index
    %450 = vector.load %arg9[%c7_275, %c0_276, %c0_277] : memref<8x32x8xbf16, #tpu.memory_space<vmem>>, vector<1x32x8xbf16>
    %451 = vector.shape_cast %450 : vector<1x32x8xbf16> to vector<32x8xbf16>
    %cst_278 = arith.constant dense<0.000000e+00> : vector<128x8xf32>
    %452 = tpu.matmul %299, %451, %cst_278 {dimension_numbers = #tpu.dot_dimension_numbers<[1], [0], [0], [1], [0, 0, 1, 1], [], []>} : vector<128x32xbf16>, vector<32x8xbf16>, vector<128x8xf32> -> vector<128x8xf32>
    %c7_279 = arith.constant 7 : index
    %c0_280 = arith.constant 0 : index
    %c0_281 = arith.constant 0 : index
    %453 = vector.load %arg10[%c7_279, %c0_280, %c0_281] : memref<8x1x8xf32, #tpu.memory_space<vmem>>, vector<1x1x8xf32>
    %454 = vector.shape_cast %453 : vector<1x1x8xf32> to vector<1x8xf32>
    %455 = vector.broadcast %454 : vector<1x8xf32> to vector<128x8xf32>
    %456 = arith.addf %452, %455 : vector<128x8xf32>
    %457 = arith.truncf %442 : vector<128x8xf32> to vector<128x8xbf16>
    %458 = arith.truncf %449 : vector<128x8xf32> to vector<128x8xbf16>
    %cst_282 = arith.constant dense<0.000000e+00> : vector<128x128xf32>
    %459 = tpu.matmul %457, %458, %cst_282 {dimension_numbers = #tpu.dot_dimension_numbers<[1], [1], [0], [0], [0, 0, 1, 0], [], []>} : vector<128x8xbf16>, vector<128x8xbf16>, vector<128x128xf32> -> vector<128x128xf32>
    %cst_283 = arith.constant 0.353553385 : f32
    %460 = vector.broadcast %cst_283 : f32 to vector<128x128xf32>
    %461 = arith.mulf %459, %460 : vector<128x128xf32>
    %462 = arith.addf %461, %29 : vector<128x128xf32>
    %cst_284 = arith.constant dense<0xFF800000> : vector<128xf32>
    %463 = vector.multi_reduction <maximumf>, %462, %cst_284 [1] : vector<128x128xf32> to vector<128xf32>
    %464 = vector.shape_cast %463 : vector<128xf32> to vector<128x1xf32>
    %465 = vector.broadcast %464 : vector<128x1xf32> to vector<128x128xf32>
    %466 = arith.subf %462, %465 : vector<128x128xf32>
    %467 = math.exp %466 : vector<128x128xf32>
    %cst_285 = arith.constant dense<0.000000e+00> : vector<128xf32>
    %468 = vector.multi_reduction <add>, %467, %cst_285 [1] : vector<128x128xf32> to vector<128xf32>
    %469 = vector.shape_cast %468 : vector<128xf32> to vector<128x1xf32>
    %470 = tpu.reciprocal %469 {approx = true} : vector<128x1xf32> -> vector<128x1xf32>
    %471 = vector.broadcast %470 : vector<128x1xf32> to vector<128x128xf32>
    %472 = arith.mulf %467, %471 : vector<128x128xf32>
    %473 = arith.truncf %472 : vector<128x128xf32> to vector<128x128xbf16>
    %474 = arith.truncf %456 : vector<128x8xf32> to vector<128x8xbf16>
    %cst_286 = arith.constant dense<0.000000e+00> : vector<128x8xf32>
    %475 = tpu.matmul %473, %474, %cst_286 {dimension_numbers = #tpu.dot_dimension_numbers<[1], [0], [0], [1], [0, 0, 1, 1], [], []>} : vector<128x128xbf16>, vector<128x8xbf16>, vector<128x8xf32> -> vector<128x8xf32>
    %476 = arith.truncf %475 : vector<128x8xf32> to vector<128x8xbf16>
    %c7_287 = arith.constant 7 : index
    %c0_288 = arith.constant 0 : index
    %c0_289 = arith.constant 0 : index
    %477 = vector.load %arg11[%c7_287, %c0_288, %c0_289] : memref<8x8x32xbf16, #tpu.memory_space<vmem>>, vector<1x8x32xbf16>
    %478 = vector.shape_cast %477 : vector<1x8x32xbf16> to vector<8x32xbf16>
    %cst_290 = arith.constant dense<0.000000e+00> : vector<128x32xf32>
    %479 = tpu.matmul %476, %478, %cst_290 {dimension_numbers = #tpu.dot_dimension_numbers<[1], [0], [0], [1], [0, 0, 1, 1], [], []>} : vector<128x8xbf16>, vector<8x32xbf16>, vector<128x32xf32> -> vector<128x32xf32>
    %480 = arith.addf %435, %479 : vector<128x32xf32>
    %c1_291 = arith.constant 1 : index
    %c0_292 = arith.constant 0 : index
    %c0_293 = arith.constant 0 : index
    %481 = vector.load %arg12[%c1_291, %c0_292, %c0_293] : memref<2x1x32xf32, #tpu.memory_space<vmem>>, vector<1x1x32xf32>
    %482 = vector.shape_cast %481 : vector<1x1x32xf32> to vector<1x32xf32>
    %483 = vector.broadcast %482 : vector<1x32xf32> to vector<128x32xf32>
    %484 = arith.addf %480, %483 : vector<128x32xf32>
    %485 = arith.addf %298, %484 : vector<128x32xf32>
    %c1_294 = arith.constant 1 : index
    %c0_295 = arith.constant 0 : index
    %c0_296 = arith.constant 0 : index
    %486 = vector.load %arg13[%c1_294, %c0_295, %c0_296] : memref<2x1x32xf32, #tpu.memory_space<vmem>>, vector<1x1x32xf32>
    %487 = vector.shape_cast %486 : vector<1x1x32xf32> to vector<1x32xf32>
    %c1_297 = arith.constant 1 : index
    %c0_298 = arith.constant 0 : index
    %c0_299 = arith.constant 0 : index
    %488 = vector.load %arg14[%c1_297, %c0_298, %c0_299] : memref<2x1x32xf32, #tpu.memory_space<vmem>>, vector<1x1x32xf32>
    %489 = vector.shape_cast %488 : vector<1x1x32xf32> to vector<1x32xf32>
    %cst_300 = arith.constant dense<0.000000e+00> : vector<128xf32>
    %490 = vector.multi_reduction <add>, %485, %cst_300 [1] : vector<128x32xf32> to vector<128xf32>
    %491 = vector.shape_cast %490 : vector<128xf32> to vector<128x1xf32>
    %cst_301 = arith.constant 3.200000e+01 : f32
    %492 = vector.broadcast %cst_301 : f32 to vector<128x1xf32>
    %493 = arith.divf %491, %492 : vector<128x1xf32>
    %494 = vector.broadcast %493 : vector<128x1xf32> to vector<128x32xf32>
    %495 = arith.subf %485, %494 : vector<128x32xf32>
    %496 = arith.mulf %495, %495 : vector<128x32xf32>
    %cst_302 = arith.constant dense<0.000000e+00> : vector<128xf32>
    %497 = vector.multi_reduction <add>, %496, %cst_302 [1] : vector<128x32xf32> to vector<128xf32>
    %498 = vector.shape_cast %497 : vector<128xf32> to vector<128x1xf32>
    %cst_303 = arith.constant 3.200000e+01 : f32
    %499 = vector.broadcast %cst_303 : f32 to vector<128x1xf32>
    %500 = arith.divf %498, %499 : vector<128x1xf32>
    %501 = vector.broadcast %493 : vector<128x1xf32> to vector<128x32xf32>
    %502 = arith.subf %485, %501 : vector<128x32xf32>
    %cst_304 = arith.constant 9.99999996E-13 : f32
    %503 = vector.broadcast %cst_304 : f32 to vector<128x1xf32>
    %504 = arith.addf %500, %503 : vector<128x1xf32>
    %505 = math.rsqrt %504 : vector<128x1xf32>
    %506 = vector.broadcast %505 : vector<128x1xf32> to vector<128x32xf32>
    %507 = arith.mulf %502, %506 : vector<128x32xf32>
    %508 = vector.broadcast %487 : vector<1x32xf32> to vector<128x32xf32>
    %509 = arith.mulf %507, %508 : vector<128x32xf32>
    %510 = vector.broadcast %489 : vector<1x32xf32> to vector<128x32xf32>
    %511 = arith.addf %509, %510 : vector<128x32xf32>
    %512 = arith.truncf %511 : vector<128x32xf32> to vector<128x32xbf16>
    %c1_305 = arith.constant 1 : index
    %c0_306 = arith.constant 0 : index
    %c0_307 = arith.constant 0 : index
    %513 = vector.load %arg15[%c1_305, %c0_306, %c0_307] : memref<2x32x64xbf16, #tpu.memory_space<vmem>>, vector<1x32x64xbf16>
    %514 = vector.shape_cast %513 : vector<1x32x64xbf16> to vector<32x64xbf16>
    %cst_308 = arith.constant dense<0.000000e+00> : vector<128x64xf32>
    %515 = tpu.matmul %512, %514, %cst_308 {dimension_numbers = #tpu.dot_dimension_numbers<[1], [0], [0], [1], [0, 0, 1, 1], [], []>} : vector<128x32xbf16>, vector<32x64xbf16>, vector<128x64xf32> -> vector<128x64xf32>
    %c1_309 = arith.constant 1 : index
    %c0_310 = arith.constant 0 : index
    %c0_311 = arith.constant 0 : index
    %516 = vector.load %arg16[%c1_309, %c0_310, %c0_311] : memref<2x1x64xf32, #tpu.memory_space<vmem>>, vector<1x1x64xf32>
    %517 = vector.shape_cast %516 : vector<1x1x64xf32> to vector<1x64xf32>
    %518 = vector.broadcast %517 : vector<1x64xf32> to vector<128x64xf32>
    %519 = arith.addf %515, %518 : vector<128x64xf32>
    %cst_312 = arith.constant 5.000000e-01 : f32
    %520 = vector.broadcast %cst_312 : f32 to vector<128x64xf32>
    %521 = arith.mulf %520, %519 : vector<128x64xf32>
    %cst_313 = arith.constant 4.471500e-02 : f32
    %522 = vector.broadcast %cst_313 : f32 to vector<128x64xf32>
    %523 = arith.mulf %522, %519 : vector<128x64xf32>
    %524 = arith.mulf %523, %519 : vector<128x64xf32>
    %525 = arith.mulf %524, %519 : vector<128x64xf32>
    %526 = arith.addf %519, %525 : vector<128x64xf32>
    %cst_314 = arith.constant 0.797884583 : f32
    %527 = vector.broadcast %cst_314 : f32 to vector<128x64xf32>
    %528 = arith.mulf %527, %526 : vector<128x64xf32>
    %529 = math.tanh %528 : vector<128x64xf32>
    %cst_315 = arith.constant 1.000000e+00 : f32
    %530 = vector.broadcast %cst_315 : f32 to vector<128x64xf32>
    %531 = arith.addf %530, %529 : vector<128x64xf32>
    %532 = arith.mulf %521, %531 : vector<128x64xf32>
    %533 = arith.truncf %532 : vector<128x64xf32> to vector<128x64xbf16>
    %c1_316 = arith.constant 1 : index
    %c0_317 = arith.constant 0 : index
    %c0_318 = arith.constant 0 : index
    %534 = vector.load %arg17[%c1_316, %c0_317, %c0_318] : memref<2x64x32xbf16, #tpu.memory_space<vmem>>, vector<1x64x32xbf16>
    %535 = vector.shape_cast %534 : vector<1x64x32xbf16> to vector<64x32xbf16>
    %cst_319 = arith.constant dense<0.000000e+00> : vector<128x32xf32>
    %536 = tpu.matmul %533, %535, %cst_319 {dimension_numbers = #tpu.dot_dimension_numbers<[1], [0], [0], [1], [0, 0, 1, 1], [], []>} : vector<128x64xbf16>, vector<64x32xbf16>, vector<128x32xf32> -> vector<128x32xf32>
    %c1_320 = arith.constant 1 : index
    %c0_321 = arith.constant 0 : index
    %c0_322 = arith.constant 0 : index
    %537 = vector.load %arg18[%c1_320, %c0_321, %c0_322] : memref<2x1x32xf32, #tpu.memory_space<vmem>>, vector<1x1x32xf32>
    %538 = vector.shape_cast %537 : vector<1x1x32xf32> to vector<1x32xf32>
    %539 = vector.broadcast %538 : vector<1x32xf32> to vector<128x32xf32>
    %540 = arith.addf %536, %539 : vector<128x32xf32>
    %541 = arith.addf %511, %540 : vector<128x32xf32>
    %c1_323 = arith.constant 1 : index
    %c0_324 = arith.constant 0 : index
    %c0_325 = arith.constant 0 : index
    %542 = vector.load %arg19[%c1_323, %c0_324, %c0_325] : memref<2x1x32xf32, #tpu.memory_space<vmem>>, vector<1x1x32xf32>
    %543 = vector.shape_cast %542 : vector<1x1x32xf32> to vector<1x32xf32>
    %c1_326 = arith.constant 1 : index
    %c0_327 = arith.constant 0 : index
    %c0_328 = arith.constant 0 : index
    %544 = vector.load %arg20[%c1_326, %c0_327, %c0_328] : memref<2x1x32xf32, #tpu.memory_space<vmem>>, vector<1x1x32xf32>
    %545 = vector.shape_cast %544 : vector<1x1x32xf32> to vector<1x32xf32>
    %cst_329 = arith.constant dense<0.000000e+00> : vector<128xf32>
    %546 = vector.multi_reduction <add>, %541, %cst_329 [1] : vector<128x32xf32> to vector<128xf32>
    %547 = vector.shape_cast %546 : vector<128xf32> to vector<128x1xf32>
    %cst_330 = arith.constant 3.200000e+01 : f32
    %548 = vector.broadcast %cst_330 : f32 to vector<128x1xf32>
    %549 = arith.divf %547, %548 : vector<128x1xf32>
    %550 = vector.broadcast %549 : vector<128x1xf32> to vector<128x32xf32>
    %551 = arith.subf %541, %550 : vector<128x32xf32>
    %552 = arith.mulf %551, %551 : vector<128x32xf32>
    %cst_331 = arith.constant dense<0.000000e+00> : vector<128xf32>
    %553 = vector.multi_reduction <add>, %552, %cst_331 [1] : vector<128x32xf32> to vector<128xf32>
    %554 = vector.shape_cast %553 : vector<128xf32> to vector<128x1xf32>
    %cst_332 = arith.constant 3.200000e+01 : f32
    %555 = vector.broadcast %cst_332 : f32 to vector<128x1xf32>
    %556 = arith.divf %554, %555 : vector<128x1xf32>
    %557 = vector.broadcast %549 : vector<128x1xf32> to vector<128x32xf32>
    %558 = arith.subf %541, %557 : vector<128x32xf32>
    %cst_333 = arith.constant 9.99999996E-13 : f32
    %559 = vector.broadcast %cst_333 : f32 to vector<128x1xf32>
    %560 = arith.addf %556, %559 : vector<128x1xf32>
    %561 = math.rsqrt %560 : vector<128x1xf32>
    %562 = vector.broadcast %561 : vector<128x1xf32> to vector<128x32xf32>
    %563 = arith.mulf %558, %562 : vector<128x32xf32>
    %564 = vector.broadcast %543 : vector<1x32xf32> to vector<128x32xf32>
    %565 = arith.mulf %563, %564 : vector<128x32xf32>
    %566 = vector.broadcast %545 : vector<1x32xf32> to vector<128x32xf32>
    %567 = arith.addf %565, %566 : vector<128x32xf32>
    %c0_334 = arith.constant 0 : index
    %c0_335 = arith.constant 0 : index
    %c0_336 = arith.constant 0 : index
    %568 = vector.load %arg21[%c0_334, %c0_335, %c0_336] : memref<1x128x32xf32, #tpu.memory_space<vmem>>, vector<1x128x32xf32>
    %569 = vector.shape_cast %568 : vector<1x128x32xf32> to vector<128x32xf32>
    %570 = vector.shape_cast %567 : vector<128x32xf32> to vector<1x128x32xf32>
    tpu.vector_store %arg21[%c0_334, %c0_335, %c0_336], %570 {strides = array<i32>} : memref<1x128x32xf32, #tpu.memory_space<vmem>>, vector<1x128x32xf32>,
    return
  }
  func.func @transform_0(%arg0: i32) -> (i32, i32, i32) {
    %c0_i32 = arith.constant 0 : i32
    %c0_i32_0 = arith.constant 0 : i32
    %c0_i32_1 = arith.constant 0 : i32
    return %arg0, %c0_i32, %c0_i32_0 : i32, i32, i32
  }
  func.func @transform_1(%arg0: i32) -> (i32, i32, i32) {
    %c0_i32 = arith.constant 0 : i32
    %c0_i32_0 = arith.constant 0 : i32
    %c0_i32_1 = arith.constant 0 : i32
    return %arg0, %c0_i32, %c0_i32_0 : i32, i32, i32
  }
  func.func @transform_2(%arg0: i32) -> (i32, i32) {
    %c0_i32 = arith.constant 0 : i32
    %c0_i32_0 = arith.constant 0 : i32
    %c0_i32_1 = arith.constant 0 : i32
    return %c0_i32, %c0_i32_0 : i32, i32
  }
  func.func @transform_3(%arg0: i32) -> (i32, i32) {
    %c0_i32 = arith.constant 0 : i32
    %c0_i32_0 = arith.constant 0 : i32
    %c0_i32_1 = arith.constant 0 : i32
    return %c0_i32, %c0_i32_0 : i32, i32
  }
  func.func @transform_4(%arg0: i32) -> (i32, i32, i32) {
    %c0_i32 = arith.constant 0 : i32
    %c0_i32_0 = arith.constant 0 : i32
    %c0_i32_1 = arith.constant 0 : i32
    %c0_i32_2 = arith.constant 0 : i32
    return %c0_i32, %c0_i32_0, %c0_i32_1 : i32, i32, i32
  }
  func.func @transform_5(%arg0: i32) -> (i32, i32, i32) {
    %c0_i32 = arith.constant 0 : i32
    %c0_i32_0 = arith.constant 0 : i32
    %c0_i32_1 = arith.constant 0 : i32
    %c0_i32_2 = arith.constant 0 : i32
    return %c0_i32, %c0_i32_0, %c0_i32_1 : i32, i32, i32
  }
  func.func @transform_6(%arg0: i32) -> (i32, i32, i32) {
    %c0_i32 = arith.constant 0 : i32
    %c0_i32_0 = arith.constant 0 : i32
    %c0_i32_1 = arith.constant 0 : i32
    %c0_i32_2 = arith.constant 0 : i32
    return %c0_i32, %c0_i32_0, %c0_i32_1 : i32, i32, i32
  }
  func.func @transform_7(%arg0: i32) -> (i32, i32, i32) {
    %c0_i32 = arith.constant 0 : i32
    %c0_i32_0 = arith.constant 0 : i32
    %c0_i32_1 = arith.constant 0 : i32
    %c0_i32_2 = arith.constant 0 : i32
    return %c0_i32, %c0_i32_0, %c0_i32_1 : i32, i32, i32
  }
  func.func @transform_8(%arg0: i32) -> (i32, i32, i32) {
    %c0_i32 = arith.constant 0 : i32
    %c0_i32_0 = arith.constant 0 : i32
    %c0_i32_1 = arith.constant 0 : i32
    %c0_i32_2 = arith.constant 0 : i32
    return %c0_i32, %c0_i32_0, %c0_i32_1 : i32, i32, i32
  }
  func.func @transform_9(%arg0: i32) -> (i32, i32, i32) {
    %c0_i32 = arith.constant 0 : i32
    %c0_i32_0 = arith.constant 0 : i32
    %c0_i32_1 = arith.constant 0 : i32
    %c0_i32_2 = arith.constant 0 : i32
    return %c0_i32, %c0_i32_0, %c0_i32_1 : i32, i32, i32
  }
  func.func @transform_10(%arg0: i32) -> (i32, i32, i32) {
    %c0_i32 = arith.constant 0 : i32
    %c0_i32_0 = arith.constant 0 : i32
    %c0_i32_1 = arith.constant 0 : i32
    %c0_i32_2 = arith.constant 0 : i32
    return %c0_i32, %c0_i32_0, %c0_i32_1 : i32, i32, i32
  }
  func.func @transform_11(%arg0: i32) -> (i32, i32, i32) {
    %c0_i32 = arith.constant 0 : i32
    %c0_i32_0 = arith.constant 0 : i32
    %c0_i32_1 = arith.constant 0 : i32
    %c0_i32_2 = arith.constant 0 : i32
    return %c0_i32, %c0_i32_0, %c0_i32_1 : i32, i32, i32
  }
  func.func @transform_12(%arg0: i32) -> (i32, i32, i32) {
    %c0_i32 = arith.constant 0 : i32
    %c0_i32_0 = arith.constant 0 : i32
    %c0_i32_1 = arith.constant 0 : i32
    %c0_i32_2 = arith.constant 0 : i32
    return %c0_i32, %c0_i32_0, %c0_i32_1 : i32, i32, i32
  }
  func.func @transform_13(%arg0: i32) -> (i32, i32, i32) {
    %c0_i32 = arith.constant 0 : i32
    %c0_i32_0 = arith.constant 0 : i32
    %c0_i32_1 = arith.constant 0 : i32
    %c0_i32_2 = arith.constant 0 : i32
    return %c0_i32, %c0_i32_0, %c0_i32_1 : i32, i32, i32
  }
  func.func @transform_14(%arg0: i32) -> (i32, i32, i32) {
    %c0_i32 = arith.constant 0 : i32
    %c0_i32_0 = arith.constant 0 : i32
    %c0_i32_1 = arith.constant 0 : i32
    %c0_i32_2 = arith.constant 0 : i32
    return %c0_i32, %c0_i32_0, %c0_i32_1 : i32, i32, i32
  }
  func.func @transform_15(%arg0: i32) -> (i32, i32, i32) {
    %c0_i32 = arith.constant 0 : i32
    %c0_i32_0 = arith.constant 0 : i32
    %c0_i32_1 = arith.constant 0 : i32
    %c0_i32_2 = arith.constant 0 : i32
    return %c0_i32, %c0_i32_0, %c0_i32_1 : i32, i32, i32
  }
  func.func @transform_16(%arg0: i32) -> (i32, i32, i32) {
    %c0_i32 = arith.constant 0 : i32
    %c0_i32_0 = arith.constant 0 : i32
    %c0_i32_1 = arith.constant 0 : i32
    %c0_i32_2 = arith.constant 0 : i32
    return %c0_i32, %c0_i32_0, %c0_i32_1 : i32, i32, i32
  }
  func.func @transform_17(%arg0: i32) -> (i32, i32, i32) {
    %c0_i32 = arith.constant 0 : i32
    %c0_i32_0 = arith.constant 0 : i32
    %c0_i32_1 = arith.constant 0 : i32
    %c0_i32_2 = arith.constant 0 : i32
    return %c0_i32, %c0_i32_0, %c0_i32_1 : i32, i32, i32
  }
  func.func @transform_18(%arg0: i32) -> (i32, i32, i32) {
    %c0_i32 = arith.constant 0 : i32
    %c0_i32_0 = arith.constant 0 : i32
    %c0_i32_1 = arith.constant 0 : i32
    %c0_i32_2 = arith.constant 0 : i32
    return %c0_i32, %c0_i32_0, %c0_i32_1 : i32, i32, i32
  }
  func.func @transform_19(%arg0: i32) -> (i32, i32, i32) {
    %c0_i32 = arith.constant 0 : i32
    %c0_i32_0 = arith.constant 0 : i32
    %c0_i32_1 = arith.constant 0 : i32
    %c0_i32_2 = arith.constant 0 : i32
    return %c0_i32, %c0_i32_0, %c0_i32_1 : i32, i32, i32
  }
  func.func @transform_20(%arg0: i32) -> (i32, i32, i32) {
    %c0_i32 = arith.constant 0 : i32
    %c0_i32_0 = arith.constant 0 : i32
    %c0_i32_1 = arith.constant 0 : i32
    return %arg0, %c0_i32, %c0_i32_0 : i32, i32, i32
  }
}

</mosaic_0001>

<llo_original>
// kernel: bert_forward.1
$region0: #{bert_forward.1}
  #allocation0 [shape = 'u32[]', space=smem, size = 0x4, offset = 0x4, fixed_abs, tag = 'smem constant byte address 0x4 - core index']
  #allocation1 [shape = 'u32[144,128]{1,0:T(1,128)}', space=vmem, size = 0x12000, scoped, tag = 'internal scratch']
  %s0 = inlined_call_operand.vmem [shape: f32[2,128,32], index: 0, kind: input, shape index: {}]
  %s1 = inlined_call_operand.vmem [shape: f32[2,1,128], index: 1, kind: input, shape index: {}]
  %s2 = inlined_call_operand.vmem [shape: f32[1,32], index: 2, kind: input, shape index: {}]
  %s3 = inlined_call_operand.vmem [shape: f32[1,32], index: 3, kind: input, shape index: {}]
  %s4 = inlined_call_operand.vmem [shape: bf16[8,32,8], index: 4, kind: input, shape index: {}]
  %s5 = inlined_call_operand.vmem [shape: f32[8,1,8], index: 5, kind: input, shape index: {}]
  %s6 = inlined_call_operand.vmem [shape: bf16[8,32,8], index: 6, kind: input, shape index: {}]
  %s7 = inlined_call_operand.vmem [shape: f32[8,1,8], index: 7, kind: input, shape index: {}]
  %s8 = inlined_call_operand.vmem [shape: bf16[8,32,8], index: 8, kind: input, shape index: {}]
  %s9 = inlined_call_operand.vmem [shape: f32[8,1,8], index: 9, kind: input, shape index: {}]
  %s10 = inlined_call_operand.vmem [shape: bf16[8,8,32], index: 10, kind: input, shape index: {}]
  %s11 = inlined_call_operand.vmem [shape: f32[2,1,32], index: 11, kind: input, shape index: {}]
  %s12 = inlined_call_operand.vmem [shape: f32[2,1,32], index: 12, kind: input, shape index: {}]
  %s13 = inlined_call_operand.vmem [shape: f32[2,1,32], index: 13, kind: input, shape index: {}]
  %s14 = inlined_call_operand.vmem [shape: bf16[2,32,64], index: 14, kind: input, shape index: {}]
  %s15 = inlined_call_operand.vmem [shape: f32[2,1,64], index: 15, kind: input, shape index: {}]
  %s16 = inlined_call_operand.vmem [shape: bf16[2,64,32], index: 16, kind: input, shape index: {}]
  %s17 = inlined_call_operand.vmem [shape: f32[2,1,32], index: 17, kind: input, shape index: {}]
  %s18 = inlined_call_operand.vmem [shape: f32[2,1,32], index: 18, kind: input, shape index: {}]
  %s19 = inlined_call_operand.vmem [shape: f32[2,1,32], index: 19, kind: input, shape index: {}]
  %s20 = inlined_call_operand.vmem [shape: f32[2,128,32], index: 20, kind: output, shape index: {}]
  %s21 = sld [smem:[#allocation0]]
  $region113: #{bert_forward.1} parent=0
    _
  %s23 = ssub.s32 1, %s21
  %s24 = scalar_select 0, %s23, %s21
  loop: start=0, step=1, limit=4
  $region2: #{bert_forward.1} parent=0 // loop_pre_header
    _
  $region3: #{bert_forward.1} parent=0 // loop_header
    %s26 = sphi 0, %s30
    %p27 = scmp.ge.s32.totalorder %s26, 4
    %s36 = sphi 0, %s38
    %s39 = sphi 0, %s36
    %s40 = sphi 0, %s39
    %s56 = sphi 0, %s40
    %s62 = sphi 0, %s64
    %s65 = sphi 0, %s62
    %s66 = sphi 0, %s65
    %s82 = sphi 0, %s66
    %s86 = sphi 0, %s86
    %s88 = sphi 0, %s86
    %s89 = sphi 0, %s88
    %s103 = sphi 0, %s89
    %s107 = sphi 0, %s107
    %s109 = sphi 0, %s107
    %s110 = sphi 0, %s109
    %s124 = sphi 0, %s110
    %s128 = sphi 0, %s128
    %s130 = sphi 0, %s128
    %s131 = sphi 0, %s130
    %s145 = sphi 0, %s131
    %s149 = sphi 0, %s149
    %s151 = sphi 0, %s149
    %s152 = sphi 0, %s151
    %s166 = sphi 0, %s152
    %s170 = sphi 0, %s170
    %s172 = sphi 0, %s170
    %s173 = sphi 0, %s172
    %s187 = sphi 0, %s173
    %s191 = sphi 0, %s191
    %s193 = sphi 0, %s191
    %s194 = sphi 0, %s193
    %s208 = sphi 0, %s194
    %s212 = sphi 0, %s212
    %s214 = sphi 0, %s212
    %s215 = sphi 0, %s214
    %s229 = sphi 0, %s215
    %s233 = sphi 0, %s233
    %s235 = sphi 0, %s233
    %s236 = sphi 0, %s235
    %s250 = sphi 0, %s236
    %s254 = sphi 0, %s254
    %s256 = sphi 0, %s254
    %s257 = sphi 0, %s256
    %s271 = sphi 0, %s257
    %s275 = sphi 0, %s275
    %s277 = sphi 0, %s275
    %s278 = sphi 0, %s277
    %s292 = sphi 0, %s278
    %s296 = sphi 0, %s296
    %s298 = sphi 0, %s296
    %s299 = sphi 0, %s298
    %s313 = sphi 0, %s299
    %s317 = sphi 0, %s317
    %s319 = sphi 0, %s317
    %s320 = sphi 0, %s319
    %s334 = sphi 0, %s320
    %s338 = sphi 0, %s338
    %s340 = sphi 0, %s338
    %s341 = sphi 0, %s340
    %s355 = sphi 0, %s341
    %s359 = sphi 0, %s359
    %s361 = sphi 0, %s359
    %s362 = sphi 0, %s361
    %s376 = sphi 0, %s362
    %s380 = sphi 0, %s380
    %s382 = sphi 0, %s380
    %s383 = sphi 0, %s382
    %s397 = sphi 0, %s383
    %s401 = sphi 0, %s401
    %s403 = sphi 0, %s401
    %s404 = sphi 0, %s403
    %s418 = sphi 0, %s404
    %s422 = sphi 0, %s422
    %s424 = sphi 0, %s422
    %s425 = sphi 0, %s424
    %s439 = sphi 0, %s425
    %s443 = sphi 0, %s443
    %s445 = sphi 0, %s443
    %s446 = sphi 0, %s445
    %s460 = sphi 0, %s446
    %s466 = sphi 0, %s468
    %s469 = sphi 0, %s466
    %s470 = sphi 0, %s469
    %s486 = sphi 0, %s470
  $region4: #{bert_forward.1} parent=0 // loop_header_branch
    %29 = sbr.rel (%p27) target = $region8
  $region5: #{bert_forward.1} parent=0 // loop_body
    %s31 = ssub.s32 %s26, 1
    %s32 = ssub.s32 %s26, 2
    %s33 = sadd.s32 %s26, 1
    %s34 = ssub.s32 %s26, %s33
    %p35 = scmp.eq.s32.totalorder %s34, 0
    %s37 = sadd.s32 %s36, 1
    %s38 = scalar_select %p35, %s36, %s37
    %p41 = pneg %p35
    %p42 = scmp.eq.s32.totalorder %s26, 1
    %p43 = por %p41, %p42
    %p44 = scmp.ne.s32.totalorder %s36, %s39
    %p45 = scmp.eq.s32.totalorder %s26, 0
    %p46 = por %p44, %p45
    %p47 = scmp.ne.s32.totalorder %s36, %s39
    %p48 = scmp.eq.s32.totalorder %s31, 1
    %p49 = por %p47, %p48
    %p50 = scmp.ne.s32.totalorder %s39, %s40
    %p51 = scmp.eq.s32.totalorder %s31, 0
    %p52 = por %p50, %p51
    %p53 = scmp.ne.s32.totalorder %s39, %s40
    %p54 = scmp.eq.s32.totalorder %s32, 1
    %p55 = por %p53, %p54
    %p57 = scmp.ne.s32.totalorder %s40, %s56
    %p58 = scmp.eq.s32.totalorder %s32, 0
    %p59 = por %p57, %p58
    %s60 = ssub.s32 %s26, %s33
    %p61 = scmp.eq.s32.totalorder %s60, 0
    %s63 = sadd.s32 %s62, 1
    %s64 = scalar_select %p61, %s62, %s63
    %p67 = pneg %p61
    %p68 = scmp.eq.s32.totalorder %s26, 1
    %p69 = por %p67, %p68
    %p70 = scmp.ne.s32.totalorder %s62, %s65
    %p71 = scmp.eq.s32.totalorder %s26, 0
    %p72 = por %p70, %p71
    %p73 = scmp.ne.s32.totalorder %s62, %s65
    %p74 = scmp.eq.s32.totalorder %s31, 1
    %p75 = por %p73, %p74
    %p76 = scmp.ne.s32.totalorder %s65, %s66
    %p77 = scmp.eq.s32.totalorder %s31, 0
    %p78 = por %p76, %p77
    %p79 = scmp.ne.s32.totalorder %s65, %s66
    %p80 = scmp.eq.s32.totalorder %s32, 1
    %p81 = por %p79, %p80
    %p83 = scmp.ne.s32.totalorder %s66, %s82
    %p84 = scmp.eq.s32.totalorder %s32, 0
    %p85 = por %p83, %p84
    %s87 = sadd.s32 %s86, 1
    %p90 = scmp.eq.s32.totalorder %s26, 1
    %p91 = scmp.ne.s32.totalorder %s86, %s88
    %p92 = scmp.eq.s32.totalorder %s26, 0
    %p93 = por %p91, %p92
    %p94 = scmp.ne.s32.totalorder %s86, %s88
    %p95 = scmp.eq.s32.totalorder %s31, 1
    %p96 = por %p94, %p95
    %p97 = scmp.ne.s32.totalorder %s88, %s89
    %p98 = scmp.eq.s32.totalorder %s31, 0
    %p99 = por %p97, %p98
    %p100 = scmp.ne.s32.totalorder %s88, %s89
    %p101 = scmp.eq.s32.totalorder %s32, 1
    %p102 = por %p100, %p101
    %p104 = scmp.ne.s32.totalorder %s89, %s103
    %p105 = scmp.eq.s32.totalorder %s32, 0
    %p106 = por %p104, %p105
    %s108 = sadd.s32 %s107, 1
    %p111 = scmp.eq.s32.totalorder %s26, 1
    %p112 = scmp.ne.s32.totalorder %s107, %s109
    %p113 = scmp.eq.s32.totalorder %s26, 0
    %p114 = por %p112, %p113
    %p115 = scmp.ne.s32.totalorder %s107, %s109
    %p116 = scmp.eq.s32.totalorder %s31, 1
    %p117 = por %p115, %p116
    %p118 = scmp.ne.s32.totalorder %s109, %s110
    %p119 = scmp.eq.s32.totalorder %s31, 0
    %p120 = por %p118, %p119
    %p121 = scmp.ne.s32.totalorder %s109, %s110
    %p122 = scmp.eq.s32.totalorder %s32, 1
    %p123 = por %p121, %p122
    %p125 = scmp.ne.s32.totalorder %s110, %s124
    %p126 = scmp.eq.s32.totalorder %s32, 0
    %p127 = por %p125, %p126
    %s129 = sadd.s32 %s128, 1
    %p132 = scmp.eq.s32.totalorder %s26, 1
    %p133 = scmp.ne.s32.totalorder %s128, %s130
    %p134 = scmp.eq.s32.totalorder %s26, 0
    %p135 = por %p133, %p134
    %p136 = scmp.ne.s32.totalorder %s128, %s130
    %p137 = scmp.eq.s32.totalorder %s31, 1
    %p138 = por %p136, %p137
    %p139 = scmp.ne.s32.totalorder %s130, %s131
    %p140 = scmp.eq.s32.totalorder %s31, 0
    %p141 = por %p139, %p140
    %p142 = scmp.ne.s32.totalorder %s130, %s131
    %p143 = scmp.eq.s32.totalorder %s32, 1
    %p144 = por %p142, %p143
    %p146 = scmp.ne.s32.totalorder %s131, %s145
    %p147 = scmp.eq.s32.totalorder %s32, 0
    %p148 = por %p146, %p147
    %s150 = sadd.s32 %s149, 1
    %p153 = scmp.eq.s32.totalorder %s26, 1
    %p154 = scmp.ne.s32.totalorder %s149, %s151
    %p155 = scmp.eq.s32.totalorder %s26, 0
    %p156 = por %p154, %p155
    %p157 = scmp.ne.s32.totalorder %s149, %s151
    %p158 = scmp.eq.s32.totalorder %s31, 1
    %p159 = por %p157, %p158
    %p160 = scmp.ne.s32.totalorder %s151, %s152
    %p161 = scmp.eq.s32.totalorder %s31, 0
    %p162 = por %p160, %p161
    %p163 = scmp.ne.s32.totalorder %s151, %s152
    %p164 = scmp.eq.s32.totalorder %s32, 1
    %p165 = por %p163, %p164
    %p167 = scmp.ne.s32.totalorder %s152, %s166
    %p168 = scmp.eq.s32.totalorder %s32, 0
    %p169 = por %p167, %p168
    %s171 = sadd.s32 %s170, 1
    %p174 = scmp.eq.s32.totalorder %s26, 1
    %p175 = scmp.ne.s32.totalorder %s170, %s172
    %p176 = scmp.eq.s32.totalorder %s26, 0
    %p177 = por %p175, %p176
    %p178 = scmp.ne.s32.totalorder %s170, %s172
    %p179 = scmp.eq.s32.totalorder %s31, 1
    %p180 = por %p178, %p179
    %p181 = scmp.ne.s32.totalorder %s172, %s173
    %p182 = scmp.eq.s32.totalorder %s31, 0
    %p183 = por %p181, %p182
    %p184 = scmp.ne.s32.totalorder %s172, %s173
    %p185 = scmp.eq.s32.totalorder %s32, 1
    %p186 = por %p184, %p185
    %p188 = scmp.ne.s32.totalorder %s173, %s187
    %p189 = scmp.eq.s32.totalorder %s32, 0
    %p190 = por %p188, %p189
    %s192 = sadd.s32 %s191, 1
    %p195 = scmp.eq.s32.totalorder %s26, 1
    %p196 = scmp.ne.s32.totalorder %s191, %s193
    %p197 = scmp.eq.s32.totalorder %s26, 0
    %p198 = por %p196, %p197
    %p199 = scmp.ne.s32.totalorder %s191, %s193
    %p200 = scmp.eq.s32.totalorder %s31, 1
    %p201 = por %p199, %p200
    %p202 = scmp.ne.s32.totalorder %s193, %s194
    %p203 = scmp.eq.s32.totalorder %s31, 0
    %p204 = por %p202, %p203
    %p205 = scmp.ne.s32.totalorder %s193, %s194
    %p206 = scmp.eq.s32.totalorder %s32, 1
    %p207 = por %p205, %p206
    %p209 = scmp.ne.s32.totalorder %s194, %s208
    %p210 = scmp.eq.s32.totalorder %s32, 0
    %p211 = por %p209, %p210
    %s213 = sadd.s32 %s212, 1
    %p216 = scmp.eq.s32.totalorder %s26, 1
    %p217 = scmp.ne.s32.totalorder %s212, %s214
    %p218 = scmp.eq.s32.totalorder %s26, 0
    %p219 = por %p217, %p218
    %p220 = scmp.ne.s32.totalorder %s212, %s214
    %p221 = scmp.eq.s32.totalorder %s31, 1
    %p222 = por %p220, %p221
    %p223 = scmp.ne.s32.totalorder %s214, %s215
    %p224 = scmp.eq.s32.totalorder %s31, 0
    %p225 = por %p223, %p224
    %p226 = scmp.ne.s32.totalorder %s214, %s215
    %p227 = scmp.eq.s32.totalorder %s32, 1
    %p228 = por %p226, %p227
    %p230 = scmp.ne.s32.totalorder %s215, %s229
    %p231 = scmp.eq.s32.totalorder %s32, 0
    %p232 = por %p230, %p231
    %s234 = sadd.s32 %s233, 1
    %p237 = scmp.eq.s32.totalorder %s26, 1
    %p238 = scmp.ne.s32.totalorder %s233, %s235
    %p239 = scmp.eq.s32.totalorder %s26, 0
    %p240 = por %p238, %p239
    %p241 = scmp.ne.s32.totalorder %s233, %s235
    %p242 = scmp.eq.s32.totalorder %s31, 1
    %p243 = por %p241, %p242
    %p244 = scmp.ne.s32.totalorder %s235, %s236
    %p245 = scmp.eq.s32.totalorder %s31, 0
    %p246 = por %p244, %p245
    %p247 = scmp.ne.s32.totalorder %s235, %s236
    %p248 = scmp.eq.s32.totalorder %s32, 1
    %p249 = por %p247, %p248
    %p251 = scmp.ne.s32.totalorder %s236, %s250
    %p252 = scmp.eq.s32.totalorder %s32, 0
    %p253 = por %p251, %p252
    %s255 = sadd.s32 %s254, 1
    %p258 = scmp.eq.s32.totalorder %s26, 1
    %p259 = scmp.ne.s32.totalorder %s254, %s256
    %p260 = scmp.eq.s32.totalorder %s26, 0
    %p261 = por %p259, %p260
    %p262 = scmp.ne.s32.totalorder %s254, %s256
    %p263 = scmp.eq.s32.totalorder %s31, 1
    %p264 = por %p262, %p263
    %p265 = scmp.ne.s32.totalorder %s256, %s257
    %p266 = scmp.eq.s32.totalorder %s31, 0
    %p267 = por %p265, %p266
    %p268 = scmp.ne.s32.totalorder %s256, %s257
    %p269 = scmp.eq.s32.totalorder %s32, 1
    %p270 = por %p268, %p269
    %p272 = scmp.ne.s32.totalorder %s257, %s271
    %p273 = scmp.eq.s32.totalorder %s32, 0
    %p274 = por %p272, %p273
    %s276 = sadd.s32 %s275, 1
    %p279 = scmp.eq.s32.totalorder %s26, 1
    %p280 = scmp.ne.s32.totalorder %s275, %s277
    %p281 = scmp.eq.s32.totalorder %s26, 0
    %p282 = por %p280, %p281
    %p283 = scmp.ne.s32.totalorder %s275, %s277
    %p284 = scmp.eq.s32.totalorder %s31, 1
    %p285 = por %p283, %p284
    %p286 = scmp.ne.s32.totalorder %s277, %s278
    %p287 = scmp.eq.s32.totalorder %s31, 0
    %p288 = por %p286, %p287
    %p289 = scmp.ne.s32.totalorder %s277, %s278
    %p290 = scmp.eq.s32.totalorder %s32, 1
    %p291 = por %p289, %p290
    %p293 = scmp.ne.s32.totalorder %s278, %s292
    %p294 = scmp.eq.s32.totalorder %s32, 0
    %p295 = por %p293, %p294
    %s297 = sadd.s32 %s296, 1
    %p300 = scmp.eq.s32.totalorder %s26, 1
    %p301 = scmp.ne.s32.totalorder %s296, %s298
    %p302 = scmp.eq.s32.totalorder %s26, 0
    %p303 = por %p301, %p302
    %p304 = scmp.ne.s32.totalorder %s296, %s298
    %p305 = scmp.eq.s32.totalorder %s31, 1
    %p306 = por %p304, %p305
    %p307 = scmp.ne.s32.totalorder %s298, %s299
    %p308 = scmp.eq.s32.totalorder %s31, 0
    %p309 = por %p307, %p308
    %p310 = scmp.ne.s32.totalorder %s298, %s299
    %p311 = scmp.eq.s32.totalorder %s32, 1
    %p312 = por %p310, %p311
    %p314 = scmp.ne.s32.totalorder %s299, %s313
    %p315 = scmp.eq.s32.totalorder %s32, 0
    %p316 = por %p314, %p315
    %s318 = sadd.s32 %s317, 1
    %p321 = scmp.eq.s32.totalorder %s26, 1
    %p322 = scmp.ne.s32.totalorder %s317, %s319
    %p323 = scmp.eq.s32.totalorder %s26, 0
    %p324 = por %p322, %p323
    %p325 = scmp.ne.s32.totalorder %s317, %s319
    %p326 = scmp.eq.s32.totalorder %s31, 1
    %p327 = por %p325, %p326
    %p328 = scmp.ne.s32.totalorder %s319, %s320
    %p329 = scmp.eq.s32.totalorder %s31, 0
    %p330 = por %p328, %p329
    %p331 = scmp.ne.s32.totalorder %s319, %s320
    %p332 = scmp.eq.s32.totalorder %s32, 1
    %p333 = por %p331, %p332
    %p335 = scmp.ne.s32.totalorder %s320, %s334
    %p336 = scmp.eq.s32.totalorder %s32, 0
    %p337 = por %p335, %p336
    %s339 = sadd.s32 %s338, 1
    %p342 = scmp.eq.s32.totalorder %s26, 1
    %p343 = scmp.ne.s32.totalorder %s338, %s340
    %p344 = scmp.eq.s32.totalorder %s26, 0
    %p345 = por %p343, %p344
    %p346 = scmp.ne.s32.totalorder %s338, %s340
    %p347 = scmp.eq.s32.totalorder %s31, 1
    %p348 = por %p346, %p347
    %p349 = scmp.ne.s32.totalorder %s340, %s341
    %p350 = scmp.eq.s32.totalorder %s31, 0
    %p351 = por %p349, %p350
    %p352 = scmp.ne.s32.totalorder %s340, %s341
    %p353 = scmp.eq.s32.totalorder %s32, 1
    %p354 = por %p352, %p353
    %p356 = scmp.ne.s32.totalorder %s341, %s355
    %p357 = scmp.eq.s32.totalorder %s32, 0
    %p358 = por %p356, %p357
    %s360 = sadd.s32 %s359, 1
    %p363 = scmp.eq.s32.totalorder %s26, 1
    %p364 = scmp.ne.s32.totalorder %s359, %s361
    %p365 = scmp.eq.s32.totalorder %s26, 0
    %p366 = por %p364, %p365
    %p367 = scmp.ne.s32.totalorder %s359, %s361
    %p368 = scmp.eq.s32.totalorder %s31, 1
    %p369 = por %p367, %p368
    %p370 = scmp.ne.s32.totalorder %s361, %s362
    %p371 = scmp.eq.s32.totalorder %s31, 0
    %p372 = por %p370, %p371
    %p373 = scmp.ne.s32.totalorder %s361, %s362
    %p374 = scmp.eq.s32.totalorder %s32, 1
    %p375 = por %p373, %p374
    %p377 = scmp.ne.s32.totalorder %s362, %s376
    %p378 = scmp.eq.s32.totalorder %s32, 0
    %p379 = por %p377, %p378
    %s381 = sadd.s32 %s380, 1
    %p384 = scmp.eq.s32.totalorder %s26, 1
    %p385 = scmp.ne.s32.totalorder %s380, %s382
    %p386 = scmp.eq.s32.totalorder %s26, 0
    %p387 = por %p385, %p386
    %p388 = scmp.ne.s32.totalorder %s380, %s382
    %p389 = scmp.eq.s32.totalorder %s31, 1
    %p390 = por %p388, %p389
    %p391 = scmp.ne.s32.totalorder %s382, %s383
    %p392 = scmp.eq.s32.totalorder %s31, 0
    %p393 = por %p391, %p392
    %p394 = scmp.ne.s32.totalorder %s382, %s383
    %p395 = scmp.eq.s32.totalorder %s32, 1
    %p396 = por %p394, %p395
    %p398 = scmp.ne.s32.totalorder %s383, %s397
    %p399 = scmp.eq.s32.totalorder %s32, 0
    %p400 = por %p398, %p399
    %s402 = sadd.s32 %s401, 1
    %p405 = scmp.eq.s32.totalorder %s26, 1
    %p406 = scmp.ne.s32.totalorder %s401, %s403
    %p407 = scmp.eq.s32.totalorder %s26, 0
    %p408 = por %p406, %p407
    %p409 = scmp.ne.s32.totalorder %s401, %s403
    %p410 = scmp.eq.s32.totalorder %s31, 1
    %p411 = por %p409, %p410
    %p412 = scmp.ne.s32.totalorder %s403, %s404
    %p413 = scmp.eq.s32.totalorder %s31, 0
    %p414 = por %p412, %p413
    %p415 = scmp.ne.s32.totalorder %s403, %s404
    %p416 = scmp.eq.s32.totalorder %s32, 1
    %p417 = por %p415, %p416
    %p419 = scmp.ne.s32.totalorder %s404, %s418
    %p420 = scmp.eq.s32.totalorder %s32, 0
    %p421 = por %p419, %p420
    %s423 = sadd.s32 %s422, 1
    %p426 = scmp.eq.s32.totalorder %s26, 1
    %p427 = scmp.ne.s32.totalorder %s422, %s424
    %p428 = scmp.eq.s32.totalorder %s26, 0
    %p429 = por %p427, %p428
    %p430 = scmp.ne.s32.totalorder %s422, %s424
    %p431 = scmp.eq.s32.totalorder %s31, 1
    %p432 = por %p430, %p431
    %p433 = scmp.ne.s32.totalorder %s424, %s425
    %p434 = scmp.eq.s32.totalorder %s31, 0
    %p435 = por %p433, %p434
    %p436 = scmp.ne.s32.totalorder %s424, %s425
    %p437 = scmp.eq.s32.totalorder %s32, 1
    %p438 = por %p436, %p437
    %p440 = scmp.ne.s32.totalorder %s425, %s439
    %p441 = scmp.eq.s32.totalorder %s32, 0
    %p442 = por %p440, %p441
    %s444 = sadd.s32 %s443, 1
    %p447 = scmp.eq.s32.totalorder %s26, 1
    %p448 = scmp.ne.s32.totalorder %s443, %s445
    %p449 = scmp.eq.s32.totalorder %s26, 0
    %p450 = por %p448, %p449
    %p451 = scmp.ne.s32.totalorder %s443, %s445
    %p452 = scmp.eq.s32.totalorder %s31, 1
    %p453 = por %p451, %p452
    %p454 = scmp.ne.s32.totalorder %s445, %s446
    %p455 = scmp.eq.s32.totalorder %s31, 0
    %p456 = por %p454, %p455
    %p457 = scmp.ne.s32.totalorder %s445, %s446
    %p458 = scmp.eq.s32.totalorder %s32, 1
    %p459 = por %p457, %p458
    %p461 = scmp.ne.s32.totalorder %s446, %s460
    %p462 = scmp.eq.s32.totalorder %s32, 0
    %p463 = por %p461, %p462
    %s464 = ssub.s32 %s26, %s33
    %p465 = scmp.eq.s32.totalorder %s464, 0
    %s467 = sadd.s32 %s466, 1
    %s468 = scalar_select %p465, %s466, %s467
    %p471 = pneg %p465
    %p472 = scmp.eq.s32.totalorder %s26, 1
    %p473 = por %p471, %p472
    %p474 = scmp.ne.s32.totalorder %s466, %s469
    %p475 = scmp.eq.s32.totalorder %s26, 0
    %p476 = por %p474, %p475
    %p477 = scmp.ne.s32.totalorder %s466, %s469
    %p478 = scmp.eq.s32.totalorder %s31, 1
    %p479 = por %p477, %p478
    %p480 = scmp.ne.s32.totalorder %s469, %s470
    %p481 = scmp.eq.s32.totalorder %s31, 0
    %p482 = por %p480, %p481
    %p483 = scmp.ne.s32.totalorder %s469, %s470
    %p484 = scmp.eq.s32.totalorder %s32, 1
    %p485 = por %p483, %p484
    %p487 = scmp.ne.s32.totalorder %s470, %s486
    %p488 = scmp.eq.s32.totalorder %s32, 0
    %p489 = por %p487, %p488
    %p490 = scmp.le.s32.totalorder 1, %s26
    %p491 = scmp.lt.s32.totalorder %s26, 3
    %p492 = pnand %p490, %p491
    %p493 = pneg %p492
    // Predicated region
    $region9: #{bert_forward.1} parent=5 // pred_check
      _
    $region10: #{bert_forward.1} parent=5 // pred_check_branch
      %495 = sbr.rel (%p492) target = $region12
    $region11: #{bert_forward.1} parent=5 // pred_region
      %s496 = ssub.s32 %s26, 1
      // Predicated region
      $region13: #{bert_forward.1} parent=11 // pred_check
        %p497 = pneg %p99
      $region14: #{bert_forward.1} parent=11 // pred_check_branch
        %499 = sbr.rel (%p497) target = $region16
      $region15: #{bert_forward.1} parent=11 // pred_region
        _
      $region16: #{bert_forward.1} parent=11 // pred_fallthru
        _
      // Predicated region
      $region17: #{bert_forward.1} parent=11 // pred_check
        %p500 = pneg %p120
      $region18: #{bert_forward.1} parent=11 // pred_check_branch
        %502 = sbr.rel (%p500) target = $region20
      $region19: #{bert_forward.1} parent=11 // pred_region
        _
      $region20: #{bert_forward.1} parent=11 // pred_fallthru
        _
      // Predicated region
      $region21: #{bert_forward.1} parent=11 // pred_check
        %p503 = pneg %p141
      $region22: #{bert_forward.1} parent=11 // pred_check_branch
        %505 = sbr.rel (%p503) target = $region24
      $region23: #{bert_forward.1} parent=11 // pred_region
        _
      $region24: #{bert_forward.1} parent=11 // pred_fallthru
        _
      // Predicated region
      $region25: #{bert_forward.1} parent=11 // pred_check
        %p506 = pneg %p162
      $region26: #{bert_forward.1} parent=11 // pred_check_branch
        %508 = sbr.rel (%p506) target = $region28
      $region27: #{bert_forward.1} parent=11 // pred_region
        _
      $region28: #{bert_forward.1} parent=11 // pred_fallthru
        _
      // Predicated region
      $region29: #{bert_forward.1} parent=11 // pred_check
        %p509 = pneg %p183
      $region30: #{bert_forward.1} parent=11 // pred_check_branch
        %511 = sbr.rel (%p509) target = $region32
      $region31: #{bert_forward.1} parent=11 // pred_region
        _
      $region32: #{bert_forward.1} parent=11 // pred_fallthru
        _
      // Predicated region
      $region33: #{bert_forward.1} parent=11 // pred_check
        %p512 = pneg %p204
      $region34: #{bert_forward.1} parent=11 // pred_check_branch
        %514 = sbr.rel (%p512) target = $region36
      $region35: #{bert_forward.1} parent=11 // pred_region
        _
      $region36: #{bert_forward.1} parent=11 // pred_fallthru
        _
      // Predicated region
      $region37: #{bert_forward.1} parent=11 // pred_check
        %p515 = pneg %p225
      $region38: #{bert_forward.1} parent=11 // pred_check_branch
        %517 = sbr.rel (%p515) target = $region40
      $region39: #{bert_forward.1} parent=11 // pred_region
        _
      $region40: #{bert_forward.1} parent=11 // pred_fallthru
        _
      // Predicated region
      $region41: #{bert_forward.1} parent=11 // pred_check
        %p518 = pneg %p246
      $region42: #{bert_forward.1} parent=11 // pred_check_branch
        %520 = sbr.rel (%p518) target = $region44
      $region43: #{bert_forward.1} parent=11 // pred_region
        _
      $region44: #{bert_forward.1} parent=11 // pred_fallthru
        _
      // Predicated region
      $region45: #{bert_forward.1} parent=11 // pred_check
        %p521 = pneg %p267
      $region46: #{bert_forward.1} parent=11 // pred_check_branch
        %523 = sbr.rel (%p521) target = $region48
      $region47: #{bert_forward.1} parent=11 // pred_region
        _
      $region48: #{bert_forward.1} parent=11 // pred_fallthru
        _
      // Predicated region
      $region49: #{bert_forward.1} parent=11 // pred_check
        %p524 = pneg %p288
      $region50: #{bert_forward.1} parent=11 // pred_check_branch
        %526 = sbr.rel (%p524) target = $region52
      $region51: #{bert_forward.1} parent=11 // pred_region
        _
      $region52: #{bert_forward.1} parent=11 // pred_fallthru
        _
      // Predicated region
      $region53: #{bert_forward.1} parent=11 // pred_check
        %p527 = pneg %p309
      $region54: #{bert_forward.1} parent=11 // pred_check_branch
        %529 = sbr.rel (%p527) target = $region56
      $region55: #{bert_forward.1} parent=11 // pred_region
        _
      $region56: #{bert_forward.1} parent=11 // pred_fallthru
        _
      // Predicated region
      $region57: #{bert_forward.1} parent=11 // pred_check
        %p530 = pneg %p330
      $region58: #{bert_forward.1} parent=11 // pred_check_branch
        %532 = sbr.rel (%p530) target = $region60
      $region59: #{bert_forward.1} parent=11 // pred_region
        _
      $region60: #{bert_forward.1} parent=11 // pred_fallthru
        _
      // Predicated region
      $region61: #{bert_forward.1} parent=11 // pred_check
        %p533 = pneg %p351
      $region62: #{bert_forward.1} parent=11 // pred_check_branch
        %535 = sbr.rel (%p533) target = $region64
      $region63: #{bert_forward.1} parent=11 // pred_region
        _
      $region64: #{bert_forward.1} parent=11 // pred_fallthru
        _
      // Predicated region
      $region65: #{bert_forward.1} parent=11 // pred_check
        %p536 = pneg %p372
      $region66: #{bert_forward.1} parent=11 // pred_check_branch
        %538 = sbr.rel (%p536) target = $region68
      $region67: #{bert_forward.1} parent=11 // pred_region
        _
      $region68: #{bert_forward.1} parent=11 // pred_fallthru
        _
      // Predicated region
      $region69: #{bert_forward.1} parent=11 // pred_check
        %p539 = pneg %p393
      $region70: #{bert_forward.1} parent=11 // pred_check_branch
        %541 = sbr.rel (%p539) target = $region72
      $region71: #{bert_forward.1} parent=11 // pred_region
        _
      $region72: #{bert_forward.1} parent=11 // pred_fallthru
        _
      // Predicated region
      $region73: #{bert_forward.1} parent=11 // pred_check
        %p542 = pneg %p414
      $region74: #{bert_forward.1} parent=11 // pred_check_branch
        %544 = sbr.rel (%p542) target = $region76
      $region75: #{bert_forward.1} parent=11 // pred_region
        _
      $region76: #{bert_forward.1} parent=11 // pred_fallthru
        _
      // Predicated region
      $region77: #{bert_forward.1} parent=11 // pred_check
        %p545 = pneg %p435
      $region78: #{bert_forward.1} parent=11 // pred_check_branch
        %547 = sbr.rel (%p545) target = $region80
      $region79: #{bert_forward.1} parent=11 // pred_region
        _
      $region80: #{bert_forward.1} parent=11 // pred_fallthru
        _
      // Predicated region
      $region81: #{bert_forward.1} parent=11 // pred_check
        %p548 = pneg %p456
      $region82: #{bert_forward.1} parent=11 // pred_check_branch
        %550 = sbr.rel (%p548) target = $region84
      $region83: #{bert_forward.1} parent=11 // pred_region
        _
      $region84: #{bert_forward.1} parent=11 // pred_fallthru
        _
    $region12: #{bert_forward.1} parent=5 // pred_fallthru
      _
    %p551 = scmp.lt.s32.totalorder %s26, 2
    // Predicated region
    $region85: #{bert_forward.1} parent=5 // pred_check
      %p552 = pneg %p551
    $region86: #{bert_forward.1} parent=5 // pred_check_branch
      %554 = sbr.rel (%p552) target = $region88
    $region87: #{bert_forward.1} parent=5 // pred_region
      // Predicated region
      $region89: #{bert_forward.1} parent=87 // pred_check
        %p555 = pneg %p46
      $region90: #{bert_forward.1} parent=87 // pred_check_branch
        %557 = sbr.rel (%p555) target = $region92
      $region91: #{bert_forward.1} parent=87 // pred_region
        %p558 = scmp.lt.s32.totalorder %s26, 1
        %s559 = scalar_select %p558, %s26, 1
        %s560 = smul.addr %s559, 16
        %s561 = smul.addr %s560, 8
        %s562 = scalar_lea.vmem %s0, %s561
      $region92: #{bert_forward.1} parent=87 // pred_fallthru
        _
      // Predicated region
      $region93: #{bert_forward.1} parent=87 // pred_check
        %p563 = pneg %p72
      $region94: #{bert_forward.1} parent=87 // pred_check_branch
        %565 = sbr.rel (%p563) target = $region96
      $region95: #{bert_forward.1} parent=87 // pred_region
        %p566 = scmp.lt.s32.totalorder %s26, 1
        %s567 = scalar_select %p566, %s26, 1
        %s568 = scalar_lea.vmem %s1, %s567
      $region96: #{bert_forward.1} parent=87 // pred_fallthru
        _
    $region88: #{bert_forward.1} parent=5 // pred_fallthru
      _
    %p569 = scmp.le.s32.totalorder 1, %s26
    %p570 = scmp.lt.s32.totalorder %s26, 3
    %p571 = pnand %p569, %p570
    %p572 = pneg %p571
    // Predicated region
    $region97: #{bert_forward.1} parent=5 // pred_check
      _
    $region98: #{bert_forward.1} parent=5 // pred_check_branch
      %574 = sbr.rel (%p571) target = $region100
    $region99: #{bert_forward.1} parent=5 // pred_region
      %s575 = ssub.s32 %s26, 1
      %p576 = scmp.lt.s32.totalorder %s31, 1
      %s577 = scalar_select %p576, %s31, 1
      %s578 = smul.addr %s577, 16
      %s579 = smul.addr %s578, 8
      %s580 = scalar_lea.vmem %s0, %s579
      %p581 = pneg %p52
      %p582 = pneg %p49
      %p583 = scmp.lt.s32.totalorder %s31, 1
      %s584 = scalar_select %p583, %s31, 1
      %s585 = scalar_lea.vmem %s1, %s584
      %p586 = pneg %p78
      %p587 = pneg %p75
      %p588 = pneg %p99
      %p589 = pneg %p96
      %p590 = pneg %p120
      %p591 = pneg %p117
      %p592 = pneg %p141
      %p593 = pneg %p138
      %p594 = pneg %p162
      %p595 = pneg %p159
      %p596 = pneg %p183
      %p597 = pneg %p180
      %p598 = pneg %p204
      %p599 = pneg %p201
      %p600 = pneg %p225
      %p601 = pneg %p222
      %p602 = pneg %p246
      %p603 = pneg %p243
      %p604 = pneg %p267
      %p605 = pneg %p264
      %p606 = pneg %p288
      %p607 = pneg %p285
      %p608 = pneg %p309
      %p609 = pneg %p306
      %p610 = pneg %p330
      %p611 = pneg %p327
      %p612 = pneg %p351
      %p613 = pneg %p348
      %p614 = pneg %p372
      %p615 = pneg %p369
      %p616 = pneg %p393
      %p617 = pneg %p390
      %p618 = pneg %p414
      %p619 = pneg %p411
      %p620 = pneg %p435
      %p621 = pneg %p432
      %p622 = pneg %p456
      %p623 = pneg %p453
      %p624 = pneg %p482
      %p625 = pneg %p479
      %p626 = scmp.lt.s32.totalorder %s31, 1
      %s627 = scalar_select %p626, %s31, 1
      %s628 = smul.addr %s627, 16
      %s629 = smul.addr %s628, 8
      %s630 = scalar_lea.vmem %s20, %s629
      %p631 = scmp.lt.s32.totalorder %s31, 1
      %s632 = scalar_select %p631, %s31, 1
      %s633 = smul.addr %s632, 16
      %s634 = smul.addr %s633, 8
      %s635 = scalar_lea.vmem %s0, %s634
      %p636 = scmp.lt.s32.totalorder %s31, 1
      %s637 = scalar_select %p636, %s31, 1
      %s638 = scalar_lea.vmem %s1, %s637
      %p639 = scmp.lt.s32.totalorder %s31, 1
      %s640 = scalar_select %p639, %s31, 1
      %s641 = smul.addr %s640, 16
      %s642 = smul.addr %s641, 8
      %s643 = scalar_lea.vmem %s20, %s642
      %v645 = vld [vmem:[%s635] sm:$0xff]
      %v646 = vld [vmem:[%s635 + $0x8] sm:$0xff]
      %v647 = vld [vmem:[%s635 + $0x10] sm:$0xff]
      %v648 = vld [vmem:[%s635 + $0x18] sm:$0xff]
      %v649 = vld [vmem:[%s635 + $0x20] sm:$0xff]
      %v650 = vld [vmem:[%s635 + $0x28] sm:$0xff]
      %v651 = vld [vmem:[%s635 + $0x30] sm:$0xff]
      %v652 = vld [vmem:[%s635 + $0x38] sm:$0xff]
      %v653 = vld [vmem:[%s635 + $0x40] sm:$0xff]
      %v654 = vld [vmem:[%s635 + $0x48] sm:$0xff]
      %v655 = vld [vmem:[%s635 + $0x50] sm:$0xff]
      %v656 = vld [vmem:[%s635 + $0x58] sm:$0xff]
      %v657 = vld [vmem:[%s635 + $0x60] sm:$0xff]
      %v658 = vld [vmem:[%s635 + $0x68] sm:$0xff]
      %v659 = vld [vmem:[%s635 + $0x70] sm:$0xff]
      %v660 = vld [vmem:[%s635 + $0x78] sm:$0xff]
      %v661 = vld [vmem:[%s2] sm:$0x1]
      %v662 = vld [vmem:[%s3] sm:$0x1]
      %vm663 = vcmask 261120
      %v664 = vsel %vm663, %v645, 0.0
      %665 = vadd.xlane.f32.xlu0 %v664
      %v666 = vpop.xlane.xlu0 %665
      %v667 = vsel %vm663, %v646, 0.0
      %668 = vadd.xlane.f32.xlu0 %v667
      %v669 = vpop.xlane.xlu0 %668
      %v670 = vsel %vm663, %v647, 0.0
      %671 = vadd.xlane.f32.xlu0 %v670
      %v672 = vpop.xlane.xlu0 %671
      %v673 = vsel %vm663, %v648, 0.0
      %674 = vadd.xlane.f32.xlu0 %v673
      %v675 = vpop.xlane.xlu0 %674
      %v676 = vsel %vm663, %v649, 0.0
      %677 = vadd.xlane.f32.xlu0 %v676
      %v678 = vpop.xlane.xlu0 %677
      %v679 = vsel %vm663, %v650, 0.0
      %680 = vadd.xlane.f32.xlu0 %v679
      %v681 = vpop.xlane.xlu0 %680
      %v682 = vsel %vm663, %v651, 0.0
      %683 = vadd.xlane.f32.xlu0 %v682
      %v684 = vpop.xlane.xlu0 %683
      %v685 = vsel %vm663, %v652, 0.0
      %686 = vadd.xlane.f32.xlu0 %v685
      %v687 = vpop.xlane.xlu0 %686
      %v688 = vsel %vm663, %v653, 0.0
      %689 = vadd.xlane.f32.xlu0 %v688
      %v690 = vpop.xlane.xlu0 %689
      %v691 = vsel %vm663, %v654, 0.0
      %692 = vadd.xlane.f32.xlu0 %v691
      %v693 = vpop.xlane.xlu0 %692
      %v694 = vsel %vm663, %v655, 0.0
      %695 = vadd.xlane.f32.xlu0 %v694
      %v696 = vpop.xlane.xlu0 %695
      %v697 = vsel %vm663, %v656, 0.0
      %698 = vadd.xlane.f32.xlu0 %v697
      %v699 = vpop.xlane.xlu0 %698
      %v700 = vsel %vm663, %v657, 0.0
      %701 = vadd.xlane.f32.xlu0 %v700
      %v702 = vpop.xlane.xlu0 %701
      %v703 = vsel %vm663, %v658, 0.0
      %704 = vadd.xlane.f32.xlu0 %v703
      %v705 = vpop.xlane.xlu0 %704
      %v706 = vsel %vm663, %v659, 0.0
      %707 = vadd.xlane.f32.xlu0 %v706
      %v708 = vpop.xlane.xlu0 %707
      %v709 = vsel %vm663, %v660, 0.0
      %710 = vadd.xlane.f32.xlu0 %v709
      %v711 = vpop.xlane.xlu0 %710
      %v712 = vrcp.pop 32.0
      %v713 = vmul.f32 %v666, %v712
      %v714 = vmul.f32 %v669, %v712
      %v715 = vmul.f32 %v672, %v712
      %v716 = vmul.f32 %v675, %v712
      %v717 = vmul.f32 %v678, %v712
      %v718 = vmul.f32 %v681, %v712
      %v719 = vmul.f32 %v684, %v712
      %v720 = vmul.f32 %v687, %v712
      %v721 = vmul.f32 %v690, %v712
      %v722 = vmul.f32 %v693, %v712
      %v723 = vmul.f32 %v696, %v712
      %v724 = vmul.f32 %v699, %v712
      %v725 = vmul.f32 %v702, %v712
      %v726 = vmul.f32 %v705, %v712
      %v727 = vmul.f32 %v708, %v712
      %v728 = vmul.f32 %v711, %v712
      %v729 = vsub.f32 %v645, %v713
      %v730 = vsub.f32 %v646, %v714
      %v731 = vsub.f32 %v647, %v715
      %v732 = vsub.f32 %v648, %v716
      %v733 = vsub.f32 %v649, %v717
      %v734 = vsub.f32 %v650, %v718
      %v735 = vsub.f32 %v651, %v719
      %v736 = vsub.f32 %v652, %v720
      %v737 = vsub.f32 %v653, %v721
      %v738 = vsub.f32 %v654, %v722
      %v739 = vsub.f32 %v655, %v723
      %v740 = vsub.f32 %v656, %v724
      %v741 = vsub.f32 %v657, %v725
      %v742 = vsub.f32 %v658, %v726
      %v743 = vsub.f32 %v659, %v727
      %v744 = vsub.f32 %v660, %v728
      %v745 = vmul.f32 %v729, %v729
      %v746 = vmul.f32 %v730, %v730
      %v747 = vmul.f32 %v731, %v731
      %v748 = vmul.f32 %v732, %v732
      %v749 = vmul.f32 %v733, %v733
      %v750 = vmul.f32 %v734, %v734
      %v751 = vmul.f32 %v735, %v735
      %v752 = vmul.f32 %v736, %v736
      %v753 = vmul.f32 %v737, %v737
      %v754 = vmul.f32 %v738, %v738
      %v755 = vmul.f32 %v739, %v739
      %v756 = vmul.f32 %v740, %v740
      %v757 = vmul.f32 %v741, %v741
      %v758 = vmul.f32 %v742, %v742
      %v759 = vmul.f32 %v743, %v743
      %v760 = vmul.f32 %v744, %v744
      %v761 = vsel %vm663, %v745, 0.0
      %762 = vadd.xlane.f32.xlu0 %v761
      %v763 = vpop.xlane.xlu0 %762
      %v764 = vsel %vm663, %v746, 0.0
      %765 = vadd.xlane.f32.xlu0 %v764
      %v766 = vpop.xlane.xlu0 %765
      %v767 = vsel %vm663, %v747, 0.0
      %768 = vadd.xlane.f32.xlu0 %v767
      %v769 = vpop.xlane.xlu0 %768
      %v770 = vsel %vm663, %v748, 0.0
      %771 = vadd.xlane.f32.xlu0 %v770
      %v772 = vpop.xlane.xlu0 %771
      %v773 = vsel %vm663, %v749, 0.0
      %774 = vadd.xlane.f32.xlu0 %v773
      %v775 = vpop.xlane.xlu0 %774
      %v776 = vsel %vm663, %v750, 0.0
      %777 = vadd.xlane.f32.xlu0 %v776
      %v778 = vpop.xlane.xlu0 %777
      %v779 = vsel %vm663, %v751, 0.0
      %780 = vadd.xlane.f32.xlu0 %v779
      %v781 = vpop.xlane.xlu0 %780
      %v782 = vsel %vm663, %v752, 0.0
      %783 = vadd.xlane.f32.xlu0 %v782
      %v784 = vpop.xlane.xlu0 %783
      %v785 = vsel %vm663, %v753, 0.0
      %786 = vadd.xlane.f32.xlu0 %v785
      %v787 = vpop.xlane.xlu0 %786
      %v788 = vsel %vm663, %v754, 0.0
      %789 = vadd.xlane.f32.xlu0 %v788
      %v790 = vpop.xlane.xlu0 %789
      %v791 = vsel %vm663, %v755, 0.0
      %792 = vadd.xlane.f32.xlu0 %v791
      %v793 = vpop.xlane.xlu0 %792
      %v794 = vsel %vm663, %v756, 0.0
      %795 = vadd.xlane.f32.xlu0 %v794
      %v796 = vpop.xlane.xlu0 %795
      %v797 = vsel %vm663, %v757, 0.0
      %798 = vadd.xlane.f32.xlu0 %v797
      %v799 = vpop.xlane.xlu0 %798
      %v800 = vsel %vm663, %v758, 0.0
      %801 = vadd.xlane.f32.xlu0 %v800
      %v802 = vpop.xlane.xlu0 %801
      %v803 = vsel %vm663, %v759, 0.0
      %804 = vadd.xlane.f32.xlu0 %v803
      %v805 = vpop.xlane.xlu0 %804
      %v806 = vsel %vm663, %v760, 0.0
      %807 = vadd.xlane.f32.xlu0 %v806
      %v808 = vpop.xlane.xlu0 %807
      %v809 = vmul.f32 %v763, %v712
      %v810 = vmul.f32 %v766, %v712
      %v811 = vmul.f32 %v769, %v712
      %v812 = vmul.f32 %v772, %v712
      %v813 = vmul.f32 %v775, %v712
      %v814 = vmul.f32 %v778, %v712
      %v815 = vmul.f32 %v781, %v712
      %v816 = vmul.f32 %v784, %v712
      %v817 = vmul.f32 %v787, %v712
      %v818 = vmul.f32 %v790, %v712
      %v819 = vmul.f32 %v793, %v712
      %v820 = vmul.f32 %v796, %v712
      %v821 = vmul.f32 %v799, %v712
      %v822 = vmul.f32 %v802, %v712
      %v823 = vmul.f32 %v805, %v712
      %v824 = vmul.f32 %v808, %v712
      %v825 = vadd.f32 %v809, 1e-12
      %v826 = vadd.f32 %v810, 1e-12
      %v827 = vadd.f32 %v811, 1e-12
      %v828 = vadd.f32 %v812, 1e-12
      %v829 = vadd.f32 %v813, 1e-12
      %v830 = vadd.f32 %v814, 1e-12
      %v831 = vadd.f32 %v815, 1e-12
      %v832 = vadd.f32 %v816, 1e-12
      %v833 = vadd.f32 %v817, 1e-12
      %v834 = vadd.f32 %v818, 1e-12
      %v835 = vadd.f32 %v819, 1e-12
      %v836 = vadd.f32 %v820, 1e-12
      %v837 = vadd.f32 %v821, 1e-12
      %v838 = vadd.f32 %v822, 1e-12
      %v839 = vadd.f32 %v823, 1e-12
      %v840 = vadd.f32 %v824, 1e-12
      %v841 = vrsqrt.pop %v825
      %v842 = vrsqrt.pop %v826
      %v843 = vrsqrt.pop %v827
      %v844 = vrsqrt.pop %v828
      %v845 = vrsqrt.pop %v829
      %v846 = vrsqrt.pop %v830
      %v847 = vrsqrt.pop %v831
      %v848 = vrsqrt.pop %v832
      %v849 = vrsqrt.pop %v833
      %v850 = vrsqrt.pop %v834
      %v851 = vrsqrt.pop %v835
      %v852 = vrsqrt.pop %v836
      %v853 = vrsqrt.pop %v837
      %v854 = vrsqrt.pop %v838
      %v855 = vrsqrt.pop %v839
      %v856 = vrsqrt.pop %v840
      %v857 = vmul.f32 %v729, %v841
      %v858 = vmul.f32 %v730, %v842
      %v859 = vmul.f32 %v731, %v843
      %v860 = vmul.f32 %v732, %v844
      %v861 = vmul.f32 %v733, %v845
      %v862 = vmul.f32 %v734, %v846
      %v863 = vmul.f32 %v735, %v847
      %v864 = vmul.f32 %v736, %v848
      %v865 = vmul.f32 %v737, %v849
      %v866 = vmul.f32 %v738, %v850
      %v867 = vmul.f32 %v739, %v851
      %v868 = vmul.f32 %v740, %v852
      %v869 = vmul.f32 %v741, %v853
      %v870 = vmul.f32 %v742, %v854
      %v871 = vmul.f32 %v743, %v855
      %v872 = vmul.f32 %v744, %v856
      %v874 = vlaneseq
      %v875 = vshrl.u32 %v874, 7
      %v876 = vsub.s32 0, %v875
      %v877 = vrot.slane %v661, %v876
      %v879 = vmul.f32 %v857, %v877
      %v880 = vmul.f32 %v858, %v877
      %v881 = vmul.f32 %v859, %v877
      %v882 = vmul.f32 %v860, %v877
      %v883 = vmul.f32 %v861, %v877
      %v884 = vmul.f32 %v862, %v877
      %v885 = vmul.f32 %v863, %v877
      %v886 = vmul.f32 %v864, %v877
      %v887 = vmul.f32 %v865, %v877
      %v888 = vmul.f32 %v866, %v877
      %v889 = vmul.f32 %v867, %v877
      %v890 = vmul.f32 %v868, %v877
      %v891 = vmul.f32 %v869, %v877
      %v892 = vmul.f32 %v870, %v877
      %v893 = vmul.f32 %v871, %v877
      %v894 = vmul.f32 %v872, %v877
      %v896 = vlaneseq
      %v897 = vshrl.u32 %v896, 7
      %v898 = vsub.s32 0, %v897
      %v899 = vrot.slane %v662, %v898
      %v901 = vadd.f32 %v879, %v899
      %v902 = vadd.f32 %v880, %v899
      %v903 = vadd.f32 %v881, %v899
      %v904 = vadd.f32 %v882, %v899
      %v905 = vadd.f32 %v883, %v899
      %v906 = vadd.f32 %v884, %v899
      %v907 = vadd.f32 %v885, %v899
      %v908 = vadd.f32 %v886, %v899
      %v909 = vadd.f32 %v887, %v899
      %v910 = vadd.f32 %v888, %v899
      %v911 = vadd.f32 %v889, %v899
      %v912 = vadd.f32 %v890, %v899
      %v913 = vadd.f32 %v891, %v899
      %v914 = vadd.f32 %v892, %v899
      %v915 = vadd.f32 %v893, %v899
      %v916 = vadd.f32 %v894, %v899
      %v917 = vld [vmem:[%s638] sm:$0x1]
      %v919 = vlaneseq
      %v920 = vshrl.u32 %v919, 7
      %v921 = vsub.s32 0, %v920
      %v922 = vrot.slane %v917, %v921
      %v924 = vpack.c.bf16 %v902, %v901
      %v925 = vpack.c.bf16 %v904, %v903
      %v926 = vpack.c.bf16 %v906, %v905
      %v927 = vpack.c.bf16 %v908, %v907
      %v928 = vpack.c.bf16 %v910, %v909
      %v929 = vpack.c.bf16 %v912, %v911
      %v930 = vpack.c.bf16 %v914, %v913
      %v931 = vpack.c.bf16 %v916, %v915
      %v932 = vld [vmem:[%s4] sm:$0xf]
      %v933 = vld [vmem:[%s4 + $0x4] sm:$0xf]
      %v934 = vld [vmem:[%s4 + $0x8] sm:$0xf]
      %v935 = vld [vmem:[%s4 + $0xc] sm:$0xf]
      %v936 = vld [vmem:[%s5] sm:$0x1]
      %v938 = vlaneseq
      %v939 = vshrl.u32 %v938, 7
      %v940 = vsub.s32 0, %v939
      %v941 = vrot.slane %v936, %v940
      %v947 = vunpack.c.l.b16 %v932
      %v948 = vunpack.c.l.b16 %v933
      %v949 = vunpack.c.l.b16 %v934
      %v950 = vunpack.c.l.b16 %v935
      %v951 = vpack.c.b16 %v948, %v947
      %v952 = vpack.c.b16 %v950, %v949
      %v956 = vsel %vm663, %v924, 0
      %v959 = vsel %vm663, %v925, 0
      %v962 = vsel %vm663, %v926, 0
      %v965 = vsel %vm663, %v927, 0
      %v968 = vsel %vm663, %v928, 0
      %v971 = vsel %vm663, %v929, 0
      %v974 = vsel %vm663, %v930, 0
      %v977 = vsel %vm663, %v931, 0
      %979 = vmatprep.subr.bf16.mxu0 0
      %980 = vmatpush1.bf16.msra.mxu0 %v951
      %981 = vmatprep.subr.bf16.mxu0 0
      %982 = vmatpush1.bf16.msra.mxu0 %v952
      %983 = vmatprep.subr.bf16.mxu0 0
      %984 = vmatpush1.bf16.msra.mxu0 0
      %985 = vmatprep.subr.bf16.mxu0 0
      %986 = vmatpush1.bf16.msra.mxu0 0
      %987 = vmatprep.subr.bf16.mxu0 0
      %988 = vmatpush1.bf16.msra.mxu0 0
      %989 = vmatprep.subr.bf16.mxu0 0
      %990 = vmatpush1.bf16.msra.mxu0 0
      %991 = vmatprep.subr.bf16.mxu0 0
      %992 = vmatpush1.bf16.msra.mxu0 0
      %993 = vmatprep.subr.bf16.mxu0 0
      %994 = vmatpush1.bf16.msra.mxu0 0
      %995 = vmatprep.subr.bf16.mxu0 0
      %996 = vmatpush1.bf16.msra.mxu0 0
      %997 = vmatprep.subr.bf16.mxu0 0
      %998 = vmatpush1.bf16.msra.mxu0 0
      %999 = vmatprep.subr.bf16.mxu0 0
      %1000 = vmatpush1.bf16.msra.mxu0 0
      %1001 = vmatprep.subr.bf16.mxu0 0
      %1002 = vmatpush1.bf16.msra.mxu0 0
      %1003 = vmatprep.subr.bf16.mxu0 0
      %1004 = vmatpush1.bf16.msra.mxu0 0
      %1005 = vmatprep.subr.bf16.mxu0 0
      %1006 = vmatpush1.bf16.msra.mxu0 0
      %1007 = vmatprep.subr.bf16.mxu0 0
      %1008 = vmatpush1.bf16.msra.mxu0 0
      %1009 = vmatprep.subr.bf16.mxu0 0
      %1010 = vmatpush1.bf16.msra.mxu0 0
      %1011 = vmatprep.mubr.bf16.mxu0 0
      %1012 = vmatmul.mubr.bf16.gmra.mrb[0].mxu0 %v956
      %v1013 = vpop.f32.mrb[0].mxu0
      %v1014 = vadd.f32 %v941, %v1013
      %v1015 = vpop.f32.mrb[0].mxu0
      %v1016 = vpop.f32.mrb[0].mxu0
      %v1017 = vadd.f32 %v941, %v1016
      %v1018 = vpop.f32.mrb[0].mxu0
      %1019 = vmatprep.mubr.bf16.mxu0 0
      %1020 = vmatmul.mubr.bf16.gmra.mrb[0].mxu0 %v959
      %v1021 = vpop.f32.mrb[0].mxu0
      %v1022 = vadd.f32 %v941, %v1021
      %v1023 = vpop.f32.mrb[0].mxu0
      %v1024 = vpop.f32.mrb[0].mxu0
      %v1025 = vadd.f32 %v941, %v1024
      %v1026 = vpop.f32.mrb[0].mxu0
      %1027 = vmatprep.mubr.bf16.mxu0 0
      %1028 = vmatmul.mubr.bf16.gmra.mrb[0].mxu0 %v962
      %v1029 = vpop.f32.mrb[0].mxu0
      %v1030 = vadd.f32 %v941, %v1029
      %v1031 = vpop.f32.mrb[0].mxu0
      %v1032 = vpop.f32.mrb[0].mxu0
      %v1033 = vadd.f32 %v941, %v1032
      %v1034 = vpop.f32.mrb[0].mxu0
      %1035 = vmatprep.mubr.bf16.mxu0 0
      %1036 = vmatmul.mubr.bf16.gmra.mrb[0].mxu0 %v965
      %v1037 = vpop.f32.mrb[0].mxu0
      %v1038 = vadd.f32 %v941, %v1037
      %v1039 = vpop.f32.mrb[0].mxu0
      %v1040 = vpop.f32.mrb[0].mxu0
      %v1041 = vadd.f32 %v941, %v1040
      %v1042 = vpop.f32.mrb[0].mxu0
      %1043 = vmatprep.mubr.bf16.mxu0 0
      %1044 = vmatmul.mubr.bf16.gmra.mrb[0].mxu0 %v968
      %v1045 = vpop.f32.mrb[0].mxu0
      %v1046 = vadd.f32 %v941, %v1045
      %v1047 = vpop.f32.mrb[0].mxu0
      %v1048 = vpop.f32.mrb[0].mxu0
      %v1049 = vadd.f32 %v941, %v1048
      %v1050 = vpop.f32.mrb[0].mxu0
      %1051 = vmatprep.mubr.bf16.mxu0 0
      %1052 = vmatmul.mubr.bf16.gmra.mrb[0].mxu0 %v971
      %v1053 = vpop.f32.mrb[0].mxu0
      %v1054 = vadd.f32 %v941, %v1053
      %v1055 = vpop.f32.mrb[0].mxu0
      %v1056 = vpop.f32.mrb[0].mxu0
      %v1057 = vadd.f32 %v941, %v1056
      %v1058 = vpop.f32.mrb[0].mxu0
      %1059 = vmatprep.mubr.bf16.mxu0 0
      %1060 = vmatmul.mubr.bf16.gmra.mrb[0].mxu0 %v974
      %v1061 = vpop.f32.mrb[0].mxu0
      %v1062 = vadd.f32 %v941, %v1061
      %v1063 = vpop.f32.mrb[0].mxu0
      %v1064 = vpop.f32.mrb[0].mxu0
      %v1065 = vadd.f32 %v941, %v1064
      %v1066 = vpop.f32.mrb[0].mxu0
      %1067 = vmatprep.mubr.bf16.mxu0 0
      %1068 = vmatmul.mubr.bf16.gmra.mrb[0].mxu0 %v977
      %v1069 = vpop.f32.mrb[0].mxu0
      %v1070 = vadd.f32 %v941, %v1069
      %v1071 = vpop.f32.mrb[0].mxu0
      %v1072 = vpop.f32.mrb[0].mxu0
      %v1073 = vadd.f32 %v941, %v1072
      %v1074 = vpop.f32.mrb[0].mxu0
      %1075 = vdwg.mxu0
      %v1076 = vld [vmem:[%s6] sm:$0xf]
      %v1077 = vld [vmem:[%s6 + $0x4] sm:$0xf]
      %v1078 = vld [vmem:[%s6 + $0x8] sm:$0xf]
      %v1079 = vld [vmem:[%s6 + $0xc] sm:$0xf]
      %v1080 = vld [vmem:[%s7] sm:$0x1]
      %v1082 = vlaneseq
      %v1083 = vshrl.u32 %v1082, 7
      %v1084 = vsub.s32 0, %v1083
      %v1085 = vrot.slane %v1080, %v1084
      %v1091 = vunpack.c.l.b16 %v1076
      %v1092 = vunpack.c.l.b16 %v1077
      %v1093 = vunpack.c.l.b16 %v1078
      %v1094 = vunpack.c.l.b16 %v1079
      %v1095 = vpack.c.b16 %v1092, %v1091
      %v1096 = vpack.c.b16 %v1094, %v1093
      %1099 = vmatprep.subr.bf16.mxu0 0
      %1100 = vmatpush1.bf16.msra.mxu0 %v1095
      %1101 = vmatprep.subr.bf16.mxu0 0
      %1102 = vmatpush1.bf16.msra.mxu0 %v1096
      %1103 = vmatprep.subr.bf16.mxu0 0
      %1104 = vmatpush1.bf16.msra.mxu0 0
      %1105 = vmatprep.subr.bf16.mxu0 0
      %1106 = vmatpush1.bf16.msra.mxu0 0
      %1107 = vmatprep.subr.bf16.mxu0 0
      %1108 = vmatpush1.bf16.msra.mxu0 0
      %1109 = vmatprep.subr.bf16.mxu0 0
      %1110 = vmatpush1.bf16.msra.mxu0 0
      %1111 = vmatprep.subr.bf16.mxu0 0
      %1112 = vmatpush1.bf16.msra.mxu0 0
      %1113 = vmatprep.subr.bf16.mxu0 0
      %1114 = vmatpush1.bf16.msra.mxu0 0
      %1115 = vmatprep.subr.bf16.mxu0 0
      %1116 = vmatpush1.bf16.msra.mxu0 0
      %1117 = vmatprep.subr.bf16.mxu0 0
      %1118 = vmatpush1.bf16.msra.mxu0 0
      %1119 = vmatprep.subr.bf16.mxu0 0
      %1120 = vmatpush1.bf16.msra.mxu0 0
      %1121 = vmatprep.subr.bf16.mxu0 0
      %1122 = vmatpush1.bf16.msra.mxu0 0
      %1123 = vmatprep.subr.bf16.mxu0 0
      %1124 = vmatpush1.bf16.msra.mxu0 0
      %1125 = vmatprep.subr.bf16.mxu0 0
      %1126 = vmatpush1.bf16.msra.mxu0 0
      %1127 = vmatprep.subr.bf16.mxu0 0
      %1128 = vmatpush1.bf16.msra.mxu0 0
      %1129 = vmatprep.subr.bf16.mxu0 0
      %1130 = vmatpush1.bf16.msra.mxu0 0
      %1131 = vmatprep.mubr.bf16.mxu0 0
      %1132 = vmatmul.mubr.bf16.gmra.mrb[0].mxu0 %v956
      %v1133 = vpop.f32.mrb[0].mxu0
      %v1134 = vadd.f32 %v1085, %v1133
      %v1135 = vpop.f32.mrb[0].mxu0
      %v1136 = vpop.f32.mrb[0].mxu0
      %v1137 = vadd.f32 %v1085, %v1136
      %v1138 = vpop.f32.mrb[0].mxu0
      %1139 = vmatprep.mubr.bf16.mxu0 0
      %1140 = vmatmul.mubr.bf16.gmra.mrb[0].mxu0 %v959
      %v1141 = vpop.f32.mrb[0].mxu0
      %v1142 = vadd.f32 %v1085, %v1141
      %v1143 = vpop.f32.mrb[0].mxu0
      %v1144 = vpop.f32.mrb[0].mxu0
      %v1145 = vadd.f32 %v1085, %v1144
      %v1146 = vpop.f32.mrb[0].mxu0
      %1147 = vmatprep.mubr.bf16.mxu0 0
      %1148 = vmatmul.mubr.bf16.gmra.mrb[0].mxu0 %v962
      %v1149 = vpop.f32.mrb[0].mxu0
      %v1150 = vadd.f32 %v1085, %v1149
      %v1151 = vpop.f32.mrb[0].mxu0
      %v1152 = vpop.f32.mrb[0].mxu0
      %v1153 = vadd.f32 %v1085, %v1152
      %v1154 = vpop.f32.mrb[0].mxu0
      %1155 = vmatprep.mubr.bf16.mxu0 0
      %1156 = vmatmul.mubr.bf16.gmra.mrb[0].mxu0 %v965
      %v1157 = vpop.f32.mrb[0].mxu0
      %v1158 = vadd.f32 %v1085, %v1157
      %v1159 = vpop.f32.mrb[0].mxu0
      %v1160 = vpop.f32.mrb[0].mxu0
      %v1161 = vadd.f32 %v1085, %v1160
      %v1162 = vpop.f32.mrb[0].mxu0
      %1163 = vmatprep.mubr.bf16.mxu0 0
      %1164 = vmatmul.mubr.bf16.gmra.mrb[0].mxu0 %v968
      %v1165 = vpop.f32.mrb[0].mxu0
      %v1166 = vadd.f32 %v1085, %v1165
      %v1167 = vpop.f32.mrb[0].mxu0
      %v1168 = vpop.f32.mrb[0].mxu0
      %v1169 = vadd.f32 %v1085, %v1168
      %v1170 = vpop.f32.mrb[0].mxu0
      %1171 = vmatprep.mubr.bf16.mxu0 0
      %1172 = vmatmul.mubr.bf16.gmra.mrb[0].mxu0 %v971
      %v1173 = vpop.f32.mrb[0].mxu0
      %v1174 = vadd.f32 %v1085, %v1173
      %v1175 = vpop.f32.mrb[0].mxu0
      %v1176 = vpop.f32.mrb[0].mxu0
      %v1177 = vadd.f32 %v1085, %v1176
      %v1178 = vpop.f32.mrb[0].mxu0
      %1179 = vmatprep.mubr.bf16.mxu0 0
      %1180 = vmatmul.mubr.bf16.gmra.mrb[0].mxu0 %v974
      %v1181 = vpop.f32.mrb[0].mxu0
      %v1182 = vadd.f32 %v1085, %v1181
      %v1183 = vpop.f32.mrb[0].mxu0
      %v1184 = vpop.f32.mrb[0].mxu0
      %v1185 = vadd.f32 %v1085, %v1184
      %v1186 = vpop.f32.mrb[0].mxu0
      %1187 = vmatprep.mubr.bf16.mxu0 0
      %1188 = vmatmul.mubr.bf16.gmra.mrb[0].mxu0 %v977
      %v1189 = vpop.f32.mrb[0].mxu0
      %v1190 = vadd.f32 %v1085, %v1189
      %v1191 = vpop.f32.mrb[0].mxu0
      %v1192 = vpop.f32.mrb[0].mxu0
      %v1193 = vadd.f32 %v1085, %v1192
      %v1194 = vpop.f32.mrb[0].mxu0
      %1195 = vdwg.mxu0
      %v1196 = vld [vmem:[%s8] sm:$0xf]
      %v1197 = vld [vmem:[%s8 + $0x4] sm:$0xf]
      %v1198 = vld [vmem:[%s8 + $0x8] sm:$0xf]
      %v1199 = vld [vmem:[%s8 + $0xc] sm:$0xf]
      %v1200 = vld [vmem:[%s9] sm:$0x1]
      %v1202 = vlaneseq
      %v1203 = vshrl.u32 %v1202, 7
      %v1204 = vsub.s32 0, %v1203
      %v1205 = vrot.slane %v1200, %v1204
      %v1211 = vunpack.c.l.b16 %v1196
      %v1212 = vunpack.c.l.b16 %v1197
      %v1213 = vunpack.c.l.b16 %v1198
      %v1214 = vunpack.c.l.b16 %v1199
      %v1215 = vpack.c.b16 %v1212, %v1211
      %v1216 = vpack.c.b16 %v1214, %v1213
      %1219 = vmatprep.subr.bf16.mxu0 0
      %1220 = vmatpush1.bf16.msra.mxu0 %v1215
      %1221 = vmatprep.subr.bf16.mxu0 0
      %1222 = vmatpush1.bf16.msra.mxu0 %v1216
      %1223 = vmatprep.subr.bf16.mxu0 0
      %1224 = vmatpush1.bf16.msra.mxu0 0
      %1225 = vmatprep.subr.bf16.mxu0 0
      %1226 = vmatpush1.bf16.msra.mxu0 0
      %1227 = vmatprep.subr.bf16.mxu0 0
      %1228 = vmatpush1.bf16.msra.mxu0 0
      %1229 = vmatprep.subr.bf16.mxu0 0
      %1230 = vmatpush1.bf16.msra.mxu0 0
      %1231 = vmatprep.subr.bf16.mxu0 0
      %1232 = vmatpush1.bf16.msra.mxu0 0
      %1233 = vmatprep.subr.bf16.mxu0 0
      %1234 = vmatpush1.bf16.msra.mxu0 0
      %1235 = vmatprep.subr.bf16.mxu0 0
      %1236 = vmatpush1.bf16.msra.mxu0 0
      %1237 = vmatprep.subr.bf16.mxu0 0
      %1238 = vmatpush1.bf16.msra.mxu0 0
      %1239 = vmatprep.subr.bf16.mxu0 0
      %1240 = vmatpush1.bf16.msra.mxu0 0
      %1241 = vmatprep.subr.bf16.mxu0 0
      %1242 = vmatpush1.bf16.msra.mxu0 0
      %1243 = vmatprep.subr.bf16.mxu0 0
      %1244 = vmatpush1.bf16.msra.mxu0 0
      %1245 = vmatprep.subr.bf16.mxu0 0
      %1246 = vmatpush1.bf16.msra.mxu0 0
      %1247 = vmatprep.subr.bf16.mxu0 0
      %1248 = vmatpush1.bf16.msra.mxu0 0
      %1249 = vmatprep.subr.bf16.mxu0 0
      %1250 = vmatpush1.bf16.msra.mxu0 0
      %1251 = vmatprep.mubr.bf16.mxu0 0
      %1252 = vmatmul.mubr.bf16.gmra.mrb[0].mxu0 %v956
      %v1253 = vpop.f32.mrb[0].mxu0
      %v1254 = vadd.f32 %v1205, %v1253
      %v1255 = vpop.f32.mrb[0].mxu0
      %v1256 = vpop.f32.mrb[0].mxu0
      %v1257 = vadd.f32 %v1205, %v1256
      %v1258 = vpop.f32.mrb[0].mxu0
      %1259 = vmatprep.mubr.bf16.mxu0 0
      %1260 = vmatmul.mubr.bf16.gmra.mrb[0].mxu0 %v959
      %v1261 = vpop.f32.mrb[0].mxu0
      %v1262 = vadd.f32 %v1205, %v1261
      %v1263 = vpop.f32.mrb[0].mxu0
      %v1264 = vpop.f32.mrb[0].mxu0
      %v1265 = vadd.f32 %v1205, %v1264
      %v1266 = vpop.f32.mrb[0].mxu0
      %1267 = vmatprep.mubr.bf16.mxu0 0
      %1268 = vmatmul.mubr.bf16.gmra.mrb[0].mxu0 %v962
      %v1269 = vpop.f32.mrb[0].mxu0
      %v1270 = vadd.f32 %v1205, %v1269
      %v1271 = vpop.f32.mrb[0].mxu0
      %v1272 = vpop.f32.mrb[0].mxu0
      %v1273 = vadd.f32 %v1205, %v1272
      %v1274 = vpop.f32.mrb[0].mxu0
      %1275 = vmatprep.mubr.bf16.mxu0 0
      %1276 = vmatmul.mubr.bf16.gmra.mrb[0].mxu0 %v965
      %v1277 = vpop.f32.mrb[0].mxu0
      %v1278 = vadd.f32 %v1205, %v1277
      %v1279 = vpop.f32.mrb[0].mxu0
      %v1280 = vpop.f32.mrb[0].mxu0
      %v1281 = vadd.f32 %v1205, %v1280
      %v1282 = vpop.f32.mrb[0].mxu0
      %1283 = vmatprep.mubr.bf16.mxu0 0
      %1284 = vmatmul.mubr.bf16.gmra.mrb[0].mxu0 %v968
      %v1285 = vpop.f32.mrb[0].mxu0
      %v1286 = vadd.f32 %v1205, %v1285
      %v1287 = vpop.f32.mrb[0].mxu0
      %v1288 = vpop.f32.mrb[0].mxu0
      %v1289 = vadd.f32 %v1205, %v1288
      %v1290 = vpop.f32.mrb[0].mxu0
      %1291 = vmatprep.mubr.bf16.mxu0 0
      %1292 = vmatmul.mubr.bf16.gmra.mrb[0].mxu0 %v971
      %v1293 = vpop.f32.mrb[0].mxu0
      %v1294 = vadd.f32 %v1205, %v1293
      %v1295 = vpop.f32.mrb[0].mxu0
      %v1296 = vpop.f32.mrb[0].mxu0
      %v1297 = vadd.f32 %v1205, %v1296
      %v1298 = vpop.f32.mrb[0].mxu0
      %1299 = vmatprep.mubr.bf16.mxu0 0
      %1300 = vmatmul.mubr.bf16.gmra.mrb[0].mxu0 %v974
      %v1301 = vpop.f32.mrb[0].mxu0
      %v1302 = vadd.f32 %v1205, %v1301
      %v1303 = vpop.f32.mrb[0].mxu0
      %v1304 = vpop.f32.mrb[0].mxu0
      %v1305 = vadd.f32 %v1205, %v1304
      %v1306 = vpop.f32.mrb[0].mxu0
      %1307 = vmatprep.mubr.bf16.mxu0 0
      %1308 = vmatmul.mubr.bf16.gmra.mrb[0].mxu0 %v977
      %v1309 = vpop.f32.mrb[0].mxu0
      %v1310 = vadd.f32 %v1205, %v1309
      %v1311 = vpop.f32.mrb[0].mxu0
      %v1312 = vpop.f32.mrb[0].mxu0
      %v1313 = vadd.f32 %v1205, %v1312
      %v1314 = vpop.f32.mrb[0].mxu0
      %1315 = vdwg.mxu0
      %v1316 = vpack.c.bf16 %v1017, %v1014
      %v1317 = vpack.c.bf16 %v1025, %v1022
      %v1318 = vpack.c.bf16 %v1033, %v1030
      %v1319 = vpack.c.bf16 %v1041, %v1038
      %v1320 = vpack.c.bf16 %v1049, %v1046
      %v1321 = vpack.c.bf16 %v1057, %v1054
      %v1322 = vpack.c.bf16 %v1065, %v1062
      %v1323 = vpack.c.bf16 %v1073, %v1070
      %v1324 = vpack.c.bf16 %v1137, %v1134
      %v1325 = vpack.c.bf16 %v1145, %v1142
      %v1326 = vpack.c.bf16 %v1153, %v1150
      %v1327 = vpack.c.bf16 %v1161, %v1158
      %v1328 = vpack.c.bf16 %v1169, %v1166
      %v1329 = vpack.c.bf16 %v1177, %v1174
      %v1330 = vpack.c.bf16 %v1185, %v1182
      %v1331 = vpack.c.bf16 %v1193, %v1190
      %vm1332 = vcmask 64512
      %v1334 = vsel %vm1332, %v1316, 0
      %v1337 = vsel %vm1332, %v1317, 0
      %v1340 = vsel %vm1332, %v1318, 0
      %v1343 = vsel %vm1332, %v1319, 0
      %v1346 = vsel %vm1332, %v1320, 0
      %v1349 = vsel %vm1332, %v1321, 0
      %v1352 = vsel %vm1332, %v1322, 0
      %v1355 = vsel %vm1332, %v1323, 0
      %v1358 = vsel %vm1332, %v1324, 0
      %v1361 = vsel %vm1332, %v1325, 0
      %v1364 = vsel %vm1332, %v1326, 0
      %v1367 = vsel %vm1332, %v1327, 0
      %v1370 = vsel %vm1332, %v1328, 0
      %v1373 = vsel %vm1332, %v1329, 0
      %v1376 = vsel %vm1332, %v1330, 0
      %v1379 = vsel %vm1332, %v1331, 0
      %1381 = vmatprep.subr.bf16.mxu0 0
      %1382 = vmatpush1.bf16.xpose.msra.mxu0 %v1358
      %1383 = vmatprep.subr.bf16.mxu0 0
      %1384 = vmatpush1.bf16.xpose.msra.mxu0 %v1361
      %1385 = vmatprep.subr.bf16.mxu0 0
      %1386 = vmatpush1.bf16.xpose.msra.mxu0 %v1364
      %1387 = vmatprep.subr.bf16.mxu0 0
      %1388 = vmatpush1.bf16.xpose.msra.mxu0 %v1367
      %1389 = vmatprep.subr.bf16.mxu0 0
      %1390 = vmatpush1.bf16.xpose.msra.mxu0 %v1370
      %1391 = vmatprep.subr.bf16.mxu0 0
      %1392 = vmatpush1.bf16.xpose.msra.mxu0 %v1373
      %1393 = vmatprep.subr.bf16.mxu0 0
      %1394 = vmatpush1.bf16.xpose.msra.mxu0 %v1376
      %1395 = vmatprep.subr.bf16.mxu0 0
      %1396 = vmatpush1.bf16.xpose.msra.mxu0 %v1379
      %1397 = vmatprep.subr.bf16.mxu0 0
      %1398 = vmatpush1.bf16.xpose.msra.mxu0 0
      %1399 = vmatprep.subr.bf16.mxu0 0
      %1400 = vmatpush1.bf16.xpose.msra.mxu0 0
      %1401 = vmatprep.subr.bf16.mxu0 0
      %1402 = vmatpush1.bf16.xpose.msra.mxu0 0
      %1403 = vmatprep.subr.bf16.mxu0 0
      %1404 = vmatpush1.bf16.xpose.msra.mxu0 0
      %1405 = vmatprep.subr.bf16.mxu0 0
      %1406 = vmatpush1.bf16.xpose.msra.mxu0 0
      %1407 = vmatprep.subr.bf16.mxu0 0
      %1408 = vmatpush1.bf16.xpose.msra.mxu0 0
      %1409 = vmatprep.subr.bf16.mxu0 0
      %1410 = vmatpush1.bf16.xpose.msra.mxu0 0
      %1411 = vmatprep.subr.bf16.mxu0 0
      %1412 = vmatpush1.bf16.xpose.msra.mxu0 0
      %1413 = vmatprep.mubr.bf16.mxu0 0
      %1414 = vmatmul.mubr.bf16.gmra.mrb[0].mxu0 %v1334
      %v1415 = vpop.f32.mrb[0].mxu0
      %v1416 = vadd.f32 0.0, %v1415
      %v1417 = vpop.f32.mrb[0].mxu0
      %v1418 = vpop.f32.mrb[0].mxu0
      %v1419 = vadd.f32 0.0, %v1418
      %v1420 = vpop.f32.mrb[0].mxu0
      %1421 = vmatprep.mubr.bf16.mxu0 0
      %1422 = vmatmul.mubr.bf16.gmra.mrb[0].mxu0 %v1337
      %v1423 = vpop.f32.mrb[0].mxu0
      %v1424 = vadd.f32 0.0, %v1423
      %v1425 = vpop.f32.mrb[0].mxu0
      %v1426 = vpop.f32.mrb[0].mxu0
      %v1427 = vadd.f32 0.0, %v1426
      %v1428 = vpop.f32.mrb[0].mxu0
      %1429 = vmatprep.mubr.bf16.mxu0 0
      %1430 = vmatmul.mubr.bf16.gmra.mrb[0].mxu0 %v1340
      %v1431 = vpop.f32.mrb[0].mxu0
      %v1432 = vadd.f32 0.0, %v1431
      %v1433 = vpop.f32.mrb[0].mxu0
      %v1434 = vpop.f32.mrb[0].mxu0
      %v1435 = vadd.f32 0.0, %v1434
      %v1436 = vpop.f32.mrb[0].mxu0
      %1437 = vmatprep.mubr.bf16.mxu0 0
      %1438 = vmatmul.mubr.bf16.gmra.mrb[0].mxu0 %v1343
      %v1439 = vpop.f32.mrb[0].mxu0
      %v1440 = vadd.f32 0.0, %v1439
      %v1441 = vpop.f32.mrb[0].mxu0
      %v1442 = vpop.f32.mrb[0].mxu0
      %v1443 = vadd.f32 0.0, %v1442
      %v1444 = vpop.f32.mrb[0].mxu0
      %1445 = vmatprep.mubr.bf16.mxu0 0
      %1446 = vmatmul.mubr.bf16.gmra.mrb[0].mxu0 %v1346
      %v1447 = vpop.f32.mrb[0].mxu0
      %v1448 = vadd.f32 0.0, %v1447
      %v1449 = vpop.f32.mrb[0].mxu0
      %v1450 = vpop.f32.mrb[0].mxu0
      %v1451 = vadd.f32 0.0, %v1450
      %v1452 = vpop.f32.mrb[0].mxu0
      %1453 = vmatprep.mubr.bf16.mxu0 0
      %1454 = vmatmul.mubr.bf16.gmra.mrb[0].mxu0 %v1349
      %v1455 = vpop.f32.mrb[0].mxu0
      %v1456 = vadd.f32 0.0, %v1455
      %v1457 = vpop.f32.mrb[0].mxu0
      %v1458 = vpop.f32.mrb[0].mxu0
      %v1459 = vadd.f32 0.0, %v1458
      %v1460 = vpop.f32.mrb[0].mxu0
      %1461 = vmatprep.mubr.bf16.mxu0 0
      %1462 = vmatmul.mubr.bf16.gmra.mrb[0].mxu0 %v1352
      %v1463 = vpop.f32.mrb[0].mxu0
      %v1464 = vadd.f32 0.0, %v1463
      %v1465 = vpop.f32.mrb[0].mxu0
      %v1466 = vpop.f32.mrb[0].mxu0
      %v1467 = vadd.f32 0.0, %v1466
      %v1468 = vpop.f32.mrb[0].mxu0
      %1469 = vmatprep.mubr.bf16.mxu0 0
      %1470 = vmatmul.mubr.bf16.gmra.mrb[0].mxu0 %v1355
      %v1471 = vpop.f32.mrb[0].mxu0
      %v1472 = vadd.f32 0.0, %v1471
      %v1473 = vpop.f32.mrb[0].mxu0
      %v1474 = vpop.f32.mrb[0].mxu0
      %v1475 = vadd.f32 0.0, %v1474
      %v1476 = vpop.f32.mrb[0].mxu0
      %1477 = vdwg.mxu0
      %v1478 = vmul.f32 %v1416, 0.35355338
      %v1479 = vmul.f32 %v1419, 0.35355338
      %v1480 = vmul.f32 %v1424, 0.35355338
      %v1481 = vmul.f32 %v1427, 0.35355338
      %v1482 = vmul.f32 %v1432, 0.35355338
      %v1483 = vmul.f32 %v1435, 0.35355338
      %v1484 = vmul.f32 %v1440, 0.35355338
      %v1485 = vmul.f32 %v1443, 0.35355338
      %v1486 = vmul.f32 %v1448, 0.35355338
      %v1487 = vmul.f32 %v1451, 0.35355338
      %v1488 = vmul.f32 %v1456, 0.35355338
      %v1489 = vmul.f32 %v1459, 0.35355338
      %v1490 = vmul.f32 %v1464, 0.35355338
      %v1491 = vmul.f32 %v1467, 0.35355338
      %v1492 = vmul.f32 %v1472, 0.35355338
      %v1493 = vmul.f32 %v1475, 0.35355338
      %v1494 = vadd.f32 %v1478, %v922
      %v1495 = vadd.f32 %v1479, %v922
      %v1496 = vadd.f32 %v1480, %v922
      %v1497 = vadd.f32 %v1481, %v922
      %v1498 = vadd.f32 %v1482, %v922
      %v1499 = vadd.f32 %v1483, %v922
      %v1500 = vadd.f32 %v1484, %v922
      %v1501 = vadd.f32 %v1485, %v922
      %v1502 = vadd.f32 %v1486, %v922
      %v1503 = vadd.f32 %v1487, %v922
      %v1504 = vadd.f32 %v1488, %v922
      %v1505 = vadd.f32 %v1489, %v922
      %v1506 = vadd.f32 %v1490, %v922
      %v1507 = vadd.f32 %v1491, %v922
      %v1508 = vadd.f32 %v1492, %v922
      %v1509 = vadd.f32 %v1493, %v922
      %1510 = vmax.xlane.f32.xlu0 %v1494
      %v1511 = vpop.xlane.xlu0 %1510
      %1512 = vmax.xlane.f32.xlu0 %v1495
      %v1513 = vpop.xlane.xlu0 %1512
      %1514 = vmax.xlane.f32.xlu0 %v1496
      %v1515 = vpop.xlane.xlu0 %1514
      %1516 = vmax.xlane.f32.xlu0 %v1497
      %v1517 = vpop.xlane.xlu0 %1516
      %1518 = vmax.xlane.f32.xlu0 %v1498
      %v1519 = vpop.xlane.xlu0 %1518
      %1520 = vmax.xlane.f32.xlu0 %v1499
      %v1521 = vpop.xlane.xlu0 %1520
      %1522 = vmax.xlane.f32.xlu0 %v1500
      %v1523 = vpop.xlane.xlu0 %1522
      %1524 = vmax.xlane.f32.xlu0 %v1501
      %v1525 = vpop.xlane.xlu0 %1524
      %1526 = vmax.xlane.f32.xlu0 %v1502
      %v1527 = vpop.xlane.xlu0 %1526
      %1528 = vmax.xlane.f32.xlu0 %v1503
      %v1529 = vpop.xlane.xlu0 %1528
      %1530 = vmax.xlane.f32.xlu0 %v1504
      %v1531 = vpop.xlane.xlu0 %1530
      %1532 = vmax.xlane.f32.xlu0 %v1505
      %v1533 = vpop.xlane.xlu0 %1532
      %1534 = vmax.xlane.f32.xlu0 %v1506
      %v1535 = vpop.xlane.xlu0 %1534
      %1536 = vmax.xlane.f32.xlu0 %v1507
      %v1537 = vpop.xlane.xlu0 %1536
      %1538 = vmax.xlane.f32.xlu0 %v1508
      %v1539 = vpop.xlane.xlu0 %1538
      %1540 = vmax.xlane.f32.xlu0 %v1509
      %v1541 = vpop.xlane.xlu0 %1540
      %v1542 = vsub.f32 %v1494, %v1511
      %v1543 = vsub.f32 %v1495, %v1513
      %v1544 = vsub.f32 %v1496, %v1515
      %v1545 = vsub.f32 %v1497, %v1517
      %v1546 = vsub.f32 %v1498, %v1519
      %v1547 = vsub.f32 %v1499, %v1521
      %v1548 = vsub.f32 %v1500, %v1523
      %v1549 = vsub.f32 %v1501, %v1525
      %v1550 = vsub.f32 %v1502, %v1527
      %v1551 = vsub.f32 %v1503, %v1529
      %v1552 = vsub.f32 %v1504, %v1531
      %v1553 = vsub.f32 %v1505, %v1533
      %v1554 = vsub.f32 %v1506, %v1535
      %v1555 = vsub.f32 %v1507, %v1537
      %v1556 = vsub.f32 %v1508, %v1539
      %v1557 = vsub.f32 %v1509, %v1541
      %v1558 = vmul.f32 %v1542, 1.442695
      %v1559 = vpow.pop %v1558
      %v1560 = vmul.f32 %v1543, 1.442695
      %v1561 = vpow.pop %v1560
      %v1562 = vmul.f32 %v1544, 1.442695
      %v1563 = vpow.pop %v1562
      %v1564 = vmul.f32 %v1545, 1.442695
      %v1565 = vpow.pop %v1564
      %v1566 = vmul.f32 %v1546, 1.442695
      %v1567 = vpow.pop %v1566
      %v1568 = vmul.f32 %v1547, 1.442695
      %v1569 = vpow.pop %v1568
      %v1570 = vmul.f32 %v1548, 1.442695
      %v1571 = vpow.pop %v1570
      %v1572 = vmul.f32 %v1549, 1.442695
      %v1573 = vpow.pop %v1572
      %v1574 = vmul.f32 %v1550, 1.442695
      %v1575 = vpow.pop %v1574
      %v1576 = vmul.f32 %v1551, 1.442695
      %v1577 = vpow.pop %v1576
      %v1578 = vmul.f32 %v1552, 1.442695
      %v1579 = vpow.pop %v1578
      %v1580 = vmul.f32 %v1553, 1.442695
      %v1581 = vpow.pop %v1580
      %v1582 = vmul.f32 %v1554, 1.442695
      %v1583 = vpow.pop %v1582
      %v1584 = vmul.f32 %v1555, 1.442695
      %v1585 = vpow.pop %v1584
      %v1586 = vmul.f32 %v1556, 1.442695
      %v1587 = vpow.pop %v1586
      %v1588 = vmul.f32 %v1557, 1.442695
      %v1589 = vpow.pop %v1588
      %1590 = vadd.xlane.f32.xlu0 %v1559
      %v1591 = vpop.xlane.xlu0 %1590
      %1592 = vadd.xlane.f32.xlu0 %v1561
      %v1593 = vpop.xlane.xlu0 %1592
      %1594 = vadd.xlane.f32.xlu0 %v1563
      %v1595 = vpop.xlane.xlu0 %1594
      %1596 = vadd.xlane.f32.xlu0 %v1565
      %v1597 = vpop.xlane.xlu0 %1596
      %1598 = vadd.xlane.f32.xlu0 %v1567
      %v1599 = vpop.xlane.xlu0 %1598
      %1600 = vadd.xlane.f32.xlu0 %v1569
      %v1601 = vpop.xlane.xlu0 %1600
      %1602 = vadd.xlane.f32.xlu0 %v1571
      %v1603 = vpop.xlane.xlu0 %1602
      %1604 = vadd.xlane.f32.xlu0 %v1573
      %v1605 = vpop.xlane.xlu0 %1604
      %1606 = vadd.xlane.f32.xlu0 %v1575
      %v1607 = vpop.xlane.xlu0 %1606
      %1608 = vadd.xlane.f32.xlu0 %v1577
      %v1609 = vpop.xlane.xlu0 %1608
      %1610 = vadd.xlane.f32.xlu0 %v1579
      %v1611 = vpop.xlane.xlu0 %1610
      %1612 = vadd.xlane.f32.xlu0 %v1581
      %v1613 = vpop.xlane.xlu0 %1612
      %1614 = vadd.xlane.f32.xlu0 %v1583
      %v1615 = vpop.xlane.xlu0 %1614
      %1616 = vadd.xlane.f32.xlu0 %v1585
      %v1617 = vpop.xlane.xlu0 %1616
      %1618 = vadd.xlane.f32.xlu0 %v1587
      %v1619 = vpop.xlane.xlu0 %1618
      %1620 = vadd.xlane.f32.xlu0 %v1589
      %v1621 = vpop.xlane.xlu0 %1620
      %v1622 = vrcp.pop %v1591
      %v1623 = vrcp.pop %v1593
      %v1624 = vrcp.pop %v1595
      %v1625 = vrcp.pop %v1597
      %v1626 = vrcp.pop %v1599
      %v1627 = vrcp.pop %v1601
      %v1628 = vrcp.pop %v1603
      %v1629 = vrcp.pop %v1605
      %v1630 = vrcp.pop %v1607
      %v1631 = vrcp.pop %v1609
      %v1632 = vrcp.pop %v1611
      %v1633 = vrcp.pop %v1613
      %v1634 = vrcp.pop %v1615
      %v1635 = vrcp.pop %v1617
      %v1636 = vrcp.pop %v1619
      %v1637 = vrcp.pop %v1621
      %v1638 = vmul.f32 %v1559, %v1622
      %v1639 = vmul.f32 %v1561, %v1623
      %v1640 = vmul.f32 %v1563, %v1624
      %v1641 = vmul.f32 %v1565, %v1625
      %v1642 = vmul.f32 %v1567, %v1626
      %v1643 = vmul.f32 %v1569, %v1627
      %v1644 = vmul.f32 %v1571, %v1628
      %v1645 = vmul.f32 %v1573, %v1629
      %v1646 = vmul.f32 %v1575, %v1630
      %v1647 = vmul.f32 %v1577, %v1631
      %v1648 = vmul.f32 %v1579, %v1632
      %v1649 = vmul.f32 %v1581, %v1633
      %v1650 = vmul.f32 %v1583, %v1634
      %v1651 = vmul.f32 %v1585, %v1635
      %v1652 = vmul.f32 %v1587, %v1636
      %v1653 = vmul.f32 %v1589, %v1637
      %v1654 = vpack.c.bf16 %v1639, %v1638
      %v1655 = vpack.c.bf16 %v1641, %v1640
      %v1656 = vpack.c.bf16 %v1643, %v1642
      %v1657 = vpack.c.bf16 %v1645, %v1644
      %v1658 = vpack.c.bf16 %v1647, %v1646
      %v1659 = vpack.c.bf16 %v1649, %v1648
      %v1660 = vpack.c.bf16 %v1651, %v1650
      %v1661 = vpack.c.bf16 %v1653, %v1652
      %v1662 = vpack.c.bf16 %v1257, %v1254
      %v1663 = vpack.c.bf16 %v1265, %v1262
      %v1664 = vpack.c.bf16 %v1273, %v1270
      %v1665 = vpack.c.bf16 %v1281, %v1278
      %v1666 = vpack.c.bf16 %v1289, %v1286
      %v1667 = vpack.c.bf16 %v1297, %v1294
      %v1668 = vpack.c.bf16 %v1305, %v1302
      %v1669 = vpack.c.bf16 %v1313, %v1310
      %1670 = vmatprep.subr.bf16.mxu0 0
      %1671 = vmatpush1.bf16.msra.mxu0 %v1662
      %1672 = vmatprep.subr.bf16.mxu0 0
      %1673 = vmatpush1.bf16.msra.mxu0 %v1663
      %1674 = vmatprep.subr.bf16.mxu0 0
      %1675 = vmatpush1.bf16.msra.mxu0 %v1664
      %1676 = vmatprep.subr.bf16.mxu0 0
      %1677 = vmatpush1.bf16.msra.mxu0 %v1665
      %1678 = vmatprep.subr.bf16.mxu0 0
      %1679 = vmatpush1.bf16.msra.mxu0 %v1666
      %1680 = vmatprep.subr.bf16.mxu0 0
      %1681 = vmatpush1.bf16.msra.mxu0 %v1667
      %1682 = vmatprep.subr.bf16.mxu0 0
      %1683 = vmatpush1.bf16.msra.mxu0 %v1668
      %1684 = vmatprep.subr.bf16.mxu0 0
      %1685 = vmatpush1.bf16.msra.mxu0 %v1669
      %1686 = vmatprep.subr.bf16.mxu0 0
      %1687 = vmatpush1.bf16.msra.mxu0 0
      %1688 = vmatprep.subr.bf16.mxu0 0
      %1689 = vmatpush1.bf16.msra.mxu0 0
      %1690 = vmatprep.subr.bf16.mxu0 0
      %1691 = vmatpush1.bf16.msra.mxu0 0
      %1692 = vmatprep.subr.bf16.mxu0 0
      %1693 = vmatpush1.bf16.msra.mxu0 0
      %1694 = vmatprep.subr.bf16.mxu0 0
      %1695 = vmatpush1.bf16.msra.mxu0 0
      %1696 = vmatprep.subr.bf16.mxu0 0
      %1697 = vmatpush1.bf16.msra.mxu0 0
      %1698 = vmatprep.subr.bf16.mxu0 0
      %1699 = vmatpush1.bf16.msra.mxu0 0
      %1700 = vmatprep.subr.bf16.mxu0 0
      %1701 = vmatpush1.bf16.msra.mxu0 0
      %1702 = vmatprep.mubr.bf16.mxu0 0
      %1703 = vmatmul.mubr.bf16.gmra.mrb[0].mxu0 %v1654
      %v1704 = vpop.f32.mrb[0].mxu0
      %v1705 = vadd.f32 0.0, %v1704
      %v1706 = vpop.f32.mrb[0].mxu0
      %v1707 = vpop.f32.mrb[0].mxu0
      %v1708 = vadd.f32 0.0, %v1707
      %v1709 = vpop.f32.mrb[0].mxu0
      %1710 = vmatprep.mubr.bf16.mxu0 0
      %1711 = vmatmul.mubr.bf16.gmra.mrb[0].mxu0 %v1655
      %v1712 = vpop.f32.mrb[0].mxu0
      %v1713 = vadd.f32 0.0, %v1712
      %v1714 = vpop.f32.mrb[0].mxu0
      %v1715 = vpop.f32.mrb[0].mxu0
      %v1716 = vadd.f32 0.0, %v1715
      %v1717 = vpop.f32.mrb[0].mxu0
      %1718 = vmatprep.mubr.bf16.mxu0 0
      %1719 = vmatmul.mubr.bf16.gmra.mrb[0].mxu0 %v1656
      %v1720 = vpop.f32.mrb[0].mxu0
      %v1721 = vadd.f32 0.0, %v1720
      %v1722 = vpop.f32.mrb[0].mxu0
      %v1723 = vpop.f32.mrb[0].mxu0
      %v1724 = vadd.f32 0.0, %v1723
      %v1725 = vpop.f32.mrb[0].mxu0
      %1726 = vmatprep.mubr.bf16.mxu0 0
      %1727 = vmatmul.mubr.bf16.gmra.mrb[0].mxu0 %v1657
      %v1728 = vpop.f32.mrb[0].mxu0
      %v1729 = vadd.f32 0.0, %v1728
      %v1730 = vpop.f32.mrb[0].mxu0
      %v1731 = vpop.f32.mrb[0].mxu0
      %v1732 = vadd.f32 0.0, %v1731
      %v1733 = vpop.f32.mrb[0].mxu0
      %1734 = vmatprep.mubr.bf16.mxu0 0
      %1735 = vmatmul.mubr.bf16.gmra.mrb[0].mxu0 %v1658
      %v1736 = vpop.f32.mrb[0].mxu0
      %v1737 = vadd.f32 0.0, %v1736
      %v1738 = vpop.f32.mrb[0].mxu0
      %v1739 = vpop.f32.mrb[0].mxu0
      %v1740 = vadd.f32 0.0, %v1739
      %v1741 = vpop.f32.mrb[0].mxu0
      %1742 = vmatprep.mubr.bf16.mxu0 0
      %1743 = vmatmul.mubr.bf16.gmra.mrb[0].mxu0 %v1659
      %v1744 = vpop.f32.mrb[0].mxu0
      %v1745 = vadd.f32 0.0, %v1744
      %v1746 = vpop.f32.mrb[0].mxu0
      %v1747 = vpop.f32.mrb[0].mxu0
      %v1748 = vadd.f32 0.0, %v1747
      %v1749 = vpop.f32.mrb[0].mxu0
      %1750 = vmatprep.mubr.bf16.mxu0 0
      %1751 = vmatmul.mubr.bf16.gmra.mrb[0].mxu0 %v1660
      %v1752 = vpop.f32.mrb[0].mxu0
      %v1753 = vadd.f32 0.0, %v1752
      %v1754 = vpop.f32.mrb[0].mxu0
      %v1755 = vpop.f32.mrb[0].mxu0
      %v1756 = vadd.f32 0.0, %v1755
      %v1757 = vpop.f32.mrb[0].mxu0
      %1758 = vmatprep.mubr.bf16.mxu0 0
      %1759 = vmatmul.mubr.bf16.gmra.mrb[0].mxu0 %v1661
      %v1760 = vpop.f32.mrb[0].mxu0
      %v1761 = vadd.f32 0.0, %v1760
      %v1762 = vpop.f32.mrb[0].mxu0
      %v1763 = vpop.f32.mrb[0].mxu0
      %v1764 = vadd.f32 0.0, %v1763
      %v1765 = vpop.f32.mrb[0].mxu0
      %1766 = vdwg.mxu0
      %v1767 = vpack.c.bf16 %v1708, %v1705
      %v1768 = vpack.c.bf16 %v1716, %v1713
      %v1769 = vpack.c.bf16 %v1724, %v1721
      %v1770 = vpack.c.bf16 %v1732, %v1729
      %v1771 = vpack.c.bf16 %v1740, %v1737
      %v1772 = vpack.c.bf16 %v1748, %v1745
      %v1773 = vpack.c.bf16 %v1756, %v1753
      %v1774 = vpack.c.bf16 %v1764, %v1761
      %v1775 = vld [vmem:[%s10] sm:$0xf]
      %s1776 = scalar_lea.vmem %s4, 16
      %v1777 = vld [vmem:[%s1776] sm:$0xf]
      %v1778 = vld [vmem:[%s1776 + $0x4] sm:$0xf]
      %v1779 = vld [vmem:[%s1776 + $0x8] sm:$0xf]
      %v1780 = vld [vmem:[%s1776 + $0xc] sm:$0xf]
      %s1781 = scalar_lea.vmem %s5, 1
      %v1782 = vld [vmem:[%s1781] sm:$0x1]
      %v1784 = vlaneseq
      %v1785 = vshrl.u32 %v1784, 7
      %v1786 = vsub.s32 0, %v1785
      %v1787 = vrot.slane %v1782, %v1786
      %v1793 = vunpack.c.l.b16 %v1777
      %v1794 = vunpack.c.l.b16 %v1778
      %v1795 = vunpack.c.l.b16 %v1779
      %v1796 = vunpack.c.l.b16 %v1780
      %v1797 = vpack.c.b16 %v1794, %v1793
      %v1798 = vpack.c.b16 %v1796, %v1795
      %1801 = vmatprep.subr.bf16.mxu0 0
      %1802 = vmatpush1.bf16.msra.mxu0 %v1797
      %1803 = vmatprep.subr.bf16.mxu0 0
      %1804 = vmatpush1.bf16.msra.mxu0 %v1798
      %1805 = vmatprep.subr.bf16.mxu0 0
      %1806 = vmatpush1.bf16.msra.mxu0 0
      %1807 = vmatprep.subr.bf16.mxu0 0
      %1808 = vmatpush1.bf16.msra.mxu0 0
      %1809 = vmatprep.subr.bf16.mxu0 0
      %1810 = vmatpush1.bf16.msra.mxu0 0
      %1811 = vmatprep.subr.bf16.mxu0 0
      %1812 = vmatpush1.bf16.msra.mxu0 0
      %1813 = vmatprep.subr.bf16.mxu0 0
      %1814 = vmatpush1.bf16.msra.mxu0 0
      %1815 = vmatprep.subr.bf16.mxu0 0
      %1816 = vmatpush1.bf16.msra.mxu0 0
      %1817 = vmatprep.subr.bf16.mxu0 0
      %1818 = vmatpush1.bf16.msra.mxu0 0
      %1819 = vmatprep.subr.bf16.mxu0 0
      %1820 = vmatpush1.bf16.msra.mxu0 0
      %1821 = vmatprep.subr.bf16.mxu0 0
      %1822 = vmatpush1.bf16.msra.mxu0 0
      %1823 = vmatprep.subr.bf16.mxu0 0
      %1824 = vmatpush1.bf16.msra.mxu0 0
      %1825 = vmatprep.subr.bf16.mxu0 0
      %1826 = vmatpush1.bf16.msra.mxu0 0
      %1827 = vmatprep.subr.bf16.mxu0 0
      %1828 = vmatpush1.bf16.msra.mxu0 0
      %1829 = vmatprep.subr.bf16.mxu0 0
      %1830 = vmatpush1.bf16.msra.mxu0 0
      %1831 = vmatprep.subr.bf16.mxu0 0
      %1832 = vmatpush1.bf16.msra.mxu0 0
      %1833 = vmatprep.mubr.bf16.mxu0 0
      %1834 = vmatmul.mubr.bf16.gmra.mrb[0].mxu0 %v956
      %v1835 = vpop.f32.mrb[0].mxu0
      %v1836 = vadd.f32 %v1787, %v1835
      %v1837 = vpop.f32.mrb[0].mxu0
      %v1838 = vpop.f32.mrb[0].mxu0
      %v1839 = vadd.f32 %v1787, %v1838
      %v1840 = vpop.f32.mrb[0].mxu0
      %1841 = vmatprep.mubr.bf16.mxu0 0
      %1842 = vmatmul.mubr.bf16.gmra.mrb[0].mxu0 %v959
      %v1843 = vpop.f32.mrb[0].mxu0
      %v1844 = vadd.f32 %v1787, %v1843
      %v1845 = vpop.f32.mrb[0].mxu0
      %v1846 = vpop.f32.mrb[0].mxu0
      %v1847 = vadd.f32 %v1787, %v1846
      %v1848 = vpop.f32.mrb[0].mxu0
      %1849 = vmatprep.mubr.bf16.mxu0 0
      %1850 = vmatmul.mubr.bf16.gmra.mrb[0].mxu0 %v962
      %v1851 = vpop.f32.mrb[0].mxu0
      %v1852 = vadd.f32 %v1787, %v1851
      %v1853 = vpop.f32.mrb[0].mxu0
      %v1854 = vpop.f32.mrb[0].mxu0
      %v1855 = vadd.f32 %v1787, %v1854
      %v1856 = vpop.f32.mrb[0].mxu0
      %1857 = vmatprep.mubr.bf16.mxu0 0
      %1858 = vmatmul.mubr.bf16.gmra.mrb[0].mxu0 %v965
      %v1859 = vpop.f32.mrb[0].mxu0
      %v1860 = vadd.f32 %v1787, %v1859
      %v1861 = vpop.f32.mrb[0].mxu0
      %v1862 = vpop.f32.mrb[0].mxu0
      %v1863 = vadd.f32 %v1787, %v1862
      %v1864 = vpop.f32.mrb[0].mxu0
      %1865 = vmatprep.mubr.bf16.mxu0 0
      %1866 = vmatmul.mubr.bf16.gmra.mrb[0].mxu0 %v968
      %v1867 = vpop.f32.mrb[0].mxu0
      %v1868 = vadd.f32 %v1787, %v1867
      %v1869 = vpop.f32.mrb[0].mxu0
      %v1870 = vpop.f32.mrb[0].mxu0
      %v1871 = vadd.f32 %v1787, %v1870
      %v1872 = vpop.f32.mrb[0].mxu0
      %1873 = vmatprep.mubr.bf16.mxu0 0
      %1874 = vmatmul.mubr.bf16.gmra.mrb[0].mxu0 %v971
      %v1875 = vpop.f32.mrb[0].mxu0
      %v1876 = vadd.f32 %v1787, %v1875
      %v1877 = vpop.f32.mrb[0].mxu0
      %v1878 = vpop.f32.mrb[0].mxu0
      %v1879 = vadd.f32 %v1787, %v1878
      %v1880 = vpop.f32.mrb[0].mxu0
      %1881 = vmatprep.mubr.bf16.mxu0 0
      %1882 = vmatmul.mubr.bf16.gmra.mrb[0].mxu0 %v974
      %v1883 = vpop.f32.mrb[0].mxu0
      %v1884 = vadd.f32 %v1787, %v1883
      %v1885 = vpop.f32.mrb[0].mxu0
      %v1886 = vpop.f32.mrb[0].mxu0
      %v1887 = vadd.f32 %v1787, %v1886
      %v1888 = vpop.f32.mrb[0].mxu0
      %1889 = vmatprep.mubr.bf16.mxu0 0
      %1890 = vmatmul.mubr.bf16.gmra.mrb[0].mxu0 %v977
      %v1891 = vpop.f32.mrb[0].mxu0
      %v1892 = vadd.f32 %v1787, %v1891
      %v1893 = vpop.f32.mrb[0].mxu0
      %v1894 = vpop.f32.mrb[0].mxu0
      %v1895 = vadd.f32 %v1787, %v1894
      %v1896 = vpop.f32.mrb[0].mxu0
      %1897 = vdwg.mxu0
      %s1898 = scalar_lea.vmem %s6, 16
      %v1899 = vld [vmem:[%s1898] sm:$0xf]
      %v1900 = vld [vmem:[%s1898 + $0x4] sm:$0xf]
      %v1901 = vld [vmem:[%s1898 + $0x8] sm:$0xf]
      %v1902 = vld [vmem:[%s1898 + $0xc] sm:$0xf]
      %s1903 = scalar_lea.vmem %s7, 1
      %v1904 = vld [vmem:[%s1903] sm:$0x1]
      %v1906 = vlaneseq
      %v1907 = vshrl.u32 %v1906, 7
      %v1908 = vsub.s32 0, %v1907
      %v1909 = vrot.slane %v1904, %v1908
      %v1915 = vunpack.c.l.b16 %v1899
      %v1916 = vunpack.c.l.b16 %v1900
      %v1917 = vunpack.c.l.b16 %v1901
      %v1918 = vunpack.c.l.b16 %v1902
      %v1919 = vpack.c.b16 %v1916, %v1915
      %v1920 = vpack.c.b16 %v1918, %v1917
      %1923 = vmatprep.subr.bf16.mxu0 0
      %1924 = vmatpush1.bf16.msra.mxu0 %v1919
      %1925 = vmatprep.subr.bf16.mxu0 0
      %1926 = vmatpush1.bf16.msra.mxu0 %v1920
      %1927 = vmatprep.subr.bf16.mxu0 0
      %1928 = vmatpush1.bf16.msra.mxu0 0
      %1929 = vmatprep.subr.bf16.mxu0 0
      %1930 = vmatpush1.bf16.msra.mxu0 0
      %1931 = vmatprep.subr.bf16.mxu0 0
      %1932 = vmatpush1.bf16.msra.mxu0 0
      %1933 = vmatprep.subr.bf16.mxu0 0
      %1934 = vmatpush1.bf16.msra.mxu0 0
      %1935 = vmatprep.subr.bf16.mxu0 0
      %1936 = vmatpush1.bf16.msra.mxu0 0
      %1937 = vmatprep.subr.bf16.mxu0 0
      %1938 = vmatpush1.bf16.msra.mxu0 0
      %1939 = vmatprep.subr.bf16.mxu0 0
      %1940 = vmatpush1.bf16.msra.mxu0 0
      %1941 = vmatprep.subr.bf16.mxu0 0
      %1942 = vmatpush1.bf16.msra.mxu0 0
      %1943 = vmatprep.subr.bf16.mxu0 0
      %1944 = vmatpush1.bf16.msra.mxu0 0
      %1945 = vmatprep.subr.bf16.mxu0 0
      %1946 = vmatpush1.bf16.msra.mxu0 0
      %1947 = vmatprep.subr.bf16.mxu0 0
      %1948 = vmatpush1.bf16.msra.mxu0 0
      %1949 = vmatprep.subr.bf16.mxu0 0
      %1950 = vmatpush1.bf16.msra.mxu0 0
      %1951 = vmatprep.subr.bf16.mxu0 0
      %1952 = vmatpush1.bf16.msra.mxu0 0
      %1953 = vmatprep.subr.bf16.mxu0 0
      %1954 = vmatpush1.bf16.msra.mxu0 0
      %1955 = vmatprep.mubr.bf16.mxu0 0
      %1956 = vmatmul.mubr.bf16.gmra.mrb[0].mxu0 %v956
      %v1957 = vpop.f32.mrb[0].mxu0
      %v1958 = vadd.f32 %v1909, %v1957
      %v1959 = vpop.f32.mrb[0].mxu0
      %v1960 = vpop.f32.mrb[0].mxu0
      %v1961 = vadd.f32 %v1909, %v1960
      %v1962 = vpop.f32.mrb[0].mxu0
      %1963 = vmatprep.mubr.bf16.mxu0 0
      %1964 = vmatmul.mubr.bf16.gmra.mrb[0].mxu0 %v959
      %v1965 = vpop.f32.mrb[0].mxu0
      %v1966 = vadd.f32 %v1909, %v1965
      %v1967 = vpop.f32.mrb[0].mxu0
      %v1968 = vpop.f32.mrb[0].mxu0
      %v1969 = vadd.f32 %v1909, %v1968
      %v1970 = vpop.f32.mrb[0].mxu0
      %1971 = vmatprep.mubr.bf16.mxu0 0
      %1972 = vmatmul.mubr.bf16.gmra.mrb[0].mxu0 %v962
      %v1973 = vpop.f32.mrb[0].mxu0
      %v1974 = vadd.f32 %v1909, %v1973
      %v1975 = vpop.f32.mrb[0].mxu0
      %v1976 = vpop.f32.mrb[0].mxu0
      %v1977 = vadd.f32 %v1909, %v1976
      %v1978 = vpop.f32.mrb[0].mxu0
      %1979 = vmatprep.mubr.bf16.mxu0 0
      %1980 = vmatmul.mubr.bf16.gmra.mrb[0].mxu0 %v965
      %v1981 = vpop.f32.mrb[0].mxu0
      %v1982 = vadd.f32 %v1909, %v1981
      %v1983 = vpop.f32.mrb[0].mxu0
      %v1984 = vpop.f32.mrb[0].mxu0
      %v1985 = vadd.f32 %v1909, %v1984
      %v1986 = vpop.f32.mrb[0].mxu0
      %1987 = vmatprep.mubr.bf16.mxu0 0
      %1988 = vmatmul.mubr.bf16.gmra.mrb[0].mxu0 %v968
      %v1989 = vpop.f32.mrb[0].mxu0
      %v1990 = vadd.f32 %v1909, %v1989
      %v1991 = vpop.f32.mrb[0].mxu0
      %v1992 = vpop.f32.mrb[0].mxu0
      %v1993 = vadd.f32 %v1909, %v1992
      %v1994 = vpop.f32.mrb[0].mxu0
      %1995 = vmatprep.mubr.bf16.mxu0 0
      %1996 = vmatmul.mubr.bf16.gmra.mrb[0].mxu0 %v971
      %v1997 = vpop.f32.mrb[0].mxu0
      %v1998 = vadd.f32 %v1909, %v1997
      %v1999 = vpop.f32.mrb[0].mxu0
      %v2000 = vpop.f32.mrb[0].mxu0
      %v2001 = vadd.f32 %v1909, %v2000
      %v2002 = vpop.f32.mrb[0].mxu0
      %2003 = vmatprep.mubr.bf16.mxu0 0
      %2004 = vmatmul.mubr.bf16.gmra.mrb[0].mxu0 %v974
      %v2005 = vpop.f32.mrb[0].mxu0
      %v2006 = vadd.f32 %v1909, %v2005
      %v2007 = vpop.f32.mrb[0].mxu0
      %v2008 = vpop.f32.mrb[0].mxu0
      %v2009 = vadd.f32 %v1909, %v2008
      %v2010 = vpop.f32.mrb[0].mxu0
      %2011 = vmatprep.mubr.bf16.mxu0 0
      %2012 = vmatmul.mubr.bf16.gmra.mrb[0].mxu0 %v977
      %v2013 = vpop.f32.mrb[0].mxu0
      %v2014 = vadd.f32 %v1909, %v2013
      %v2015 = vpop.f32.mrb[0].mxu0
      %v2016 = vpop.f32.mrb[0].mxu0
      %v2017 = vadd.f32 %v1909, %v2016
      %v2018 = vpop.f32.mrb[0].mxu0
      %2019 = vdwg.mxu0
      %s2020 = scalar_lea.vmem %s8, 16
      %v2021 = vld [vmem:[%s2020] sm:$0xf]
      %v2022 = vld [vmem:[%s2020 + $0x4] sm:$0xf]
      %v2023 = vld [vmem:[%s2020 + $0x8] sm:$0xf]
      %v2024 = vld [vmem:[%s2020 + $0xc] sm:$0xf]
      %s2025 = scalar_lea.vmem %s9, 1
      %v2026 = vld [vmem:[%s2025] sm:$0x1]
      %v2028 = vlaneseq
      %v2029 = vshrl.u32 %v2028, 7
      %v2030 = vsub.s32 0, %v2029
      %v2031 = vrot.slane %v2026, %v2030
      %v2037 = vunpack.c.l.b16 %v2021
      %v2038 = vunpack.c.l.b16 %v2022
      %v2039 = vunpack.c.l.b16 %v2023
      %v2040 = vunpack.c.l.b16 %v2024
      %v2041 = vpack.c.b16 %v2038, %v2037
      %v2042 = vpack.c.b16 %v2040, %v2039
      %2045 = vmatprep.subr.bf16.mxu0 0
      %2046 = vmatpush1.bf16.msra.mxu0 %v2041
      %2047 = vmatprep.subr.bf16.mxu0 0
      %2048 = vmatpush1.bf16.msra.mxu0 %v2042
      %2049 = vmatprep.subr.bf16.mxu0 0
      %2050 = vmatpush1.bf16.msra.mxu0 0
      %2051 = vmatprep.subr.bf16.mxu0 0
      %2052 = vmatpush1.bf16.msra.mxu0 0
      %2053 = vmatprep.subr.bf16.mxu0 0
      %2054 = vmatpush1.bf16.msra.mxu0 0
      %2055 = vmatprep.subr.bf16.mxu0 0
      %2056 = vmatpush1.bf16.msra.mxu0 0
      %2057 = vmatprep.subr.bf16.mxu0 0
      %2058 = vmatpush1.bf16.msra.mxu0 0
      %2059 = vmatprep.subr.bf16.mxu0 0
      %2060 = vmatpush1.bf16.msra.mxu0 0
      %2061 = vmatprep.subr.bf16.mxu0 0
      %2062 = vmatpush1.bf16.msra.mxu0 0
      %2063 = vmatprep.subr.bf16.mxu0 0
      %2064 = vmatpush1.bf16.msra.mxu0 0
      %2065 = vmatprep.subr.bf16.mxu0 0
      %2066 = vmatpush1.bf16.msra.mxu0 0
      %2067 = vmatprep.subr.bf16.mxu0 0
      %2068 = vmatpush1.bf16.msra.mxu0 0
      %2069 = vmatprep.subr.bf16.mxu0 0
      %2070 = vmatpush1.bf16.msra.mxu0 0
      %2071 = vmatprep.subr.bf16.mxu0 0
      %2072 = vmatpush1.bf16.msra.mxu0 0
      %2073 = vmatprep.subr.bf16.mxu0 0
      %2074 = vmatpush1.bf16.msra.mxu0 0
      %2075 = vmatprep.subr.bf16.mxu0 0
      %2076 = vmatpush1.bf16.msra.mxu0 0
      %2077 = vmatprep.mubr.bf16.mxu0 0
      %2078 = vmatmul.mubr.bf16.gmra.mrb[0].mxu0 %v956
      %v2079 = vpop.f32.mrb[0].mxu0
      %v2080 = vadd.f32 %v2031, %v2079
      %v2081 = vpop.f32.mrb[0].mxu0
      %v2082 = vpop.f32.mrb[0].mxu0
      %v2083 = vadd.f32 %v2031, %v2082
      %v2084 = vpop.f32.mrb[0].mxu0
      %2085 = vmatprep.mubr.bf16.mxu0 0
      %2086 = vmatmul.mubr.bf16.gmra.mrb[0].mxu0 %v959
      %v2087 = vpop.f32.mrb[0].mxu0
      %v2088 = vadd.f32 %v2031, %v2087
      %v2089 = vpop.f32.mrb[0].mxu0
      %v2090 = vpop.f32.mrb[0].mxu0
      %v2091 = vadd.f32 %v2031, %v2090
      %v2092 = vpop.f32.mrb[0].mxu0
      %2093 = vmatprep.mubr.bf16.mxu0 0
      %2094 = vmatmul.mubr.bf16.gmra.mrb[0].mxu0 %v962
      %v2095 = vpop.f32.mrb[0].mxu0
      %v2096 = vadd.f32 %v2031, %v2095
      %v2097 = vpop.f32.mrb[0].mxu0
      %v2098 = vpop.f32.mrb[0].mxu0
      %v2099 = vadd.f32 %v2031, %v2098
      %v2100 = vpop.f32.mrb[0].mxu0
      %2101 = vmatprep.mubr.bf16.mxu0 0
      %2102 = vmatmul.mubr.bf16.gmra.mrb[0].mxu0 %v965
      %v2103 = vpop.f32.mrb[0].mxu0
      %v2104 = vadd.f32 %v2031, %v2103
      %v2105 = vpop.f32.mrb[0].mxu0
      %v2106 = vpop.f32.mrb[0].mxu0
      %v2107 = vadd.f32 %v2031, %v2106
      %v2108 = vpop.f32.mrb[0].mxu0
      %2109 = vmatprep.mubr.bf16.mxu0 0
      %2110 = vmatmul.mubr.bf16.gmra.mrb[0].mxu0 %v968
      %v2111 = vpop.f32.mrb[0].mxu0
      %v2112 = vadd.f32 %v2031, %v2111
      %v2113 = vpop.f32.mrb[0].mxu0
      %v2114 = vpop.f32.mrb[0].mxu0
      %v2115 = vadd.f32 %v2031, %v2114
      %v2116 = vpop.f32.mrb[0].mxu0
      %2117 = vmatprep.mubr.bf16.mxu0 0
      %2118 = vmatmul.mubr.bf16.gmra.mrb[0].mxu0 %v971
      %v2119 = vpop.f32.mrb[0].mxu0
      %v2120 = vadd.f32 %v2031, %v2119
      %v2121 = vpop.f32.mrb[0].mxu0
      %v2122 = vpop.f32.mrb[0].mxu0
      %v2123 = vadd.f32 %v2031, %v2122
      %v2124 = vpop.f32.mrb[0].mxu0
      %2125 = vmatprep.mubr.bf16.mxu0 0
      %2126 = vmatmul.mubr.bf16.gmra.mrb[0].mxu0 %v974
      %v2127 = vpop.f32.mrb[0].mxu0
      %v2128 = vadd.f32 %v2031, %v2127
      %v2129 = vpop.f32.mrb[0].mxu0
      %v2130 = vpop.f32.mrb[0].mxu0
      %v2131 = vadd.f32 %v2031, %v2130
      %v2132 = vpop.f32.mrb[0].mxu0
      %2133 = vmatprep.mubr.bf16.mxu0 0
      %2134 = vmatmul.mubr.bf16.gmra.mrb[0].mxu0 %v977
      %v2135 = vpop.f32.mrb[0].mxu0
      %v2136 = vadd.f32 %v2031, %v2135
      %v2137 = vpop.f32.mrb[0].mxu0
      %v2138 = vpop.f32.mrb[0].mxu0
      %v2139 = vadd.f32 %v2031, %v2138
      %v2140 = vpop.f32.mrb[0].mxu0
      %2141 = vdwg.mxu0
      %v2142 = vpack.c.bf16 %v1839, %v1836
      %v2143 = vpack.c.bf16 %v1847, %v1844
      %v2144 = vpack.c.bf16 %v1855, %v1852
      %v2145 = vpack.c.bf16 %v1863, %v1860
      %v2146 = vpack.c.bf16 %v1871, %v1868
      %v2147 = vpack.c.bf16 %v1879, %v1876
      %v2148 = vpack.c.bf16 %v1887, %v1884
      %v2149 = vpack.c.bf16 %v1895, %v1892
      %v2150 = vpack.c.bf16 %v1961, %v1958
      %v2151 = vpack.c.bf16 %v1969, %v1966
      %v2152 = vpack.c.bf16 %v1977, %v1974
      %v2153 = vpack.c.bf16 %v1985, %v1982
      %v2154 = vpack.c.bf16 %v1993, %v1990
      %v2155 = vpack.c.bf16 %v2001, %v1998
      %v2156 = vpack.c.bf16 %v2009, %v2006
      %v2157 = vpack.c.bf16 %v2017, %v2014
      %v2159 = vsel %vm1332, %v2142, 0
      %v2162 = vsel %vm1332, %v2143, 0
      %v2165 = vsel %vm1332, %v2144, 0
      %v2168 = vsel %vm1332, %v2145, 0
      %v2171 = vsel %vm1332, %v2146, 0
      %v2174 = vsel %vm1332, %v2147, 0
      %v2177 = vsel %vm1332, %v2148, 0
      %v2180 = vsel %vm1332, %v2149, 0
      %v2183 = vsel %vm1332, %v2150, 0
      %v2186 = vsel %vm1332, %v2151, 0
      %v2189 = vsel %vm1332, %v2152, 0
      %v2192 = vsel %vm1332, %v2153, 0
      %v2195 = vsel %vm1332, %v2154, 0
      %v2198 = vsel %vm1332, %v2155, 0
      %v2201 = vsel %vm1332, %v2156, 0
      %v2204 = vsel %vm1332, %v2157, 0
      %2206 = vmatprep.subr.bf16.mxu0 0
      %2207 = vmatpush1.bf16.xpose.msra.mxu0 %v2183
      %2208 = vmatprep.subr.bf16.mxu0 0
      %2209 = vmatpush1.bf16.xpose.msra.mxu0 %v2186
      %2210 = vmatprep.subr.bf16.mxu0 0
      %2211 = vmatpush1.bf16.xpose.msra.mxu0 %v2189
      %2212 = vmatprep.subr.bf16.mxu0 0
      %2213 = vmatpush1.bf16.xpose.msra.mxu0 %v2192
      %2214 = vmatprep.subr.bf16.mxu0 0
      %2215 = vmatpush1.bf16.xpose.msra.mxu0 %v2195
      %2216 = vmatprep.subr.bf16.mxu0 0
      %2217 = vmatpush1.bf16.xpose.msra.mxu0 %v2198
      %2218 = vmatprep.subr.bf16.mxu0 0
      %2219 = vmatpush1.bf16.xpose.msra.mxu0 %v2201
      %2220 = vmatprep.subr.bf16.mxu0 0
      %2221 = vmatpush1.bf16.xpose.msra.mxu0 %v2204
      %2222 = vmatprep.subr.bf16.mxu0 0
      %2223 = vmatpush1.bf16.xpose.msra.mxu0 0
      %2224 = vmatprep.subr.bf16.mxu0 0
      %2225 = vmatpush1.bf16.xpose.msra.mxu0 0
      %2226 = vmatprep.subr.bf16.mxu0 0
      %2227 = vmatpush1.bf16.xpose.msra.mxu0 0
      %2228 = vmatprep.subr.bf16.mxu0 0
      %2229 = vmatpush1.bf16.xpose.msra.mxu0 0
      %2230 = vmatprep.subr.bf16.mxu0 0
      %2231 = vmatpush1.bf16.xpose.msra.mxu0 0
      %2232 = vmatprep.subr.bf16.mxu0 0
      %2233 = vmatpush1.bf16.xpose.msra.mxu0 0
      %2234 = vmatprep.subr.bf16.mxu0 0
      %2235 = vmatpush1.bf16.xpose.msra.mxu0 0
      %2236 = vmatprep.subr.bf16.mxu0 0
      %2237 = vmatpush1.bf16.xpose.msra.mxu0 0
      %2238 = vmatprep.mubr.bf16.mxu0 0
      %2239 = vmatmul.mubr.bf16.gmra.mrb[0].mxu0 %v2159
      %v2240 = vpop.f32.mrb[0].mxu0
      %v2241 = vadd.f32 0.0, %v2240
      %v2242 = vpop.f32.mrb[0].mxu0
      %v2243 = vpop.f32.mrb[0].mxu0
      %v2244 = vadd.f32 0.0, %v2243
      %v2245 = vpop.f32.mrb[0].mxu0
      %2246 = vmatprep.mubr.bf16.mxu0 0
      %2247 = vmatmul.mubr.bf16.gmra.mrb[0].mxu0 %v2162
      %v2248 = vpop.f32.mrb[0].mxu0
      %v2249 = vadd.f32 0.0, %v2248
      %v2250 = vpop.f32.mrb[0].mxu0
      %v2251 = vpop.f32.mrb[0].mxu0
      %v2252 = vadd.f32 0.0, %v2251
      %v2253 = vpop.f32.mrb[0].mxu0
      %2254 = vmatprep.mubr.bf16.mxu0 0
      %2255 = vmatmul.mubr.bf16.gmra.mrb[0].mxu0 %v2165
      %v2256 = vpop.f32.mrb[0].mxu0
      %v2257 = vadd.f32 0.0, %v2256
      %v2258 = vpop.f32.mrb[0].mxu0
      %v2259 = vpop.f32.mrb[0].mxu0
      %v2260 = vadd.f32 0.0, %v2259
      %v2261 = vpop.f32.mrb[0].mxu0
      %2262 = vmatprep.mubr.bf16.mxu0 0
      %2263 = vmatmul.mubr.bf16.gmra.mrb[0].mxu0 %v2168
      %v2264 = vpop.f32.mrb[0].mxu0
      %v2265 = vadd.f32 0.0, %v2264
      %v2266 = vpop.f32.mrb[0].mxu0
      %v2267 = vpop.f32.mrb[0].mxu0
      %v2268 = vadd.f32 0.0, %v2267
      %v2269 = vpop.f32.mrb[0].mxu0
      %2270 = vmatprep.mubr.bf16.mxu0 0
      %2271 = vmatmul.mubr.bf16.gmra.mrb[0].mxu0 %v2171
      %v2272 = vpop.f32.mrb[0].mxu0
      %v2273 = vadd.f32 0.0, %v2272
      %v2274 = vpop.f32.mrb[0].mxu0
      %v2275 = vpop.f32.mrb[0].mxu0
      %v2276 = vadd.f32 0.0, %v2275
      %v2277 = vpop.f32.mrb[0].mxu0
      %2278 = vmatprep.mubr.bf16.mxu0 0
      %2279 = vmatmul.mubr.bf16.gmra.mrb[0].mxu0 %v2174
      %v2280 = vpop.f32.mrb[0].mxu0
      %v2281 = vadd.f32 0.0, %v2280
      %v2282 = vpop.f32.mrb[0].mxu0
      %v2283 = vpop.f32.mrb[0].mxu0
      %v2284 = vadd.f32 0.0, %v2283
      %v2285 = vpop.f32.mrb[0].mxu0
      %2286 = vmatprep.mubr.bf16.mxu0 0
      %2287 = vmatmul.mubr.bf16.gmra.mrb[0].mxu0 %v2177
      %v2288 = vpop.f32.mrb[0].mxu0
      %v2289 = vadd.f32 0.0, %v2288
      %v2290 = vpop.f32.mrb[0].mxu0
      %v2291 = vpop.f32.mrb[0].mxu0
      %v2292 = vadd.f32 0.0, %v2291
      %v2293 = vpop.f32.mrb[0].mxu0
      %2294 = vmatprep.mubr.bf16.mxu0 0
      %2295 = vmatmul.mubr.bf16.gmra.mrb[0].mxu0 %v2180
      %v2296 = vpop.f32.mrb[0].mxu0
      %v2297 = vadd.f32 0.0, %v2296
      %v2298 = vpop.f32.mrb[0].mxu0
      %v2299 = vpop.f32.mrb[0].mxu0
      %v2300 = vadd.f32 0.0, %v2299
      %v2301 = vpop.f32.mrb[0].mxu0
      %2302 = vdwg.mxu0
      %v2303 = vmul.f32 %v2241, 0.35355338
      %v2304 = vmul.f32 %v2244, 0.35355338
      %v2305 = vmul.f32 %v2249, 0.35355338
      %v2306 = vmul.f32 %v2252, 0.35355338
      %v2307 = vmul.f32 %v2257, 0.35355338
      %v2308 = vmul.f32 %v2260, 0.35355338
      %v2309 = vmul.f32 %v2265, 0.35355338
      %v2310 = vmul.f32 %v2268, 0.35355338
      %v2311 = vmul.f32 %v2273, 0.35355338
      %v2312 = vmul.f32 %v2276, 0.35355338
      %v2313 = vmul.f32 %v2281, 0.35355338
      %v2314 = vmul.f32 %v2284, 0.35355338
      %v2315 = vmul.f32 %v2289, 0.35355338
      %v2316 = vmul.f32 %v2292, 0.35355338
      %v2317 = vmul.f32 %v2297, 0.35355338
      %v2318 = vmul.f32 %v2300, 0.35355338
      %v2319 = vadd.f32 %v2303, %v922
      %v2320 = vadd.f32 %v2304, %v922
      %v2321 = vadd.f32 %v2305, %v922
      %v2322 = vadd.f32 %v2306, %v922
      %v2323 = vadd.f32 %v2307, %v922
      %v2324 = vadd.f32 %v2308, %v922
      %v2325 = vadd.f32 %v2309, %v922
      %v2326 = vadd.f32 %v2310, %v922
      %v2327 = vadd.f32 %v2311, %v922
      %v2328 = vadd.f32 %v2312, %v922
      %v2329 = vadd.f32 %v2313, %v922
      %v2330 = vadd.f32 %v2314, %v922
      %v2331 = vadd.f32 %v2315, %v922
      %v2332 = vadd.f32 %v2316, %v922
      %v2333 = vadd.f32 %v2317, %v922
      %v2334 = vadd.f32 %v2318, %v922
      %2335 = vmax.xlane.f32.xlu0 %v2319
      %v2336 = vpop.xlane.xlu0 %2335
      %2337 = vmax.xlane.f32.xlu0 %v2320
      %v2338 = vpop.xlane.xlu0 %2337
      %2339 = vmax.xlane.f32.xlu0 %v2321
      %v2340 = vpop.xlane.xlu0 %2339
      %2341 = vmax.xlane.f32.xlu0 %v2322
      %v2342 = vpop.xlane.xlu0 %2341
      %2343 = vmax.xlane.f32.xlu0 %v2323
      %v2344 = vpop.xlane.xlu0 %2343
      %2345 = vmax.xlane.f32.xlu0 %v2324
      %v2346 = vpop.xlane.xlu0 %2345
      %2347 = vmax.xlane.f32.xlu0 %v2325
      %v2348 = vpop.xlane.xlu0 %2347
      %2349 = vmax.xlane.f32.xlu0 %v2326
      %v2350 = vpop.xlane.xlu0 %2349
      %2351 = vmax.xlane.f32.xlu0 %v2327
      %v2352 = vpop.xlane.xlu0 %2351
      %2353 = vmax.xlane.f32.xlu0 %v2328
      %v2354 = vpop.xlane.xlu0 %2353
      %2355 = vmax.xlane.f32.xlu0 %v2329
      %v2356 = vpop.xlane.xlu0 %2355
      %2357 = vmax.xlane.f32.xlu0 %v2330
      %v2358 = vpop.xlane.xlu0 %2357
      %2359 = vmax.xlane.f32.xlu0 %v2331
      %v2360 = vpop.xlane.xlu0 %2359
      %2361 = vmax.xlane.f32.xlu0 %v2332
      %v2362 = vpop.xlane.xlu0 %2361
      %2363 = vmax.xlane.f32.xlu0 %v2333
      %v2364 = vpop.xlane.xlu0 %2363
      %2365 = vmax.xlane.f32.xlu0 %v2334
      %v2366 = vpop.xlane.xlu0 %2365
      %v2367 = vsub.f32 %v2319, %v2336
      %v2368 = vsub.f32 %v2320, %v2338
      %v2369 = vsub.f32 %v2321, %v2340
      %v2370 = vsub.f32 %v2322, %v2342
      %v2371 = vsub.f32 %v2323, %v2344
      %v2372 = vsub.f32 %v2324, %v2346
      %v2373 = vsub.f32 %v2325, %v2348
      %v2374 = vsub.f32 %v2326, %v2350
      %v2375 = vsub.f32 %v2327, %v2352
      %v2376 = vsub.f32 %v2328, %v2354
      %v2377 = vsub.f32 %v2329, %v2356
      %v2378 = vsub.f32 %v2330, %v2358
      %v2379 = vsub.f32 %v2331, %v2360
      %v2380 = vsub.f32 %v2332, %v2362
      %v2381 = vsub.f32 %v2333, %v2364
      %v2382 = vsub.f32 %v2334, %v2366
      %v2383 = vmul.f32 %v2367, 1.442695
      %v2384 = vpow.pop %v2383
      %v2385 = vmul.f32 %v2368, 1.442695
      %v2386 = vpow.pop %v2385
      %v2387 = vmul.f32 %v2369, 1.442695
      %v2388 = vpow.pop %v2387
      %v2389 = vmul.f32 %v2370, 1.442695
      %v2390 = vpow.pop %v2389
      %v2391 = vmul.f32 %v2371, 1.442695
      %v2392 = vpow.pop %v2391
      %v2393 = vmul.f32 %v2372, 1.442695
      %v2394 = vpow.pop %v2393
      %v2395 = vmul.f32 %v2373, 1.442695
      %v2396 = vpow.pop %v2395
      %v2397 = vmul.f32 %v2374, 1.442695
      %v2398 = vpow.pop %v2397
      %v2399 = vmul.f32 %v2375, 1.442695
      %v2400 = vpow.pop %v2399
      %v2401 = vmul.f32 %v2376, 1.442695
      %v2402 = vpow.pop %v2401
      %v2403 = vmul.f32 %v2377, 1.442695
      %v2404 = vpow.pop %v2403
      %v2405 = vmul.f32 %v2378, 1.442695
      %v2406 = vpow.pop %v2405
      %v2407 = vmul.f32 %v2379, 1.442695
      %v2408 = vpow.pop %v2407
      %v2409 = vmul.f32 %v2380, 1.442695
      %v2410 = vpow.pop %v2409
      %v2411 = vmul.f32 %v2381, 1.442695
      %v2412 = vpow.pop %v2411
      %v2413 = vmul.f32 %v2382, 1.442695
      %v2414 = vpow.pop %v2413
      %2415 = vadd.xlane.f32.xlu0 %v2384
      %v2416 = vpop.xlane.xlu0 %2415
      %2417 = vadd.xlane.f32.xlu0 %v2386
      %v2418 = vpop.xlane.xlu0 %2417
      %2419 = vadd.xlane.f32.xlu0 %v2388
      %v2420 = vpop.xlane.xlu0 %2419
      %2421 = vadd.xlane.f32.xlu0 %v2390
      %v2422 = vpop.xlane.xlu0 %2421
      %2423 = vadd.xlane.f32.xlu0 %v2392
      %v2424 = vpop.xlane.xlu0 %2423
      %2425 = vadd.xlane.f32.xlu0 %v2394
      %v2426 = vpop.xlane.xlu0 %2425
      %2427 = vadd.xlane.f32.xlu0 %v2396
      %v2428 = vpop.xlane.xlu0 %2427
      %2429 = vadd.xlane.f32.xlu0 %v2398
      %v2430 = vpop.xlane.xlu0 %2429
      %2431 = vadd.xlane.f32.xlu0 %v2400
      %v2432 = vpop.xlane.xlu0 %2431
      %2433 = vadd.xlane.f32.xlu0 %v2402
      %v2434 = vpop.xlane.xlu0 %2433
      %2435 = vadd.xlane.f32.xlu0 %v2404
      %v2436 = vpop.xlane.xlu0 %2435
      %2437 = vadd.xlane.f32.xlu0 %v2406
      %v2438 = vpop.xlane.xlu0 %2437
      %2439 = vadd.xlane.f32.xlu0 %v2408
      %v2440 = vpop.xlane.xlu0 %2439
      %2441 = vadd.xlane.f32.xlu0 %v2410
      %v2442 = vpop.xlane.xlu0 %2441
      %2443 = vadd.xlane.f32.xlu0 %v2412
      %v2444 = vpop.xlane.xlu0 %2443
      %2445 = vadd.xlane.f32.xlu0 %v2414
      %v2446 = vpop.xlane.xlu0 %2445
      %v2447 = vrcp.pop %v2416
      %v2448 = vrcp.pop %v2418
      %v2449 = vrcp.pop %v2420
      %v2450 = vrcp.pop %v2422
      %v2451 = vrcp.pop %v2424
      %v2452 = vrcp.pop %v2426
      %v2453 = vrcp.pop %v2428
      %v2454 = vrcp.pop %v2430
      %v2455 = vrcp.pop %v2432
      %v2456 = vrcp.pop %v2434
      %v2457 = vrcp.pop %v2436
      %v2458 = vrcp.pop %v2438
      %v2459 = vrcp.pop %v2440
      %v2460 = vrcp.pop %v2442
      %v2461 = vrcp.pop %v2444
      %v2462 = vrcp.pop %v2446
      %v2463 = vmul.f32 %v2384, %v2447
      %v2464 = vmul.f32 %v2386, %v2448
      %v2465 = vmul.f32 %v2388, %v2449
      %v2466 = vmul.f32 %v2390, %v2450
      %v2467 = vmul.f32 %v2392, %v2451
      %v2468 = vmul.f32 %v2394, %v2452
      %v2469 = vmul.f32 %v2396, %v2453
      %v2470 = vmul.f32 %v2398, %v2454
      %v2471 = vmul.f32 %v2400, %v2455
      %v2472 = vmul.f32 %v2402, %v2456
      %v2473 = vmul.f32 %v2404, %v2457
      %v2474 = vmul.f32 %v2406, %v2458
      %v2475 = vmul.f32 %v2408, %v2459
      %v2476 = vmul.f32 %v2410, %v2460
      %v2477 = vmul.f32 %v2412, %v2461
      %v2478 = vmul.f32 %v2414, %v2462
      %v2479 = vpack.c.bf16 %v2464, %v2463
      %v2480 = vpack.c.bf16 %v2466, %v2465
      %v2481 = vpack.c.bf16 %v2468, %v2467
      %v2482 = vpack.c.bf16 %v2470, %v2469
      %v2483 = vpack.c.bf16 %v2472, %v2471
      %v2484 = vpack.c.bf16 %v2474, %v2473
      %v2485 = vpack.c.bf16 %v2476, %v2475
      %v2486 = vpack.c.bf16 %v2478, %v2477
      %v2487 = vpack.c.bf16 %v2083, %v2080
      %v2488 = vpack.c.bf16 %v2091, %v2088
      %v2489 = vpack.c.bf16 %v2099, %v2096
      %v2490 = vpack.c.bf16 %v2107, %v2104
      %v2491 = vpack.c.bf16 %v2115, %v2112
      %v2492 = vpack.c.bf16 %v2123, %v2120
      %v2493 = vpack.c.bf16 %v2131, %v2128
      %v2494 = vpack.c.bf16 %v2139, %v2136
      %2495 = vmatprep.subr.bf16.mxu0 0
      %2496 = vmatpush1.bf16.msra.mxu0 %v2487
      %2497 = vmatprep.subr.bf16.mxu0 0
      %2498 = vmatpush1.bf16.msra.mxu0 %v2488
      %2499 = vmatprep.subr.bf16.mxu0 0
      %2500 = vmatpush1.bf16.msra.mxu0 %v2489
      %2501 = vmatprep.subr.bf16.mxu0 0
      %2502 = vmatpush1.bf16.msra.mxu0 %v2490
      %2503 = vmatprep.subr.bf16.mxu0 0
      %2504 = vmatpush1.bf16.msra.mxu0 %v2491
      %2505 = vmatprep.subr.bf16.mxu0 0
      %2506 = vmatpush1.bf16.msra.mxu0 %v2492
      %2507 = vmatprep.subr.bf16.mxu0 0
      %2508 = vmatpush1.bf16.msra.mxu0 %v2493
      %2509 = vmatprep.subr.bf16.mxu0 0
      %2510 = vmatpush1.bf16.msra.mxu0 %v2494
      %2511 = vmatprep.subr.bf16.mxu0 0
      %2512 = vmatpush1.bf16.msra.mxu0 0
      %2513 = vmatprep.subr.bf16.mxu0 0
      %2514 = vmatpush1.bf16.msra.mxu0 0
      %2515 = vmatprep.subr.bf16.mxu0 0
      %2516 = vmatpush1.bf16.msra.mxu0 0
      %2517 = vmatprep.subr.bf16.mxu0 0
      %2518 = vmatpush1.bf16.msra.mxu0 0
      %2519 = vmatprep.subr.bf16.mxu0 0
      %2520 = vmatpush1.bf16.msra.mxu0 0
      %2521 = vmatprep.subr.bf16.mxu0 0
      %2522 = vmatpush1.bf16.msra.mxu0 0
      %2523 = vmatprep.subr.bf16.mxu0 0
      %2524 = vmatpush1.bf16.msra.mxu0 0
      %2525 = vmatprep.subr.bf16.mxu0 0
      %2526 = vmatpush1.bf16.msra.mxu0 0
      %2527 = vmatprep.mubr.bf16.mxu0 0
      %2528 = vmatmul.mubr.bf16.gmra.mrb[0].mxu0 %v2479
      %v2529 = vpop.f32.mrb[0].mxu0
      %v2530 = vadd.f32 0.0, %v2529
      %v2531 = vpop.f32.mrb[0].mxu0
      %v2532 = vpop.f32.mrb[0].mxu0
      %v2533 = vadd.f32 0.0, %v2532
      %v2534 = vpop.f32.mrb[0].mxu0
      %2535 = vmatprep.mubr.bf16.mxu0 0
      %2536 = vmatmul.mubr.bf16.gmra.mrb[0].mxu0 %v2480
      %v2537 = vpop.f32.mrb[0].mxu0
      %v2538 = vadd.f32 0.0, %v2537
      %v2539 = vpop.f32.mrb[0].mxu0
      %v2540 = vpop.f32.mrb[0].mxu0
      %v2541 = vadd.f32 0.0, %v2540
      %v2542 = vpop.f32.mrb[0].mxu0
      %2543 = vmatprep.mubr.bf16.mxu0 0
      %2544 = vmatmul.mubr.bf16.gmra.mrb[0].mxu0 %v2481
      %v2545 = vpop.f32.mrb[0].mxu0
      %v2546 = vadd.f32 0.0, %v2545
      %v2547 = vpop.f32.mrb[0].mxu0
      %v2548 = vpop.f32.mrb[0].mxu0
      %v2549 = vadd.f32 0.0, %v2548
      %v2550 = vpop.f32.mrb[0].mxu0
      %2551 = vmatprep.mubr.bf16.mxu0 0
      %2552 = vmatmul.mubr.bf16.gmra.mrb[0].mxu0 %v2482
      %v2553 = vpop.f32.mrb[0].mxu0
      %v2554 = vadd.f32 0.0, %v2553
      %v2555 = vpop.f32.mrb[0].mxu0
      %v2556 = vpop.f32.mrb[0].mxu0
      %v2557 = vadd.f32 0.0, %v2556
      %v2558 = vpop.f32.mrb[0].mxu0
      %2559 = vmatprep.mubr.bf16.mxu0 0
      %2560 = vmatmul.mubr.bf16.gmra.mrb[0].mxu0 %v2483
      %v2561 = vpop.f32.mrb[0].mxu0
      %v2562 = vadd.f32 0.0, %v2561
      %v2563 = vpop.f32.mrb[0].mxu0
      %v2564 = vpop.f32.mrb[0].mxu0
      %v2565 = vadd.f32 0.0, %v2564
      %v2566 = vpop.f32.mrb[0].mxu0
      %2567 = vmatprep.mubr.bf16.mxu0 0
      %2568 = vmatmul.mubr.bf16.gmra.mrb[0].mxu0 %v2484
      %v2569 = vpop.f32.mrb[0].mxu0
      %v2570 = vadd.f32 0.0, %v2569
      %v2571 = vpop.f32.mrb[0].mxu0
      %v2572 = vpop.f32.mrb[0].mxu0
      %v2573 = vadd.f32 0.0, %v2572
      %v2574 = vpop.f32.mrb[0].mxu0
      %2575 = vmatprep.mubr.bf16.mxu0 0
      %2576 = vmatmul.mubr.bf16.gmra.mrb[0].mxu0 %v2485
      %v2577 = vpop.f32.mrb[0].mxu0
      %v2578 = vadd.f32 0.0, %v2577
      %v2579 = vpop.f32.mrb[0].mxu0
      %v2580 = vpop.f32.mrb[0].mxu0
      %v2581 = vadd.f32 0.0, %v2580
      %v2582 = vpop.f32.mrb[0].mxu0
      %2583 = vmatprep.mubr.bf16.mxu0 0
      %2584 = vmatmul.mubr.bf16.gmra.mrb[0].mxu0 %v2486
      %v2585 = vpop.f32.mrb[0].mxu0
      %v2586 = vadd.f32 0.0, %v2585
      %v2587 = vpop.f32.mrb[0].mxu0
      %v2588 = vpop.f32.mrb[0].mxu0
      %v2589 = vadd.f32 0.0, %v2588
      %v2590 = vpop.f32.mrb[0].mxu0
      %2591 = vdwg.mxu0
      %v2592 = vpack.c.bf16 %v2533, %v2530
      %v2593 = vpack.c.bf16 %v2541, %v2538
      %v2594 = vpack.c.bf16 %v2549, %v2546
      %v2595 = vpack.c.bf16 %v2557, %v2554
      %v2596 = vpack.c.bf16 %v2565, %v2562
      %v2597 = vpack.c.bf16 %v2573, %v2570
      %v2598 = vpack.c.bf16 %v2581, %v2578
      %v2599 = vpack.c.bf16 %v2589, %v2586
      %s2600 = scalar_lea.vmem %s10, 4
      %v2601 = vld [vmem:[%s2600] sm:$0xf]
      %v2603 = vsel %vm1332, %v2592, 0
      %v2606 = vsel %vm1332, %v2593, 0
      %v2609 = vsel %vm1332, %v2594, 0
      %v2612 = vsel %vm1332, %v2595, 0
      %v2615 = vsel %vm1332, %v2596, 0
      %v2618 = vsel %vm1332, %v2597, 0
      %v2621 = vsel %vm1332, %v2598, 0
      %v2624 = vsel %vm1332, %v2599, 0
      %vm2626 = vcmask 1043456
      %v2628 = vsel %vm2626, %v2601, 0
      %2630 = vmatprep.subr.bf16.mxu0 0
      %2631 = vmatpush1.bf16.msra.mxu0 %v2628
      %2632 = vmatprep.subr.bf16.mxu0 0
      %2633 = vmatpush1.bf16.msra.mxu0 0
      %2634 = vmatprep.subr.bf16.mxu0 0
      %2635 = vmatpush1.bf16.msra.mxu0 0
      %2636 = vmatprep.subr.bf16.mxu0 0
      %2637 = vmatpush1.bf16.msra.mxu0 0
      %2638 = vmatprep.subr.bf16.mxu0 0
      %2639 = vmatpush1.bf16.msra.mxu0 0
      %2640 = vmatprep.subr.bf16.mxu0 0
      %2641 = vmatpush1.bf16.msra.mxu0 0
      %2642 = vmatprep.subr.bf16.mxu0 0
      %2643 = vmatpush1.bf16.msra.mxu0 0
      %2644 = vmatprep.subr.bf16.mxu0 0
      %2645 = vmatpush1.bf16.msra.mxu0 0
      %2646 = vmatprep.subr.bf16.mxu0 0
      %2647 = vmatpush1.bf16.msra.mxu0 0
      %2648 = vmatprep.subr.bf16.mxu0 0
      %2649 = vmatpush1.bf16.msra.mxu0 0
      %2650 = vmatprep.subr.bf16.mxu0 0
      %2651 = vmatpush1.bf16.msra.mxu0 0
      %2652 = vmatprep.subr.bf16.mxu0 0
      %2653 = vmatpush1.bf16.msra.mxu0 0
      %2654 = vmatprep.subr.bf16.mxu0 0
      %2655 = vmatpush1.bf16.msra.mxu0 0
      %2656 = vmatprep.subr.bf16.mxu0 0
      %2657 = vmatpush1.bf16.msra.mxu0 0
      %2658 = vmatprep.subr.bf16.mxu0 0
      %2659 = vmatpush1.bf16.msra.mxu0 0
      %2660 = vmatprep.subr.bf16.mxu0 0
      %2661 = vmatpush1.bf16.msra.mxu0 0
      %2662 = vmatprep.mubr.bf16.mxu0 0
      %2663 = vmatmul.mubr.bf16.gmra.mrb[0].mxu0 %v2603
      %v2664 = vpop.f32.mrb[0].mxu0
      %v2665 = vadd.f32 0.0, %v2664
      %v2666 = vpop.f32.mrb[0].mxu0
      %v2667 = vpop.f32.mrb[0].mxu0
      %v2668 = vadd.f32 0.0, %v2667
      %v2669 = vpop.f32.mrb[0].mxu0
      %2670 = vmatprep.mubr.bf16.mxu0 0
      %2671 = vmatmul.mubr.bf16.gmra.mrb[0].mxu0 %v2606
      %v2672 = vpop.f32.mrb[0].mxu0
      %v2673 = vadd.f32 0.0, %v2672
      %v2674 = vpop.f32.mrb[0].mxu0
      %v2675 = vpop.f32.mrb[0].mxu0
      %v2676 = vadd.f32 0.0, %v2675
      %v2677 = vpop.f32.mrb[0].mxu0
      %2678 = vmatprep.mubr.bf16.mxu0 0
      %2679 = vmatmul.mubr.bf16.gmra.mrb[0].mxu0 %v2609
      %v2680 = vpop.f32.mrb[0].mxu0
      %v2681 = vadd.f32 0.0, %v2680
      %v2682 = vpop.f32.mrb[0].mxu0
      %v2683 = vpop.f32.mrb[0].mxu0
      %v2684 = vadd.f32 0.0, %v2683
      %v2685 = vpop.f32.mrb[0].mxu0
      %2686 = vmatprep.mubr.bf16.mxu0 0
      %2687 = vmatmul.mubr.bf16.gmra.mrb[0].mxu0 %v2612
      %v2688 = vpop.f32.mrb[0].mxu0
      %v2689 = vadd.f32 0.0, %v2688
      %v2690 = vpop.f32.mrb[0].mxu0
      %v2691 = vpop.f32.mrb[0].mxu0
      %v2692 = vadd.f32 0.0, %v2691
      %v2693 = vpop.f32.mrb[0].mxu0
      %2694 = vmatprep.mubr.bf16.mxu0 0
      %2695 = vmatmul.mubr.bf16.gmra.mrb[0].mxu0 %v2615
      %v2696 = vpop.f32.mrb[0].mxu0
      %v2697 = vadd.f32 0.0, %v2696
      %v2698 = vpop.f32.mrb[0].mxu0
      %v2699 = vpop.f32.mrb[0].mxu0
      %v2700 = vadd.f32 0.0, %v2699
      %v2701 = vpop.f32.mrb[0].mxu0
      %2702 = vmatprep.mubr.bf16.mxu0 0
      %2703 = vmatmul.mubr.bf16.gmra.mrb[0].mxu0 %v2618
      %v2704 = vpop.f32.mrb[0].mxu0
      %v2705 = vadd.f32 0.0, %v2704
      %v2706 = vpop.f32.mrb[0].mxu0
      %v2707 = vpop.f32.mrb[0].mxu0
      %v2708 = vadd.f32 0.0, %v2707
      %v2709 = vpop.f32.mrb[0].mxu0
      %2710 = vmatprep.mubr.bf16.mxu0 0
      %2711 = vmatmul.mubr.bf16.gmra.mrb[0].mxu0 %v2621
      %v2712 = vpop.f32.mrb[0].mxu0
      %v2713 = vadd.f32 0.0, %v2712
      %v2714 = vpop.f32.mrb[0].mxu0
      %v2715 = vpop.f32.mrb[0].mxu0
      %v2716 = vadd.f32 0.0, %v2715
      %v2717 = vpop.f32.mrb[0].mxu0
      %2718 = vmatprep.mubr.bf16.mxu0 0
      %2719 = vmatmul.mubr.bf16.gmra.mrb[0].mxu0 %v2624
      %v2720 = vpop.f32.mrb[0].mxu0
      %v2721 = vadd.f32 0.0, %v2720
      %v2722 = vpop.f32.mrb[0].mxu0
      %v2723 = vpop.f32.mrb[0].mxu0
      %v2724 = vadd.f32 0.0, %v2723
      %v2725 = vpop.f32.mrb[0].mxu0
      %2726 = vdwg.mxu0
      %v2728 = vsel %vm1332, %v1767, 0
      %v2731 = vsel %vm1332, %v1768, 0
      %v2734 = vsel %vm1332, %v1769, 0
      %v2737 = vsel %vm1332, %v1770, 0
      %v2740 = vsel %vm1332, %v1771, 0
      %v2743 = vsel %vm1332, %v1772, 0
      %v2746 = vsel %vm1332, %v1773, 0
      %v2749 = vsel %vm1332, %v1774, 0
      %v2752 = vsel %vm2626, %v1775, 0
      %2754 = vmatprep.subr.bf16.mxu0 0
      %2755 = vmatpush1.bf16.msra.mxu0 %v2752
      %2756 = vmatprep.subr.bf16.mxu0 0
      %2757 = vmatpush1.bf16.msra.mxu0 0
      %2758 = vmatprep.subr.bf16.mxu0 0
      %2759 = vmatpush1.bf16.msra.mxu0 0
      %2760 = vmatprep.subr.bf16.mxu0 0
      %2761 = vmatpush1.bf16.msra.mxu0 0
      %2762 = vmatprep.subr.bf16.mxu0 0
      %2763 = vmatpush1.bf16.msra.mxu0 0
      %2764 = vmatprep.subr.bf16.mxu0 0
      %2765 = vmatpush1.bf16.msra.mxu0 0
      %2766 = vmatprep.subr.bf16.mxu0 0
      %2767 = vmatpush1.bf16.msra.mxu0 0
      %2768 = vmatprep.subr.bf16.mxu0 0
      %2769 = vmatpush1.bf16.msra.mxu0 0
      %2770 = vmatprep.subr.bf16.mxu0 0
      %2771 = vmatpush1.bf16.msra.mxu0 0
      %2772 = vmatprep.subr.bf16.mxu0 0
      %2773 = vmatpush1.bf16.msra.mxu0 0
      %2774 = vmatprep.subr.bf16.mxu0 0
      %2775 = vmatpush1.bf16.msra.mxu0 0
      %2776 = vmatprep.subr.bf16.mxu0 0
      %2777 = vmatpush1.bf16.msra.mxu0 0
      %2778 = vmatprep.subr.bf16.mxu0 0
      %2779 = vmatpush1.bf16.msra.mxu0 0
      %2780 = vmatprep.subr.bf16.mxu0 0
      %2781 = vmatpush1.bf16.msra.mxu0 0
      %2782 = vmatprep.subr.bf16.mxu0 0
      %2783 = vmatpush1.bf16.msra.mxu0 0
      %2784 = vmatprep.subr.bf16.mxu0 0
      %2785 = vmatpush1.bf16.msra.mxu0 0
      %2786 = vmatprep.mubr.bf16.mxu0 0
      %2787 = vmatmul.mubr.bf16.gmra.mrb[0].mxu0 %v2728
      %v2788 = vpop.f32.mrb[0].mxu0
      %v2789 = vadd.f32 %v2665, %v2788
      %v2790 = vpop.f32.mrb[0].mxu0
      %v2791 = vpop.f32.mrb[0].mxu0
      %v2792 = vadd.f32 %v2668, %v2791
      %v2793 = vpop.f32.mrb[0].mxu0
      %2794 = vmatprep.mubr.bf16.mxu0 0
      %2795 = vmatmul.mubr.bf16.gmra.mrb[0].mxu0 %v2731
      %v2796 = vpop.f32.mrb[0].mxu0
      %v2797 = vadd.f32 %v2673, %v2796
      %v2798 = vpop.f32.mrb[0].mxu0
      %v2799 = vpop.f32.mrb[0].mxu0
      %v2800 = vadd.f32 %v2676, %v2799
      %v2801 = vpop.f32.mrb[0].mxu0
      %2802 = vmatprep.mubr.bf16.mxu0 0
      %2803 = vmatmul.mubr.bf16.gmra.mrb[0].mxu0 %v2734
      %v2804 = vpop.f32.mrb[0].mxu0
      %v2805 = vadd.f32 %v2681, %v2804
      %v2806 = vpop.f32.mrb[0].mxu0
      %v2807 = vpop.f32.mrb[0].mxu0
      %v2808 = vadd.f32 %v2684, %v2807
      %v2809 = vpop.f32.mrb[0].mxu0
      %2810 = vmatprep.mubr.bf16.mxu0 0
      %2811 = vmatmul.mubr.bf16.gmra.mrb[0].mxu0 %v2737
      %v2812 = vpop.f32.mrb[0].mxu0
      %v2813 = vadd.f32 %v2689, %v2812
      %v2814 = vpop.f32.mrb[0].mxu0
      %v2815 = vpop.f32.mrb[0].mxu0
      %v2816 = vadd.f32 %v2692, %v2815
      %v2817 = vpop.f32.mrb[0].mxu0
      %2818 = vmatprep.mubr.bf16.mxu0 0
      %2819 = vmatmul.mubr.bf16.gmra.mrb[0].mxu0 %v2740
      %v2820 = vpop.f32.mrb[0].mxu0
      %v2821 = vadd.f32 %v2697, %v2820
      %v2822 = vpop.f32.mrb[0].mxu0
      %v2823 = vpop.f32.mrb[0].mxu0
      %v2824 = vadd.f32 %v2700, %v2823
      %v2825 = vpop.f32.mrb[0].mxu0
      %2826 = vmatprep.mubr.bf16.mxu0 0
      %2827 = vmatmul.mubr.bf16.gmra.mrb[0].mxu0 %v2743
      %v2828 = vpop.f32.mrb[0].mxu0
      %v2829 = vadd.f32 %v2705, %v2828
      %v2830 = vpop.f32.mrb[0].mxu0
      %v2831 = vpop.f32.mrb[0].mxu0
      %v2832 = vadd.f32 %v2708, %v2831
      %v2833 = vpop.f32.mrb[0].mxu0
      %2834 = vmatprep.mubr.bf16.mxu0 0
      %2835 = vmatmul.mubr.bf16.gmra.mrb[0].mxu0 %v2746
      %v2836 = vpop.f32.mrb[0].mxu0
      %v2837 = vadd.f32 %v2713, %v2836
      %v2838 = vpop.f32.mrb[0].mxu0
      %v2839 = vpop.f32.mrb[0].mxu0
      %v2840 = vadd.f32 %v2716, %v2839
      %v2841 = vpop.f32.mrb[0].mxu0
      %2842 = vmatprep.mubr.bf16.mxu0 0
      %2843 = vmatmul.mubr.bf16.gmra.mrb[0].mxu0 %v2749
      %v2844 = vpop.f32.mrb[0].mxu0
      %v2845 = vadd.f32 %v2721, %v2844
      %v2846 = vpop.f32.mrb[0].mxu0
      %v2847 = vpop.f32.mrb[0].mxu0
      %v2848 = vadd.f32 %v2724, %v2847
      %v2849 = vpop.f32.mrb[0].mxu0
      %2850 = vdwg.mxu0
      %s2851 = scalar_lea.vmem %s4, 32
      %v2852 = vld [vmem:[%s2851] sm:$0xf]
      %v2853 = vld [vmem:[%s2851 + $0x4] sm:$0xf]
      %v2854 = vld [vmem:[%s2851 + $0x8] sm:$0xf]
      %v2855 = vld [vmem:[%s2851 + $0xc] sm:$0xf]
      %s2856 = scalar_lea.vmem %s5, 2
      %v2857 = vld [vmem:[%s2856] sm:$0x1]
      %v2859 = vlaneseq
      %v2860 = vshrl.u32 %v2859, 7
      %v2861 = vsub.s32 0, %v2860
      %v2862 = vrot.slane %v2857, %v2861
      %v2868 = vunpack.c.l.b16 %v2852
      %v2869 = vunpack.c.l.b16 %v2853
      %v2870 = vunpack.c.l.b16 %v2854
      %v2871 = vunpack.c.l.b16 %v2855
      %v2872 = vpack.c.b16 %v2869, %v2868
      %v2873 = vpack.c.b16 %v2871, %v2870
      %2876 = vmatprep.subr.bf16.mxu0 0
      %2877 = vmatpush1.bf16.msra.mxu0 %v2872
      %2878 = vmatprep.subr.bf16.mxu0 0
      %2879 = vmatpush1.bf16.msra.mxu0 %v2873
      %2880 = vmatprep.subr.bf16.mxu0 0
      %2881 = vmatpush1.bf16.msra.mxu0 0
      %2882 = vmatprep.subr.bf16.mxu0 0
      %2883 = vmatpush1.bf16.msra.mxu0 0
      %2884 = vmatprep.subr.bf16.mxu0 0
      %2885 = vmatpush1.bf16.msra.mxu0 0
      %2886 = vmatprep.subr.bf16.mxu0 0
      %2887 = vmatpush1.bf16.msra.mxu0 0
      %2888 = vmatprep.subr.bf16.mxu0 0
      %2889 = vmatpush1.bf16.msra.mxu0 0
      %2890 = vmatprep.subr.bf16.mxu0 0
      %2891 = vmatpush1.bf16.msra.mxu0 0
      %2892 = vmatprep.subr.bf16.mxu0 0
      %2893 = vmatpush1.bf16.msra.mxu0 0
      %2894 = vmatprep.subr.bf16.mxu0 0
      %2895 = vmatpush1.bf16.msra.mxu0 0
      %2896 = vmatprep.subr.bf16.mxu0 0
      %2897 = vmatpush1.bf16.msra.mxu0 0
      %2898 = vmatprep.subr.bf16.mxu0 0
      %2899 = vmatpush1.bf16.msra.mxu0 0
      %2900 = vmatprep.subr.bf16.mxu0 0
      %2901 = vmatpush1.bf16.msra.mxu0 0
      %2902 = vmatprep.subr.bf16.mxu0 0
      %2903 = vmatpush1.bf16.msra.mxu0 0
      %2904 = vmatprep.subr.bf16.mxu0 0
      %2905 = vmatpush1.bf16.msra.mxu0 0
      %2906 = vmatprep.subr.bf16.mxu0 0
      %2907 = vmatpush1.bf16.msra.mxu0 0
      %2908 = vmatprep.mubr.bf16.mxu0 0
      %2909 = vmatmul.mubr.bf16.gmra.mrb[0].mxu0 %v956
      %v2910 = vpop.f32.mrb[0].mxu0
      %v2911 = vadd.f32 %v2862, %v2910
      %v2912 = vpop.f32.mrb[0].mxu0
      %v2913 = vpop.f32.mrb[0].mxu0
      %v2914 = vadd.f32 %v2862, %v2913
      %v2915 = vpop.f32.mrb[0].mxu0
      %2916 = vmatprep.mubr.bf16.mxu0 0
      %2917 = vmatmul.mubr.bf16.gmra.mrb[0].mxu0 %v959
      %v2918 = vpop.f32.mrb[0].mxu0
      %v2919 = vadd.f32 %v2862, %v2918
      %v2920 = vpop.f32.mrb[0].mxu0
      %v2921 = vpop.f32.mrb[0].mxu0
      %v2922 = vadd.f32 %v2862, %v2921
      %v2923 = vpop.f32.mrb[0].mxu0
      %2924 = vmatprep.mubr.bf16.mxu0 0
      %2925 = vmatmul.mubr.bf16.gmra.mrb[0].mxu0 %v962
      %v2926 = vpop.f32.mrb[0].mxu0
      %v2927 = vadd.f32 %v2862, %v2926
      %v2928 = vpop.f32.mrb[0].mxu0
      %v2929 = vpop.f32.mrb[0].mxu0
      %v2930 = vadd.f32 %v2862, %v2929
      %v2931 = vpop.f32.mrb[0].mxu0
      %2932 = vmatprep.mubr.bf16.mxu0 0
      %2933 = vmatmul.mubr.bf16.gmra.mrb[0].mxu0 %v965
      %v2934 = vpop.f32.mrb[0].mxu0
      %v2935 = vadd.f32 %v2862, %v2934
      %v2936 = vpop.f32.mrb[0].mxu0
      %v2937 = vpop.f32.mrb[0].mxu0
      %v2938 = vadd.f32 %v2862, %v2937
      %v2939 = vpop.f32.mrb[0].mxu0
      %2940 = vmatprep.mubr.bf16.mxu0 0
      %2941 = vmatmul.mubr.bf16.gmra.mrb[0].mxu0 %v968
      %v2942 = vpop.f32.mrb[0].mxu0
      %v2943 = vadd.f32 %v2862, %v2942
      %v2944 = vpop.f32.mrb[0].mxu0
      %v2945 = vpop.f32.mrb[0].mxu0
      %v2946 = vadd.f32 %v2862, %v2945
      %v2947 = vpop.f32.mrb[0].mxu0
      %2948 = vmatprep.mubr.bf16.mxu0 0
      %2949 = vmatmul.mubr.bf16.gmra.mrb[0].mxu0 %v971
      %v2950 = vpop.f32.mrb[0].mxu0
      %v2951 = vadd.f32 %v2862, %v2950
      %v2952 = vpop.f32.mrb[0].mxu0
      %v2953 = vpop.f32.mrb[0].mxu0
      %v2954 = vadd.f32 %v2862, %v2953
      %v2955 = vpop.f32.mrb[0].mxu0
      %2956 = vmatprep.mubr.bf16.mxu0 0
      %2957 = vmatmul.mubr.bf16.gmra.mrb[0].mxu0 %v974
      %v2958 = vpop.f32.mrb[0].mxu0
      %v2959 = vadd.f32 %v2862, %v2958
      %v2960 = vpop.f32.mrb[0].mxu0
      %v2961 = vpop.f32.mrb[0].mxu0
      %v2962 = vadd.f32 %v2862, %v2961
      %v2963 = vpop.f32.mrb[0].mxu0
      %2964 = vmatprep.mubr.bf16.mxu0 0
      %2965 = vmatmul.mubr.bf16.gmra.mrb[0].mxu0 %v977
      %v2966 = vpop.f32.mrb[0].mxu0
      %v2967 = vadd.f32 %v2862, %v2966
      %v2968 = vpop.f32.mrb[0].mxu0
      %v2969 = vpop.f32.mrb[0].mxu0
      %v2970 = vadd.f32 %v2862, %v2969
      %v2971 = vpop.f32.mrb[0].mxu0
      %2972 = vdwg.mxu0
      %s2973 = scalar_lea.vmem %s6, 32
      %v2974 = vld [vmem:[%s2973] sm:$0xf]
      %v2975 = vld [vmem:[%s2973 + $0x4] sm:$0xf]
      %v2976 = vld [vmem:[%s2973 + $0x8] sm:$0xf]
      %v2977 = vld [vmem:[%s2973 + $0xc] sm:$0xf]
      %s2978 = scalar_lea.vmem %s7, 2
      %v2979 = vld [vmem:[%s2978] sm:$0x1]
      %v2981 = vlaneseq
      %v2982 = vshrl.u32 %v2981, 7
      %v2983 = vsub.s32 0, %v2982
      %v2984 = vrot.slane %v2979, %v2983
      %v2990 = vunpack.c.l.b16 %v2974
      %v2991 = vunpack.c.l.b16 %v2975
      %v2992 = vunpack.c.l.b16 %v2976
      %v2993 = vunpack.c.l.b16 %v2977
      %v2994 = vpack.c.b16 %v2991, %v2990
      %v2995 = vpack.c.b16 %v2993, %v2992
      %2998 = vmatprep.subr.bf16.mxu0 0
      %2999 = vmatpush1.bf16.msra.mxu0 %v2994
      %3000 = vmatprep.subr.bf16.mxu0 0
      %3001 = vmatpush1.bf16.msra.mxu0 %v2995
      %3002 = vmatprep.subr.bf16.mxu0 0
      %3003 = vmatpush1.bf16.msra.mxu0 0
      %3004 = vmatprep.subr.bf16.mxu0 0
      %3005 = vmatpush1.bf16.msra.mxu0 0
      %3006 = vmatprep.subr.bf16.mxu0 0
      %3007 = vmatpush1.bf16.msra.mxu0 0
      %3008 = vmatprep.subr.bf16.mxu0 0
      %3009 = vmatpush1.bf16.msra.mxu0 0
      %3010 = vmatprep.subr.bf16.mxu0 0
      %3011 = vmatpush1.bf16.msra.mxu0 0
      %3012 = vmatprep.subr.bf16.mxu0 0
      %3013 = vmatpush1.bf16.msra.mxu0 0
      %3014 = vmatprep.subr.bf16.mxu0 0
      %3015 = vmatpush1.bf16.msra.mxu0 0
      %3016 = vmatprep.subr.bf16.mxu0 0
      %3017 = vmatpush1.bf16.msra.mxu0 0
      %3018 = vmatprep.subr.bf16.mxu0 0
      %3019 = vmatpush1.bf16.msra.mxu0 0
      %3020 = vmatprep.subr.bf16.mxu0 0
      %3021 = vmatpush1.bf16.msra.mxu0 0
      %3022 = vmatprep.subr.bf16.mxu0 0
      %3023 = vmatpush1.bf16.msra.mxu0 0
      %3024 = vmatprep.subr.bf16.mxu0 0
      %3025 = vmatpush1.bf16.msra.mxu0 0
      %3026 = vmatprep.subr.bf16.mxu0 0
      %3027 = vmatpush1.bf16.msra.mxu0 0
      %3028 = vmatprep.subr.bf16.mxu0 0
      %3029 = vmatpush1.bf16.msra.mxu0 0
      %3030 = vmatprep.mubr.bf16.mxu0 0
      %3031 = vmatmul.mubr.bf16.gmra.mrb[0].mxu0 %v956
      %v3032 = vpop.f32.mrb[0].mxu0
      %v3033 = vadd.f32 %v2984, %v3032
      %v3034 = vpop.f32.mrb[0].mxu0
      %v3035 = vpop.f32.mrb[0].mxu0
      %v3036 = vadd.f32 %v2984, %v3035
      %v3037 = vpop.f32.mrb[0].mxu0
      %3038 = vmatprep.mubr.bf16.mxu0 0
      %3039 = vmatmul.mubr.bf16.gmra.mrb[0].mxu0 %v959
      %v3040 = vpop.f32.mrb[0].mxu0
      %v3041 = vadd.f32 %v2984, %v3040
      %v3042 = vpop.f32.mrb[0].mxu0
      %v3043 = vpop.f32.mrb[0].mxu0
      %v3044 = vadd.f32 %v2984, %v3043
      %v3045 = vpop.f32.mrb[0].mxu0
      %3046 = vmatprep.mubr.bf16.mxu0 0
      %3047 = vmatmul.mubr.bf16.gmra.mrb[0].mxu0 %v962
      %v3048 = vpop.f32.mrb[0].mxu0
      %v3049 = vadd.f32 %v2984, %v3048
      %v3050 = vpop.f32.mrb[0].mxu0
      %v3051 = vpop.f32.mrb[0].mxu0
      %v3052 = vadd.f32 %v2984, %v3051
      %v3053 = vpop.f32.mrb[0].mxu0
      %3054 = vmatprep.mubr.bf16.mxu0 0
      %3055 = vmatmul.mubr.bf16.gmra.mrb[0].mxu0 %v965
      %v3056 = vpop.f32.mrb[0].mxu0
      %v3057 = vadd.f32 %v2984, %v3056
      %v3058 = vpop.f32.mrb[0].mxu0
      %v3059 = vpop.f32.mrb[0].mxu0
      %v3060 = vadd.f32 %v2984, %v3059
      %v3061 = vpop.f32.mrb[0].mxu0
      %3062 = vmatprep.mubr.bf16.mxu0 0
      %3063 = vmatmul.mubr.bf16.gmra.mrb[0].mxu0 %v968
      %v3064 = vpop.f32.mrb[0].mxu0
      %v3065 = vadd.f32 %v2984, %v3064
      %v3066 = vpop.f32.mrb[0].mxu0
      %v3067 = vpop.f32.mrb[0].mxu0
      %v3068 = vadd.f32 %v2984, %v3067
      %v3069 = vpop.f32.mrb[0].mxu0
      %3070 = vmatprep.mubr.bf16.mxu0 0
      %3071 = vmatmul.mubr.bf16.gmra.mrb[0].mxu0 %v971
      %v3072 = vpop.f32.mrb[0].mxu0
      %v3073 = vadd.f32 %v2984, %v3072
      %v3074 = vpop.f32.mrb[0].mxu0
      %v3075 = vpop.f32.mrb[0].mxu0
      %v3076 = vadd.f32 %v2984, %v3075
      %v3077 = vpop.f32.mrb[0].mxu0
      %3078 = vmatprep.mubr.bf16.mxu0 0
      %3079 = vmatmul.mubr.bf16.gmra.mrb[0].mxu0 %v974
      %v3080 = vpop.f32.mrb[0].mxu0
      %v3081 = vadd.f32 %v2984, %v3080
      %v3082 = vpop.f32.mrb[0].mxu0
      %v3083 = vpop.f32.mrb[0].mxu0
      %v3084 = vadd.f32 %v2984, %v3083
      %v3085 = vpop.f32.mrb[0].mxu0
      %3086 = vmatprep.mubr.bf16.mxu0 0
      %3087 = vmatmul.mubr.bf16.gmra.mrb[0].mxu0 %v977
      %v3088 = vpop.f32.mrb[0].mxu0
      %v3089 = vadd.f32 %v2984, %v3088
      %v3090 = vpop.f32.mrb[0].mxu0
      %v3091 = vpop.f32.mrb[0].mxu0
      %v3092 = vadd.f32 %v2984, %v3091
      %v3093 = vpop.f32.mrb[0].mxu0
      %3094 = vdwg.mxu0
      %s3095 = scalar_lea.vmem %s8, 32
      %v3096 = vld [vmem:[%s3095] sm:$0xf]
      %v3097 = vld [vmem:[%s3095 + $0x4] sm:$0xf]
      %v3098 = vld [vmem:[%s3095 + $0x8] sm:$0xf]
      %v3099 = vld [vmem:[%s3095 + $0xc] sm:$0xf]
      %s3100 = scalar_lea.vmem %s9, 2
      %v3101 = vld [vmem:[%s3100] sm:$0x1]
      %v3103 = vlaneseq
      %v3104 = vshrl.u32 %v3103, 7
      %v3105 = vsub.s32 0, %v3104
      %v3106 = vrot.slane %v3101, %v3105
      %v3112 = vunpack.c.l.b16 %v3096
      %v3113 = vunpack.c.l.b16 %v3097
      %v3114 = vunpack.c.l.b16 %v3098
      %v3115 = vunpack.c.l.b16 %v3099
      %v3116 = vpack.c.b16 %v3113, %v3112
      %v3117 = vpack.c.b16 %v3115, %v3114
      %3120 = vmatprep.subr.bf16.mxu0 0
      %3121 = vmatpush1.bf16.msra.mxu0 %v3116
      %3122 = vmatprep.subr.bf16.mxu0 0
      %3123 = vmatpush1.bf16.msra.mxu0 %v3117
      %3124 = vmatprep.subr.bf16.mxu0 0
      %3125 = vmatpush1.bf16.msra.mxu0 0
      %3126 = vmatprep.subr.bf16.mxu0 0
      %3127 = vmatpush1.bf16.msra.mxu0 0
      %3128 = vmatprep.subr.bf16.mxu0 0
      %3129 = vmatpush1.bf16.msra.mxu0 0
      %3130 = vmatprep.subr.bf16.mxu0 0
      %3131 = vmatpush1.bf16.msra.mxu0 0
      %3132 = vmatprep.subr.bf16.mxu0 0
      %3133 = vmatpush1.bf16.msra.mxu0 0
      %3134 = vmatprep.subr.bf16.mxu0 0
      %3135 = vmatpush1.bf16.msra.mxu0 0
      %3136 = vmatprep.subr.bf16.mxu0 0
      %3137 = vmatpush1.bf16.msra.mxu0 0
      %3138 = vmatprep.subr.bf16.mxu0 0
      %3139 = vmatpush1.bf16.msra.mxu0 0
      %3140 = vmatprep.subr.bf16.mxu0 0
      %3141 = vmatpush1.bf16.msra.mxu0 0
      %3142 = vmatprep.subr.bf16.mxu0 0
      %3143 = vmatpush1.bf16.msra.mxu0 0
      %3144 = vmatprep.subr.bf16.mxu0 0
      %3145 = vmatpush1.bf16.msra.mxu0 0
      %3146 = vmatprep.subr.bf16.mxu0 0
      %3147 = vmatpush1.bf16.msra.mxu0 0
      %3148 = vmatprep.subr.bf16.mxu0 0
      %3149 = vmatpush1.bf16.msra.mxu0 0
      %3150 = vmatprep.subr.bf16.mxu0 0
      %3151 = vmatpush1.bf16.msra.mxu0 0
      %3152 = vmatprep.mubr.bf16.mxu0 0
      %3153 = vmatmul.mubr.bf16.gmra.mrb[0].mxu0 %v956
      %v3154 = vpop.f32.mrb[0].mxu0
      %v3155 = vadd.f32 %v3106, %v3154
      %v3156 = vpop.f32.mrb[0].mxu0
      %v3157 = vpop.f32.mrb[0].mxu0
      %v3158 = vadd.f32 %v3106, %v3157
      %v3159 = vpop.f32.mrb[0].mxu0
      %3160 = vmatprep.mubr.bf16.mxu0 0
      %3161 = vmatmul.mubr.bf16.gmra.mrb[0].mxu0 %v959
      %v3162 = vpop.f32.mrb[0].mxu0
      %v3163 = vadd.f32 %v3106, %v3162
      %v3164 = vpop.f32.mrb[0].mxu0
      %v3165 = vpop.f32.mrb[0].mxu0
      %v3166 = vadd.f32 %v3106, %v3165
      %v3167 = vpop.f32.mrb[0].mxu0
      %3168 = vmatprep.mubr.bf16.mxu0 0
      %3169 = vmatmul.mubr.bf16.gmra.mrb[0].mxu0 %v962
      %v3170 = vpop.f32.mrb[0].mxu0
      %v3171 = vadd.f32 %v3106, %v3170
      %v3172 = vpop.f32.mrb[0].mxu0
      %v3173 = vpop.f32.mrb[0].mxu0
      %v3174 = vadd.f32 %v3106, %v3173
      %v3175 = vpop.f32.mrb[0].mxu0
      %3176 = vmatprep.mubr.bf16.mxu0 0
      %3177 = vmatmul.mubr.bf16.gmra.mrb[0].mxu0 %v965
      %v3178 = vpop.f32.mrb[0].mxu0
      %v3179 = vadd.f32 %v3106, %v3178
      %v3180 = vpop.f32.mrb[0].mxu0
      %v3181 = vpop.f32.mrb[0].mxu0
      %v3182 = vadd.f32 %v3106, %v3181
      %v3183 = vpop.f32.mrb[0].mxu0
      %3184 = vmatprep.mubr.bf16.mxu0 0
      %3185 = vmatmul.mubr.bf16.gmra.mrb[0].mxu0 %v968
      %v3186 = vpop.f32.mrb[0].mxu0
      %v3187 = vadd.f32 %v3106, %v3186
      %v3188 = vpop.f32.mrb[0].mxu0
      %v3189 = vpop.f32.mrb[0].mxu0
      %v3190 = vadd.f32 %v3106, %v3189
      %v3191 = vpop.f32.mrb[0].mxu0
      %3192 = vmatprep.mubr.bf16.mxu0 0
      %3193 = vmatmul.mubr.bf16.gmra.mrb[0].mxu0 %v971
      %v3194 = vpop.f32.mrb[0].mxu0
      %v3195 = vadd.f32 %v3106, %v3194
      %v3196 = vpop.f32.mrb[0].mxu0
      %v3197 = vpop.f32.mrb[0].mxu0
      %v3198 = vadd.f32 %v3106, %v3197
      %v3199 = vpop.f32.mrb[0].mxu0
      %3200 = vmatprep.mubr.bf16.mxu0 0
      %3201 = vmatmul.mubr.bf16.gmra.mrb[0].mxu0 %v974
      %v3202 = vpop.f32.mrb[0].mxu0
      %v3203 = vadd.f32 %v3106, %v3202
      %v3204 = vpop.f32.mrb[0].mxu0
      %v3205 = vpop.f32.mrb[0].mxu0
      %v3206 = vadd.f32 %v3106, %v3205
      %v3207 = vpop.f32.mrb[0].mxu0
      %3208 = vmatprep.mubr.bf16.mxu0 0
      %3209 = vmatmul.mubr.bf16.gmra.mrb[0].mxu0 %v977
      %v3210 = vpop.f32.mrb[0].mxu0
      %v3211 = vadd.f32 %v3106, %v3210
      %v3212 = vpop.f32.mrb[0].mxu0
      %v3213 = vpop.f32.mrb[0].mxu0
      %v3214 = vadd.f32 %v3106, %v3213
      %v3215 = vpop.f32.mrb[0].mxu0
      %3216 = vdwg.mxu0
      %v3217 = vpack.c.bf16 %v2914, %v2911
      %v3218 = vpack.c.bf16 %v2922, %v2919
      %v3219 = vpack.c.bf16 %v2930, %v2927
      %v3220 = vpack.c.bf16 %v2938, %v2935
      %v3221 = vpack.c.bf16 %v2946, %v2943
      %v3222 = vpack.c.bf16 %v2954, %v2951
      %v3223 = vpack.c.bf16 %v2962, %v2959
      %v3224 = vpack.c.bf16 %v2970, %v2967
      %v3225 = vpack.c.bf16 %v3036, %v3033
      %v3226 = vpack.c.bf16 %v3044, %v3041
      %v3227 = vpack.c.bf16 %v3052, %v3049
      %v3228 = vpack.c.bf16 %v3060, %v3057
      %v3229 = vpack.c.bf16 %v3068, %v3065
      %v3230 = vpack.c.bf16 %v3076, %v3073
      %v3231 = vpack.c.bf16 %v3084, %v3081
      %v3232 = vpack.c.bf16 %v3092, %v3089
      %v3234 = vsel %vm1332, %v3217, 0
      %v3237 = vsel %vm1332, %v3218, 0
      %v3240 = vsel %vm1332, %v3219, 0
      %v3243 = vsel %vm1332, %v3220, 0
      %v3246 = vsel %vm1332, %v3221, 0
      %v3249 = vsel %vm1332, %v3222, 0
      %v3252 = vsel %vm1332, %v3223, 0
      %v3255 = vsel %vm1332, %v3224, 0
      %v3258 = vsel %vm1332, %v3225, 0
      %v3261 = vsel %vm1332, %v3226, 0
      %v3264 = vsel %vm1332, %v3227, 0
      %v3267 = vsel %vm1332, %v3228, 0
      %v3270 = vsel %vm1332, %v3229, 0
      %v3273 = vsel %vm1332, %v3230, 0
      %v3276 = vsel %vm1332, %v3231, 0
      %v3279 = vsel %vm1332, %v3232, 0
      %3281 = vmatprep.subr.bf16.mxu0 0
      %3282 = vmatpush1.bf16.xpose.msra.mxu0 %v3258
      %3283 = vmatprep.subr.bf16.mxu0 0
      %3284 = vmatpush1.bf16.xpose.msra.mxu0 %v3261
      %3285 = vmatprep.subr.bf16.mxu0 0
      %3286 = vmatpush1.bf16.xpose.msra.mxu0 %v3264
      %3287 = vmatprep.subr.bf16.mxu0 0
      %3288 = vmatpush1.bf16.xpose.msra.mxu0 %v3267
      %3289 = vmatprep.subr.bf16.mxu0 0
      %3290 = vmatpush1.bf16.xpose.msra.mxu0 %v3270
      %3291 = vmatprep.subr.bf16.mxu0 0
      %3292 = vmatpush1.bf16.xpose.msra.mxu0 %v3273
      %3293 = vmatprep.subr.bf16.mxu0 0
      %3294 = vmatpush1.bf16.xpose.msra.mxu0 %v3276
      %3295 = vmatprep.subr.bf16.mxu0 0
      %3296 = vmatpush1.bf16.xpose.msra.mxu0 %v3279
      %3297 = vmatprep.subr.bf16.mxu0 0
      %3298 = vmatpush1.bf16.xpose.msra.mxu0 0
      %3299 = vmatprep.subr.bf16.mxu0 0
      %3300 = vmatpush1.bf16.xpose.msra.mxu0 0
      %3301 = vmatprep.subr.bf16.mxu0 0
      %3302 = vmatpush1.bf16.xpose.msra.mxu0 0
      %3303 = vmatprep.subr.bf16.mxu0 0
      %3304 = vmatpush1.bf16.xpose.msra.mxu0 0
      %3305 = vmatprep.subr.bf16.mxu0 0
      %3306 = vmatpush1.bf16.xpose.msra.mxu0 0
      %3307 = vmatprep.subr.bf16.mxu0 0
      %3308 = vmatpush1.bf16.xpose.msra.mxu0 0
      %3309 = vmatprep.subr.bf16.mxu0 0
      %3310 = vmatpush1.bf16.xpose.msra.mxu0 0
      %3311 = vmatprep.subr.bf16.mxu0 0
      %3312 = vmatpush1.bf16.xpose.msra.mxu0 0
      %3313 = vmatprep.mubr.bf16.mxu0 0
      %3314 = vmatmul.mubr.bf16.gmra.mrb[0].mxu0 %v3234
      %v3315 = vpop.f32.mrb[0].mxu0
      %v3316 = vadd.f32 0.0, %v3315
      %v3317 = vpop.f32.mrb[0].mxu0
      %v3318 = vpop.f32.mrb[0].mxu0
      %v3319 = vadd.f32 0.0, %v3318
      %v3320 = vpop.f32.mrb[0].mxu0
      %3321 = vmatprep.mubr.bf16.mxu0 0
      %3322 = vmatmul.mubr.bf16.gmra.mrb[0].mxu0 %v3237
      %v3323 = vpop.f32.mrb[0].mxu0
      %v3324 = vadd.f32 0.0, %v3323
      %v3325 = vpop.f32.mrb[0].mxu0
      %v3326 = vpop.f32.mrb[0].mxu0
      %v3327 = vadd.f32 0.0, %v3326
      %v3328 = vpop.f32.mrb[0].mxu0
      %3329 = vmatprep.mubr.bf16.mxu0 0
      %3330 = vmatmul.mubr.bf16.gmra.mrb[0].mxu0 %v3240
      %v3331 = vpop.f32.mrb[0].mxu0
      %v3332 = vadd.f32 0.0, %v3331
      %v3333 = vpop.f32.mrb[0].mxu0
      %v3334 = vpop.f32.mrb[0].mxu0
      %v3335 = vadd.f32 0.0, %v3334
      %v3336 = vpop.f32.mrb[0].mxu0
      %3337 = vmatprep.mubr.bf16.mxu0 0
      %3338 = vmatmul.mubr.bf16.gmra.mrb[0].mxu0 %v3243
      %v3339 = vpop.f32.mrb[0].mxu0
      %v3340 = vadd.f32 0.0, %v3339
      %v3341 = vpop.f32.mrb[0].mxu0
      %v3342 = vpop.f32.mrb[0].mxu0
      %v3343 = vadd.f32 0.0, %v3342
      %v3344 = vpop.f32.mrb[0].mxu0
      %3345 = vmatprep.mubr.bf16.mxu0 0
      %3346 = vmatmul.mubr.bf16.gmra.mrb[0].mxu0 %v3246
      %v3347 = vpop.f32.mrb[0].mxu0
      %v3348 = vadd.f32 0.0, %v3347
      %v3349 = vpop.f32.mrb[0].mxu0
      %v3350 = vpop.f32.mrb[0].mxu0
      %v3351 = vadd.f32 0.0, %v3350
      %v3352 = vpop.f32.mrb[0].mxu0
      %3353 = vmatprep.mubr.bf16.mxu0 0
      %3354 = vmatmul.mubr.bf16.gmra.mrb[0].mxu0 %v3249
      %v3355 = vpop.f32.mrb[0].mxu0
      %v3356 = vadd.f32 0.0, %v3355
      %v3357 = vpop.f32.mrb[0].mxu0
      %v3358 = vpop.f32.mrb[0].mxu0
      %v3359 = vadd.f32 0.0, %v3358
      %v3360 = vpop.f32.mrb[0].mxu0
      %3361 = vmatprep.mubr.bf16.mxu0 0
      %3362 = vmatmul.mubr.bf16.gmra.mrb[0].mxu0 %v3252
      %v3363 = vpop.f32.mrb[0].mxu0
      %v3364 = vadd.f32 0.0, %v3363
      %v3365 = vpop.f32.mrb[0].mxu0
      %v3366 = vpop.f32.mrb[0].mxu0
      %v3367 = vadd.f32 0.0, %v3366
      %v3368 = vpop.f32.mrb[0].mxu0
      %3369 = vmatprep.mubr.bf16.mxu0 0
      %3370 = vmatmul.mubr.bf16.gmra.mrb[0].mxu0 %v3255
      %v3371 = vpop.f32.mrb[0].mxu0
      %v3372 = vadd.f32 0.0, %v3371
      %v3373 = vpop.f32.mrb[0].mxu0
      %v3374 = vpop.f32.mrb[0].mxu0
      %v3375 = vadd.f32 0.0, %v3374
      %v3376 = vpop.f32.mrb[0].mxu0
      %3377 = vdwg.mxu0
      %v3378 = vmul.f32 %v3316, 0.35355338
      %v3379 = vmul.f32 %v3319, 0.35355338
      %v3380 = vmul.f32 %v3324, 0.35355338
      %v3381 = vmul.f32 %v3327, 0.35355338
      %v3382 = vmul.f32 %v3332, 0.35355338
      %v3383 = vmul.f32 %v3335, 0.35355338
      %v3384 = vmul.f32 %v3340, 0.35355338
      %v3385 = vmul.f32 %v3343, 0.35355338
      %v3386 = vmul.f32 %v3348, 0.35355338
      %v3387 = vmul.f32 %v3351, 0.35355338
      %v3388 = vmul.f32 %v3356, 0.35355338
      %v3389 = vmul.f32 %v3359, 0.35355338
      %v3390 = vmul.f32 %v3364, 0.35355338
      %v3391 = vmul.f32 %v3367, 0.35355338
      %v3392 = vmul.f32 %v3372, 0.35355338
      %v3393 = vmul.f32 %v3375, 0.35355338
      %v3394 = vadd.f32 %v3378, %v922
      %v3395 = vadd.f32 %v3379, %v922
      %v3396 = vadd.f32 %v3380, %v922
      %v3397 = vadd.f32 %v3381, %v922
      %v3398 = vadd.f32 %v3382, %v922
      %v3399 = vadd.f32 %v3383, %v922
      %v3400 = vadd.f32 %v3384, %v922
      %v3401 = vadd.f32 %v3385, %v922
      %v3402 = vadd.f32 %v3386, %v922
      %v3403 = vadd.f32 %v3387, %v922
      %v3404 = vadd.f32 %v3388, %v922
      %v3405 = vadd.f32 %v3389, %v922
      %v3406 = vadd.f32 %v3390, %v922
      %v3407 = vadd.f32 %v3391, %v922
      %v3408 = vadd.f32 %v3392, %v922
      %v3409 = vadd.f32 %v3393, %v922
      %3410 = vmax.xlane.f32.xlu0 %v3394
      %v3411 = vpop.xlane.xlu0 %3410
      %3412 = vmax.xlane.f32.xlu0 %v3395
      %v3413 = vpop.xlane.xlu0 %3412
      %3414 = vmax.xlane.f32.xlu0 %v3396
      %v3415 = vpop.xlane.xlu0 %3414
      %3416 = vmax.xlane.f32.xlu0 %v3397
      %v3417 = vpop.xlane.xlu0 %3416
      %3418 = vmax.xlane.f32.xlu0 %v3398
      %v3419 = vpop.xlane.xlu0 %3418
      %3420 = vmax.xlane.f32.xlu0 %v3399
      %v3421 = vpop.xlane.xlu0 %3420
      %3422 = vmax.xlane.f32.xlu0 %v3400
      %v3423 = vpop.xlane.xlu0 %3422
      %3424 = vmax.xlane.f32.xlu0 %v3401
      %v3425 = vpop.xlane.xlu0 %3424
      %3426 = vmax.xlane.f32.xlu0 %v3402
      %v3427 = vpop.xlane.xlu0 %3426
      %3428 = vmax.xlane.f32.xlu0 %v3403
      %v3429 = vpop.xlane.xlu0 %3428
      %3430 = vmax.xlane.f32.xlu0 %v3404
      %v3431 = vpop.xlane.xlu0 %3430
      %3432 = vmax.xlane.f32.xlu0 %v3405
      %v3433 = vpop.xlane.xlu0 %3432
      %3434 = vmax.xlane.f32.xlu0 %v3406
      %v3435 = vpop.xlane.xlu0 %3434
      %3436 = vmax.xlane.f32.xlu0 %v3407
      %v3437 = vpop.xlane.xlu0 %3436
      %3438 = vmax.xlane.f32.xlu0 %v3408
      %v3439 = vpop.xlane.xlu0 %3438
      %3440 = vmax.xlane.f32.xlu0 %v3409
      %v3441 = vpop.xlane.xlu0 %3440
      %v3442 = vsub.f32 %v3394, %v3411
      %v3443 = vsub.f32 %v3395, %v3413
      %v3444 = vsub.f32 %v3396, %v3415
      %v3445 = vsub.f32 %v3397, %v3417
      %v3446 = vsub.f32 %v3398, %v3419
      %v3447 = vsub.f32 %v3399, %v3421
      %v3448 = vsub.f32 %v3400, %v3423
      %v3449 = vsub.f32 %v3401, %v3425
      %v3450 = vsub.f32 %v3402, %v3427
      %v3451 = vsub.f32 %v3403, %v3429
      %v3452 = vsub.f32 %v3404, %v3431
      %v3453 = vsub.f32 %v3405, %v3433
      %v3454 = vsub.f32 %v3406, %v3435
      %v3455 = vsub.f32 %v3407, %v3437
      %v3456 = vsub.f32 %v3408, %v3439
      %v3457 = vsub.f32 %v3409, %v3441
      %v3458 = vmul.f32 %v3442, 1.442695
      %v3459 = vpow.pop %v3458
      %v3460 = vmul.f32 %v3443, 1.442695
      %v3461 = vpow.pop %v3460
      %v3462 = vmul.f32 %v3444, 1.442695
      %v3463 = vpow.pop %v3462
      %v3464 = vmul.f32 %v3445, 1.442695
      %v3465 = vpow.pop %v3464
      %v3466 = vmul.f32 %v3446, 1.442695
      %v3467 = vpow.pop %v3466
      %v3468 = vmul.f32 %v3447, 1.442695
      %v3469 = vpow.pop %v3468
      %v3470 = vmul.f32 %v3448, 1.442695
      %v3471 = vpow.pop %v3470
      %v3472 = vmul.f32 %v3449, 1.442695
      %v3473 = vpow.pop %v3472
      %v3474 = vmul.f32 %v3450, 1.442695
      %v3475 = vpow.pop %v3474
      %v3476 = vmul.f32 %v3451, 1.442695
      %v3477 = vpow.pop %v3476
      %v3478 = vmul.f32 %v3452, 1.442695
      %v3479 = vpow.pop %v3478
      %v3480 = vmul.f32 %v3453, 1.442695
      %v3481 = vpow.pop %v3480
      %v3482 = vmul.f32 %v3454, 1.442695
      %v3483 = vpow.pop %v3482
      %v3484 = vmul.f32 %v3455, 1.442695
      %v3485 = vpow.pop %v3484
      %v3486 = vmul.f32 %v3456, 1.442695
      %v3487 = vpow.pop %v3486
      %v3488 = vmul.f32 %v3457, 1.442695
      %v3489 = vpow.pop %v3488
      %3490 = vadd.xlane.f32.xlu0 %v3459
      %v3491 = vpop.xlane.xlu0 %3490
      %3492 = vadd.xlane.f32.xlu0 %v3461
      %v3493 = vpop.xlane.xlu0 %3492
      %3494 = vadd.xlane.f32.xlu0 %v3463
      %v3495 = vpop.xlane.xlu0 %3494
      %3496 = vadd.xlane.f32.xlu0 %v3465
      %v3497 = vpop.xlane.xlu0 %3496
      %3498 = vadd.xlane.f32.xlu0 %v3467
      %v3499 = vpop.xlane.xlu0 %3498
      %3500 = vadd.xlane.f32.xlu0 %v3469
      %v3501 = vpop.xlane.xlu0 %3500
      %3502 = vadd.xlane.f32.xlu0 %v3471
      %v3503 = vpop.xlane.xlu0 %3502
      %3504 = vadd.xlane.f32.xlu0 %v3473
      %v3505 = vpop.xlane.xlu0 %3504
      %3506 = vadd.xlane.f32.xlu0 %v3475
      %v3507 = vpop.xlane.xlu0 %3506
      %3508 = vadd.xlane.f32.xlu0 %v3477
      %v3509 = vpop.xlane.xlu0 %3508
      %3510 = vadd.xlane.f32.xlu0 %v3479
      %v3511 = vpop.xlane.xlu0 %3510
      %3512 = vadd.xlane.f32.xlu0 %v3481
      %v3513 = vpop.xlane.xlu0 %3512
      %3514 = vadd.xlane.f32.xlu0 %v3483
      %v3515 = vpop.xlane.xlu0 %3514
      %3516 = vadd.xlane.f32.xlu0 %v3485
      %v3517 = vpop.xlane.xlu0 %3516
      %3518 = vadd.xlane.f32.xlu0 %v3487
      %v3519 = vpop.xlane.xlu0 %3518
      %3520 = vadd.xlane.f32.xlu0 %v3489
      %v3521 = vpop.xlane.xlu0 %3520
      %v3522 = vrcp.pop %v3491
      %v3523 = vrcp.pop %v3493
      %v3524 = vrcp.pop %v3495
      %v3525 = vrcp.pop %v3497
      %v3526 = vrcp.pop %v3499
      %v3527 = vrcp.pop %v3501
      %v3528 = vrcp.pop %v3503
      %v3529 = vrcp.pop %v3505
      %v3530 = vrcp.pop %v3507
      %v3531 = vrcp.pop %v3509
      %v3532 = vrcp.pop %v3511
      %v3533 = vrcp.pop %v3513
      %v3534 = vrcp.pop %v3515
      %v3535 = vrcp.pop %v3517
      %v3536 = vrcp.pop %v3519
      %v3537 = vrcp.pop %v3521
      %v3538 = vmul.f32 %v3459, %v3522
      %v3539 = vmul.f32 %v3461, %v3523
      %v3540 = vmul.f32 %v3463, %v3524
      %v3541 = vmul.f32 %v3465, %v3525
      %v3542 = vmul.f32 %v3467, %v3526
      %v3543 = vmul.f32 %v3469, %v3527
      %v3544 = vmul.f32 %v3471, %v3528
      %v3545 = vmul.f32 %v3473, %v3529
      %v3546 = vmul.f32 %v3475, %v3530
      %v3547 = vmul.f32 %v3477, %v3531
      %v3548 = vmul.f32 %v3479, %v3532
      %v3549 = vmul.f32 %v3481, %v3533
      %v3550 = vmul.f32 %v3483, %v3534
      %v3551 = vmul.f32 %v3485, %v3535
      %v3552 = vmul.f32 %v3487, %v3536
      %v3553 = vmul.f32 %v3489, %v3537
      %v3554 = vpack.c.bf16 %v3539, %v3538
      %v3555 = vpack.c.bf16 %v3541, %v3540
      %v3556 = vpack.c.bf16 %v3543, %v3542
      %v3557 = vpack.c.bf16 %v3545, %v3544
      %v3558 = vpack.c.bf16 %v3547, %v3546
      %v3559 = vpack.c.bf16 %v3549, %v3548
      %v3560 = vpack.c.bf16 %v3551, %v3550
      %v3561 = vpack.c.bf16 %v3553, %v3552
      %v3562 = vpack.c.bf16 %v3158, %v3155
      %v3563 = vpack.c.bf16 %v3166, %v3163
      %v3564 = vpack.c.bf16 %v3174, %v3171
      %v3565 = vpack.c.bf16 %v3182, %v3179
      %v3566 = vpack.c.bf16 %v3190, %v3187
      %v3567 = vpack.c.bf16 %v3198, %v3195
      %v3568 = vpack.c.bf16 %v3206, %v3203
      %v3569 = vpack.c.bf16 %v3214, %v3211
      %3570 = vmatprep.subr.bf16.mxu0 0
      %3571 = vmatpush1.bf16.msra.mxu0 %v3562
      %3572 = vmatprep.subr.bf16.mxu0 0
      %3573 = vmatpush1.bf16.msra.mxu0 %v3563
      %3574 = vmatprep.subr.bf16.mxu0 0
      %3575 = vmatpush1.bf16.msra.mxu0 %v3564
      %3576 = vmatprep.subr.bf16.mxu0 0
      %3577 = vmatpush1.bf16.msra.mxu0 %v3565
      %3578 = vmatprep.subr.bf16.mxu0 0
      %3579 = vmatpush1.bf16.msra.mxu0 %v3566
      %3580 = vmatprep.subr.bf16.mxu0 0
      %3581 = vmatpush1.bf16.msra.mxu0 %v3567
      %3582 = vmatprep.subr.bf16.mxu0 0
      %3583 = vmatpush1.bf16.msra.mxu0 %v3568
      %3584 = vmatprep.subr.bf16.mxu0 0
      %3585 = vmatpush1.bf16.msra.mxu0 %v3569
      %3586 = vmatprep.subr.bf16.mxu0 0
      %3587 = vmatpush1.bf16.msra.mxu0 0
      %3588 = vmatprep.subr.bf16.mxu0 0
      %3589 = vmatpush1.bf16.msra.mxu0 0
      %3590 = vmatprep.subr.bf16.mxu0 0
      %3591 = vmatpush1.bf16.msra.mxu0 0
      %3592 = vmatprep.subr.bf16.mxu0 0
      %3593 = vmatpush1.bf16.msra.mxu0 0
      %3594 = vmatprep.subr.bf16.mxu0 0
      %3595 = vmatpush1.bf16.msra.mxu0 0
      %3596 = vmatprep.subr.bf16.mxu0 0
      %3597 = vmatpush1.bf16.msra.mxu0 0
      %3598 = vmatprep.subr.bf16.mxu0 0
      %3599 = vmatpush1.bf16.msra.mxu0 0
      %3600 = vmatprep.subr.bf16.mxu0 0
      %3601 = vmatpush1.bf16.msra.mxu0 0
      %3602 = vmatprep.mubr.bf16.mxu0 0
      %3603 = vmatmul.mubr.bf16.gmra.mrb[0].mxu0 %v3554
      %v3604 = vpop.f32.mrb[0].mxu0
      %v3605 = vadd.f32 0.0, %v3604
      %v3606 = vpop.f32.mrb[0].mxu0
      %v3607 = vpop.f32.mrb[0].mxu0
      %v3608 = vadd.f32 0.0, %v3607
      %v3609 = vpop.f32.mrb[0].mxu0
      %3610 = vmatprep.mubr.bf16.mxu0 0
      %3611 = vmatmul.mubr.bf16.gmra.mrb[0].mxu0 %v3555
      %v3612 = vpop.f32.mrb[0].mxu0
      %v3613 = vadd.f32 0.0, %v3612
      %v3614 = vpop.f32.mrb[0].mxu0
      %v3615 = vpop.f32.mrb[0].mxu0
      %v3616 = vadd.f32 0.0, %v3615
      %v3617 = vpop.f32.mrb[0].mxu0
      %3618 = vmatprep.mubr.bf16.mxu0 0
      %3619 = vmatmul.mubr.bf16.gmra.mrb[0].mxu0 %v3556
      %v3620 = vpop.f32.mrb[0].mxu0
      %v3621 = vadd.f32 0.0, %v3620
      %v3622 = vpop.f32.mrb[0].mxu0
      %v3623 = vpop.f32.mrb[0].mxu0
      %v3624 = vadd.f32 0.0, %v3623
      %v3625 = vpop.f32.mrb[0].mxu0
      %3626 = vmatprep.mubr.bf16.mxu0 0
      %3627 = vmatmul.mubr.bf16.gmra.mrb[0].mxu0 %v3557
      %v3628 = vpop.f32.mrb[0].mxu0
      %v3629 = vadd.f32 0.0, %v3628
      %v3630 = vpop.f32.mrb[0].mxu0
      %v3631 = vpop.f32.mrb[0].mxu0
      %v3632 = vadd.f32 0.0, %v3631
      %v3633 = vpop.f32.mrb[0].mxu0
      %3634 = vmatprep.mubr.bf16.mxu0 0
      %3635 = vmatmul.mubr.bf16.gmra.mrb[0].mxu0 %v3558
      %v3636 = vpop.f32.mrb[0].mxu0
      %v3637 = vadd.f32 0.0, %v3636
      %v3638 = vpop.f32.mrb[0].mxu0
      %v3639 = vpop.f32.mrb[0].mxu0
      %v3640 = vadd.f32 0.0, %v3639
      %v3641 = vpop.f32.mrb[0].mxu0
      %3642 = vmatprep.mubr.bf16.mxu0 0
      %3643 = vmatmul.mubr.bf16.gmra.mrb[0].mxu0 %v3559
      %v3644 = vpop.f32.mrb[0].mxu0
      %v3645 = vadd.f32 0.0, %v3644
      %v3646 = vpop.f32.mrb[0].mxu0
      %v3647 = vpop.f32.mrb[0].mxu0
      %v3648 = vadd.f32 0.0, %v3647
      %v3649 = vpop.f32.mrb[0].mxu0
      %3650 = vmatprep.mubr.bf16.mxu0 0
      %3651 = vmatmul.mubr.bf16.gmra.mrb[0].mxu0 %v3560
      %v3652 = vpop.f32.mrb[0].mxu0
      %v3653 = vadd.f32 0.0, %v3652
      %v3654 = vpop.f32.mrb[0].mxu0
      %v3655 = vpop.f32.mrb[0].mxu0
      %v3656 = vadd.f32 0.0, %v3655
      %v3657 = vpop.f32.mrb[0].mxu0
      %3658 = vmatprep.mubr.bf16.mxu0 0
      %3659 = vmatmul.mubr.bf16.gmra.mrb[0].mxu0 %v3561
      %v3660 = vpop.f32.mrb[0].mxu0
      %v3661 = vadd.f32 0.0, %v3660
      %v3662 = vpop.f32.mrb[0].mxu0
      %v3663 = vpop.f32.mrb[0].mxu0
      %v3664 = vadd.f32 0.0, %v3663
      %v3665 = vpop.f32.mrb[0].mxu0
      %3666 = vdwg.mxu0
      %v3667 = vpack.c.bf16 %v3608, %v3605
      %v3668 = vpack.c.bf16 %v3616, %v3613
      %v3669 = vpack.c.bf16 %v3624, %v3621
      %v3670 = vpack.c.bf16 %v3632, %v3629
      %v3671 = vpack.c.bf16 %v3640, %v3637
      %v3672 = vpack.c.bf16 %v3648, %v3645
      %v3673 = vpack.c.bf16 %v3656, %v3653
      %v3674 = vpack.c.bf16 %v3664, %v3661
      %s3675 = scalar_lea.vmem %s10, 8
      %v3676 = vld [vmem:[%s3675] sm:$0xf]
      %v3678 = vsel %vm1332, %v3667, 0
      %v3681 = vsel %vm1332, %v3668, 0
      %v3684 = vsel %vm1332, %v3669, 0
      %v3687 = vsel %vm1332, %v3670, 0
      %v3690 = vsel %vm1332, %v3671, 0
      %v3693 = vsel %vm1332, %v3672, 0
      %v3696 = vsel %vm1332, %v3673, 0
      %v3699 = vsel %vm1332, %v3674, 0
      %v3702 = vsel %vm2626, %v3676, 0
      %3704 = vmatprep.subr.bf16.mxu0 0
      %3705 = vmatpush1.bf16.msra.mxu0 %v3702
      %3706 = vmatprep.subr.bf16.mxu0 0
      %3707 = vmatpush1.bf16.msra.mxu0 0
      %3708 = vmatprep.subr.bf16.mxu0 0
      %3709 = vmatpush1.bf16.msra.mxu0 0
      %3710 = vmatprep.subr.bf16.mxu0 0
      %3711 = vmatpush1.bf16.msra.mxu0 0
      %3712 = vmatprep.subr.bf16.mxu0 0
      %3713 = vmatpush1.bf16.msra.mxu0 0
      %3714 = vmatprep.subr.bf16.mxu0 0
      %3715 = vmatpush1.bf16.msra.mxu0 0
      %3716 = vmatprep.subr.bf16.mxu0 0
      %3717 = vmatpush1.bf16.msra.mxu0 0
      %3718 = vmatprep.subr.bf16.mxu0 0
      %3719 = vmatpush1.bf16.msra.mxu0 0
      %3720 = vmatprep.subr.bf16.mxu0 0
      %3721 = vmatpush1.bf16.msra.mxu0 0
      %3722 = vmatprep.subr.bf16.mxu0 0
      %3723 = vmatpush1.bf16.msra.mxu0 0
      %3724 = vmatprep.subr.bf16.mxu0 0
      %3725 = vmatpush1.bf16.msra.mxu0 0
      %3726 = vmatprep.subr.bf16.mxu0 0
      %3727 = vmatpush1.bf16.msra.mxu0 0
      %3728 = vmatprep.subr.bf16.mxu0 0
      %3729 = vmatpush1.bf16.msra.mxu0 0
      %3730 = vmatprep.subr.bf16.mxu0 0
      %3731 = vmatpush1.bf16.msra.mxu0 0
      %3732 = vmatprep.subr.bf16.mxu0 0
      %3733 = vmatpush1.bf16.msra.mxu0 0
      %3734 = vmatprep.subr.bf16.mxu0 0
      %3735 = vmatpush1.bf16.msra.mxu0 0
      %3736 = vmatprep.mubr.bf16.mxu0 0
      %3737 = vmatmul.mubr.bf16.gmra.mrb[0].mxu0 %v3678
      %v3738 = vpop.f32.mrb[0].mxu0
      %v3739 = vadd.f32 0.0, %v3738
      %v3740 = vpop.f32.mrb[0].mxu0
      %v3741 = vpop.f32.mrb[0].mxu0
      %v3742 = vadd.f32 0.0, %v3741
      %v3743 = vpop.f32.mrb[0].mxu0
      %3744 = vmatprep.mubr.bf16.mxu0 0
      %3745 = vmatmul.mubr.bf16.gmra.mrb[0].mxu0 %v3681
      %v3746 = vpop.f32.mrb[0].mxu0
      %v3747 = vadd.f32 0.0, %v3746
      %v3748 = vpop.f32.mrb[0].mxu0
      %v3749 = vpop.f32.mrb[0].mxu0
      %v3750 = vadd.f32 0.0, %v3749
      %v3751 = vpop.f32.mrb[0].mxu0
      %3752 = vmatprep.mubr.bf16.mxu0 0
      %3753 = vmatmul.mubr.bf16.gmra.mrb[0].mxu0 %v3684
      %v3754 = vpop.f32.mrb[0].mxu0
      %v3755 = vadd.f32 0.0, %v3754
      %v3756 = vpop.f32.mrb[0].mxu0
      %v3757 = vpop.f32.mrb[0].mxu0
      %v3758 = vadd.f32 0.0, %v3757
      %v3759 = vpop.f32.mrb[0].mxu0
      %3760 = vmatprep.mubr.bf16.mxu0 0
      %3761 = vmatmul.mubr.bf16.gmra.mrb[0].mxu0 %v3687
      %v3762 = vpop.f32.mrb[0].mxu0
      %v3763 = vadd.f32 0.0, %v3762
      %v3764 = vpop.f32.mrb[0].mxu0
      %v3765 = vpop.f32.mrb[0].mxu0
      %v3766 = vadd.f32 0.0, %v3765
      %v3767 = vpop.f32.mrb[0].mxu0
      %3768 = vmatprep.mubr.bf16.mxu0 0
      %3769 = vmatmul.mubr.bf16.gmra.mrb[0].mxu0 %v3690
      %v3770 = vpop.f32.mrb[0].mxu0
      %v3771 = vadd.f32 0.0, %v3770
      %v3772 = vpop.f32.mrb[0].mxu0
      %v3773 = vpop.f32.mrb[0].mxu0
      %v3774 = vadd.f32 0.0, %v3773
      %v3775 = vpop.f32.mrb[0].mxu0
      %3776 = vmatprep.mubr.bf16.mxu0 0
      %3777 = vmatmul.mubr.bf16.gmra.mrb[0].mxu0 %v3693
      %v3778 = vpop.f32.mrb[0].mxu0
      %v3779 = vadd.f32 0.0, %v3778
      %v3780 = vpop.f32.mrb[0].mxu0
      %v3781 = vpop.f32.mrb[0].mxu0
      %v3782 = vadd.f32 0.0, %v3781
      %v3783 = vpop.f32.mrb[0].mxu0
      %3784 = vmatprep.mubr.bf16.mxu0 0
      %3785 = vmatmul.mubr.bf16.gmra.mrb[0].mxu0 %v3696
      %v3786 = vpop.f32.mrb[0].mxu0
      %v3787 = vadd.f32 0.0, %v3786
      %v3788 = vpop.f32.mrb[0].mxu0
      %v3789 = vpop.f32.mrb[0].mxu0
      %v3790 = vadd.f32 0.0, %v3789
      %v3791 = vpop.f32.mrb[0].mxu0
      %3792 = vmatprep.mubr.bf16.mxu0 0
      %3793 = vmatmul.mubr.bf16.gmra.mrb[0].mxu0 %v3699
      %v3794 = vpop.f32.mrb[0].mxu0
      %v3795 = vadd.f32 0.0, %v3794
      %v3796 = vpop.f32.mrb[0].mxu0
      %v3797 = vpop.f32.mrb[0].mxu0
      %v3798 = vadd.f32 0.0, %v3797
      %v3799 = vpop.f32.mrb[0].mxu0
      %3800 = vdwg.mxu0
      %v3801 = vadd.f32 %v2789, %v3739
      %v3802 = vadd.f32 %v2792, %v3742
      %v3803 = vadd.f32 %v2797, %v3747
      %v3804 = vadd.f32 %v2800, %v3750
      %v3805 = vadd.f32 %v2805, %v3755
      %v3806 = vadd.f32 %v2808, %v3758
      %v3807 = vadd.f32 %v2813, %v3763
      %v3808 = vadd.f32 %v2816, %v3766
      %v3809 = vadd.f32 %v2821, %v3771
      %v3810 = vadd.f32 %v2824, %v3774
      %v3811 = vadd.f32 %v2829, %v3779
      %v3812 = vadd.f32 %v2832, %v3782
      %v3813 = vadd.f32 %v2837, %v3787
      %v3814 = vadd.f32 %v2840, %v3790
      %v3815 = vadd.f32 %v2845, %v3795
      %v3816 = vadd.f32 %v2848, %v3798
      %s3817 = scalar_lea.vmem %s4, 48
      %v3818 = vld [vmem:[%s3817] sm:$0xf]
      %v3819 = vld [vmem:[%s3817 + $0x4] sm:$0xf]
      %v3820 = vld [vmem:[%s3817 + $0x8] sm:$0xf]
      %v3821 = vld [vmem:[%s3817 + $0xc] sm:$0xf]
      %s3822 = scalar_lea.vmem %s5, 3
      %v3823 = vld [vmem:[%s3822] sm:$0x1]
      %v3825 = vlaneseq
      %v3826 = vshrl.u32 %v3825, 7
      %v3827 = vsub.s32 0, %v3826
      %v3828 = vrot.slane %v3823, %v3827
      %v3834 = vunpack.c.l.b16 %v3818
      %v3835 = vunpack.c.l.b16 %v3819
      %v3836 = vunpack.c.l.b16 %v3820
      %v3837 = vunpack.c.l.b16 %v3821
      %v3838 = vpack.c.b16 %v3835, %v3834
      %v3839 = vpack.c.b16 %v3837, %v3836
      %3842 = vmatprep.subr.bf16.mxu0 0
      %3843 = vmatpush1.bf16.msra.mxu0 %v3838
      %3844 = vmatprep.subr.bf16.mxu0 0
      %3845 = vmatpush1.bf16.msra.mxu0 %v3839
      %3846 = vmatprep.subr.bf16.mxu0 0
      %3847 = vmatpush1.bf16.msra.mxu0 0
      %3848 = vmatprep.subr.bf16.mxu0 0
      %3849 = vmatpush1.bf16.msra.mxu0 0
      %3850 = vmatprep.subr.bf16.mxu0 0
      %3851 = vmatpush1.bf16.msra.mxu0 0
      %3852 = vmatprep.subr.bf16.mxu0 0
      %3853 = vmatpush1.bf16.msra.mxu0 0
      %3854 = vmatprep.subr.bf16.mxu0 0
      %3855 = vmatpush1.bf16.msra.mxu0 0
      %3856 = vmatprep.subr.bf16.mxu0 0
      %3857 = vmatpush1.bf16.msra.mxu0 0
      %3858 = vmatprep.subr.bf16.mxu0 0
      %3859 = vmatpush1.bf16.msra.mxu0 0
      %3860 = vmatprep.subr.bf16.mxu0 0
      %3861 = vmatpush1.bf16.msra.mxu0 0
      %3862 = vmatprep.subr.bf16.mxu0 0
      %3863 = vmatpush1.bf16.msra.mxu0 0
      %3864 = vmatprep.subr.bf16.mxu0 0
      %3865 = vmatpush1.bf16.msra.mxu0 0
      %3866 = vmatprep.subr.bf16.mxu0 0
      %3867 = vmatpush1.bf16.msra.mxu0 0
      %3868 = vmatprep.subr.bf16.mxu0 0
      %3869 = vmatpush1.bf16.msra.mxu0 0
      %3870 = vmatprep.subr.bf16.mxu0 0
      %3871 = vmatpush1.bf16.msra.mxu0 0
      %3872 = vmatprep.subr.bf16.mxu0 0
      %3873 = vmatpush1.bf16.msra.mxu0 0
      %3874 = vmatprep.mubr.bf16.mxu0 0
      %3875 = vmatmul.mubr.bf16.gmra.mrb[0].mxu0 %v956
      %v3876 = vpop.f32.mrb[0].mxu0
      %v3877 = vadd.f32 %v3828, %v3876
      %v3878 = vpop.f32.mrb[0].mxu0
      %v3879 = vpop.f32.mrb[0].mxu0
      %v3880 = vadd.f32 %v3828, %v3879
      %v3881 = vpop.f32.mrb[0].mxu0
      %3882 = vmatprep.mubr.bf16.mxu0 0
      %3883 = vmatmul.mubr.bf16.gmra.mrb[0].mxu0 %v959
      %v3884 = vpop.f32.mrb[0].mxu0
      %v3885 = vadd.f32 %v3828, %v3884
      %v3886 = vpop.f32.mrb[0].mxu0
      %v3887 = vpop.f32.mrb[0].mxu0
      %v3888 = vadd.f32 %v3828, %v3887
      %v3889 = vpop.f32.mrb[0].mxu0
      %3890 = vmatprep.mubr.bf16.mxu0 0
      %3891 = vmatmul.mubr.bf16.gmra.mrb[0].mxu0 %v962
      %v3892 = vpop.f32.mrb[0].mxu0
      %v3893 = vadd.f32 %v3828, %v3892
      %v3894 = vpop.f32.mrb[0].mxu0
      %v3895 = vpop.f32.mrb[0].mxu0
      %v3896 = vadd.f32 %v3828, %v3895
      %v3897 = vpop.f32.mrb[0].mxu0
      %3898 = vmatprep.mubr.bf16.mxu0 0
      %3899 = vmatmul.mubr.bf16.gmra.mrb[0].mxu0 %v965
      %v3900 = vpop.f32.mrb[0].mxu0
      %v3901 = vadd.f32 %v3828, %v3900
      %v3902 = vpop.f32.mrb[0].mxu0
      %v3903 = vpop.f32.mrb[0].mxu0
      %v3904 = vadd.f32 %v3828, %v3903
      %v3905 = vpop.f32.mrb[0].mxu0
      %3906 = vmatprep.mubr.bf16.mxu0 0
      %3907 = vmatmul.mubr.bf16.gmra.mrb[0].mxu0 %v968
      %v3908 = vpop.f32.mrb[0].mxu0
      %v3909 = vadd.f32 %v3828, %v3908
      %v3910 = vpop.f32.mrb[0].mxu0
      %v3911 = vpop.f32.mrb[0].mxu0
      %v3912 = vadd.f32 %v3828, %v3911
      %v3913 = vpop.f32.mrb[0].mxu0
      %3914 = vmatprep.mubr.bf16.mxu0 0
      %3915 = vmatmul.mubr.bf16.gmra.mrb[0].mxu0 %v971
      %v3916 = vpop.f32.mrb[0].mxu0
      %v3917 = vadd.f32 %v3828, %v3916
      %v3918 = vpop.f32.mrb[0].mxu0
      %v3919 = vpop.f32.mrb[0].mxu0
      %v3920 = vadd.f32 %v3828, %v3919
      %v3921 = vpop.f32.mrb[0].mxu0
      %3922 = vmatprep.mubr.bf16.mxu0 0
      %3923 = vmatmul.mubr.bf16.gmra.mrb[0].mxu0 %v974
      %v3924 = vpop.f32.mrb[0].mxu0
      %v3925 = vadd.f32 %v3828, %v3924
      %v3926 = vpop.f32.mrb[0].mxu0
      %v3927 = vpop.f32.mrb[0].mxu0
      %v3928 = vadd.f32 %v3828, %v3927
      %v3929 = vpop.f32.mrb[0].mxu0
      %3930 = vmatprep.mubr.bf16.mxu0 0
      %3931 = vmatmul.mubr.bf16.gmra.mrb[0].mxu0 %v977
      %v3932 = vpop.f32.mrb[0].mxu0
      %v3933 = vadd.f32 %v3828, %v3932
      %v3934 = vpop.f32.mrb[0].mxu0
      %v3935 = vpop.f32.mrb[0].mxu0
      %v3936 = vadd.f32 %v3828, %v3935
      %v3937 = vpop.f32.mrb[0].mxu0
      %3938 = vdwg.mxu0
      %s3939 = scalar_lea.vmem %s6, 48
      %v3940 = vld [vmem:[%s3939] sm:$0xf]
      %v3941 = vld [vmem:[%s3939 + $0x4] sm:$0xf]
      %v3942 = vld [vmem:[%s3939 + $0x8] sm:$0xf]
      %v3943 = vld [vmem:[%s3939 + $0xc] sm:$0xf]
      %s3944 = scalar_lea.vmem %s7, 3
      %v3945 = vld [vmem:[%s3944] sm:$0x1]
      %v3947 = vlaneseq
      %v3948 = vshrl.u32 %v3947, 7
      %v3949 = vsub.s32 0, %v3948
      %v3950 = vrot.slane %v3945, %v3949
      %v3956 = vunpack.c.l.b16 %v3940
      %v3957 = vunpack.c.l.b16 %v3941
      %v3958 = vunpack.c.l.b16 %v3942
      %v3959 = vunpack.c.l.b16 %v3943
      %v3960 = vpack.c.b16 %v3957, %v3956
      %v3961 = vpack.c.b16 %v3959, %v3958
      %3964 = vmatprep.subr.bf16.mxu0 0
      %3965 = vmatpush1.bf16.msra.mxu0 %v3960
      %3966 = vmatprep.subr.bf16.mxu0 0
      %3967 = vmatpush1.bf16.msra.mxu0 %v3961
      %3968 = vmatprep.subr.bf16.mxu0 0
      %3969 = vmatpush1.bf16.msra.mxu0 0
      %3970 = vmatprep.subr.bf16.mxu0 0
      %3971 = vmatpush1.bf16.msra.mxu0 0
      %3972 = vmatprep.subr.bf16.mxu0 0
      %3973 = vmatpush1.bf16.msra.mxu0 0
      %3974 = vmatprep.subr.bf16.mxu0 0
      %3975 = vmatpush1.bf16.msra.mxu0 0
      %3976 = vmatprep.subr.bf16.mxu0 0
      %3977 = vmatpush1.bf16.msra.mxu0 0
      %3978 = vmatprep.subr.bf16.mxu0 0
      %3979 = vmatpush1.bf16.msra.mxu0 0
      %3980 = vmatprep.subr.bf16.mxu0 0
      %3981 = vmatpush1.bf16.msra.mxu0 0
      %3982 = vmatprep.subr.bf16.mxu0 0
      %3983 = vmatpush1.bf16.msra.mxu0 0
      %3984 = vmatprep.subr.bf16.mxu0 0
      %3985 = vmatpush1.bf16.msra.mxu0 0
      %3986 = vmatprep.subr.bf16.mxu0 0
      %3987 = vmatpush1.bf16.msra.mxu0 0
      %3988 = vmatprep.subr.bf16.mxu0 0
      %3989 = vmatpush1.bf16.msra.mxu0 0
      %3990 = vmatprep.subr.bf16.mxu0 0
      %3991 = vmatpush1.bf16.msra.mxu0 0
      %3992 = vmatprep.subr.bf16.mxu0 0
      %3993 = vmatpush1.bf16.msra.mxu0 0
      %3994 = vmatprep.subr.bf16.mxu0 0
      %3995 = vmatpush1.bf16.msra.mxu0 0
      %3996 = vmatprep.mubr.bf16.mxu0 0
      %3997 = vmatmul.mubr.bf16.gmra.mrb[0].mxu0 %v956
      %v3998 = vpop.f32.mrb[0].mxu0
      %v3999 = vadd.f32 %v3950, %v3998
      %v4000 = vpop.f32.mrb[0].mxu0
      %v4001 = vpop.f32.mrb[0].mxu0
      %v4002 = vadd.f32 %v3950, %v4001
      %v4003 = vpop.f32.mrb[0].mxu0
      %4004 = vmatprep.mubr.bf16.mxu0 0
      %4005 = vmatmul.mubr.bf16.gmra.mrb[0].mxu0 %v959
      %v4006 = vpop.f32.mrb[0].mxu0
      %v4007 = vadd.f32 %v3950, %v4006
      %v4008 = vpop.f32.mrb[0].mxu0
      %v4009 = vpop.f32.mrb[0].mxu0
      %v4010 = vadd.f32 %v3950, %v4009
      %v4011 = vpop.f32.mrb[0].mxu0
      %4012 = vmatprep.mubr.bf16.mxu0 0
      %4013 = vmatmul.mubr.bf16.gmra.mrb[0].mxu0 %v962
      %v4014 = vpop.f32.mrb[0].mxu0
      %v4015 = vadd.f32 %v3950, %v4014
      %v4016 = vpop.f32.mrb[0].mxu0
      %v4017 = vpop.f32.mrb[0].mxu0
      %v4018 = vadd.f32 %v3950, %v4017
      %v4019 = vpop.f32.mrb[0].mxu0
      %4020 = vmatprep.mubr.bf16.mxu0 0
      %4021 = vmatmul.mubr.bf16.gmra.mrb[0].mxu0 %v965
      %v4022 = vpop.f32.mrb[0].mxu0
      %v4023 = vadd.f32 %v3950, %v4022
      %v4024 = vpop.f32.mrb[0].mxu0
      %v4025 = vpop.f32.mrb[0].mxu0
      %v4026 = vadd.f32 %v3950, %v4025
      %v4027 = vpop.f32.mrb[0].mxu0
      %4028 = vmatprep.mubr.bf16.mxu0 0
      %4029 = vmatmul.mubr.bf16.gmra.mrb[0].mxu0 %v968
      %v4030 = vpop.f32.mrb[0].mxu0
      %v4031 = vadd.f32 %v3950, %v4030
      %v4032 = vpop.f32.mrb[0].mxu0
      %v4033 = vpop.f32.mrb[0].mxu0
      %v4034 = vadd.f32 %v3950, %v4033
      %v4035 = vpop.f32.mrb[0].mxu0
      %4036 = vmatprep.mubr.bf16.mxu0 0
      %4037 = vmatmul.mubr.bf16.gmra.mrb[0].mxu0 %v971
      %v4038 = vpop.f32.mrb[0].mxu0
      %v4039 = vadd.f32 %v3950, %v4038
      %v4040 = vpop.f32.mrb[0].mxu0
      %v4041 = vpop.f32.mrb[0].mxu0
      %v4042 = vadd.f32 %v3950, %v4041
      %v4043 = vpop.f32.mrb[0].mxu0
      %4044 = vmatprep.mubr.bf16.mxu0 0
      %4045 = vmatmul.mubr.bf16.gmra.mrb[0].mxu0 %v974
      %v4046 = vpop.f32.mrb[0].mxu0
      %v4047 = vadd.f32 %v3950, %v4046
      %v4048 = vpop.f32.mrb[0].mxu0
      %v4049 = vpop.f32.mrb[0].mxu0
      %v4050 = vadd.f32 %v3950, %v4049
      %v4051 = vpop.f32.mrb[0].mxu0
      %4052 = vmatprep.mubr.bf16.mxu0 0
      %4053 = vmatmul.mubr.bf16.gmra.mrb[0].mxu0 %v977
      %v4054 = vpop.f32.mrb[0].mxu0
      %v4055 = vadd.f32 %v3950, %v4054
      %v4056 = vpop.f32.mrb[0].mxu0
      %v4057 = vpop.f32.mrb[0].mxu0
      %v4058 = vadd.f32 %v3950, %v4057
      %v4059 = vpop.f32.mrb[0].mxu0
      %4060 = vdwg.mxu0
      %s4061 = scalar_lea.vmem %s8, 48
      %v4062 = vld [vmem:[%s4061] sm:$0xf]
      %v4063 = vld [vmem:[%s4061 + $0x4] sm:$0xf]
      %v4064 = vld [vmem:[%s4061 + $0x8] sm:$0xf]
      %v4065 = vld [vmem:[%s4061 + $0xc] sm:$0xf]
      %s4066 = scalar_lea.vmem %s9, 3
      %v4067 = vld [vmem:[%s4066] sm:$0x1]
      %v4069 = vlaneseq
      %v4070 = vshrl.u32 %v4069, 7
      %v4071 = vsub.s32 0, %v4070
      %v4072 = vrot.slane %v4067, %v4071
      %v4078 = vunpack.c.l.b16 %v4062
      %v4079 = vunpack.c.l.b16 %v4063
      %v4080 = vunpack.c.l.b16 %v4064
      %v4081 = vunpack.c.l.b16 %v4065
      %v4082 = vpack.c.b16 %v4079, %v4078
      %v4083 = vpack.c.b16 %v4081, %v4080
      %4086 = vmatprep.subr.bf16.mxu0 0
      %4087 = vmatpush1.bf16.msra.mxu0 %v4082
      %4088 = vmatprep.subr.bf16.mxu0 0
      %4089 = vmatpush1.bf16.msra.mxu0 %v4083
      %4090 = vmatprep.subr.bf16.mxu0 0
      %4091 = vmatpush1.bf16.msra.mxu0 0
      %4092 = vmatprep.subr.bf16.mxu0 0
      %4093 = vmatpush1.bf16.msra.mxu0 0
      %4094 = vmatprep.subr.bf16.mxu0 0
      %4095 = vmatpush1.bf16.msra.mxu0 0
      %4096 = vmatprep.subr.bf16.mxu0 0
      %4097 = vmatpush1.bf16.msra.mxu0 0
      %4098 = vmatprep.subr.bf16.mxu0 0
      %4099 = vmatpush1.bf16.msra.mxu0 0
      %4100 = vmatprep.subr.bf16.mxu0 0
      %4101 = vmatpush1.bf16.msra.mxu0 0
      %4102 = vmatprep.subr.bf16.mxu0 0
      %4103 = vmatpush1.bf16.msra.mxu0 0
      %4104 = vmatprep.subr.bf16.mxu0 0
      %4105 = vmatpush1.bf16.msra.mxu0 0
      %4106 = vmatprep.subr.bf16.mxu0 0
      %4107 = vmatpush1.bf16.msra.mxu0 0
      %4108 = vmatprep.subr.bf16.mxu0 0
      %4109 = vmatpush1.bf16.msra.mxu0 0
      %4110 = vmatprep.subr.bf16.mxu0 0
      %4111 = vmatpush1.bf16.msra.mxu0 0
      %4112 = vmatprep.subr.bf16.mxu0 0
      %4113 = vmatpush1.bf16.msra.mxu0 0
      %4114 = vmatprep.subr.bf16.mxu0 0
      %4115 = vmatpush1.bf16.msra.mxu0 0
      %4116 = vmatprep.subr.bf16.mxu0 0
      %4117 = vmatpush1.bf16.msra.mxu0 0
      %4118 = vmatprep.mubr.bf16.mxu0 0
      %4119 = vmatmul.mubr.bf16.gmra.mrb[0].mxu0 %v956
      %v4120 = vpop.f32.mrb[0].mxu0
      %v4121 = vadd.f32 %v4072, %v4120
      %v4122 = vpop.f32.mrb[0].mxu0
      %v4123 = vpop.f32.mrb[0].mxu0
      %v4124 = vadd.f32 %v4072, %v4123
      %v4125 = vpop.f32.mrb[0].mxu0
      %4126 = vmatprep.mubr.bf16.mxu0 0
      %4127 = vmatmul.mubr.bf16.gmra.mrb[0].mxu0 %v959
      %v4128 = vpop.f32.mrb[0].mxu0
      %v4129 = vadd.f32 %v4072, %v4128
      %v4130 = vpop.f32.mrb[0].mxu0
      %v4131 = vpop.f32.mrb[0].mxu0
      %v4132 = vadd.f32 %v4072, %v4131
      %v4133 = vpop.f32.mrb[0].mxu0
      %4134 = vmatprep.mubr.bf16.mxu0 0
      %4135 = vmatmul.mubr.bf16.gmra.mrb[0].mxu0 %v962
      %v4136 = vpop.f32.mrb[0].mxu0
      %v4137 = vadd.f32 %v4072, %v4136
      %v4138 = vpop.f32.mrb[0].mxu0
      %v4139 = vpop.f32.mrb[0].mxu0
      %v4140 = vadd.f32 %v4072, %v4139
      %v4141 = vpop.f32.mrb[0].mxu0
      %4142 = vmatprep.mubr.bf16.mxu0 0
      %4143 = vmatmul.mubr.bf16.gmra.mrb[0].mxu0 %v965
      %v4144 = vpop.f32.mrb[0].mxu0
      %v4145 = vadd.f32 %v4072, %v4144
      %v4146 = vpop.f32.mrb[0].mxu0
      %v4147 = vpop.f32.mrb[0].mxu0
      %v4148 = vadd.f32 %v4072, %v4147
      %v4149 = vpop.f32.mrb[0].mxu0
      %4150 = vmatprep.mubr.bf16.mxu0 0
      %4151 = vmatmul.mubr.bf16.gmra.mrb[0].mxu0 %v968
      %v4152 = vpop.f32.mrb[0].mxu0
      %v4153 = vadd.f32 %v4072, %v4152
      %v4154 = vpop.f32.mrb[0].mxu0
      %v4155 = vpop.f32.mrb[0].mxu0
      %v4156 = vadd.f32 %v4072, %v4155
      %v4157 = vpop.f32.mrb[0].mxu0
      %4158 = vmatprep.mubr.bf16.mxu0 0
      %4159 = vmatmul.mubr.bf16.gmra.mrb[0].mxu0 %v971
      %v4160 = vpop.f32.mrb[0].mxu0
      %v4161 = vadd.f32 %v4072, %v4160
      %v4162 = vpop.f32.mrb[0].mxu0
      %v4163 = vpop.f32.mrb[0].mxu0
      %v4164 = vadd.f32 %v4072, %v4163
      %v4165 = vpop.f32.mrb[0].mxu0
      %4166 = vmatprep.mubr.bf16.mxu0 0
      %4167 = vmatmul.mubr.bf16.gmra.mrb[0].mxu0 %v974
      %v4168 = vpop.f32.mrb[0].mxu0
      %v4169 = vadd.f32 %v4072, %v4168
      %v4170 = vpop.f32.mrb[0].mxu0
      %v4171 = vpop.f32.mrb[0].mxu0
      %v4172 = vadd.f32 %v4072, %v4171
      %v4173 = vpop.f32.mrb[0].mxu0
      %4174 = vmatprep.mubr.bf16.mxu0 0
      %4175 = vmatmul.mubr.bf16.gmra.mrb[0].mxu0 %v977
      %v4176 = vpop.f32.mrb[0].mxu0
      %v4177 = vadd.f32 %v4072, %v4176
      %v4178 = vpop.f32.mrb[0].mxu0
      %v4179 = vpop.f32.mrb[0].mxu0
      %v4180 = vadd.f32 %v4072, %v4179
      %v4181 = vpop.f32.mrb[0].mxu0
      %4182 = vdwg.mxu0
      %v4183 = vpack.c.bf16 %v3880, %v3877
      %v4184 = vpack.c.bf16 %v3888, %v3885
      %v4185 = vpack.c.bf16 %v3896, %v3893
      %v4186 = vpack.c.bf16 %v3904, %v3901
      %v4187 = vpack.c.bf16 %v3912, %v3909
      %v4188 = vpack.c.bf16 %v3920, %v3917
      %v4189 = vpack.c.bf16 %v3928, %v3925
      %v4190 = vpack.c.bf16 %v3936, %v3933
      %v4191 = vpack.c.bf16 %v4002, %v3999
      %v4192 = vpack.c.bf16 %v4010, %v4007
      %v4193 = vpack.c.bf16 %v4018, %v4015
      %v4194 = vpack.c.bf16 %v4026, %v4023
      %v4195 = vpack.c.bf16 %v4034, %v4031
      %v4196 = vpack.c.bf16 %v4042, %v4039
      %v4197 = vpack.c.bf16 %v4050, %v4047
      %v4198 = vpack.c.bf16 %v4058, %v4055
      %v4200 = vsel %vm1332, %v4183, 0
      %v4203 = vsel %vm1332, %v4184, 0
      %v4206 = vsel %vm1332, %v4185, 0
      %v4209 = vsel %vm1332, %v4186, 0
      %v4212 = vsel %vm1332, %v4187, 0
      %v4215 = vsel %vm1332, %v4188, 0
      %v4218 = vsel %vm1332, %v4189, 0
      %v4221 = vsel %vm1332, %v4190, 0
      %v4224 = vsel %vm1332, %v4191, 0
      %v4227 = vsel %vm1332, %v4192, 0
      %v4230 = vsel %vm1332, %v4193, 0
      %v4233 = vsel %vm1332, %v4194, 0
      %v4236 = vsel %vm1332, %v4195, 0
      %v4239 = vsel %vm1332, %v4196, 0
      %v4242 = vsel %vm1332, %v4197, 0
      %v4245 = vsel %vm1332, %v4198, 0
      %4247 = vmatprep.subr.bf16.mxu0 0
      %4248 = vmatpush1.bf16.xpose.msra.mxu0 %v4224
      %4249 = vmatprep.subr.bf16.mxu0 0
      %4250 = vmatpush1.bf16.xpose.msra.mxu0 %v4227
      %4251 = vmatprep.subr.bf16.mxu0 0
      %4252 = vmatpush1.bf16.xpose.msra.mxu0 %v4230
      %4253 = vmatprep.subr.bf16.mxu0 0
      %4254 = vmatpush1.bf16.xpose.msra.mxu0 %v4233
      %4255 = vmatprep.subr.bf16.mxu0 0
      %4256 = vmatpush1.bf16.xpose.msra.mxu0 %v4236
      %4257 = vmatprep.subr.bf16.mxu0 0
      %4258 = vmatpush1.bf16.xpose.msra.mxu0 %v4239
      %4259 = vmatprep.subr.bf16.mxu0 0
      %4260 = vmatpush1.bf16.xpose.msra.mxu0 %v4242
      %4261 = vmatprep.subr.bf16.mxu0 0
      %4262 = vmatpush1.bf16.xpose.msra.mxu0 %v4245
      %4263 = vmatprep.subr.bf16.mxu0 0
      %4264 = vmatpush1.bf16.xpose.msra.mxu0 0
      %4265 = vmatprep.subr.bf16.mxu0 0
      %4266 = vmatpush1.bf16.xpose.msra.mxu0 0
      %4267 = vmatprep.subr.bf16.mxu0 0
      %4268 = vmatpush1.bf16.xpose.msra.mxu0 0
      %4269 = vmatprep.subr.bf16.mxu0 0
      %4270 = vmatpush1.bf16.xpose.msra.mxu0 0
      %4271 = vmatprep.subr.bf16.mxu0 0
      %4272 = vmatpush1.bf16.xpose.msra.mxu0 0
      %4273 = vmatprep.subr.bf16.mxu0 0
      %4274 = vmatpush1.bf16.xpose.msra.mxu0 0
      %4275 = vmatprep.subr.bf16.mxu0 0
      %4276 = vmatpush1.bf16.xpose.msra.mxu0 0
      %4277 = vmatprep.subr.bf16.mxu0 0
      %4278 = vmatpush1.bf16.xpose.msra.mxu0 0
      %4279 = vmatprep.mubr.bf16.mxu0 0
      %4280 = vmatmul.mubr.bf16.gmra.mrb[0].mxu0 %v4200
      %v4281 = vpop.f32.mrb[0].mxu0
      %v4282 = vadd.f32 0.0, %v4281
      %v4283 = vpop.f32.mrb[0].mxu0
      %v4284 = vpop.f32.mrb[0].mxu0
      %v4285 = vadd.f32 0.0, %v4284
      %v4286 = vpop.f32.mrb[0].mxu0
      %4287 = vmatprep.mubr.bf16.mxu0 0
      %4288 = vmatmul.mubr.bf16.gmra.mrb[0].mxu0 %v4203
      %v4289 = vpop.f32.mrb[0].mxu0
      %v4290 = vadd.f32 0.0, %v4289
      %v4291 = vpop.f32.mrb[0].mxu0
      %v4292 = vpop.f32.mrb[0].mxu0
      %v4293 = vadd.f32 0.0, %v4292
      %v4294 = vpop.f32.mrb[0].mxu0
      %4295 = vmatprep.mubr.bf16.mxu0 0
      %4296 = vmatmul.mubr.bf16.gmra.mrb[0].mxu0 %v4206
      %v4297 = vpop.f32.mrb[0].mxu0
      %v4298 = vadd.f32 0.0, %v4297
      %v4299 = vpop.f32.mrb[0].mxu0
      %v4300 = vpop.f32.mrb[0].mxu0
      %v4301 = vadd.f32 0.0, %v4300
      %v4302 = vpop.f32.mrb[0].mxu0
      %4303 = vmatprep.mubr.bf16.mxu0 0
      %4304 = vmatmul.mubr.bf16.gmra.mrb[0].mxu0 %v4209
      %v4305 = vpop.f32.mrb[0].mxu0
      %v4306 = vadd.f32 0.0, %v4305
      %v4307 = vpop.f32.mrb[0].mxu0
      %v4308 = vpop.f32.mrb[0].mxu0
      %v4309 = vadd.f32 0.0, %v4308
      %v4310 = vpop.f32.mrb[0].mxu0
      %4311 = vmatprep.mubr.bf16.mxu0 0
      %4312 = vmatmul.mubr.bf16.gmra.mrb[0].mxu0 %v4212
      %v4313 = vpop.f32.mrb[0].mxu0
      %v4314 = vadd.f32 0.0, %v4313
      %v4315 = vpop.f32.mrb[0].mxu0
      %v4316 = vpop.f32.mrb[0].mxu0
      %v4317 = vadd.f32 0.0, %v4316
      %v4318 = vpop.f32.mrb[0].mxu0
      %4319 = vmatprep.mubr.bf16.mxu0 0
      %4320 = vmatmul.mubr.bf16.gmra.mrb[0].mxu0 %v4215
      %v4321 = vpop.f32.mrb[0].mxu0
      %v4322 = vadd.f32 0.0, %v4321
      %v4323 = vpop.f32.mrb[0].mxu0
      %v4324 = vpop.f32.mrb[0].mxu0
      %v4325 = vadd.f32 0.0, %v4324
      %v4326 = vpop.f32.mrb[0].mxu0
      %4327 = vmatprep.mubr.bf16.mxu0 0
      %4328 = vmatmul.mubr.bf16.gmra.mrb[0].mxu0 %v4218
      %v4329 = vpop.f32.mrb[0].mxu0
      %v4330 = vadd.f32 0.0, %v4329
      %v4331 = vpop.f32.mrb[0].mxu0
      %v4332 = vpop.f32.mrb[0].mxu0
      %v4333 = vadd.f32 0.0, %v4332
      %v4334 = vpop.f32.mrb[0].mxu0
      %4335 = vmatprep.mubr.bf16.mxu0 0
      %4336 = vmatmul.mubr.bf16.gmra.mrb[0].mxu0 %v4221
      %v4337 = vpop.f32.mrb[0].mxu0
      %v4338 = vadd.f32 0.0, %v4337
      %v4339 = vpop.f32.mrb[0].mxu0
      %v4340 = vpop.f32.mrb[0].mxu0
      %v4341 = vadd.f32 0.0, %v4340
      %v4342 = vpop.f32.mrb[0].mxu0
      %4343 = vdwg.mxu0
      %v4344 = vmul.f32 %v4282, 0.35355338
      %v4345 = vmul.f32 %v4285, 0.35355338
      %v4346 = vmul.f32 %v4290, 0.35355338
      %v4347 = vmul.f32 %v4293, 0.35355338
      %v4348 = vmul.f32 %v4298, 0.35355338
      %v4349 = vmul.f32 %v4301, 0.35355338
      %v4350 = vmul.f32 %v4306, 0.35355338
      %v4351 = vmul.f32 %v4309, 0.35355338
      %v4352 = vmul.f32 %v4314, 0.35355338
      %v4353 = vmul.f32 %v4317, 0.35355338
      %v4354 = vmul.f32 %v4322, 0.35355338
      %v4355 = vmul.f32 %v4325, 0.35355338
      %v4356 = vmul.f32 %v4330, 0.35355338
      %v4357 = vmul.f32 %v4333, 0.35355338
      %v4358 = vmul.f32 %v4338, 0.35355338
      %v4359 = vmul.f32 %v4341, 0.35355338
      %v4360 = vadd.f32 %v4344, %v922
      %v4361 = vadd.f32 %v4345, %v922
      %v4362 = vadd.f32 %v4346, %v922
      %v4363 = vadd.f32 %v4347, %v922
      %v4364 = vadd.f32 %v4348, %v922
      %v4365 = vadd.f32 %v4349, %v922
      %v4366 = vadd.f32 %v4350, %v922
      %v4367 = vadd.f32 %v4351, %v922
      %v4368 = vadd.f32 %v4352, %v922
      %v4369 = vadd.f32 %v4353, %v922
      %v4370 = vadd.f32 %v4354, %v922
      %v4371 = vadd.f32 %v4355, %v922
      %v4372 = vadd.f32 %v4356, %v922
      %v4373 = vadd.f32 %v4357, %v922
      %v4374 = vadd.f32 %v4358, %v922
      %v4375 = vadd.f32 %v4359, %v922
      %4376 = vmax.xlane.f32.xlu0 %v4360
      %v4377 = vpop.xlane.xlu0 %4376
      %4378 = vmax.xlane.f32.xlu0 %v4361
      %v4379 = vpop.xlane.xlu0 %4378
      %4380 = vmax.xlane.f32.xlu0 %v4362
      %v4381 = vpop.xlane.xlu0 %4380
      %4382 = vmax.xlane.f32.xlu0 %v4363
      %v4383 = vpop.xlane.xlu0 %4382
      %4384 = vmax.xlane.f32.xlu0 %v4364
      %v4385 = vpop.xlane.xlu0 %4384
      %4386 = vmax.xlane.f32.xlu0 %v4365
      %v4387 = vpop.xlane.xlu0 %4386
      %4388 = vmax.xlane.f32.xlu0 %v4366
      %v4389 = vpop.xlane.xlu0 %4388
      %4390 = vmax.xlane.f32.xlu0 %v4367
      %v4391 = vpop.xlane.xlu0 %4390
      %4392 = vmax.xlane.f32.xlu0 %v4368
      %v4393 = vpop.xlane.xlu0 %4392
      %4394 = vmax.xlane.f32.xlu0 %v4369
      %v4395 = vpop.xlane.xlu0 %4394
      %4396 = vmax.xlane.f32.xlu0 %v4370
      %v4397 = vpop.xlane.xlu0 %4396
      %4398 = vmax.xlane.f32.xlu0 %v4371
      %v4399 = vpop.xlane.xlu0 %4398
      %4400 = vmax.xlane.f32.xlu0 %v4372
      %v4401 = vpop.xlane.xlu0 %4400
      %4402 = vmax.xlane.f32.xlu0 %v4373
      %v4403 = vpop.xlane.xlu0 %4402
      %4404 = vmax.xlane.f32.xlu0 %v4374
      %v4405 = vpop.xlane.xlu0 %4404
      %4406 = vmax.xlane.f32.xlu0 %v4375
      %v4407 = vpop.xlane.xlu0 %4406
      %v4408 = vsub.f32 %v4360, %v4377
      %v4409 = vsub.f32 %v4361, %v4379
      %v4410 = vsub.f32 %v4362, %v4381
      %v4411 = vsub.f32 %v4363, %v4383
      %v4412 = vsub.f32 %v4364, %v4385
      %v4413 = vsub.f32 %v4365, %v4387
      %v4414 = vsub.f32 %v4366, %v4389
      %v4415 = vsub.f32 %v4367, %v4391
      %v4416 = vsub.f32 %v4368, %v4393
      %v4417 = vsub.f32 %v4369, %v4395
      %v4418 = vsub.f32 %v4370, %v4397
      %v4419 = vsub.f32 %v4371, %v4399
      %v4420 = vsub.f32 %v4372, %v4401
      %v4421 = vsub.f32 %v4373, %v4403
      %v4422 = vsub.f32 %v4374, %v4405
      %v4423 = vsub.f32 %v4375, %v4407
      %v4424 = vmul.f32 %v4408, 1.442695
      %v4425 = vpow.pop %v4424
      %v4426 = vmul.f32 %v4409, 1.442695
      %v4427 = vpow.pop %v4426
      %v4428 = vmul.f32 %v4410, 1.442695
      %v4429 = vpow.pop %v4428
      %v4430 = vmul.f32 %v4411, 1.442695
      %v4431 = vpow.pop %v4430
      %v4432 = vmul.f32 %v4412, 1.442695
      %v4433 = vpow.pop %v4432
      %v4434 = vmul.f32 %v4413, 1.442695
      %v4435 = vpow.pop %v4434
      %v4436 = vmul.f32 %v4414, 1.442695
      %v4437 = vpow.pop %v4436
      %v4438 = vmul.f32 %v4415, 1.442695
      %v4439 = vpow.pop %v4438
      %v4440 = vmul.f32 %v4416, 1.442695
      %v4441 = vpow.pop %v4440
      %v4442 = vmul.f32 %v4417, 1.442695
      %v4443 = vpow.pop %v4442
      %v4444 = vmul.f32 %v4418, 1.442695
      %v4445 = vpow.pop %v4444
      %v4446 = vmul.f32 %v4419, 1.442695
      %v4447 = vpow.pop %v4446
      %v4448 = vmul.f32 %v4420, 1.442695
      %v4449 = vpow.pop %v4448
      %v4450 = vmul.f32 %v4421, 1.442695
      %v4451 = vpow.pop %v4450
      %v4452 = vmul.f32 %v4422, 1.442695
      %v4453 = vpow.pop %v4452
      %v4454 = vmul.f32 %v4423, 1.442695
      %v4455 = vpow.pop %v4454
      %4456 = vadd.xlane.f32.xlu0 %v4425
      %v4457 = vpop.xlane.xlu0 %4456
      %4458 = vadd.xlane.f32.xlu0 %v4427
      %v4459 = vpop.xlane.xlu0 %4458
      %4460 = vadd.xlane.f32.xlu0 %v4429
      %v4461 = vpop.xlane.xlu0 %4460
      %4462 = vadd.xlane.f32.xlu0 %v4431
      %v4463 = vpop.xlane.xlu0 %4462
      %4464 = vadd.xlane.f32.xlu0 %v4433
      %v4465 = vpop.xlane.xlu0 %4464
      %4466 = vadd.xlane.f32.xlu0 %v4435
      %v4467 = vpop.xlane.xlu0 %4466
      %4468 = vadd.xlane.f32.xlu0 %v4437
      %v4469 = vpop.xlane.xlu0 %4468
      %4470 = vadd.xlane.f32.xlu0 %v4439
      %v4471 = vpop.xlane.xlu0 %4470
      %4472 = vadd.xlane.f32.xlu0 %v4441
      %v4473 = vpop.xlane.xlu0 %4472
      %4474 = vadd.xlane.f32.xlu0 %v4443
      %v4475 = vpop.xlane.xlu0 %4474
      %4476 = vadd.xlane.f32.xlu0 %v4445
      %v4477 = vpop.xlane.xlu0 %4476
      %4478 = vadd.xlane.f32.xlu0 %v4447
      %v4479 = vpop.xlane.xlu0 %4478
      %4480 = vadd.xlane.f32.xlu0 %v4449
      %v4481 = vpop.xlane.xlu0 %4480
      %4482 = vadd.xlane.f32.xlu0 %v4451
      %v4483 = vpop.xlane.xlu0 %4482
      %4484 = vadd.xlane.f32.xlu0 %v4453
      %v4485 = vpop.xlane.xlu0 %4484
      %4486 = vadd.xlane.f32.xlu0 %v4455
      %v4487 = vpop.xlane.xlu0 %4486
      %v4488 = vrcp.pop %v4457
      %v4489 = vrcp.pop %v4459
      %v4490 = vrcp.pop %v4461
      %v4491 = vrcp.pop %v4463
      %v4492 = vrcp.pop %v4465
      %v4493 = vrcp.pop %v4467
      %v4494 = vrcp.pop %v4469
      %v4495 = vrcp.pop %v4471
      %v4496 = vrcp.pop %v4473
      %v4497 = vrcp.pop %v4475
      %v4498 = vrcp.pop %v4477
      %v4499 = vrcp.pop %v4479
      %v4500 = vrcp.pop %v4481
      %v4501 = vrcp.pop %v4483
      %v4502 = vrcp.pop %v4485
      %v4503 = vrcp.pop %v4487
      %v4504 = vmul.f32 %v4425, %v4488
      %v4505 = vmul.f32 %v4427, %v4489
      %v4506 = vmul.f32 %v4429, %v4490
      %v4507 = vmul.f32 %v4431, %v4491
      %v4508 = vmul.f32 %v4433, %v4492
      %v4509 = vmul.f32 %v4435, %v4493
      %v4510 = vmul.f32 %v4437, %v4494
      %v4511 = vmul.f32 %v4439, %v4495
      %v4512 = vmul.f32 %v4441, %v4496
      %v4513 = vmul.f32 %v4443, %v4497
      %v4514 = vmul.f32 %v4445, %v4498
      %v4515 = vmul.f32 %v4447, %v4499
      %v4516 = vmul.f32 %v4449, %v4500
      %v4517 = vmul.f32 %v4451, %v4501
      %v4518 = vmul.f32 %v4453, %v4502
      %v4519 = vmul.f32 %v4455, %v4503
      %v4520 = vpack.c.bf16 %v4505, %v4504
      %v4521 = vpack.c.bf16 %v4507, %v4506
      %v4522 = vpack.c.bf16 %v4509, %v4508
      %v4523 = vpack.c.bf16 %v4511, %v4510
      %v4524 = vpack.c.bf16 %v4513, %v4512
      %v4525 = vpack.c.bf16 %v4515, %v4514
      %v4526 = vpack.c.bf16 %v4517, %v4516
      %v4527 = vpack.c.bf16 %v4519, %v4518
      %v4528 = vpack.c.bf16 %v4124, %v4121
      %v4529 = vpack.c.bf16 %v4132, %v4129
      %v4530 = vpack.c.bf16 %v4140, %v4137
      %v4531 = vpack.c.bf16 %v4148, %v4145
      %v4532 = vpack.c.bf16 %v4156, %v4153
      %v4533 = vpack.c.bf16 %v4164, %v4161
      %v4534 = vpack.c.bf16 %v4172, %v4169
      %v4535 = vpack.c.bf16 %v4180, %v4177
      %4536 = vmatprep.subr.bf16.mxu0 0
      %4537 = vmatpush1.bf16.msra.mxu0 %v4528
      %4538 = vmatprep.subr.bf16.mxu0 0
      %4539 = vmatpush1.bf16.msra.mxu0 %v4529
      %4540 = vmatprep.subr.bf16.mxu0 0
      %4541 = vmatpush1.bf16.msra.mxu0 %v4530
      %4542 = vmatprep.subr.bf16.mxu0 0
      %4543 = vmatpush1.bf16.msra.mxu0 %v4531
      %4544 = vmatprep.subr.bf16.mxu0 0
      %4545 = vmatpush1.bf16.msra.mxu0 %v4532
      %4546 = vmatprep.subr.bf16.mxu0 0
      %4547 = vmatpush1.bf16.msra.mxu0 %v4533
      %4548 = vmatprep.subr.bf16.mxu0 0
      %4549 = vmatpush1.bf16.msra.mxu0 %v4534
      %4550 = vmatprep.subr.bf16.mxu0 0
      %4551 = vmatpush1.bf16.msra.mxu0 %v4535
      %4552 = vmatprep.subr.bf16.mxu0 0
      %4553 = vmatpush1.bf16.msra.mxu0 0
      %4554 = vmatprep.subr.bf16.mxu0 0
      %4555 = vmatpush1.bf16.msra.mxu0 0
      %4556 = vmatprep.subr.bf16.mxu0 0
      %4557 = vmatpush1.bf16.msra.mxu0 0
      %4558 = vmatprep.subr.bf16.mxu0 0
      %4559 = vmatpush1.bf16.msra.mxu0 0
      %4560 = vmatprep.subr.bf16.mxu0 0
      %4561 = vmatpush1.bf16.msra.mxu0 0
      %4562 = vmatprep.subr.bf16.mxu0 0
      %4563 = vmatpush1.bf16.msra.mxu0 0
      %4564 = vmatprep.subr.bf16.mxu0 0
      %4565 = vmatpush1.bf16.msra.mxu0 0
      %4566 = vmatprep.subr.bf16.mxu0 0
      %4567 = vmatpush1.bf16.msra.mxu0 0
      %4568 = vmatprep.mubr.bf16.mxu0 0
      %4569 = vmatmul.mubr.bf16.gmra.mrb[0].mxu0 %v4520
      %v4570 = vpop.f32.mrb[0].mxu0
      %v4571 = vadd.f32 0.0, %v4570
      %v4572 = vpop.f32.mrb[0].mxu0
      %v4573 = vpop.f32.mrb[0].mxu0
      %v4574 = vadd.f32 0.0, %v4573
      %v4575 = vpop.f32.mrb[0].mxu0
      %4576 = vmatprep.mubr.bf16.mxu0 0
      %4577 = vmatmul.mubr.bf16.gmra.mrb[0].mxu0 %v4521
      %v4578 = vpop.f32.mrb[0].mxu0
      %v4579 = vadd.f32 0.0, %v4578
      %v4580 = vpop.f32.mrb[0].mxu0
      %v4581 = vpop.f32.mrb[0].mxu0
      %v4582 = vadd.f32 0.0, %v4581
      %v4583 = vpop.f32.mrb[0].mxu0
      %4584 = vmatprep.mubr.bf16.mxu0 0
      %4585 = vmatmul.mubr.bf16.gmra.mrb[0].mxu0 %v4522
      %v4586 = vpop.f32.mrb[0].mxu0
      %v4587 = vadd.f32 0.0, %v4586
      %v4588 = vpop.f32.mrb[0].mxu0
      %v4589 = vpop.f32.mrb[0].mxu0
      %v4590 = vadd.f32 0.0, %v4589
      %v4591 = vpop.f32.mrb[0].mxu0
      %4592 = vmatprep.mubr.bf16.mxu0 0
      %4593 = vmatmul.mubr.bf16.gmra.mrb[0].mxu0 %v4523
      %v4594 = vpop.f32.mrb[0].mxu0
      %v4595 = vadd.f32 0.0, %v4594
      %v4596 = vpop.f32.mrb[0].mxu0
      %v4597 = vpop.f32.mrb[0].mxu0
      %v4598 = vadd.f32 0.0, %v4597
      %v4599 = vpop.f32.mrb[0].mxu0
      %4600 = vmatprep.mubr.bf16.mxu0 0
      %4601 = vmatmul.mubr.bf16.gmra.mrb[0].mxu0 %v4524
      %v4602 = vpop.f32.mrb[0].mxu0
      %v4603 = vadd.f32 0.0, %v4602
      %v4604 = vpop.f32.mrb[0].mxu0
      %v4605 = vpop.f32.mrb[0].mxu0
      %v4606 = vadd.f32 0.0, %v4605
      %v4607 = vpop.f32.mrb[0].mxu0
      %4608 = vmatprep.mubr.bf16.mxu0 0
      %4609 = vmatmul.mubr.bf16.gmra.mrb[0].mxu0 %v4525
      %v4610 = vpop.f32.mrb[0].mxu0
      %v4611 = vadd.f32 0.0, %v4610
      %v4612 = vpop.f32.mrb[0].mxu0
      %v4613 = vpop.f32.mrb[0].mxu0
      %v4614 = vadd.f32 0.0, %v4613
      %v4615 = vpop.f32.mrb[0].mxu0
      %4616 = vmatprep.mubr.bf16.mxu0 0
      %4617 = vmatmul.mubr.bf16.gmra.mrb[0].mxu0 %v4526
      %v4618 = vpop.f32.mrb[0].mxu0
      %v4619 = vadd.f32 0.0, %v4618
      %v4620 = vpop.f32.mrb[0].mxu0
      %v4621 = vpop.f32.mrb[0].mxu0
      %v4622 = vadd.f32 0.0, %v4621
      %v4623 = vpop.f32.mrb[0].mxu0
      %4624 = vmatprep.mubr.bf16.mxu0 0
      %4625 = vmatmul.mubr.bf16.gmra.mrb[0].mxu0 %v4527
      %v4626 = vpop.f32.mrb[0].mxu0
      %v4627 = vadd.f32 0.0, %v4626
      %v4628 = vpop.f32.mrb[0].mxu0
      %v4629 = vpop.f32.mrb[0].mxu0
      %v4630 = vadd.f32 0.0, %v4629
      %v4631 = vpop.f32.mrb[0].mxu0
      %4632 = vdwg.mxu0
      %v4633 = vpack.c.bf16 %v4574, %v4571
      %v4634 = vpack.c.bf16 %v4582, %v4579
      %v4635 = vpack.c.bf16 %v4590, %v4587
      %v4636 = vpack.c.bf16 %v4598, %v4595
      %v4637 = vpack.c.bf16 %v4606, %v4603
      %v4638 = vpack.c.bf16 %v4614, %v4611
      %v4639 = vpack.c.bf16 %v4622, %v4619
      %v4640 = vpack.c.bf16 %v4630, %v4627
      %s4641 = scalar_lea.vmem %s10, 12
      %v4642 = vld [vmem:[%s4641] sm:$0xf]
      %v4644 = vsel %vm1332, %v4633, 0
      %v4647 = vsel %vm1332, %v4634, 0
      %v4650 = vsel %vm1332, %v4635, 0
      %v4653 = vsel %vm1332, %v4636, 0
      %v4656 = vsel %vm1332, %v4637, 0
      %v4659 = vsel %vm1332, %v4638, 0
      %v4662 = vsel %vm1332, %v4639, 0
      %v4665 = vsel %vm1332, %v4640, 0
      %v4668 = vsel %vm2626, %v4642, 0
      %4670 = vmatprep.subr.bf16.mxu0 0
      %4671 = vmatpush1.bf16.msra.mxu0 %v4668
      %4672 = vmatprep.subr.bf16.mxu0 0
      %4673 = vmatpush1.bf16.msra.mxu0 0
      %4674 = vmatprep.subr.bf16.mxu0 0
      %4675 = vmatpush1.bf16.msra.mxu0 0
      %4676 = vmatprep.subr.bf16.mxu0 0
      %4677 = vmatpush1.bf16.msra.mxu0 0
      %4678 = vmatprep.subr.bf16.mxu0 0
      %4679 = vmatpush1.bf16.msra.mxu0 0
      %4680 = vmatprep.subr.bf16.mxu0 0
      %4681 = vmatpush1.bf16.msra.mxu0 0
      %4682 = vmatprep.subr.bf16.mxu0 0
      %4683 = vmatpush1.bf16.msra.mxu0 0
      %4684 = vmatprep.subr.bf16.mxu0 0
      %4685 = vmatpush1.bf16.msra.mxu0 0
      %4686 = vmatprep.subr.bf16.mxu0 0
      %4687 = vmatpush1.bf16.msra.mxu0 0
      %4688 = vmatprep.subr.bf16.mxu0 0
      %4689 = vmatpush1.bf16.msra.mxu0 0
      %4690 = vmatprep.subr.bf16.mxu0 0
      %4691 = vmatpush1.bf16.msra.mxu0 0
      %4692 = vmatprep.subr.bf16.mxu0 0
      %4693 = vmatpush1.bf16.msra.mxu0 0
      %4694 = vmatprep.subr.bf16.mxu0 0
      %4695 = vmatpush1.bf16.msra.mxu0 0
      %4696 = vmatprep.subr.bf16.mxu0 0
      %4697 = vmatpush1.bf16.msra.mxu0 0
      %4698 = vmatprep.subr.bf16.mxu0 0
      %4699 = vmatpush1.bf16.msra.mxu0 0
      %4700 = vmatprep.subr.bf16.mxu0 0
      %4701 = vmatpush1.bf16.msra.mxu0 0
      %4702 = vmatprep.mubr.bf16.mxu0 0
      %4703 = vmatmul.mubr.bf16.gmra.mrb[0].mxu0 %v4644
      %v4704 = vpop.f32.mrb[0].mxu0
      %v4705 = vadd.f32 0.0, %v4704
      %v4706 = vpop.f32.mrb[0].mxu0
      %v4707 = vpop.f32.mrb[0].mxu0
      %v4708 = vadd.f32 0.0, %v4707
      %v4709 = vpop.f32.mrb[0].mxu0
      %4710 = vmatprep.mubr.bf16.mxu0 0
      %4711 = vmatmul.mubr.bf16.gmra.mrb[0].mxu0 %v4647
      %v4712 = vpop.f32.mrb[0].mxu0
      %v4713 = vadd.f32 0.0, %v4712
      %v4714 = vpop.f32.mrb[0].mxu0
      %v4715 = vpop.f32.mrb[0].mxu0
      %v4716 = vadd.f32 0.0, %v4715
      %v4717 = vpop.f32.mrb[0].mxu0
      %4718 = vmatprep.mubr.bf16.mxu0 0
      %4719 = vmatmul.mubr.bf16.gmra.mrb[0].mxu0 %v4650
      %v4720 = vpop.f32.mrb[0].mxu0
      %v4721 = vadd.f32 0.0, %v4720
      %v4722 = vpop.f32.mrb[0].mxu0
      %v4723 = vpop.f32.mrb[0].mxu0
      %v4724 = vadd.f32 0.0, %v4723
      %v4725 = vpop.f32.mrb[0].mxu0
      %4726 = vmatprep.mubr.bf16.mxu0 0
      %4727 = vmatmul.mubr.bf16.gmra.mrb[0].mxu0 %v4653
      %v4728 = vpop.f32.mrb[0].mxu0
      %v4729 = vadd.f32 0.0, %v4728
      %v4730 = vpop.f32.mrb[0].mxu0
      %v4731 = vpop.f32.mrb[0].mxu0
      %v4732 = vadd.f32 0.0, %v4731
      %v4733 = vpop.f32.mrb[0].mxu0
      %4734 = vmatprep.mubr.bf16.mxu0 0
      %4735 = vmatmul.mubr.bf16.gmra.mrb[0].mxu0 %v4656
      %v4736 = vpop.f32.mrb[0].mxu0
      %v4737 = vadd.f32 0.0, %v4736
      %v4738 = vpop.f32.mrb[0].mxu0
      %v4739 = vpop.f32.mrb[0].mxu0
      %v4740 = vadd.f32 0.0, %v4739
      %v4741 = vpop.f32.mrb[0].mxu0
      %4742 = vmatprep.mubr.bf16.mxu0 0
      %4743 = vmatmul.mubr.bf16.gmra.mrb[0].mxu0 %v4659
      %v4744 = vpop.f32.mrb[0].mxu0
      %v4745 = vadd.f32 0.0, %v4744
      %v4746 = vpop.f32.mrb[0].mxu0
      %v4747 = vpop.f32.mrb[0].mxu0
      %v4748 = vadd.f32 0.0, %v4747
      %v4749 = vpop.f32.mrb[0].mxu0
      %4750 = vmatprep.mubr.bf16.mxu0 0
      %4751 = vmatmul.mubr.bf16.gmra.mrb[0].mxu0 %v4662
      %v4752 = vpop.f32.mrb[0].mxu0
      %v4753 = vadd.f32 0.0, %v4752
      %v4754 = vpop.f32.mrb[0].mxu0
      %v4755 = vpop.f32.mrb[0].mxu0
      %v4756 = vadd.f32 0.0, %v4755
      %v4757 = vpop.f32.mrb[0].mxu0
      %4758 = vmatprep.mubr.bf16.mxu0 0
      %4759 = vmatmul.mubr.bf16.gmra.mrb[0].mxu0 %v4665
      %v4760 = vpop.f32.mrb[0].mxu0
      %v4761 = vadd.f32 0.0, %v4760
      %v4762 = vpop.f32.mrb[0].mxu0
      %v4763 = vpop.f32.mrb[0].mxu0
      %v4764 = vadd.f32 0.0, %v4763
      %v4765 = vpop.f32.mrb[0].mxu0
      %4766 = vdwg.mxu0
      %v4767 = vadd.f32 %v3801, %v4705
      %v4768 = vadd.f32 %v3802, %v4708
      %v4769 = vadd.f32 %v3803, %v4713
      %v4770 = vadd.f32 %v3804, %v4716
      %v4771 = vadd.f32 %v3805, %v4721
      %v4772 = vadd.f32 %v3806, %v4724
      %v4773 = vadd.f32 %v3807, %v4729
      %v4774 = vadd.f32 %v3808, %v4732
      %v4775 = vadd.f32 %v3809, %v4737
      %v4776 = vadd.f32 %v3810, %v4740
      %v4777 = vadd.f32 %v3811, %v4745
      %v4778 = vadd.f32 %v3812, %v4748
      %v4779 = vadd.f32 %v3813, %v4753
      %v4780 = vadd.f32 %v3814, %v4756
      %v4781 = vadd.f32 %v3815, %v4761
      %v4782 = vadd.f32 %v3816, %v4764
      %v4783 = vld [vmem:[%s11] sm:$0x1]
      %v4785 = vlaneseq
      %v4786 = vshrl.u32 %v4785, 7
      %v4787 = vsub.s32 0, %v4786
      %v4788 = vrot.slane %v4783, %v4787
      %v4790 = vadd.f32 %v4767, %v4788
      %v4791 = vadd.f32 %v4768, %v4788
      %v4792 = vadd.f32 %v4769, %v4788
      %v4793 = vadd.f32 %v4770, %v4788
      %v4794 = vadd.f32 %v4771, %v4788
      %v4795 = vadd.f32 %v4772, %v4788
      %v4796 = vadd.f32 %v4773, %v4788
      %v4797 = vadd.f32 %v4774, %v4788
      %v4798 = vadd.f32 %v4775, %v4788
      %v4799 = vadd.f32 %v4776, %v4788
      %v4800 = vadd.f32 %v4777, %v4788
      %v4801 = vadd.f32 %v4778, %v4788
      %v4802 = vadd.f32 %v4779, %v4788
      %v4803 = vadd.f32 %v4780, %v4788
      %v4804 = vadd.f32 %v4781, %v4788
      %v4805 = vadd.f32 %v4782, %v4788
      %v4806 = vadd.f32 %v901, %v4790
      %v4807 = vadd.f32 %v902, %v4791
      %v4808 = vadd.f32 %v903, %v4792
      %v4809 = vadd.f32 %v904, %v4793
      %v4810 = vadd.f32 %v905, %v4794
      %v4811 = vadd.f32 %v906, %v4795
      %v4812 = vadd.f32 %v907, %v4796
      %v4813 = vadd.f32 %v908, %v4797
      %v4814 = vadd.f32 %v909, %v4798
      %v4815 = vadd.f32 %v910, %v4799
      %v4816 = vadd.f32 %v911, %v4800
      %v4817 = vadd.f32 %v912, %v4801
      %v4818 = vadd.f32 %v913, %v4802
      %v4819 = vadd.f32 %v914, %v4803
      %v4820 = vadd.f32 %v915, %v4804
      %v4821 = vadd.f32 %v916, %v4805
      %v4822 = vld [vmem:[%s12] sm:$0x1]
      %v4823 = vld [vmem:[%s13] sm:$0x1]
      %v4824 = vsel %vm663, %v4806, 0.0
      %4825 = vadd.xlane.f32.xlu0 %v4824
      %v4826 = vpop.xlane.xlu0 %4825
      %v4827 = vsel %vm663, %v4807, 0.0
      %4828 = vadd.xlane.f32.xlu0 %v4827
      %v4829 = vpop.xlane.xlu0 %4828
      %v4830 = vsel %vm663, %v4808, 0.0
      %4831 = vadd.xlane.f32.xlu0 %v4830
      %v4832 = vpop.xlane.xlu0 %4831
      %v4833 = vsel %vm663, %v4809, 0.0
      %4834 = vadd.xlane.f32.xlu0 %v4833
      %v4835 = vpop.xlane.xlu0 %4834
      %v4836 = vsel %vm663, %v4810, 0.0
      %4837 = vadd.xlane.f32.xlu0 %v4836
      %v4838 = vpop.xlane.xlu0 %4837
      %v4839 = vsel %vm663, %v4811, 0.0
      %4840 = vadd.xlane.f32.xlu0 %v4839
      %v4841 = vpop.xlane.xlu0 %4840
      %v4842 = vsel %vm663, %v4812, 0.0
      %4843 = vadd.xlane.f32.xlu0 %v4842
      %v4844 = vpop.xlane.xlu0 %4843
      %v4845 = vsel %vm663, %v4813, 0.0
      %4846 = vadd.xlane.f32.xlu0 %v4845
      %v4847 = vpop.xlane.xlu0 %4846
      %v4848 = vsel %vm663, %v4814, 0.0
      %4849 = vadd.xlane.f32.xlu0 %v4848
      %v4850 = vpop.xlane.xlu0 %4849
      %v4851 = vsel %vm663, %v4815, 0.0
      %4852 = vadd.xlane.f32.xlu0 %v4851
      %v4853 = vpop.xlane.xlu0 %4852
      %v4854 = vsel %vm663, %v4816, 0.0
      %4855 = vadd.xlane.f32.xlu0 %v4854
      %v4856 = vpop.xlane.xlu0 %4855
      %v4857 = vsel %vm663, %v4817, 0.0
      %4858 = vadd.xlane.f32.xlu0 %v4857
      %v4859 = vpop.xlane.xlu0 %4858
      %v4860 = vsel %vm663, %v4818, 0.0
      %4861 = vadd.xlane.f32.xlu0 %v4860
      %v4862 = vpop.xlane.xlu0 %4861
      %v4863 = vsel %vm663, %v4819, 0.0
      %4864 = vadd.xlane.f32.xlu0 %v4863
      %v4865 = vpop.xlane.xlu0 %4864
      %v4866 = vsel %vm663, %v4820, 0.0
      %4867 = vadd.xlane.f32.xlu0 %v4866
      %v4868 = vpop.xlane.xlu0 %4867
      %v4869 = vsel %vm663, %v4821, 0.0
      %4870 = vadd.xlane.f32.xlu0 %v4869
      %v4871 = vpop.xlane.xlu0 %4870
      %v4872 = vmul.f32 %v4826, %v712
      %v4873 = vmul.f32 %v4829, %v712
      %v4874 = vmul.f32 %v4832, %v712
      %v4875 = vmul.f32 %v4835, %v712
      %v4876 = vmul.f32 %v4838, %v712
      %v4877 = vmul.f32 %v4841, %v712
      %v4878 = vmul.f32 %v4844, %v712
      %v4879 = vmul.f32 %v4847, %v712
      %v4880 = vmul.f32 %v4850, %v712
      %v4881 = vmul.f32 %v4853, %v712
      %v4882 = vmul.f32 %v4856, %v712
      %v4883 = vmul.f32 %v4859, %v712
      %v4884 = vmul.f32 %v4862, %v712
      %v4885 = vmul.f32 %v4865, %v712
      %v4886 = vmul.f32 %v4868, %v712
      %v4887 = vmul.f32 %v4871, %v712
      %v4888 = vsub.f32 %v4806, %v4872
      %v4889 = vsub.f32 %v4807, %v4873
      %v4890 = vsub.f32 %v4808, %v4874
      %v4891 = vsub.f32 %v4809, %v4875
      %v4892 = vsub.f32 %v4810, %v4876
      %v4893 = vsub.f32 %v4811, %v4877
      %v4894 = vsub.f32 %v4812, %v4878
      %v4895 = vsub.f32 %v4813, %v4879
      %v4896 = vsub.f32 %v4814, %v4880
      %v4897 = vsub.f32 %v4815, %v4881
      %v4898 = vsub.f32 %v4816, %v4882
      %v4899 = vsub.f32 %v4817, %v4883
      %v4900 = vsub.f32 %v4818, %v4884
      %v4901 = vsub.f32 %v4819, %v4885
      %v4902 = vsub.f32 %v4820, %v4886
      %v4903 = vsub.f32 %v4821, %v4887
      %v4904 = vmul.f32 %v4888, %v4888
      %v4905 = vmul.f32 %v4889, %v4889
      %v4906 = vmul.f32 %v4890, %v4890
      %v4907 = vmul.f32 %v4891, %v4891
      %v4908 = vmul.f32 %v4892, %v4892
      %v4909 = vmul.f32 %v4893, %v4893
      %v4910 = vmul.f32 %v4894, %v4894
      %v4911 = vmul.f32 %v4895, %v4895
      %v4912 = vmul.f32 %v4896, %v4896
      %v4913 = vmul.f32 %v4897, %v4897
      %v4914 = vmul.f32 %v4898, %v4898
      %v4915 = vmul.f32 %v4899, %v4899
      %v4916 = vmul.f32 %v4900, %v4900
      %v4917 = vmul.f32 %v4901, %v4901
      %v4918 = vmul.f32 %v4902, %v4902
      %v4919 = vmul.f32 %v4903, %v4903
      %v4920 = vsel %vm663, %v4904, 0.0
      %4921 = vadd.xlane.f32.xlu0 %v4920
      %v4922 = vpop.xlane.xlu0 %4921
      %v4923 = vsel %vm663, %v4905, 0.0
      %4924 = vadd.xlane.f32.xlu0 %v4923
      %v4925 = vpop.xlane.xlu0 %4924
      %v4926 = vsel %vm663, %v4906, 0.0
      %4927 = vadd.xlane.f32.xlu0 %v4926
      %v4928 = vpop.xlane.xlu0 %4927
      %v4929 = vsel %vm663, %v4907, 0.0
      %4930 = vadd.xlane.f32.xlu0 %v4929
      %v4931 = vpop.xlane.xlu0 %4930
      %v4932 = vsel %vm663, %v4908, 0.0
      %4933 = vadd.xlane.f32.xlu0 %v4932
      %v4934 = vpop.xlane.xlu0 %4933
      %v4935 = vsel %vm663, %v4909, 0.0
      %4936 = vadd.xlane.f32.xlu0 %v4935
      %v4937 = vpop.xlane.xlu0 %4936
      %v4938 = vsel %vm663, %v4910, 0.0
      %4939 = vadd.xlane.f32.xlu0 %v4938
      %v4940 = vpop.xlane.xlu0 %4939
      %v4941 = vsel %vm663, %v4911, 0.0
      %4942 = vadd.xlane.f32.xlu0 %v4941
      %v4943 = vpop.xlane.xlu0 %4942
      %v4944 = vsel %vm663, %v4912, 0.0
      %4945 = vadd.xlane.f32.xlu0 %v4944
      %v4946 = vpop.xlane.xlu0 %4945
      %v4947 = vsel %vm663, %v4913, 0.0
      %4948 = vadd.xlane.f32.xlu0 %v4947
      %v4949 = vpop.xlane.xlu0 %4948
      %v4950 = vsel %vm663, %v4914, 0.0
      %4951 = vadd.xlane.f32.xlu0 %v4950
      %v4952 = vpop.xlane.xlu0 %4951
      %v4953 = vsel %vm663, %v4915, 0.0
      %4954 = vadd.xlane.f32.xlu0 %v4953
      %v4955 = vpop.xlane.xlu0 %4954
      %v4956 = vsel %vm663, %v4916, 0.0
      %4957 = vadd.xlane.f32.xlu0 %v4956
      %v4958 = vpop.xlane.xlu0 %4957
      %v4959 = vsel %vm663, %v4917, 0.0
      %4960 = vadd.xlane.f32.xlu0 %v4959
      %v4961 = vpop.xlane.xlu0 %4960
      %v4962 = vsel %vm663, %v4918, 0.0
      %4963 = vadd.xlane.f32.xlu0 %v4962
      %v4964 = vpop.xlane.xlu0 %4963
      %v4965 = vsel %vm663, %v4919, 0.0
      %4966 = vadd.xlane.f32.xlu0 %v4965
      %v4967 = vpop.xlane.xlu0 %4966
      %v4968 = vmul.f32 %v4922, %v712
      %v4969 = vmul.f32 %v4925, %v712
      %v4970 = vmul.f32 %v4928, %v712
      %v4971 = vmul.f32 %v4931, %v712
      %v4972 = vmul.f32 %v4934, %v712
      %v4973 = vmul.f32 %v4937, %v712
      %v4974 = vmul.f32 %v4940, %v712
      %v4975 = vmul.f32 %v4943, %v712
      %v4976 = vmul.f32 %v4946, %v712
      %v4977 = vmul.f32 %v4949, %v712
      %v4978 = vmul.f32 %v4952, %v712
      %v4979 = vmul.f32 %v4955, %v712
      %v4980 = vmul.f32 %v4958, %v712
      %v4981 = vmul.f32 %v4961, %v712
      %v4982 = vmul.f32 %v4964, %v712
      %v4983 = vmul.f32 %v4967, %v712
      %v4984 = vadd.f32 %v4968, 1e-12
      %v4985 = vadd.f32 %v4969, 1e-12
      %v4986 = vadd.f32 %v4970, 1e-12
      %v4987 = vadd.f32 %v4971, 1e-12
      %v4988 = vadd.f32 %v4972, 1e-12
      %v4989 = vadd.f32 %v4973, 1e-12
      %v4990 = vadd.f32 %v4974, 1e-12
      %v4991 = vadd.f32 %v4975, 1e-12
      %v4992 = vadd.f32 %v4976, 1e-12
      %v4993 = vadd.f32 %v4977, 1e-12
      %v4994 = vadd.f32 %v4978, 1e-12
      %v4995 = vadd.f32 %v4979, 1e-12
      %v4996 = vadd.f32 %v4980, 1e-12
      %v4997 = vadd.f32 %v4981, 1e-12
      %v4998 = vadd.f32 %v4982, 1e-12
      %v4999 = vadd.f32 %v4983, 1e-12
      %v5000 = vrsqrt.pop %v4984
      %v5001 = vrsqrt.pop %v4985
      %v5002 = vrsqrt.pop %v4986
      %v5003 = vrsqrt.pop %v4987
      %v5004 = vrsqrt.pop %v4988
      %v5005 = vrsqrt.pop %v4989
      %v5006 = vrsqrt.pop %v4990
      %v5007 = vrsqrt.pop %v4991
      %v5008 = vrsqrt.pop %v4992
      %v5009 = vrsqrt.pop %v4993
      %v5010 = vrsqrt.pop %v4994
      %v5011 = vrsqrt.pop %v4995
      %v5012 = vrsqrt.pop %v4996
      %v5013 = vrsqrt.pop %v4997
      %v5014 = vrsqrt.pop %v4998
      %v5015 = vrsqrt.pop %v4999
      %v5016 = vmul.f32 %v4888, %v5000
      %v5017 = vmul.f32 %v4889, %v5001
      %v5018 = vmul.f32 %v4890, %v5002
      %v5019 = vmul.f32 %v4891, %v5003
      %v5020 = vmul.f32 %v4892, %v5004
      %v5021 = vmul.f32 %v4893, %v5005
      %v5022 = vmul.f32 %v4894, %v5006
      %v5023 = vmul.f32 %v4895, %v5007
      %v5024 = vmul.f32 %v4896, %v5008
      %v5025 = vmul.f32 %v4897, %v5009
      %v5026 = vmul.f32 %v4898, %v5010
      %v5027 = vmul.f32 %v4899, %v5011
      %v5028 = vmul.f32 %v4900, %v5012
      %v5029 = vmul.f32 %v4901, %v5013
      %v5030 = vmul.f32 %v4902, %v5014
      %v5031 = vmul.f32 %v4903, %v5015
      %v5033 = vlaneseq
      %v5034 = vshrl.u32 %v5033, 7
      %v5035 = vsub.s32 0, %v5034
      %v5036 = vrot.slane %v4822, %v5035
      %v5038 = vmul.f32 %v5016, %v5036
      %v5039 = vmul.f32 %v5017, %v5036
      %v5040 = vmul.f32 %v5018, %v5036
      %v5041 = vmul.f32 %v5019, %v5036
      %v5042 = vmul.f32 %v5020, %v5036
      %v5043 = vmul.f32 %v5021, %v5036
      %v5044 = vmul.f32 %v5022, %v5036
      %v5045 = vmul.f32 %v5023, %v5036
      %v5046 = vmul.f32 %v5024, %v5036
      %v5047 = vmul.f32 %v5025, %v5036
      %v5048 = vmul.f32 %v5026, %v5036
      %v5049 = vmul.f32 %v5027, %v5036
      %v5050 = vmul.f32 %v5028, %v5036
      %v5051 = vmul.f32 %v5029, %v5036
      %v5052 = vmul.f32 %v5030, %v5036
      %v5053 = vmul.f32 %v5031, %v5036
      %v5055 = vlaneseq
      %v5056 = vshrl.u32 %v5055, 7
      %v5057 = vsub.s32 0, %v5056
      %v5058 = vrot.slane %v4823, %v5057
      %v5060 = vadd.f32 %v5038, %v5058
      %v5061 = vadd.f32 %v5039, %v5058
      %v5062 = vadd.f32 %v5040, %v5058
      %v5063 = vadd.f32 %v5041, %v5058
      %v5064 = vadd.f32 %v5042, %v5058
      %v5065 = vadd.f32 %v5043, %v5058
      %v5066 = vadd.f32 %v5044, %v5058
      %v5067 = vadd.f32 %v5045, %v5058
      %v5068 = vadd.f32 %v5046, %v5058
      %v5069 = vadd.f32 %v5047, %v5058
      %v5070 = vadd.f32 %v5048, %v5058
      %v5071 = vadd.f32 %v5049, %v5058
      %v5072 = vadd.f32 %v5050, %v5058
      %v5073 = vadd.f32 %v5051, %v5058
      %v5074 = vadd.f32 %v5052, %v5058
      %v5075 = vadd.f32 %v5053, %v5058
      %v5076 = vpack.c.bf16 %v5061, %v5060
      %v5077 = vpack.c.bf16 %v5063, %v5062
      %v5078 = vpack.c.bf16 %v5065, %v5064
      %v5079 = vpack.c.bf16 %v5067, %v5066
      %v5080 = vpack.c.bf16 %v5069, %v5068
      %v5081 = vpack.c.bf16 %v5071, %v5070
      %v5082 = vpack.c.bf16 %v5073, %v5072
      %v5083 = vpack.c.bf16 %v5075, %v5074
      %v5084 = vld [vmem:[%s14] sm:$0xf]
      %v5085 = vld [vmem:[%s14 + $0x4] sm:$0xf]
      %v5086 = vld [vmem:[%s14 + $0x8] sm:$0xf]
      %v5087 = vld [vmem:[%s14 + $0xc] sm:$0xf]
      %v5088 = vld [vmem:[%s15] sm:$0x1]
      %v5090 = vlaneseq
      %v5091 = vshrl.u32 %v5090, 7
      %v5092 = vsub.s32 0, %v5091
      %v5093 = vrot.slane %v5088, %v5092
      %v5099 = vunpack.c.l.b16 %v5084
      %v5100 = vunpack.c.l.b16 %v5085
      %v5101 = vunpack.c.l.b16 %v5086
      %v5102 = vunpack.c.l.b16 %v5087
      %v5103 = vpack.c.b16 %v5100, %v5099
      %v5104 = vpack.c.b16 %v5102, %v5101
      %v5108 = vsel %vm663, %v5076, 0
      %v5111 = vsel %vm663, %v5077, 0
      %v5114 = vsel %vm663, %v5078, 0
      %v5117 = vsel %vm663, %v5079, 0
      %v5120 = vsel %vm663, %v5080, 0
      %v5123 = vsel %vm663, %v5081, 0
      %v5126 = vsel %vm663, %v5082, 0
      %v5129 = vsel %vm663, %v5083, 0
      %5131 = vmatprep.subr.bf16.mxu0 0
      %5132 = vmatpush1.bf16.msra.mxu0 %v5103
      %5133 = vmatprep.subr.bf16.mxu0 0
      %5134 = vmatpush1.bf16.msra.mxu0 %v5104
      %5135 = vmatprep.subr.bf16.mxu0 0
      %5136 = vmatpush1.bf16.msra.mxu0 0
      %5137 = vmatprep.subr.bf16.mxu0 0
      %5138 = vmatpush1.bf16.msra.mxu0 0
      %5139 = vmatprep.subr.bf16.mxu0 0
      %5140 = vmatpush1.bf16.msra.mxu0 0
      %5141 = vmatprep.subr.bf16.mxu0 0
      %5142 = vmatpush1.bf16.msra.mxu0 0
      %5143 = vmatprep.subr.bf16.mxu0 0
      %5144 = vmatpush1.bf16.msra.mxu0 0
      %5145 = vmatprep.subr.bf16.mxu0 0
      %5146 = vmatpush1.bf16.msra.mxu0 0
      %5147 = vmatprep.subr.bf16.mxu0 0
      %5148 = vmatpush1.bf16.msra.mxu0 0
      %5149 = vmatprep.subr.bf16.mxu0 0
      %5150 = vmatpush1.bf16.msra.mxu0 0
      %5151 = vmatprep.subr.bf16.mxu0 0
      %5152 = vmatpush1.bf16.msra.mxu0 0
      %5153 = vmatprep.subr.bf16.mxu0 0
      %5154 = vmatpush1.bf16.msra.mxu0 0
      %5155 = vmatprep.subr.bf16.mxu0 0
      %5156 = vmatpush1.bf16.msra.mxu0 0
      %5157 = vmatprep.subr.bf16.mxu0 0
      %5158 = vmatpush1.bf16.msra.mxu0 0
      %5159 = vmatprep.subr.bf16.mxu0 0
      %5160 = vmatpush1.bf16.msra.mxu0 0
      %5161 = vmatprep.subr.bf16.mxu0 0
      %5162 = vmatpush1.bf16.msra.mxu0 0
      %5163 = vmatprep.mubr.bf16.mxu0 0
      %5164 = vmatmul.mubr.bf16.gmra.mrb[0].mxu0 %v5108
      %v5165 = vpop.f32.mrb[0].mxu0
      %v5166 = vadd.f32 %v5093, %v5165
      %v5167 = vpop.f32.mrb[0].mxu0
      %v5168 = vpop.f32.mrb[0].mxu0
      %v5169 = vadd.f32 %v5093, %v5168
      %v5170 = vpop.f32.mrb[0].mxu0
      %5171 = vmatprep.mubr.bf16.mxu0 0
      %5172 = vmatmul.mubr.bf16.gmra.mrb[0].mxu0 %v5111
      %v5173 = vpop.f32.mrb[0].mxu0
      %v5174 = vadd.f32 %v5093, %v5173
      %v5175 = vpop.f32.mrb[0].mxu0
      %v5176 = vpop.f32.mrb[0].mxu0
      %v5177 = vadd.f32 %v5093, %v5176
      %v5178 = vpop.f32.mrb[0].mxu0
      %5179 = vmatprep.mubr.bf16.mxu0 0
      %5180 = vmatmul.mubr.bf16.gmra.mrb[0].mxu0 %v5114
      %v5181 = vpop.f32.mrb[0].mxu0
      %v5182 = vadd.f32 %v5093, %v5181
      %v5183 = vpop.f32.mrb[0].mxu0
      %v5184 = vpop.f32.mrb[0].mxu0
      %v5185 = vadd.f32 %v5093, %v5184
      %v5186 = vpop.f32.mrb[0].mxu0
      %5187 = vmatprep.mubr.bf16.mxu0 0
      %5188 = vmatmul.mubr.bf16.gmra.mrb[0].mxu0 %v5117
      %v5189 = vpop.f32.mrb[0].mxu0
      %v5190 = vadd.f32 %v5093, %v5189
      %v5191 = vpop.f32.mrb[0].mxu0
      %v5192 = vpop.f32.mrb[0].mxu0
      %v5193 = vadd.f32 %v5093, %v5192
      %v5194 = vpop.f32.mrb[0].mxu0
      %5195 = vmatprep.mubr.bf16.mxu0 0
      %5196 = vmatmul.mubr.bf16.gmra.mrb[0].mxu0 %v5120
      %v5197 = vpop.f32.mrb[0].mxu0
      %v5198 = vadd.f32 %v5093, %v5197
      %v5199 = vpop.f32.mrb[0].mxu0
      %v5200 = vpop.f32.mrb[0].mxu0
      %v5201 = vadd.f32 %v5093, %v5200
      %v5202 = vpop.f32.mrb[0].mxu0
      %5203 = vmatprep.mubr.bf16.mxu0 0
      %5204 = vmatmul.mubr.bf16.gmra.mrb[0].mxu0 %v5123
      %v5205 = vpop.f32.mrb[0].mxu0
      %v5206 = vadd.f32 %v5093, %v5205
      %v5207 = vpop.f32.mrb[0].mxu0
      %v5208 = vpop.f32.mrb[0].mxu0
      %v5209 = vadd.f32 %v5093, %v5208
      %v5210 = vpop.f32.mrb[0].mxu0
      %5211 = vmatprep.mubr.bf16.mxu0 0
      %5212 = vmatmul.mubr.bf16.gmra.mrb[0].mxu0 %v5126
      %v5213 = vpop.f32.mrb[0].mxu0
      %v5214 = vadd.f32 %v5093, %v5213
      %v5215 = vpop.f32.mrb[0].mxu0
      %v5216 = vpop.f32.mrb[0].mxu0
      %v5217 = vadd.f32 %v5093, %v5216
      %v5218 = vpop.f32.mrb[0].mxu0
      %5219 = vmatprep.mubr.bf16.mxu0 0
      %5220 = vmatmul.mubr.bf16.gmra.mrb[0].mxu0 %v5129
      %v5221 = vpop.f32.mrb[0].mxu0
      %v5222 = vadd.f32 %v5093, %v5221
      %v5223 = vpop.f32.mrb[0].mxu0
      %v5224 = vpop.f32.mrb[0].mxu0
      %v5225 = vadd.f32 %v5093, %v5224
      %v5226 = vpop.f32.mrb[0].mxu0
      %5227 = vdwg.mxu0
      %v5228 = vmul.f32 %v5166, 0.5
      %v5229 = vmul.f32 %v5169, 0.5
      %v5230 = vmul.f32 %v5174, 0.5
      %v5231 = vmul.f32 %v5177, 0.5
      %v5232 = vmul.f32 %v5182, 0.5
      %v5233 = vmul.f32 %v5185, 0.5
      %v5234 = vmul.f32 %v5190, 0.5
      %v5235 = vmul.f32 %v5193, 0.5
      %v5236 = vmul.f32 %v5198, 0.5
      %v5237 = vmul.f32 %v5201, 0.5
      %v5238 = vmul.f32 %v5206, 0.5
      %v5239 = vmul.f32 %v5209, 0.5
      %v5240 = vmul.f32 %v5214, 0.5
      %v5241 = vmul.f32 %v5217, 0.5
      %v5242 = vmul.f32 %v5222, 0.5
      %v5243 = vmul.f32 %v5225, 0.5
      %v5244 = vmul.f32 %v5166, 0.044715
      %v5245 = vmul.f32 %v5169, 0.044715
      %v5246 = vmul.f32 %v5174, 0.044715
      %v5247 = vmul.f32 %v5177, 0.044715
      %v5248 = vmul.f32 %v5182, 0.044715
      %v5249 = vmul.f32 %v5185, 0.044715
      %v5250 = vmul.f32 %v5190, 0.044715
      %v5251 = vmul.f32 %v5193, 0.044715
      %v5252 = vmul.f32 %v5198, 0.044715
      %v5253 = vmul.f32 %v5201, 0.044715
      %v5254 = vmul.f32 %v5206, 0.044715
      %v5255 = vmul.f32 %v5209, 0.044715
      %v5256 = vmul.f32 %v5214, 0.044715
      %v5257 = vmul.f32 %v5217, 0.044715
      %v5258 = vmul.f32 %v5222, 0.044715
      %v5259 = vmul.f32 %v5225, 0.044715
      %v5260 = vmul.f32 %v5244, %v5166
      %v5261 = vmul.f32 %v5245, %v5169
      %v5262 = vmul.f32 %v5246, %v5174
      %v5263 = vmul.f32 %v5247, %v5177
      %v5264 = vmul.f32 %v5248, %v5182
      %v5265 = vmul.f32 %v5249, %v5185
      %v5266 = vmul.f32 %v5250, %v5190
      %v5267 = vmul.f32 %v5251, %v5193
      %v5268 = vmul.f32 %v5252, %v5198
      %v5269 = vmul.f32 %v5253, %v5201
      %v5270 = vmul.f32 %v5254, %v5206
      %v5271 = vmul.f32 %v5255, %v5209
      %v5272 = vmul.f32 %v5256, %v5214
      %v5273 = vmul.f32 %v5257, %v5217
      %v5274 = vmul.f32 %v5258, %v5222
      %v5275 = vmul.f32 %v5259, %v5225
      %v5276 = vmul.f32 %v5260, %v5166
      %v5277 = vmul.f32 %v5261, %v5169
      %v5278 = vmul.f32 %v5262, %v5174
      %v5279 = vmul.f32 %v5263, %v5177
      %v5280 = vmul.f32 %v5264, %v5182
      %v5281 = vmul.f32 %v5265, %v5185
      %v5282 = vmul.f32 %v5266, %v5190
      %v5283 = vmul.f32 %v5267, %v5193
      %v5284 = vmul.f32 %v5268, %v5198
      %v5285 = vmul.f32 %v5269, %v5201
      %v5286 = vmul.f32 %v5270, %v5206
      %v5287 = vmul.f32 %v5271, %v5209
      %v5288 = vmul.f32 %v5272, %v5214
      %v5289 = vmul.f32 %v5273, %v5217
      %v5290 = vmul.f32 %v5274, %v5222
      %v5291 = vmul.f32 %v5275, %v5225
      %v5292 = vadd.f32 %v5166, %v5276
      %v5293 = vadd.f32 %v5169, %v5277
      %v5294 = vadd.f32 %v5174, %v5278
      %v5295 = vadd.f32 %v5177, %v5279
      %v5296 = vadd.f32 %v5182, %v5280
      %v5297 = vadd.f32 %v5185, %v5281
      %v5298 = vadd.f32 %v5190, %v5282
      %v5299 = vadd.f32 %v5193, %v5283
      %v5300 = vadd.f32 %v5198, %v5284
      %v5301 = vadd.f32 %v5201, %v5285
      %v5302 = vadd.f32 %v5206, %v5286
      %v5303 = vadd.f32 %v5209, %v5287
      %v5304 = vadd.f32 %v5214, %v5288
      %v5305 = vadd.f32 %v5217, %v5289
      %v5306 = vadd.f32 %v5222, %v5290
      %v5307 = vadd.f32 %v5225, %v5291
      %v5308 = vmul.f32 %v5292, 0.7978846
      %v5309 = vmul.f32 %v5293, 0.7978846
      %v5310 = vmul.f32 %v5294, 0.7978846
      %v5311 = vmul.f32 %v5295, 0.7978846
      %v5312 = vmul.f32 %v5296, 0.7978846
      %v5313 = vmul.f32 %v5297, 0.7978846
      %v5314 = vmul.f32 %v5298, 0.7978846
      %v5315 = vmul.f32 %v5299, 0.7978846
      %v5316 = vmul.f32 %v5300, 0.7978846
      %v5317 = vmul.f32 %v5301, 0.7978846
      %v5318 = vmul.f32 %v5302, 0.7978846
      %v5319 = vmul.f32 %v5303, 0.7978846
      %v5320 = vmul.f32 %v5304, 0.7978846
      %v5321 = vmul.f32 %v5305, 0.7978846
      %v5322 = vmul.f32 %v5306, 0.7978846
      %v5323 = vmul.f32 %v5307, 0.7978846
      %v5324 = vtanh.pop %v5308
      %v5325 = vtanh.pop %v5309
      %v5326 = vtanh.pop %v5310
      %v5327 = vtanh.pop %v5311
      %v5328 = vtanh.pop %v5312
      %v5329 = vtanh.pop %v5313
      %v5330 = vtanh.pop %v5314
      %v5331 = vtanh.pop %v5315
      %v5332 = vtanh.pop %v5316
      %v5333 = vtanh.pop %v5317
      %v5334 = vtanh.pop %v5318
      %v5335 = vtanh.pop %v5319
      %v5336 = vtanh.pop %v5320
      %v5337 = vtanh.pop %v5321
      %v5338 = vtanh.pop %v5322
      %v5339 = vtanh.pop %v5323
      %v5340 = vadd.f32 %v5324, 1.0
      %v5341 = vadd.f32 %v5325, 1.0
      %v5342 = vadd.f32 %v5326, 1.0
      %v5343 = vadd.f32 %v5327, 1.0
      %v5344 = vadd.f32 %v5328, 1.0
      %v5345 = vadd.f32 %v5329, 1.0
      %v5346 = vadd.f32 %v5330, 1.0
      %v5347 = vadd.f32 %v5331, 1.0
      %v5348 = vadd.f32 %v5332, 1.0
      %v5349 = vadd.f32 %v5333, 1.0
      %v5350 = vadd.f32 %v5334, 1.0
      %v5351 = vadd.f32 %v5335, 1.0
      %v5352 = vadd.f32 %v5336, 1.0
      %v5353 = vadd.f32 %v5337, 1.0
      %v5354 = vadd.f32 %v5338, 1.0
      %v5355 = vadd.f32 %v5339, 1.0
      %v5356 = vmul.f32 %v5228, %v5340
      %v5357 = vmul.f32 %v5229, %v5341
      %v5358 = vmul.f32 %v5230, %v5342
      %v5359 = vmul.f32 %v5231, %v5343
      %v5360 = vmul.f32 %v5232, %v5344
      %v5361 = vmul.f32 %v5233, %v5345
      %v5362 = vmul.f32 %v5234, %v5346
      %v5363 = vmul.f32 %v5235, %v5347
      %v5364 = vmul.f32 %v5236, %v5348
      %v5365 = vmul.f32 %v5237, %v5349
      %v5366 = vmul.f32 %v5238, %v5350
      %v5367 = vmul.f32 %v5239, %v5351
      %v5368 = vmul.f32 %v5240, %v5352
      %v5369 = vmul.f32 %v5241, %v5353
      %v5370 = vmul.f32 %v5242, %v5354
      %v5371 = vmul.f32 %v5243, %v5355
      %v5372 = vpack.c.bf16 %v5357, %v5356
      %v5373 = vpack.c.bf16 %v5359, %v5358
      %v5374 = vpack.c.bf16 %v5361, %v5360
      %v5375 = vpack.c.bf16 %v5363, %v5362
      %v5376 = vpack.c.bf16 %v5365, %v5364
      %v5377 = vpack.c.bf16 %v5367, %v5366
      %v5378 = vpack.c.bf16 %v5369, %v5368
      %v5379 = vpack.c.bf16 %v5371, %v5370
      %v5380 = vld [vmem:[%s16] sm:$0xf]
      %v5381 = vld [vmem:[%s16 + $0x4] sm:$0xf]
      %v5382 = vld [vmem:[%s16 + $0x8] sm:$0xf]
      %v5383 = vld [vmem:[%s16 + $0xc] sm:$0xf]
      %v5384 = vld [vmem:[%s16 + $0x10] sm:$0xf]
      %v5385 = vld [vmem:[%s16 + $0x14] sm:$0xf]
      %v5386 = vld [vmem:[%s16 + $0x18] sm:$0xf]
      %v5387 = vld [vmem:[%s16 + $0x1c] sm:$0xf]
      %v5388 = vld [vmem:[%s17] sm:$0x1]
      %v5390 = vlaneseq
      %v5391 = vshrl.u32 %v5390, 7
      %v5392 = vsub.s32 0, %v5391
      %v5393 = vrot.slane %v5388, %v5392
      %v5403 = vunpack.c.l.b16 %v5380
      %v5404 = vunpack.c.l.b16 %v5381
      %v5405 = vunpack.c.l.b16 %v5382
      %v5406 = vunpack.c.l.b16 %v5383
      %v5407 = vunpack.c.l.b16 %v5384
      %v5408 = vunpack.c.l.b16 %v5385
      %v5409 = vunpack.c.l.b16 %v5386
      %v5410 = vunpack.c.l.b16 %v5387
      %v5411 = vpack.c.b16 %v5404, %v5403
      %v5412 = vpack.c.b16 %v5406, %v5405
      %v5413 = vpack.c.b16 %v5408, %v5407
      %v5414 = vpack.c.b16 %v5410, %v5409
      %vm5419 = vcmask 523264
      %v5421 = vsel %vm5419, %v5372, 0
      %v5424 = vsel %vm5419, %v5373, 0
      %v5427 = vsel %vm5419, %v5374, 0
      %v5430 = vsel %vm5419, %v5375, 0
      %v5433 = vsel %vm5419, %v5376, 0
      %v5436 = vsel %vm5419, %v5377, 0
      %v5439 = vsel %vm5419, %v5378, 0
      %v5442 = vsel %vm5419, %v5379, 0
      %5444 = vmatprep.subr.bf16.mxu0 0
      %5445 = vmatpush1.bf16.msra.mxu0 %v5411
      %5446 = vmatprep.subr.bf16.mxu0 0
      %5447 = vmatpush1.bf16.msra.mxu0 %v5412
      %5448 = vmatprep.subr.bf16.mxu0 0
      %5449 = vmatpush1.bf16.msra.mxu0 %v5413
      %5450 = vmatprep.subr.bf16.mxu0 0
      %5451 = vmatpush1.bf16.msra.mxu0 %v5414
      %5452 = vmatprep.subr.bf16.mxu0 0
      %5453 = vmatpush1.bf16.msra.mxu0 0
      %5454 = vmatprep.subr.bf16.mxu0 0
      %5455 = vmatpush1.bf16.msra.mxu0 0
      %5456 = vmatprep.subr.bf16.mxu0 0
      %5457 = vmatpush1.bf16.msra.mxu0 0
      %5458 = vmatprep.subr.bf16.mxu0 0
      %5459 = vmatpush1.bf16.msra.mxu0 0
      %5460 = vmatprep.subr.bf16.mxu0 0
      %5461 = vmatpush1.bf16.msra.mxu0 0
      %5462 = vmatprep.subr.bf16.mxu0 0
      %5463 = vmatpush1.bf16.msra.mxu0 0
      %5464 = vmatprep.subr.bf16.mxu0 0
      %5465 = vmatpush1.bf16.msra.mxu0 0
      %5466 = vmatprep.subr.bf16.mxu0 0
      %5467 = vmatpush1.bf16.msra.mxu0 0
      %5468 = vmatprep.subr.bf16.mxu0 0
      %5469 = vmatpush1.bf16.msra.mxu0 0
      %5470 = vmatprep.subr.bf16.mxu0 0
      %5471 = vmatpush1.bf16.msra.mxu0 0
      %5472 = vmatprep.subr.bf16.mxu0 0
      %5473 = vmatpush1.bf16.msra.mxu0 0
      %5474 = vmatprep.subr.bf16.mxu0 0
      %5475 = vmatpush1.bf16.msra.mxu0 0
      %5476 = vmatprep.mubr.bf16.mxu0 0
      %5477 = vmatmul.mubr.bf16.gmra.mrb[0].mxu0 %v5421
      %v5478 = vpop.f32.mrb[0].mxu0
      %v5479 = vadd.f32 %v5393, %v5478
      %v5480 = vpop.f32.mrb[0].mxu0
      %v5481 = vpop.f32.mrb[0].mxu0
      %v5482 = vadd.f32 %v5393, %v5481
      %v5483 = vpop.f32.mrb[0].mxu0
      %5484 = vmatprep.mubr.bf16.mxu0 0
      %5485 = vmatmul.mubr.bf16.gmra.mrb[0].mxu0 %v5424
      %v5486 = vpop.f32.mrb[0].mxu0
      %v5487 = vadd.f32 %v5393, %v5486
      %v5488 = vpop.f32.mrb[0].mxu0
      %v5489 = vpop.f32.mrb[0].mxu0
      %v5490 = vadd.f32 %v5393, %v5489
      %v5491 = vpop.f32.mrb[0].mxu0
      %5492 = vmatprep.mubr.bf16.mxu0 0
      %5493 = vmatmul.mubr.bf16.gmra.mrb[0].mxu0 %v5427
      %v5494 = vpop.f32.mrb[0].mxu0
      %v5495 = vadd.f32 %v5393, %v5494
      %v5496 = vpop.f32.mrb[0].mxu0
      %v5497 = vpop.f32.mrb[0].mxu0
      %v5498 = vadd.f32 %v5393, %v5497
      %v5499 = vpop.f32.mrb[0].mxu0
      %5500 = vmatprep.mubr.bf16.mxu0 0
      %5501 = vmatmul.mubr.bf16.gmra.mrb[0].mxu0 %v5430
      %v5502 = vpop.f32.mrb[0].mxu0
      %v5503 = vadd.f32 %v5393, %v5502
      %v5504 = vpop.f32.mrb[0].mxu0
      %v5505 = vpop.f32.mrb[0].mxu0
      %v5506 = vadd.f32 %v5393, %v5505
      %v5507 = vpop.f32.mrb[0].mxu0
      %5508 = vmatprep.mubr.bf16.mxu0 0
      %5509 = vmatmul.mubr.bf16.gmra.mrb[0].mxu0 %v5433
      %v5510 = vpop.f32.mrb[0].mxu0
      %v5511 = vadd.f32 %v5393, %v5510
      %v5512 = vpop.f32.mrb[0].mxu0
      %v5513 = vpop.f32.mrb[0].mxu0
      %v5514 = vadd.f32 %v5393, %v5513
      %v5515 = vpop.f32.mrb[0].mxu0
      %5516 = vmatprep.mubr.bf16.mxu0 0
      %5517 = vmatmul.mubr.bf16.gmra.mrb[0].mxu0 %v5436
      %v5518 = vpop.f32.mrb[0].mxu0
      %v5519 = vadd.f32 %v5393, %v5518
      %v5520 = vpop.f32.mrb[0].mxu0
      %v5521 = vpop.f32.mrb[0].mxu0
      %v5522 = vadd.f32 %v5393, %v5521
      %v5523 = vpop.f32.mrb[0].mxu0
      %5524 = vmatprep.mubr.bf16.mxu0 0
      %5525 = vmatmul.mubr.bf16.gmra.mrb[0].mxu0 %v5439
      %v5526 = vpop.f32.mrb[0].mxu0
      %v5527 = vadd.f32 %v5393, %v5526
      %v5528 = vpop.f32.mrb[0].mxu0
      %v5529 = vpop.f32.mrb[0].mxu0
      %v5530 = vadd.f32 %v5393, %v5529
      %v5531 = vpop.f32.mrb[0].mxu0
      %5532 = vmatprep.mubr.bf16.mxu0 0
      %5533 = vmatmul.mubr.bf16.gmra.mrb[0].mxu0 %v5442
      %v5534 = vpop.f32.mrb[0].mxu0
      %v5535 = vadd.f32 %v5393, %v5534
      %v5536 = vpop.f32.mrb[0].mxu0
      %v5537 = vpop.f32.mrb[0].mxu0
      %v5538 = vadd.f32 %v5393, %v5537
      %v5539 = vpop.f32.mrb[0].mxu0
      %5540 = vdwg.mxu0
      %v5541 = vadd.f32 %v5060, %v5479
      %v5542 = vadd.f32 %v5061, %v5482
      %v5543 = vadd.f32 %v5062, %v5487
      %v5544 = vadd.f32 %v5063, %v5490
      %v5545 = vadd.f32 %v5064, %v5495
      %v5546 = vadd.f32 %v5065, %v5498
      %v5547 = vadd.f32 %v5066, %v5503
      %v5548 = vadd.f32 %v5067, %v5506
      %v5549 = vadd.f32 %v5068, %v5511
      %v5550 = vadd.f32 %v5069, %v5514
      %v5551 = vadd.f32 %v5070, %v5519
      %v5552 = vadd.f32 %v5071, %v5522
      %v5553 = vadd.f32 %v5072, %v5527
      %v5554 = vadd.f32 %v5073, %v5530
      %v5555 = vadd.f32 %v5074, %v5535
      %v5556 = vadd.f32 %v5075, %v5538
      %v5557 = vld [vmem:[%s18] sm:$0x1]
      %v5558 = vld [vmem:[%s19] sm:$0x1]
      %v5559 = vsel %vm663, %v5541, 0.0
      %5560 = vadd.xlane.f32.xlu0 %v5559
      %v5561 = vpop.xlane.xlu0 %5560
      %v5562 = vsel %vm663, %v5542, 0.0
      %5563 = vadd.xlane.f32.xlu0 %v5562
      %v5564 = vpop.xlane.xlu0 %5563
      %v5565 = vsel %vm663, %v5543, 0.0
      %5566 = vadd.xlane.f32.xlu0 %v5565
      %v5567 = vpop.xlane.xlu0 %5566
      %v5568 = vsel %vm663, %v5544, 0.0
      %5569 = vadd.xlane.f32.xlu0 %v5568
      %v5570 = vpop.xlane.xlu0 %5569
      %v5571 = vsel %vm663, %v5545, 0.0
      %5572 = vadd.xlane.f32.xlu0 %v5571
      %v5573 = vpop.xlane.xlu0 %5572
      %v5574 = vsel %vm663, %v5546, 0.0
      %5575 = vadd.xlane.f32.xlu0 %v5574
      %v5576 = vpop.xlane.xlu0 %5575
      %v5577 = vsel %vm663, %v5547, 0.0
      %5578 = vadd.xlane.f32.xlu0 %v5577
      %v5579 = vpop.xlane.xlu0 %5578
      %v5580 = vsel %vm663, %v5548, 0.0
      %5581 = vadd.xlane.f32.xlu0 %v5580
      %v5582 = vpop.xlane.xlu0 %5581
      %v5583 = vsel %vm663, %v5549, 0.0
      %5584 = vadd.xlane.f32.xlu0 %v5583
      %v5585 = vpop.xlane.xlu0 %5584
      %v5586 = vsel %vm663, %v5550, 0.0
      %5587 = vadd.xlane.f32.xlu0 %v5586
      %v5588 = vpop.xlane.xlu0 %5587
      %v5589 = vsel %vm663, %v5551, 0.0
      %5590 = vadd.xlane.f32.xlu0 %v5589
      %v5591 = vpop.xlane.xlu0 %5590
      %v5592 = vsel %vm663, %v5552, 0.0
      %5593 = vadd.xlane.f32.xlu0 %v5592
      %v5594 = vpop.xlane.xlu0 %5593
      %v5595 = vsel %vm663, %v5553, 0.0
      %5596 = vadd.xlane.f32.xlu0 %v5595
      %v5597 = vpop.xlane.xlu0 %5596
      %v5598 = vsel %vm663, %v5554, 0.0
      %5599 = vadd.xlane.f32.xlu0 %v5598
      %v5600 = vpop.xlane.xlu0 %5599
      %v5601 = vsel %vm663, %v5555, 0.0
      %5602 = vadd.xlane.f32.xlu0 %v5601
      %v5603 = vpop.xlane.xlu0 %5602
      %v5604 = vsel %vm663, %v5556, 0.0
      %5605 = vadd.xlane.f32.xlu0 %v5604
      %v5606 = vpop.xlane.xlu0 %5605
      %v5607 = vmul.f32 %v5561, %v712
      %v5608 = vmul.f32 %v5564, %v712
      %v5609 = vmul.f32 %v5567, %v712
      %v5610 = vmul.f32 %v5570, %v712
      %v5611 = vmul.f32 %v5573, %v712
      %v5612 = vmul.f32 %v5576, %v712
      %v5613 = vmul.f32 %v5579, %v712
      %v5614 = vmul.f32 %v5582, %v712
      %v5615 = vmul.f32 %v5585, %v712
      %v5616 = vmul.f32 %v5588, %v712
      %v5617 = vmul.f32 %v5591, %v712
      %v5618 = vmul.f32 %v5594, %v712
      %v5619 = vmul.f32 %v5597, %v712
      %v5620 = vmul.f32 %v5600, %v712
      %v5621 = vmul.f32 %v5603, %v712
      %v5622 = vmul.f32 %v5606, %v712
      %v5623 = vsub.f32 %v5541, %v5607
      %v5624 = vsub.f32 %v5542, %v5608
      %v5625 = vsub.f32 %v5543, %v5609
      %v5626 = vsub.f32 %v5544, %v5610
      %v5627 = vsub.f32 %v5545, %v5611
      %v5628 = vsub.f32 %v5546, %v5612
      %v5629 = vsub.f32 %v5547, %v5613
      %v5630 = vsub.f32 %v5548, %v5614
      %v5631 = vsub.f32 %v5549, %v5615
      %v5632 = vsub.f32 %v5550, %v5616
      %v5633 = vsub.f32 %v5551, %v5617
      %v5634 = vsub.f32 %v5552, %v5618
      %v5635 = vsub.f32 %v5553, %v5619
      %v5636 = vsub.f32 %v5554, %v5620
      %v5637 = vsub.f32 %v5555, %v5621
      %v5638 = vsub.f32 %v5556, %v5622
      %v5639 = vmul.f32 %v5623, %v5623
      %v5640 = vmul.f32 %v5624, %v5624
      %v5641 = vmul.f32 %v5625, %v5625
      %v5642 = vmul.f32 %v5626, %v5626
      %v5643 = vmul.f32 %v5627, %v5627
      %v5644 = vmul.f32 %v5628, %v5628
      %v5645 = vmul.f32 %v5629, %v5629
      %v5646 = vmul.f32 %v5630, %v5630
      %v5647 = vmul.f32 %v5631, %v5631
      %v5648 = vmul.f32 %v5632, %v5632
      %v5649 = vmul.f32 %v5633, %v5633
      %v5650 = vmul.f32 %v5634, %v5634
      %v5651 = vmul.f32 %v5635, %v5635
      %v5652 = vmul.f32 %v5636, %v5636
      %v5653 = vmul.f32 %v5637, %v5637
      %v5654 = vmul.f32 %v5638, %v5638
      %v5655 = vsel %vm663, %v5639, 0.0
      %5656 = vadd.xlane.f32.xlu0 %v5655
      %v5657 = vpop.xlane.xlu0 %5656
      %v5658 = vsel %vm663, %v5640, 0.0
      %5659 = vadd.xlane.f32.xlu0 %v5658
      %v5660 = vpop.xlane.xlu0 %5659
      %v5661 = vsel %vm663, %v5641, 0.0
      %5662 = vadd.xlane.f32.xlu0 %v5661
      %v5663 = vpop.xlane.xlu0 %5662
      %v5664 = vsel %vm663, %v5642, 0.0
      %5665 = vadd.xlane.f32.xlu0 %v5664
      %v5666 = vpop.xlane.xlu0 %5665
      %v5667 = vsel %vm663, %v5643, 0.0
      %5668 = vadd.xlane.f32.xlu0 %v5667
      %v5669 = vpop.xlane.xlu0 %5668
      %v5670 = vsel %vm663, %v5644, 0.0
      %5671 = vadd.xlane.f32.xlu0 %v5670
      %v5672 = vpop.xlane.xlu0 %5671
      %v5673 = vsel %vm663, %v5645, 0.0
      %5674 = vadd.xlane.f32.xlu0 %v5673
      %v5675 = vpop.xlane.xlu0 %5674
      %v5676 = vsel %vm663, %v5646, 0.0
      %5677 = vadd.xlane.f32.xlu0 %v5676
      %v5678 = vpop.xlane.xlu0 %5677
      %v5679 = vsel %vm663, %v5647, 0.0
      %5680 = vadd.xlane.f32.xlu0 %v5679
      %v5681 = vpop.xlane.xlu0 %5680
      %v5682 = vsel %vm663, %v5648, 0.0
      %5683 = vadd.xlane.f32.xlu0 %v5682
      %v5684 = vpop.xlane.xlu0 %5683
      %v5685 = vsel %vm663, %v5649, 0.0
      %5686 = vadd.xlane.f32.xlu0 %v5685
      %v5687 = vpop.xlane.xlu0 %5686
      %v5688 = vsel %vm663, %v5650, 0.0
      %5689 = vadd.xlane.f32.xlu0 %v5688
      %v5690 = vpop.xlane.xlu0 %5689
      %v5691 = vsel %vm663, %v5651, 0.0
      %5692 = vadd.xlane.f32.xlu0 %v5691
      %v5693 = vpop.xlane.xlu0 %5692
      %v5694 = vsel %vm663, %v5652, 0.0
      %5695 = vadd.xlane.f32.xlu0 %v5694
      %v5696 = vpop.xlane.xlu0 %5695
      %v5697 = vsel %vm663, %v5653, 0.0
      %5698 = vadd.xlane.f32.xlu0 %v5697
      %v5699 = vpop.xlane.xlu0 %5698
      %v5700 = vsel %vm663, %v5654, 0.0
      %5701 = vadd.xlane.f32.xlu0 %v5700
      %v5702 = vpop.xlane.xlu0 %5701
      %v5703 = vmul.f32 %v5657, %v712
      %v5704 = vmul.f32 %v5660, %v712
      %v5705 = vmul.f32 %v5663, %v712
      %v5706 = vmul.f32 %v5666, %v712
      %v5707 = vmul.f32 %v5669, %v712
      %v5708 = vmul.f32 %v5672, %v712
      %v5709 = vmul.f32 %v5675, %v712
      %v5710 = vmul.f32 %v5678, %v712
      %v5711 = vmul.f32 %v5681, %v712
      %v5712 = vmul.f32 %v5684, %v712
      %v5713 = vmul.f32 %v5687, %v712
      %v5714 = vmul.f32 %v5690, %v712
      %v5715 = vmul.f32 %v5693, %v712
      %v5716 = vmul.f32 %v5696, %v712
      %v5717 = vmul.f32 %v5699, %v712
      %v5718 = vmul.f32 %v5702, %v712
      %v5719 = vadd.f32 %v5703, 1e-12
      %v5720 = vadd.f32 %v5704, 1e-12
      %v5721 = vadd.f32 %v5705, 1e-12
      %v5722 = vadd.f32 %v5706, 1e-12
      %v5723 = vadd.f32 %v5707, 1e-12
      %v5724 = vadd.f32 %v5708, 1e-12
      %v5725 = vadd.f32 %v5709, 1e-12
      %v5726 = vadd.f32 %v5710, 1e-12
      %v5727 = vadd.f32 %v5711, 1e-12
      %v5728 = vadd.f32 %v5712, 1e-12
      %v5729 = vadd.f32 %v5713, 1e-12
      %v5730 = vadd.f32 %v5714, 1e-12
      %v5731 = vadd.f32 %v5715, 1e-12
      %v5732 = vadd.f32 %v5716, 1e-12
      %v5733 = vadd.f32 %v5717, 1e-12
      %v5734 = vadd.f32 %v5718, 1e-12
      %v5735 = vrsqrt.pop %v5719
      %v5736 = vrsqrt.pop %v5720
      %v5737 = vrsqrt.pop %v5721
      %v5738 = vrsqrt.pop %v5722
      %v5739 = vrsqrt.pop %v5723
      %v5740 = vrsqrt.pop %v5724
      %v5741 = vrsqrt.pop %v5725
      %v5742 = vrsqrt.pop %v5726
      %v5743 = vrsqrt.pop %v5727
      %v5744 = vrsqrt.pop %v5728
      %v5745 = vrsqrt.pop %v5729
      %v5746 = vrsqrt.pop %v5730
      %v5747 = vrsqrt.pop %v5731
      %v5748 = vrsqrt.pop %v5732
      %v5749 = vrsqrt.pop %v5733
      %v5750 = vrsqrt.pop %v5734
      %v5751 = vmul.f32 %v5623, %v5735
      %v5752 = vmul.f32 %v5624, %v5736
      %v5753 = vmul.f32 %v5625, %v5737
      %v5754 = vmul.f32 %v5626, %v5738
      %v5755 = vmul.f32 %v5627, %v5739
      %v5756 = vmul.f32 %v5628, %v5740
      %v5757 = vmul.f32 %v5629, %v5741
      %v5758 = vmul.f32 %v5630, %v5742
      %v5759 = vmul.f32 %v5631, %v5743
      %v5760 = vmul.f32 %v5632, %v5744
      %v5761 = vmul.f32 %v5633, %v5745
      %v5762 = vmul.f32 %v5634, %v5746
      %v5763 = vmul.f32 %v5635, %v5747
      %v5764 = vmul.f32 %v5636, %v5748
      %v5765 = vmul.f32 %v5637, %v5749
      %v5766 = vmul.f32 %v5638, %v5750
      %v5768 = vlaneseq
      %v5769 = vshrl.u32 %v5768, 7
      %v5770 = vsub.s32 0, %v5769
      %v5771 = vrot.slane %v5557, %v5770
      %v5773 = vmul.f32 %v5751, %v5771
      %v5774 = vmul.f32 %v5752, %v5771
      %v5775 = vmul.f32 %v5753, %v5771
      %v5776 = vmul.f32 %v5754, %v5771
      %v5777 = vmul.f32 %v5755, %v5771
      %v5778 = vmul.f32 %v5756, %v5771
      %v5779 = vmul.f32 %v5757, %v5771
      %v5780 = vmul.f32 %v5758, %v5771
      %v5781 = vmul.f32 %v5759, %v5771
      %v5782 = vmul.f32 %v5760, %v5771
      %v5783 = vmul.f32 %v5761, %v5771
      %v5784 = vmul.f32 %v5762, %v5771
      %v5785 = vmul.f32 %v5763, %v5771
      %v5786 = vmul.f32 %v5764, %v5771
      %v5787 = vmul.f32 %v5765, %v5771
      %v5788 = vmul.f32 %v5766, %v5771
      %v5790 = vlaneseq
      %v5791 = vshrl.u32 %v5790, 7
      %v5792 = vsub.s32 0, %v5791
      %v5793 = vrot.slane %v5558, %v5792
      %v5795 = vadd.f32 %v5773, %v5793
      %v5796 = vadd.f32 %v5774, %v5793
      %v5797 = vadd.f32 %v5775, %v5793
      %v5798 = vadd.f32 %v5776, %v5793
      %v5799 = vadd.f32 %v5777, %v5793
      %v5800 = vadd.f32 %v5778, %v5793
      %v5801 = vadd.f32 %v5779, %v5793
      %v5802 = vadd.f32 %v5780, %v5793
      %v5803 = vadd.f32 %v5781, %v5793
      %v5804 = vadd.f32 %v5782, %v5793
      %v5805 = vadd.f32 %v5783, %v5793
      %v5806 = vadd.f32 %v5784, %v5793
      %v5807 = vadd.f32 %v5785, %v5793
      %v5808 = vadd.f32 %v5786, %v5793
      %v5809 = vadd.f32 %v5787, %v5793
      %v5810 = vadd.f32 %v5788, %v5793
      %v5811 = vpack.c.bf16 %v5796, %v5795
      %v5812 = vpack.c.bf16 %v5798, %v5797
      %v5813 = vpack.c.bf16 %v5800, %v5799
      %v5814 = vpack.c.bf16 %v5802, %v5801
      %v5815 = vpack.c.bf16 %v5804, %v5803
      %v5816 = vpack.c.bf16 %v5806, %v5805
      %v5817 = vpack.c.bf16 %v5808, %v5807
      %v5818 = vpack.c.bf16 %v5810, %v5809
      %s5819 = scalar_lea.vmem %s4, 64
      %v5820 = vld [vmem:[%s5819] sm:$0xf]
      %v5821 = vld [vmem:[%s5819 + $0x4] sm:$0xf]
      %v5822 = vld [vmem:[%s5819 + $0x8] sm:$0xf]
      %v5823 = vld [vmem:[%s5819 + $0xc] sm:$0xf]
      %s5824 = scalar_lea.vmem %s5, 4
      %v5825 = vld [vmem:[%s5824] sm:$0x1]
      %v5827 = vlaneseq
      %v5828 = vshrl.u32 %v5827, 7
      %v5829 = vsub.s32 0, %v5828
      %v5830 = vrot.slane %v5825, %v5829
      %v5836 = vunpack.c.l.b16 %v5820
      %v5837 = vunpack.c.l.b16 %v5821
      %v5838 = vunpack.c.l.b16 %v5822
      %v5839 = vunpack.c.l.b16 %v5823
      %v5840 = vpack.c.b16 %v5837, %v5836
      %v5841 = vpack.c.b16 %v5839, %v5838
      %v5845 = vsel %vm663, %v5811, 0
      %v5848 = vsel %vm663, %v5812, 0
      %v5851 = vsel %vm663, %v5813, 0
      %v5854 = vsel %vm663, %v5814, 0
      %v5857 = vsel %vm663, %v5815, 0
      %v5860 = vsel %vm663, %v5816, 0
      %v5863 = vsel %vm663, %v5817, 0
      %v5866 = vsel %vm663, %v5818, 0
      %5868 = vmatprep.subr.bf16.mxu0 0
      %5869 = vmatpush1.bf16.msra.mxu0 %v5840
      %5870 = vmatprep.subr.bf16.mxu0 0
      %5871 = vmatpush1.bf16.msra.mxu0 %v5841
      %5872 = vmatprep.subr.bf16.mxu0 0
      %5873 = vmatpush1.bf16.msra.mxu0 0
      %5874 = vmatprep.subr.bf16.mxu0 0
      %5875 = vmatpush1.bf16.msra.mxu0 0
      %5876 = vmatprep.subr.bf16.mxu0 0
      %5877 = vmatpush1.bf16.msra.mxu0 0
      %5878 = vmatprep.subr.bf16.mxu0 0
      %5879 = vmatpush1.bf16.msra.mxu0 0
      %5880 = vmatprep.subr.bf16.mxu0 0
      %5881 = vmatpush1.bf16.msra.mxu0 0
      %5882 = vmatprep.subr.bf16.mxu0 0
      %5883 = vmatpush1.bf16.msra.mxu0 0
      %5884 = vmatprep.subr.bf16.mxu0 0
      %5885 = vmatpush1.bf16.msra.mxu0 0
      %5886 = vmatprep.subr.bf16.mxu0 0
      %5887 = vmatpush1.bf16.msra.mxu0 0
      %5888 = vmatprep.subr.bf16.mxu0 0
      %5889 = vmatpush1.bf16.msra.mxu0 0
      %5890 = vmatprep.subr.bf16.mxu0 0
      %5891 = vmatpush1.bf16.msra.mxu0 0
      %5892 = vmatprep.subr.bf16.mxu0 0
      %5893 = vmatpush1.bf16.msra.mxu0 0
      %5894 = vmatprep.subr.bf16.mxu0 0
      %5895 = vmatpush1.bf16.msra.mxu0 0
      %5896 = vmatprep.subr.bf16.mxu0 0
      %5897 = vmatpush1.bf16.msra.mxu0 0
      %5898 = vmatprep.subr.bf16.mxu0 0
      %5899 = vmatpush1.bf16.msra.mxu0 0
      %5900 = vmatprep.mubr.bf16.mxu0 0
      %5901 = vmatmul.mubr.bf16.gmra.mrb[0].mxu0 %v5845
      %v5902 = vpop.f32.mrb[0].mxu0
      %v5903 = vadd.f32 %v5830, %v5902
      %v5904 = vpop.f32.mrb[0].mxu0
      %v5905 = vpop.f32.mrb[0].mxu0
      %v5906 = vadd.f32 %v5830, %v5905
      %v5907 = vpop.f32.mrb[0].mxu0
      %5908 = vmatprep.mubr.bf16.mxu0 0
      %5909 = vmatmul.mubr.bf16.gmra.mrb[0].mxu0 %v5848
      %v5910 = vpop.f32.mrb[0].mxu0
      %v5911 = vadd.f32 %v5830, %v5910
      %v5912 = vpop.f32.mrb[0].mxu0
      %v5913 = vpop.f32.mrb[0].mxu0
      %v5914 = vadd.f32 %v5830, %v5913
      %v5915 = vpop.f32.mrb[0].mxu0
      %5916 = vmatprep.mubr.bf16.mxu0 0
      %5917 = vmatmul.mubr.bf16.gmra.mrb[0].mxu0 %v5851
      %v5918 = vpop.f32.mrb[0].mxu0
      %v5919 = vadd.f32 %v5830, %v5918
      %v5920 = vpop.f32.mrb[0].mxu0
      %v5921 = vpop.f32.mrb[0].mxu0
      %v5922 = vadd.f32 %v5830, %v5921
      %v5923 = vpop.f32.mrb[0].mxu0
      %5924 = vmatprep.mubr.bf16.mxu0 0
      %5925 = vmatmul.mubr.bf16.gmra.mrb[0].mxu0 %v5854
      %v5926 = vpop.f32.mrb[0].mxu0
      %v5927 = vadd.f32 %v5830, %v5926
      %v5928 = vpop.f32.mrb[0].mxu0
      %v5929 = vpop.f32.mrb[0].mxu0
      %v5930 = vadd.f32 %v5830, %v5929
      %v5931 = vpop.f32.mrb[0].mxu0
      %5932 = vmatprep.mubr.bf16.mxu0 0
      %5933 = vmatmul.mubr.bf16.gmra.mrb[0].mxu0 %v5857
      %v5934 = vpop.f32.mrb[0].mxu0
      %v5935 = vadd.f32 %v5830, %v5934
      %v5936 = vpop.f32.mrb[0].mxu0
      %v5937 = vpop.f32.mrb[0].mxu0
      %v5938 = vadd.f32 %v5830, %v5937
      %v5939 = vpop.f32.mrb[0].mxu0
      %5940 = vmatprep.mubr.bf16.mxu0 0
      %5941 = vmatmul.mubr.bf16.gmra.mrb[0].mxu0 %v5860
      %v5942 = vpop.f32.mrb[0].mxu0
      %v5943 = vadd.f32 %v5830, %v5942
      %v5944 = vpop.f32.mrb[0].mxu0
      %v5945 = vpop.f32.mrb[0].mxu0
      %v5946 = vadd.f32 %v5830, %v5945
      %v5947 = vpop.f32.mrb[0].mxu0
      %5948 = vmatprep.mubr.bf16.mxu0 0
      %5949 = vmatmul.mubr.bf16.gmra.mrb[0].mxu0 %v5863
      %v5950 = vpop.f32.mrb[0].mxu0
      %v5951 = vadd.f32 %v5830, %v5950
      %v5952 = vpop.f32.mrb[0].mxu0
      %v5953 = vpop.f32.mrb[0].mxu0
      %v5954 = vadd.f32 %v5830, %v5953
      %v5955 = vpop.f32.mrb[0].mxu0
      %5956 = vmatprep.mubr.bf16.mxu0 0
      %5957 = vmatmul.mubr.bf16.gmra.mrb[0].mxu0 %v5866
      %v5958 = vpop.f32.mrb[0].mxu0
      %v5959 = vadd.f32 %v5830, %v5958
      %v5960 = vpop.f32.mrb[0].mxu0
      %v5961 = vpop.f32.mrb[0].mxu0
      %v5962 = vadd.f32 %v5830, %v5961
      %v5963 = vpop.f32.mrb[0].mxu0
      %5964 = vdwg.mxu0
      %s5965 = scalar_lea.vmem %s6, 64
      %v5966 = vld [vmem:[%s5965] sm:$0xf]
      %v5967 = vld [vmem:[%s5965 + $0x4] sm:$0xf]
      %v5968 = vld [vmem:[%s5965 + $0x8] sm:$0xf]
      %v5969 = vld [vmem:[%s5965 + $0xc] sm:$0xf]
      %s5970 = scalar_lea.vmem %s7, 4
      %v5971 = vld [vmem:[%s5970] sm:$0x1]
      %v5973 = vlaneseq
      %v5974 = vshrl.u32 %v5973, 7
      %v5975 = vsub.s32 0, %v5974
      %v5976 = vrot.slane %v5971, %v5975
      %v5982 = vunpack.c.l.b16 %v5966
      %v5983 = vunpack.c.l.b16 %v5967
      %v5984 = vunpack.c.l.b16 %v5968
      %v5985 = vunpack.c.l.b16 %v5969
      %v5986 = vpack.c.b16 %v5983, %v5982
      %v5987 = vpack.c.b16 %v5985, %v5984
      %5990 = vmatprep.subr.bf16.mxu0 0
      %5991 = vmatpush1.bf16.msra.mxu0 %v5986
      %5992 = vmatprep.subr.bf16.mxu0 0
      %5993 = vmatpush1.bf16.msra.mxu0 %v5987
      %5994 = vmatprep.subr.bf16.mxu0 0
      %5995 = vmatpush1.bf16.msra.mxu0 0
      %5996 = vmatprep.subr.bf16.mxu0 0
      %5997 = vmatpush1.bf16.msra.mxu0 0
      %5998 = vmatprep.subr.bf16.mxu0 0
      %5999 = vmatpush1.bf16.msra.mxu0 0
      %6000 = vmatprep.subr.bf16.mxu0 0
      %6001 = vmatpush1.bf16.msra.mxu0 0
      %6002 = vmatprep.subr.bf16.mxu0 0
      %6003 = vmatpush1.bf16.msra.mxu0 0
      %6004 = vmatprep.subr.bf16.mxu0 0
      %6005 = vmatpush1.bf16.msra.mxu0 0
      %6006 = vmatprep.subr.bf16.mxu0 0
      %6007 = vmatpush1.bf16.msra.mxu0 0
      %6008 = vmatprep.subr.bf16.mxu0 0
      %6009 = vmatpush1.bf16.msra.mxu0 0
      %6010 = vmatprep.subr.bf16.mxu0 0
      %6011 = vmatpush1.bf16.msra.mxu0 0
      %6012 = vmatprep.subr.bf16.mxu0 0
      %6013 = vmatpush1.bf16.msra.mxu0 0
      %6014 = vmatprep.subr.bf16.mxu0 0
      %6015 = vmatpush1.bf16.msra.mxu0 0
      %6016 = vmatprep.subr.bf16.mxu0 0
      %6017 = vmatpush1.bf16.msra.mxu0 0
      %6018 = vmatprep.subr.bf16.mxu0 0
      %6019 = vmatpush1.bf16.msra.mxu0 0
      %6020 = vmatprep.subr.bf16.mxu0 0
      %6021 = vmatpush1.bf16.msra.mxu0 0
      %6022 = vmatprep.mubr.bf16.mxu0 0
      %6023 = vmatmul.mubr.bf16.gmra.mrb[0].mxu0 %v5845
      %v6024 = vpop.f32.mrb[0].mxu0
      %v6025 = vadd.f32 %v5976, %v6024
      %v6026 = vpop.f32.mrb[0].mxu0
      %v6027 = vpop.f32.mrb[0].mxu0
      %v6028 = vadd.f32 %v5976, %v6027
      %v6029 = vpop.f32.mrb[0].mxu0
      %6030 = vmatprep.mubr.bf16.mxu0 0
      %6031 = vmatmul.mubr.bf16.gmra.mrb[0].mxu0 %v5848
      %v6032 = vpop.f32.mrb[0].mxu0
      %v6033 = vadd.f32 %v5976, %v6032
      %v6034 = vpop.f32.mrb[0].mxu0
      %v6035 = vpop.f32.mrb[0].mxu0
      %v6036 = vadd.f32 %v5976, %v6035
      %v6037 = vpop.f32.mrb[0].mxu0
      %6038 = vmatprep.mubr.bf16.mxu0 0
      %6039 = vmatmul.mubr.bf16.gmra.mrb[0].mxu0 %v5851
      %v6040 = vpop.f32.mrb[0].mxu0
      %v6041 = vadd.f32 %v5976, %v6040
      %v6042 = vpop.f32.mrb[0].mxu0
      %v6043 = vpop.f32.mrb[0].mxu0
      %v6044 = vadd.f32 %v5976, %v6043
      %v6045 = vpop.f32.mrb[0].mxu0
      %6046 = vmatprep.mubr.bf16.mxu0 0
      %6047 = vmatmul.mubr.bf16.gmra.mrb[0].mxu0 %v5854
      %v6048 = vpop.f32.mrb[0].mxu0
      %v6049 = vadd.f32 %v5976, %v6048
      %v6050 = vpop.f32.mrb[0].mxu0
      %v6051 = vpop.f32.mrb[0].mxu0
      %v6052 = vadd.f32 %v5976, %v6051
      %v6053 = vpop.f32.mrb[0].mxu0
      %6054 = vmatprep.mubr.bf16.mxu0 0
      %6055 = vmatmul.mubr.bf16.gmra.mrb[0].mxu0 %v5857
      %v6056 = vpop.f32.mrb[0].mxu0
      %v6057 = vadd.f32 %v5976, %v6056
      %v6058 = vpop.f32.mrb[0].mxu0
      %v6059 = vpop.f32.mrb[0].mxu0
      %v6060 = vadd.f32 %v5976, %v6059
      %v6061 = vpop.f32.mrb[0].mxu0
      %6062 = vmatprep.mubr.bf16.mxu0 0
      %6063 = vmatmul.mubr.bf16.gmra.mrb[0].mxu0 %v5860
      %v6064 = vpop.f32.mrb[0].mxu0
      %v6065 = vadd.f32 %v5976, %v6064
      %v6066 = vpop.f32.mrb[0].mxu0
      %v6067 = vpop.f32.mrb[0].mxu0
      %v6068 = vadd.f32 %v5976, %v6067
      %v6069 = vpop.f32.mrb[0].mxu0
      %6070 = vmatprep.mubr.bf16.mxu0 0
      %6071 = vmatmul.mubr.bf16.gmra.mrb[0].mxu0 %v5863
      %v6072 = vpop.f32.mrb[0].mxu0
      %v6073 = vadd.f32 %v5976, %v6072
      %v6074 = vpop.f32.mrb[0].mxu0
      %v6075 = vpop.f32.mrb[0].mxu0
      %v6076 = vadd.f32 %v5976, %v6075
      %v6077 = vpop.f32.mrb[0].mxu0
      %6078 = vmatprep.mubr.bf16.mxu0 0
      %6079 = vmatmul.mubr.bf16.gmra.mrb[0].mxu0 %v5866
      %v6080 = vpop.f32.mrb[0].mxu0
      %v6081 = vadd.f32 %v5976, %v6080
      %v6082 = vpop.f32.mrb[0].mxu0
      %v6083 = vpop.f32.mrb[0].mxu0
      %v6084 = vadd.f32 %v5976, %v6083
      %v6085 = vpop.f32.mrb[0].mxu0
      %6086 = vdwg.mxu0
      %s6087 = scalar_lea.vmem %s8, 64
      %v6088 = vld [vmem:[%s6087] sm:$0xf]
      %v6089 = vld [vmem:[%s6087 + $0x4] sm:$0xf]
      %v6090 = vld [vmem:[%s6087 + $0x8] sm:$0xf]
      %v6091 = vld [vmem:[%s6087 + $0xc] sm:$0xf]
      %s6092 = scalar_lea.vmem %s9, 4
      %v6093 = vld [vmem:[%s6092] sm:$0x1]
      %v6095 = vlaneseq
      %v6096 = vshrl.u32 %v6095, 7
      %v6097 = vsub.s32 0, %v6096
      %v6098 = vrot.slane %v6093, %v6097
      %v6104 = vunpack.c.l.b16 %v6088
      %v6105 = vunpack.c.l.b16 %v6089
      %v6106 = vunpack.c.l.b16 %v6090
      %v6107 = vunpack.c.l.b16 %v6091
      %v6108 = vpack.c.b16 %v6105, %v6104
      %v6109 = vpack.c.b16 %v6107, %v6106
      %6112 = vmatprep.subr.bf16.mxu0 0
      %6113 = vmatpush1.bf16.msra.mxu0 %v6108
      %6114 = vmatprep.subr.bf16.mxu0 0
      %6115 = vmatpush1.bf16.msra.mxu0 %v6109
      %6116 = vmatprep.subr.bf16.mxu0 0
      %6117 = vmatpush1.bf16.msra.mxu0 0
      %6118 = vmatprep.subr.bf16.mxu0 0
      %6119 = vmatpush1.bf16.msra.mxu0 0
      %6120 = vmatprep.subr.bf16.mxu0 0
      %6121 = vmatpush1.bf16.msra.mxu0 0
      %6122 = vmatprep.subr.bf16.mxu0 0
      %6123 = vmatpush1.bf16.msra.mxu0 0
      %6124 = vmatprep.subr.bf16.mxu0 0
      %6125 = vmatpush1.bf16.msra.mxu0 0
      %6126 = vmatprep.subr.bf16.mxu0 0
      %6127 = vmatpush1.bf16.msra.mxu0 0
      %6128 = vmatprep.subr.bf16.mxu0 0
      %6129 = vmatpush1.bf16.msra.mxu0 0
      %6130 = vmatprep.subr.bf16.mxu0 0
      %6131 = vmatpush1.bf16.msra.mxu0 0
      %6132 = vmatprep.subr.bf16.mxu0 0
      %6133 = vmatpush1.bf16.msra.mxu0 0
      %6134 = vmatprep.subr.bf16.mxu0 0
      %6135 = vmatpush1.bf16.msra.mxu0 0
      %6136 = vmatprep.subr.bf16.mxu0 0
      %6137 = vmatpush1.bf16.msra.mxu0 0
      %6138 = vmatprep.subr.bf16.mxu0 0
      %6139 = vmatpush1.bf16.msra.mxu0 0
      %6140 = vmatprep.subr.bf16.mxu0 0
      %6141 = vmatpush1.bf16.msra.mxu0 0
      %6142 = vmatprep.subr.bf16.mxu0 0
      %6143 = vmatpush1.bf16.msra.mxu0 0
      %6144 = vmatprep.mubr.bf16.mxu0 0
      %6145 = vmatmul.mubr.bf16.gmra.mrb[0].mxu0 %v5845
      %v6146 = vpop.f32.mrb[0].mxu0
      %v6147 = vadd.f32 %v6098, %v6146
      %v6148 = vpop.f32.mrb[0].mxu0
      %v6149 = vpop.f32.mrb[0].mxu0
      %v6150 = vadd.f32 %v6098, %v6149
      %v6151 = vpop.f32.mrb[0].mxu0
      %6152 = vmatprep.mubr.bf16.mxu0 0
      %6153 = vmatmul.mubr.bf16.gmra.mrb[0].mxu0 %v5848
      %v6154 = vpop.f32.mrb[0].mxu0
      %v6155 = vadd.f32 %v6098, %v6154
      %v6156 = vpop.f32.mrb[0].mxu0
      %v6157 = vpop.f32.mrb[0].mxu0
      %v6158 = vadd.f32 %v6098, %v6157
      %v6159 = vpop.f32.mrb[0].mxu0
      %6160 = vmatprep.mubr.bf16.mxu0 0
      %6161 = vmatmul.mubr.bf16.gmra.mrb[0].mxu0 %v5851
      %v6162 = vpop.f32.mrb[0].mxu0
      %v6163 = vadd.f32 %v6098, %v6162
      %v6164 = vpop.f32.mrb[0].mxu0
      %v6165 = vpop.f32.mrb[0].mxu0
      %v6166 = vadd.f32 %v6098, %v6165
      %v6167 = vpop.f32.mrb[0].mxu0
      %6168 = vmatprep.mubr.bf16.mxu0 0
      %6169 = vmatmul.mubr.bf16.gmra.mrb[0].mxu0 %v5854
      %v6170 = vpop.f32.mrb[0].mxu0
      %v6171 = vadd.f32 %v6098, %v6170
      %v6172 = vpop.f32.mrb[0].mxu0
      %v6173 = vpop.f32.mrb[0].mxu0
      %v6174 = vadd.f32 %v6098, %v6173
      %v6175 = vpop.f32.mrb[0].mxu0
      %6176 = vmatprep.mubr.bf16.mxu0 0
      %6177 = vmatmul.mubr.bf16.gmra.mrb[0].mxu0 %v5857
      %v6178 = vpop.f32.mrb[0].mxu0
      %v6179 = vadd.f32 %v6098, %v6178
      %v6180 = vpop.f32.mrb[0].mxu0
      %v6181 = vpop.f32.mrb[0].mxu0
      %v6182 = vadd.f32 %v6098, %v6181
      %v6183 = vpop.f32.mrb[0].mxu0
      %6184 = vmatprep.mubr.bf16.mxu0 0
      %6185 = vmatmul.mubr.bf16.gmra.mrb[0].mxu0 %v5860
      %v6186 = vpop.f32.mrb[0].mxu0
      %v6187 = vadd.f32 %v6098, %v6186
      %v6188 = vpop.f32.mrb[0].mxu0
      %v6189 = vpop.f32.mrb[0].mxu0
      %v6190 = vadd.f32 %v6098, %v6189
      %v6191 = vpop.f32.mrb[0].mxu0
      %6192 = vmatprep.mubr.bf16.mxu0 0
      %6193 = vmatmul.mubr.bf16.gmra.mrb[0].mxu0 %v5863
      %v6194 = vpop.f32.mrb[0].mxu0
      %v6195 = vadd.f32 %v6098, %v6194
      %v6196 = vpop.f32.mrb[0].mxu0
      %v6197 = vpop.f32.mrb[0].mxu0
      %v6198 = vadd.f32 %v6098, %v6197
      %v6199 = vpop.f32.mrb[0].mxu0
      %6200 = vmatprep.mubr.bf16.mxu0 0
      %6201 = vmatmul.mubr.bf16.gmra.mrb[0].mxu0 %v5866
      %v6202 = vpop.f32.mrb[0].mxu0
      %v6203 = vadd.f32 %v6098, %v6202
      %v6204 = vpop.f32.mrb[0].mxu0
      %v6205 = vpop.f32.mrb[0].mxu0
      %v6206 = vadd.f32 %v6098, %v6205
      %v6207 = vpop.f32.mrb[0].mxu0
      %6208 = vdwg.mxu0
      %v6209 = vpack.c.bf16 %v5906, %v5903
      %v6210 = vpack.c.bf16 %v5914, %v5911
      %v6211 = vpack.c.bf16 %v5922, %v5919
      %v6212 = vpack.c.bf16 %v5930, %v5927
      %v6213 = vpack.c.bf16 %v5938, %v5935
      %v6214 = vpack.c.bf16 %v5946, %v5943
      %v6215 = vpack.c.bf16 %v5954, %v5951
      %v6216 = vpack.c.bf16 %v5962, %v5959
      %v6217 = vpack.c.bf16 %v6028, %v6025
      %v6218 = vpack.c.bf16 %v6036, %v6033
      %v6219 = vpack.c.bf16 %v6044, %v6041
      %v6220 = vpack.c.bf16 %v6052, %v6049
      %v6221 = vpack.c.bf16 %v6060, %v6057
      %v6222 = vpack.c.bf16 %v6068, %v6065
      %v6223 = vpack.c.bf16 %v6076, %v6073
      %v6224 = vpack.c.bf16 %v6084, %v6081
      %v6226 = vsel %vm1332, %v6209, 0
      %v6229 = vsel %vm1332, %v6210, 0
      %v6232 = vsel %vm1332, %v6211, 0
      %v6235 = vsel %vm1332, %v6212, 0
      %v6238 = vsel %vm1332, %v6213, 0
      %v6241 = vsel %vm1332, %v6214, 0
      %v6244 = vsel %vm1332, %v6215, 0
      %v6247 = vsel %vm1332, %v6216, 0
      %v6250 = vsel %vm1332, %v6217, 0
      %v6253 = vsel %vm1332, %v6218, 0
      %v6256 = vsel %vm1332, %v6219, 0
      %v6259 = vsel %vm1332, %v6220, 0
      %v6262 = vsel %vm1332, %v6221, 0
      %v6265 = vsel %vm1332, %v6222, 0
      %v6268 = vsel %vm1332, %v6223, 0
      %v6271 = vsel %vm1332, %v6224, 0
      %6273 = vmatprep.subr.bf16.mxu0 0
      %6274 = vmatpush1.bf16.xpose.msra.mxu0 %v6250
      %6275 = vmatprep.subr.bf16.mxu0 0
      %6276 = vmatpush1.bf16.xpose.msra.mxu0 %v6253
      %6277 = vmatprep.subr.bf16.mxu0 0
      %6278 = vmatpush1.bf16.xpose.msra.mxu0 %v6256
      %6279 = vmatprep.subr.bf16.mxu0 0
      %6280 = vmatpush1.bf16.xpose.msra.mxu0 %v6259
      %6281 = vmatprep.subr.bf16.mxu0 0
      %6282 = vmatpush1.bf16.xpose.msra.mxu0 %v6262
      %6283 = vmatprep.subr.bf16.mxu0 0
      %6284 = vmatpush1.bf16.xpose.msra.mxu0 %v6265
      %6285 = vmatprep.subr.bf16.mxu0 0
      %6286 = vmatpush1.bf16.xpose.msra.mxu0 %v6268
      %6287 = vmatprep.subr.bf16.mxu0 0
      %6288 = vmatpush1.bf16.xpose.msra.mxu0 %v6271
      %6289 = vmatprep.subr.bf16.mxu0 0
      %6290 = vmatpush1.bf16.xpose.msra.mxu0 0
      %6291 = vmatprep.subr.bf16.mxu0 0
      %6292 = vmatpush1.bf16.xpose.msra.mxu0 0
      %6293 = vmatprep.subr.bf16.mxu0 0
      %6294 = vmatpush1.bf16.xpose.msra.mxu0 0
      %6295 = vmatprep.subr.bf16.mxu0 0
      %6296 = vmatpush1.bf16.xpose.msra.mxu0 0
      %6297 = vmatprep.subr.bf16.mxu0 0
      %6298 = vmatpush1.bf16.xpose.msra.mxu0 0
      %6299 = vmatprep.subr.bf16.mxu0 0
      %6300 = vmatpush1.bf16.xpose.msra.mxu0 0
      %6301 = vmatprep.subr.bf16.mxu0 0
      %6302 = vmatpush1.bf16.xpose.msra.mxu0 0
      %6303 = vmatprep.subr.bf16.mxu0 0
      %6304 = vmatpush1.bf16.xpose.msra.mxu0 0
      %6305 = vmatprep.mubr.bf16.mxu0 0
      %6306 = vmatmul.mubr.bf16.gmra.mrb[0].mxu0 %v6226
      %v6307 = vpop.f32.mrb[0].mxu0
      %v6308 = vadd.f32 0.0, %v6307
      %v6309 = vpop.f32.mrb[0].mxu0
      %v6310 = vpop.f32.mrb[0].mxu0
      %v6311 = vadd.f32 0.0, %v6310
      %v6312 = vpop.f32.mrb[0].mxu0
      %6313 = vmatprep.mubr.bf16.mxu0 0
      %6314 = vmatmul.mubr.bf16.gmra.mrb[0].mxu0 %v6229
      %v6315 = vpop.f32.mrb[0].mxu0
      %v6316 = vadd.f32 0.0, %v6315
      %v6317 = vpop.f32.mrb[0].mxu0
      %v6318 = vpop.f32.mrb[0].mxu0
      %v6319 = vadd.f32 0.0, %v6318
      %v6320 = vpop.f32.mrb[0].mxu0
      %6321 = vmatprep.mubr.bf16.mxu0 0
      %6322 = vmatmul.mubr.bf16.gmra.mrb[0].mxu0 %v6232
      %v6323 = vpop.f32.mrb[0].mxu0
      %v6324 = vadd.f32 0.0, %v6323
      %v6325 = vpop.f32.mrb[0].mxu0
      %v6326 = vpop.f32.mrb[0].mxu0
      %v6327 = vadd.f32 0.0, %v6326
      %v6328 = vpop.f32.mrb[0].mxu0
      %6329 = vmatprep.mubr.bf16.mxu0 0
      %6330 = vmatmul.mubr.bf16.gmra.mrb[0].mxu0 %v6235
      %v6331 = vpop.f32.mrb[0].mxu0
      %v6332 = vadd.f32 0.0, %v6331
      %v6333 = vpop.f32.mrb[0].mxu0
      %v6334 = vpop.f32.mrb[0].mxu0
      %v6335 = vadd.f32 0.0, %v6334
      %v6336 = vpop.f32.mrb[0].mxu0
      %6337 = vmatprep.mubr.bf16.mxu0 0
      %6338 = vmatmul.mubr.bf16.gmra.mrb[0].mxu0 %v6238
      %v6339 = vpop.f32.mrb[0].mxu0
      %v6340 = vadd.f32 0.0, %v6339
      %v6341 = vpop.f32.mrb[0].mxu0
      %v6342 = vpop.f32.mrb[0].mxu0
      %v6343 = vadd.f32 0.0, %v6342
      %v6344 = vpop.f32.mrb[0].mxu0
      %6345 = vmatprep.mubr.bf16.mxu0 0
      %6346 = vmatmul.mubr.bf16.gmra.mrb[0].mxu0 %v6241
      %v6347 = vpop.f32.mrb[0].mxu0
      %v6348 = vadd.f32 0.0, %v6347
      %v6349 = vpop.f32.mrb[0].mxu0
      %v6350 = vpop.f32.mrb[0].mxu0
      %v6351 = vadd.f32 0.0, %v6350
      %v6352 = vpop.f32.mrb[0].mxu0
      %6353 = vmatprep.mubr.bf16.mxu0 0
      %6354 = vmatmul.mubr.bf16.gmra.mrb[0].mxu0 %v6244
      %v6355 = vpop.f32.mrb[0].mxu0
      %v6356 = vadd.f32 0.0, %v6355
      %v6357 = vpop.f32.mrb[0].mxu0
      %v6358 = vpop.f32.mrb[0].mxu0
      %v6359 = vadd.f32 0.0, %v6358
      %v6360 = vpop.f32.mrb[0].mxu0
      %6361 = vmatprep.mubr.bf16.mxu0 0
      %6362 = vmatmul.mubr.bf16.gmra.mrb[0].mxu0 %v6247
      %v6363 = vpop.f32.mrb[0].mxu0
      %v6364 = vadd.f32 0.0, %v6363
      %v6365 = vpop.f32.mrb[0].mxu0
      %v6366 = vpop.f32.mrb[0].mxu0
      %v6367 = vadd.f32 0.0, %v6366
      %v6368 = vpop.f32.mrb[0].mxu0
      %6369 = vdwg.mxu0
      %v6370 = vmul.f32 %v6308, 0.35355338
      %v6371 = vmul.f32 %v6311, 0.35355338
      %v6372 = vmul.f32 %v6316, 0.35355338
      %v6373 = vmul.f32 %v6319, 0.35355338
      %v6374 = vmul.f32 %v6324, 0.35355338
      %v6375 = vmul.f32 %v6327, 0.35355338
      %v6376 = vmul.f32 %v6332, 0.35355338
      %v6377 = vmul.f32 %v6335, 0.35355338
      %v6378 = vmul.f32 %v6340, 0.35355338
      %v6379 = vmul.f32 %v6343, 0.35355338
      %v6380 = vmul.f32 %v6348, 0.35355338
      %v6381 = vmul.f32 %v6351, 0.35355338
      %v6382 = vmul.f32 %v6356, 0.35355338
      %v6383 = vmul.f32 %v6359, 0.35355338
      %v6384 = vmul.f32 %v6364, 0.35355338
      %v6385 = vmul.f32 %v6367, 0.35355338
      %v6386 = vadd.f32 %v6370, %v922
      %v6387 = vadd.f32 %v6371, %v922
      %v6388 = vadd.f32 %v6372, %v922
      %v6389 = vadd.f32 %v6373, %v922
      %v6390 = vadd.f32 %v6374, %v922
      %v6391 = vadd.f32 %v6375, %v922
      %v6392 = vadd.f32 %v6376, %v922
      %v6393 = vadd.f32 %v6377, %v922
      %v6394 = vadd.f32 %v6378, %v922
      %v6395 = vadd.f32 %v6379, %v922
      %v6396 = vadd.f32 %v6380, %v922
      %v6397 = vadd.f32 %v6381, %v922
      %v6398 = vadd.f32 %v6382, %v922
      %v6399 = vadd.f32 %v6383, %v922
      %v6400 = vadd.f32 %v6384, %v922
      %v6401 = vadd.f32 %v6385, %v922
      %6402 = vmax.xlane.f32.xlu0 %v6386
      %v6403 = vpop.xlane.xlu0 %6402
      %6404 = vmax.xlane.f32.xlu0 %v6387
      %v6405 = vpop.xlane.xlu0 %6404
      %6406 = vmax.xlane.f32.xlu0 %v6388
      %v6407 = vpop.xlane.xlu0 %6406
      %6408 = vmax.xlane.f32.xlu0 %v6389
      %v6409 = vpop.xlane.xlu0 %6408
      %6410 = vmax.xlane.f32.xlu0 %v6390
      %v6411 = vpop.xlane.xlu0 %6410
      %6412 = vmax.xlane.f32.xlu0 %v6391
      %v6413 = vpop.xlane.xlu0 %6412
      %6414 = vmax.xlane.f32.xlu0 %v6392
      %v6415 = vpop.xlane.xlu0 %6414
      %6416 = vmax.xlane.f32.xlu0 %v6393
      %v6417 = vpop.xlane.xlu0 %6416
      %6418 = vmax.xlane.f32.xlu0 %v6394
      %v6419 = vpop.xlane.xlu0 %6418
      %6420 = vmax.xlane.f32.xlu0 %v6395
      %v6421 = vpop.xlane.xlu0 %6420
      %6422 = vmax.xlane.f32.xlu0 %v6396
      %v6423 = vpop.xlane.xlu0 %6422
      %6424 = vmax.xlane.f32.xlu0 %v6397
      %v6425 = vpop.xlane.xlu0 %6424
      %6426 = vmax.xlane.f32.xlu0 %v6398
      %v6427 = vpop.xlane.xlu0 %6426
      %6428 = vmax.xlane.f32.xlu0 %v6399
      %v6429 = vpop.xlane.xlu0 %6428
      %6430 = vmax.xlane.f32.xlu0 %v6400
      %v6431 = vpop.xlane.xlu0 %6430
      %6432 = vmax.xlane.f32.xlu0 %v6401
      %v6433 = vpop.xlane.xlu0 %6432
      %v6434 = vsub.f32 %v6386, %v6403
      %v6435 = vsub.f32 %v6387, %v6405
      %v6436 = vsub.f32 %v6388, %v6407
      %v6437 = vsub.f32 %v6389, %v6409
      %v6438 = vsub.f32 %v6390, %v6411
      %v6439 = vsub.f32 %v6391, %v6413
      %v6440 = vsub.f32 %v6392, %v6415
      %v6441 = vsub.f32 %v6393, %v6417
      %v6442 = vsub.f32 %v6394, %v6419
      %v6443 = vsub.f32 %v6395, %v6421
      %v6444 = vsub.f32 %v6396, %v6423
      %v6445 = vsub.f32 %v6397, %v6425
      %v6446 = vsub.f32 %v6398, %v6427
      %v6447 = vsub.f32 %v6399, %v6429
      %v6448 = vsub.f32 %v6400, %v6431
      %v6449 = vsub.f32 %v6401, %v6433
      %v6450 = vmul.f32 %v6434, 1.442695
      %v6451 = vpow.pop %v6450
      %v6452 = vmul.f32 %v6435, 1.442695
      %v6453 = vpow.pop %v6452
      %v6454 = vmul.f32 %v6436, 1.442695
      %v6455 = vpow.pop %v6454
      %v6456 = vmul.f32 %v6437, 1.442695
      %v6457 = vpow.pop %v6456
      %v6458 = vmul.f32 %v6438, 1.442695
      %v6459 = vpow.pop %v6458
      %v6460 = vmul.f32 %v6439, 1.442695
      %v6461 = vpow.pop %v6460
      %v6462 = vmul.f32 %v6440, 1.442695
      %v6463 = vpow.pop %v6462
      %v6464 = vmul.f32 %v6441, 1.442695
      %v6465 = vpow.pop %v6464
      %v6466 = vmul.f32 %v6442, 1.442695
      %v6467 = vpow.pop %v6466
      %v6468 = vmul.f32 %v6443, 1.442695
      %v6469 = vpow.pop %v6468
      %v6470 = vmul.f32 %v6444, 1.442695
      %v6471 = vpow.pop %v6470
      %v6472 = vmul.f32 %v6445, 1.442695
      %v6473 = vpow.pop %v6472
      %v6474 = vmul.f32 %v6446, 1.442695
      %v6475 = vpow.pop %v6474
      %v6476 = vmul.f32 %v6447, 1.442695
      %v6477 = vpow.pop %v6476
      %v6478 = vmul.f32 %v6448, 1.442695
      %v6479 = vpow.pop %v6478
      %v6480 = vmul.f32 %v6449, 1.442695
      %v6481 = vpow.pop %v6480
      %6482 = vadd.xlane.f32.xlu0 %v6451
      %v6483 = vpop.xlane.xlu0 %6482
      %6484 = vadd.xlane.f32.xlu0 %v6453
      %v6485 = vpop.xlane.xlu0 %6484
      %6486 = vadd.xlane.f32.xlu0 %v6455
      %v6487 = vpop.xlane.xlu0 %6486
      %6488 = vadd.xlane.f32.xlu0 %v6457
      %v6489 = vpop.xlane.xlu0 %6488
      %6490 = vadd.xlane.f32.xlu0 %v6459
      %v6491 = vpop.xlane.xlu0 %6490
      %6492 = vadd.xlane.f32.xlu0 %v6461
      %v6493 = vpop.xlane.xlu0 %6492
      %6494 = vadd.xlane.f32.xlu0 %v6463
      %v6495 = vpop.xlane.xlu0 %6494
      %6496 = vadd.xlane.f32.xlu0 %v6465
      %v6497 = vpop.xlane.xlu0 %6496
      %6498 = vadd.xlane.f32.xlu0 %v6467
      %v6499 = vpop.xlane.xlu0 %6498
      %6500 = vadd.xlane.f32.xlu0 %v6469
      %v6501 = vpop.xlane.xlu0 %6500
      %6502 = vadd.xlane.f32.xlu0 %v6471
      %v6503 = vpop.xlane.xlu0 %6502
      %6504 = vadd.xlane.f32.xlu0 %v6473
      %v6505 = vpop.xlane.xlu0 %6504
      %6506 = vadd.xlane.f32.xlu0 %v6475
      %v6507 = vpop.xlane.xlu0 %6506
      %6508 = vadd.xlane.f32.xlu0 %v6477
      %v6509 = vpop.xlane.xlu0 %6508
      %6510 = vadd.xlane.f32.xlu0 %v6479
      %v6511 = vpop.xlane.xlu0 %6510
      %6512 = vadd.xlane.f32.xlu0 %v6481
      %v6513 = vpop.xlane.xlu0 %6512
      %v6514 = vrcp.pop %v6483
      %v6515 = vrcp.pop %v6485
      %v6516 = vrcp.pop %v6487
      %v6517 = vrcp.pop %v6489
      %v6518 = vrcp.pop %v6491
      %v6519 = vrcp.pop %v6493
      %v6520 = vrcp.pop %v6495
      %v6521 = vrcp.pop %v6497
      %v6522 = vrcp.pop %v6499
      %v6523 = vrcp.pop %v6501
      %v6524 = vrcp.pop %v6503
      %v6525 = vrcp.pop %v6505
      %v6526 = vrcp.pop %v6507
      %v6527 = vrcp.pop %v6509
      %v6528 = vrcp.pop %v6511
      %v6529 = vrcp.pop %v6513
      %v6530 = vmul.f32 %v6451, %v6514
      %v6531 = vmul.f32 %v6453, %v6515
      %v6532 = vmul.f32 %v6455, %v6516
      %v6533 = vmul.f32 %v6457, %v6517
      %v6534 = vmul.f32 %v6459, %v6518
      %v6535 = vmul.f32 %v6461, %v6519
      %v6536 = vmul.f32 %v6463, %v6520
      %v6537 = vmul.f32 %v6465, %v6521
      %v6538 = vmul.f32 %v6467, %v6522
      %v6539 = vmul.f32 %v6469, %v6523
      %v6540 = vmul.f32 %v6471, %v6524
      %v6541 = vmul.f32 %v6473, %v6525
      %v6542 = vmul.f32 %v6475, %v6526
      %v6543 = vmul.f32 %v6477, %v6527
      %v6544 = vmul.f32 %v6479, %v6528
      %v6545 = vmul.f32 %v6481, %v6529
      %v6546 = vpack.c.bf16 %v6531, %v6530
      %v6547 = vpack.c.bf16 %v6533, %v6532
      %v6548 = vpack.c.bf16 %v6535, %v6534
      %v6549 = vpack.c.bf16 %v6537, %v6536
      %v6550 = vpack.c.bf16 %v6539, %v6538
      %v6551 = vpack.c.bf16 %v6541, %v6540
      %v6552 = vpack.c.bf16 %v6543, %v6542
      %v6553 = vpack.c.bf16 %v6545, %v6544
      %v6554 = vpack.c.bf16 %v6150, %v6147
      %v6555 = vpack.c.bf16 %v6158, %v6155
      %v6556 = vpack.c.bf16 %v6166, %v6163
      %v6557 = vpack.c.bf16 %v6174, %v6171
      %v6558 = vpack.c.bf16 %v6182, %v6179
      %v6559 = vpack.c.bf16 %v6190, %v6187
      %v6560 = vpack.c.bf16 %v6198, %v6195
      %v6561 = vpack.c.bf16 %v6206, %v6203
      %6562 = vmatprep.subr.bf16.mxu0 0
      %6563 = vmatpush1.bf16.msra.mxu0 %v6554
      %6564 = vmatprep.subr.bf16.mxu0 0
      %6565 = vmatpush1.bf16.msra.mxu0 %v6555
      %6566 = vmatprep.subr.bf16.mxu0 0
      %6567 = vmatpush1.bf16.msra.mxu0 %v6556
      %6568 = vmatprep.subr.bf16.mxu0 0
      %6569 = vmatpush1.bf16.msra.mxu0 %v6557
      %6570 = vmatprep.subr.bf16.mxu0 0
      %6571 = vmatpush1.bf16.msra.mxu0 %v6558
      %6572 = vmatprep.subr.bf16.mxu0 0
      %6573 = vmatpush1.bf16.msra.mxu0 %v6559
      %6574 = vmatprep.subr.bf16.mxu0 0
      %6575 = vmatpush1.bf16.msra.mxu0 %v6560
      %6576 = vmatprep.subr.bf16.mxu0 0
      %6577 = vmatpush1.bf16.msra.mxu0 %v6561
      %6578 = vmatprep.subr.bf16.mxu0 0
      %6579 = vmatpush1.bf16.msra.mxu0 0
      %6580 = vmatprep.subr.bf16.mxu0 0
      %6581 = vmatpush1.bf16.msra.mxu0 0
      %6582 = vmatprep.subr.bf16.mxu0 0
      %6583 = vmatpush1.bf16.msra.mxu0 0
      %6584 = vmatprep.subr.bf16.mxu0 0
      %6585 = vmatpush1.bf16.msra.mxu0 0
      %6586 = vmatprep.subr.bf16.mxu0 0
      %6587 = vmatpush1.bf16.msra.mxu0 0
      %6588 = vmatprep.subr.bf16.mxu0 0
      %6589 = vmatpush1.bf16.msra.mxu0 0
      %6590 = vmatprep.subr.bf16.mxu0 0
      %6591 = vmatpush1.bf16.msra.mxu0 0
      %6592 = vmatprep.subr.bf16.mxu0 0
      %6593 = vmatpush1.bf16.msra.mxu0 0
      %6594 = vmatprep.mubr.bf16.mxu0 0
      %6595 = vmatmul.mubr.bf16.gmra.mrb[0].mxu0 %v6546
      %v6596 = vpop.f32.mrb[0].mxu0
      %v6597 = vadd.f32 0.0, %v6596
      %v6598 = vpop.f32.mrb[0].mxu0
      %v6599 = vpop.f32.mrb[0].mxu0
      %v6600 = vadd.f32 0.0, %v6599
      %v6601 = vpop.f32.mrb[0].mxu0
      %6602 = vmatprep.mubr.bf16.mxu0 0
      %6603 = vmatmul.mubr.bf16.gmra.mrb[0].mxu0 %v6547
      %v6604 = vpop.f32.mrb[0].mxu0
      %v6605 = vadd.f32 0.0, %v6604
      %v6606 = vpop.f32.mrb[0].mxu0
      %v6607 = vpop.f32.mrb[0].mxu0
      %v6608 = vadd.f32 0.0, %v6607
      %v6609 = vpop.f32.mrb[0].mxu0
      %6610 = vmatprep.mubr.bf16.mxu0 0
      %6611 = vmatmul.mubr.bf16.gmra.mrb[0].mxu0 %v6548
      %v6612 = vpop.f32.mrb[0].mxu0
      %v6613 = vadd.f32 0.0, %v6612
      %v6614 = vpop.f32.mrb[0].mxu0
      %v6615 = vpop.f32.mrb[0].mxu0
      %v6616 = vadd.f32 0.0, %v6615
      %v6617 = vpop.f32.mrb[0].mxu0
      %6618 = vmatprep.mubr.bf16.mxu0 0
      %6619 = vmatmul.mubr.bf16.gmra.mrb[0].mxu0 %v6549
      %v6620 = vpop.f32.mrb[0].mxu0
      %v6621 = vadd.f32 0.0, %v6620
      %v6622 = vpop.f32.mrb[0].mxu0
      %v6623 = vpop.f32.mrb[0].mxu0
      %v6624 = vadd.f32 0.0, %v6623
      %v6625 = vpop.f32.mrb[0].mxu0
      %6626 = vmatprep.mubr.bf16.mxu0 0
      %6627 = vmatmul.mubr.bf16.gmra.mrb[0].mxu0 %v6550
      %v6628 = vpop.f32.mrb[0].mxu0
      %v6629 = vadd.f32 0.0, %v6628
      %v6630 = vpop.f32.mrb[0].mxu0
      %v6631 = vpop.f32.mrb[0].mxu0
      %v6632 = vadd.f32 0.0, %v6631
      %v6633 = vpop.f32.mrb[0].mxu0
      %6634 = vmatprep.mubr.bf16.mxu0 0
      %6635 = vmatmul.mubr.bf16.gmra.mrb[0].mxu0 %v6551
      %v6636 = vpop.f32.mrb[0].mxu0
      %v6637 = vadd.f32 0.0, %v6636
      %v6638 = vpop.f32.mrb[0].mxu0
      %v6639 = vpop.f32.mrb[0].mxu0
      %v6640 = vadd.f32 0.0, %v6639
      %v6641 = vpop.f32.mrb[0].mxu0
      %6642 = vmatprep.mubr.bf16.mxu0 0
      %6643 = vmatmul.mubr.bf16.gmra.mrb[0].mxu0 %v6552
      %v6644 = vpop.f32.mrb[0].mxu0
      %v6645 = vadd.f32 0.0, %v6644
      %v6646 = vpop.f32.mrb[0].mxu0
      %v6647 = vpop.f32.mrb[0].mxu0
      %v6648 = vadd.f32 0.0, %v6647
      %v6649 = vpop.f32.mrb[0].mxu0
      %6650 = vmatprep.mubr.bf16.mxu0 0
      %6651 = vmatmul.mubr.bf16.gmra.mrb[0].mxu0 %v6553
      %v6652 = vpop.f32.mrb[0].mxu0
      %v6653 = vadd.f32 0.0, %v6652
      %v6654 = vpop.f32.mrb[0].mxu0
      %v6655 = vpop.f32.mrb[0].mxu0
      %v6656 = vadd.f32 0.0, %v6655
      %v6657 = vpop.f32.mrb[0].mxu0
      %6658 = vdwg.mxu0
      %v6659 = vpack.c.bf16 %v6600, %v6597
      %v6660 = vpack.c.bf16 %v6608, %v6605
      %v6661 = vpack.c.bf16 %v6616, %v6613
      %v6662 = vpack.c.bf16 %v6624, %v6621
      %v6663 = vpack.c.bf16 %v6632, %v6629
      %v6664 = vpack.c.bf16 %v6640, %v6637
      %v6665 = vpack.c.bf16 %v6648, %v6645
      %v6666 = vpack.c.bf16 %v6656, %v6653
      %s6667 = scalar_lea.vmem %s10, 16
      %v6668 = vld [vmem:[%s6667] sm:$0xf]
      %s6669 = scalar_lea.vmem %s4, 80
      %v6670 = vld [vmem:[%s6669] sm:$0xf]
      %v6671 = vld [vmem:[%s6669 + $0x4] sm:$0xf]
      %v6672 = vld [vmem:[%s6669 + $0x8] sm:$0xf]
      %v6673 = vld [vmem:[%s6669 + $0xc] sm:$0xf]
      %s6674 = scalar_lea.vmem %s5, 5
      %v6675 = vld [vmem:[%s6674] sm:$0x1]
      %v6677 = vlaneseq
      %v6678 = vshrl.u32 %v6677, 7
      %v6679 = vsub.s32 0, %v6678
      %v6680 = vrot.slane %v6675, %v6679
      %v6686 = vunpack.c.l.b16 %v6670
      %v6687 = vunpack.c.l.b16 %v6671
      %v6688 = vunpack.c.l.b16 %v6672
      %v6689 = vunpack.c.l.b16 %v6673
      %v6690 = vpack.c.b16 %v6687, %v6686
      %v6691 = vpack.c.b16 %v6689, %v6688
      %6694 = vmatprep.subr.bf16.mxu0 0
      %6695 = vmatpush1.bf16.msra.mxu0 %v6690
      %6696 = vmatprep.subr.bf16.mxu0 0
      %6697 = vmatpush1.bf16.msra.mxu0 %v6691
      %6698 = vmatprep.subr.bf16.mxu0 0
      %6699 = vmatpush1.bf16.msra.mxu0 0
      %6700 = vmatprep.subr.bf16.mxu0 0
      %6701 = vmatpush1.bf16.msra.mxu0 0
      %6702 = vmatprep.subr.bf16.mxu0 0
      %6703 = vmatpush1.bf16.msra.mxu0 0
      %6704 = vmatprep.subr.bf16.mxu0 0
      %6705 = vmatpush1.bf16.msra.mxu0 0
      %6706 = vmatprep.subr.bf16.mxu0 0
      %6707 = vmatpush1.bf16.msra.mxu0 0
      %6708 = vmatprep.subr.bf16.mxu0 0
      %6709 = vmatpush1.bf16.msra.mxu0 0
      %6710 = vmatprep.subr.bf16.mxu0 0
      %6711 = vmatpush1.bf16.msra.mxu0 0
      %6712 = vmatprep.subr.bf16.mxu0 0
      %6713 = vmatpush1.bf16.msra.mxu0 0
      %6714 = vmatprep.subr.bf16.mxu0 0
      %6715 = vmatpush1.bf16.msra.mxu0 0
      %6716 = vmatprep.subr.bf16.mxu0 0
      %6717 = vmatpush1.bf16.msra.mxu0 0
      %6718 = vmatprep.subr.bf16.mxu0 0
      %6719 = vmatpush1.bf16.msra.mxu0 0
      %6720 = vmatprep.subr.bf16.mxu0 0
      %6721 = vmatpush1.bf16.msra.mxu0 0
      %6722 = vmatprep.subr.bf16.mxu0 0
      %6723 = vmatpush1.bf16.msra.mxu0 0
      %6724 = vmatprep.subr.bf16.mxu0 0
      %6725 = vmatpush1.bf16.msra.mxu0 0
      %6726 = vmatprep.mubr.bf16.mxu0 0
      %6727 = vmatmul.mubr.bf16.gmra.mrb[0].mxu0 %v5845
      %v6728 = vpop.f32.mrb[0].mxu0
      %v6729 = vadd.f32 %v6680, %v6728
      %v6730 = vpop.f32.mrb[0].mxu0
      %v6731 = vpop.f32.mrb[0].mxu0
      %v6732 = vadd.f32 %v6680, %v6731
      %v6733 = vpop.f32.mrb[0].mxu0
      %6734 = vmatprep.mubr.bf16.mxu0 0
      %6735 = vmatmul.mubr.bf16.gmra.mrb[0].mxu0 %v5848
      %v6736 = vpop.f32.mrb[0].mxu0
      %v6737 = vadd.f32 %v6680, %v6736
      %v6738 = vpop.f32.mrb[0].mxu0
      %v6739 = vpop.f32.mrb[0].mxu0
      %v6740 = vadd.f32 %v6680, %v6739
      %v6741 = vpop.f32.mrb[0].mxu0
      %6742 = vmatprep.mubr.bf16.mxu0 0
      %6743 = vmatmul.mubr.bf16.gmra.mrb[0].mxu0 %v5851
      %v6744 = vpop.f32.mrb[0].mxu0
      %v6745 = vadd.f32 %v6680, %v6744
      %v6746 = vpop.f32.mrb[0].mxu0
      %v6747 = vpop.f32.mrb[0].mxu0
      %v6748 = vadd.f32 %v6680, %v6747
      %v6749 = vpop.f32.mrb[0].mxu0
      %6750 = vmatprep.mubr.bf16.mxu0 0
      %6751 = vmatmul.mubr.bf16.gmra.mrb[0].mxu0 %v5854
      %v6752 = vpop.f32.mrb[0].mxu0
      %v6753 = vadd.f32 %v6680, %v6752
      %v6754 = vpop.f32.mrb[0].mxu0
      %v6755 = vpop.f32.mrb[0].mxu0
      %v6756 = vadd.f32 %v6680, %v6755
      %v6757 = vpop.f32.mrb[0].mxu0
      %6758 = vmatprep.mubr.bf16.mxu0 0
      %6759 = vmatmul.mubr.bf16.gmra.mrb[0].mxu0 %v5857
      %v6760 = vpop.f32.mrb[0].mxu0
      %v6761 = vadd.f32 %v6680, %v6760
      %v6762 = vpop.f32.mrb[0].mxu0
      %v6763 = vpop.f32.mrb[0].mxu0
      %v6764 = vadd.f32 %v6680, %v6763
      %v6765 = vpop.f32.mrb[0].mxu0
      %6766 = vmatprep.mubr.bf16.mxu0 0
      %6767 = vmatmul.mubr.bf16.gmra.mrb[0].mxu0 %v5860
      %v6768 = vpop.f32.mrb[0].mxu0
      %v6769 = vadd.f32 %v6680, %v6768
      %v6770 = vpop.f32.mrb[0].mxu0
      %v6771 = vpop.f32.mrb[0].mxu0
      %v6772 = vadd.f32 %v6680, %v6771
      %v6773 = vpop.f32.mrb[0].mxu0
      %6774 = vmatprep.mubr.bf16.mxu0 0
      %6775 = vmatmul.mubr.bf16.gmra.mrb[0].mxu0 %v5863
      %v6776 = vpop.f32.mrb[0].mxu0
      %v6777 = vadd.f32 %v6680, %v6776
      %v6778 = vpop.f32.mrb[0].mxu0
      %v6779 = vpop.f32.mrb[0].mxu0
      %v6780 = vadd.f32 %v6680, %v6779
      %v6781 = vpop.f32.mrb[0].mxu0
      %6782 = vmatprep.mubr.bf16.mxu0 0
      %6783 = vmatmul.mubr.bf16.gmra.mrb[0].mxu0 %v5866
      %v6784 = vpop.f32.mrb[0].mxu0
      %v6785 = vadd.f32 %v6680, %v6784
      %v6786 = vpop.f32.mrb[0].mxu0
      %v6787 = vpop.f32.mrb[0].mxu0
      %v6788 = vadd.f32 %v6680, %v6787
      %v6789 = vpop.f32.mrb[0].mxu0
      %6790 = vdwg.mxu0
      %s6791 = scalar_lea.vmem %s6, 80
      %v6792 = vld [vmem:[%s6791] sm:$0xf]
      %v6793 = vld [vmem:[%s6791 + $0x4] sm:$0xf]
      %v6794 = vld [vmem:[%s6791 + $0x8] sm:$0xf]
      %v6795 = vld [vmem:[%s6791 + $0xc] sm:$0xf]
      %s6796 = scalar_lea.vmem %s7, 5
      %v6797 = vld [vmem:[%s6796] sm:$0x1]
      %v6799 = vlaneseq
      %v6800 = vshrl.u32 %v6799, 7
      %v6801 = vsub.s32 0, %v6800
      %v6802 = vrot.slane %v6797, %v6801
      %v6808 = vunpack.c.l.b16 %v6792
      %v6809 = vunpack.c.l.b16 %v6793
      %v6810 = vunpack.c.l.b16 %v6794
      %v6811 = vunpack.c.l.b16 %v6795
      %v6812 = vpack.c.b16 %v6809, %v6808
      %v6813 = vpack.c.b16 %v6811, %v6810
      %6816 = vmatprep.subr.bf16.mxu0 0
      %6817 = vmatpush1.bf16.msra.mxu0 %v6812
      %6818 = vmatprep.subr.bf16.mxu0 0
      %6819 = vmatpush1.bf16.msra.mxu0 %v6813
      %6820 = vmatprep.subr.bf16.mxu0 0
      %6821 = vmatpush1.bf16.msra.mxu0 0
      %6822 = vmatprep.subr.bf16.mxu0 0
      %6823 = vmatpush1.bf16.msra.mxu0 0
      %6824 = vmatprep.subr.bf16.mxu0 0
      %6825 = vmatpush1.bf16.msra.mxu0 0
      %6826 = vmatprep.subr.bf16.mxu0 0
      %6827 = vmatpush1.bf16.msra.mxu0 0
      %6828 = vmatprep.subr.bf16.mxu0 0
      %6829 = vmatpush1.bf16.msra.mxu0 0
      %6830 = vmatprep.subr.bf16.mxu0 0
      %6831 = vmatpush1.bf16.msra.mxu0 0
      %6832 = vmatprep.subr.bf16.mxu0 0
      %6833 = vmatpush1.bf16.msra.mxu0 0
      %6834 = vmatprep.subr.bf16.mxu0 0
      %6835 = vmatpush1.bf16.msra.mxu0 0
      %6836 = vmatprep.subr.bf16.mxu0 0
      %6837 = vmatpush1.bf16.msra.mxu0 0
      %6838 = vmatprep.subr.bf16.mxu0 0
      %6839 = vmatpush1.bf16.msra.mxu0 0
      %6840 = vmatprep.subr.bf16.mxu0 0
      %6841 = vmatpush1.bf16.msra.mxu0 0
      %6842 = vmatprep.subr.bf16.mxu0 0
      %6843 = vmatpush1.bf16.msra.mxu0 0
      %6844 = vmatprep.subr.bf16.mxu0 0
      %6845 = vmatpush1.bf16.msra.mxu0 0
      %6846 = vmatprep.subr.bf16.mxu0 0
      %6847 = vmatpush1.bf16.msra.mxu0 0
      %6848 = vmatprep.mubr.bf16.mxu0 0
      %6849 = vmatmul.mubr.bf16.gmra.mrb[0].mxu0 %v5845
      %v6850 = vpop.f32.mrb[0].mxu0
      %v6851 = vadd.f32 %v6802, %v6850
      %v6852 = vpop.f32.mrb[0].mxu0
      %v6853 = vpop.f32.mrb[0].mxu0
      %v6854 = vadd.f32 %v6802, %v6853
      %v6855 = vpop.f32.mrb[0].mxu0
      %6856 = vmatprep.mubr.bf16.mxu0 0
      %6857 = vmatmul.mubr.bf16.gmra.mrb[0].mxu0 %v5848
      %v6858 = vpop.f32.mrb[0].mxu0
      %v6859 = vadd.f32 %v6802, %v6858
      %v6860 = vpop.f32.mrb[0].mxu0
      %v6861 = vpop.f32.mrb[0].mxu0
      %v6862 = vadd.f32 %v6802, %v6861
      %v6863 = vpop.f32.mrb[0].mxu0
      %6864 = vmatprep.mubr.bf16.mxu0 0
      %6865 = vmatmul.mubr.bf16.gmra.mrb[0].mxu0 %v5851
      %v6866 = vpop.f32.mrb[0].mxu0
      %v6867 = vadd.f32 %v6802, %v6866
      %v6868 = vpop.f32.mrb[0].mxu0
      %v6869 = vpop.f32.mrb[0].mxu0
      %v6870 = vadd.f32 %v6802, %v6869
      %v6871 = vpop.f32.mrb[0].mxu0
      %6872 = vmatprep.mubr.bf16.mxu0 0
      %6873 = vmatmul.mubr.bf16.gmra.mrb[0].mxu0 %v5854
      %v6874 = vpop.f32.mrb[0].mxu0
      %v6875 = vadd.f32 %v6802, %v6874
      %v6876 = vpop.f32.mrb[0].mxu0
      %v6877 = vpop.f32.mrb[0].mxu0
      %v6878 = vadd.f32 %v6802, %v6877
      %v6879 = vpop.f32.mrb[0].mxu0
      %6880 = vmatprep.mubr.bf16.mxu0 0
      %6881 = vmatmul.mubr.bf16.gmra.mrb[0].mxu0 %v5857
      %v6882 = vpop.f32.mrb[0].mxu0
      %v6883 = vadd.f32 %v6802, %v6882
      %v6884 = vpop.f32.mrb[0].mxu0
      %v6885 = vpop.f32.mrb[0].mxu0
      %v6886 = vadd.f32 %v6802, %v6885
      %v6887 = vpop.f32.mrb[0].mxu0
      %6888 = vmatprep.mubr.bf16.mxu0 0
      %6889 = vmatmul.mubr.bf16.gmra.mrb[0].mxu0 %v5860
      %v6890 = vpop.f32.mrb[0].mxu0
      %v6891 = vadd.f32 %v6802, %v6890
      %v6892 = vpop.f32.mrb[0].mxu0
      %v6893 = vpop.f32.mrb[0].mxu0
      %v6894 = vadd.f32 %v6802, %v6893
      %v6895 = vpop.f32.mrb[0].mxu0
      %6896 = vmatprep.mubr.bf16.mxu0 0
      %6897 = vmatmul.mubr.bf16.gmra.mrb[0].mxu0 %v5863
      %v6898 = vpop.f32.mrb[0].mxu0
      %v6899 = vadd.f32 %v6802, %v6898
      %v6900 = vpop.f32.mrb[0].mxu0
      %v6901 = vpop.f32.mrb[0].mxu0
      %v6902 = vadd.f32 %v6802, %v6901
      %v6903 = vpop.f32.mrb[0].mxu0
      %6904 = vmatprep.mubr.bf16.mxu0 0
      %6905 = vmatmul.mubr.bf16.gmra.mrb[0].mxu0 %v5866
      %v6906 = vpop.f32.mrb[0].mxu0
      %v6907 = vadd.f32 %v6802, %v6906
      %v6908 = vpop.f32.mrb[0].mxu0
      %v6909 = vpop.f32.mrb[0].mxu0
      %v6910 = vadd.f32 %v6802, %v6909
      %v6911 = vpop.f32.mrb[0].mxu0
      %6912 = vdwg.mxu0
      %s6913 = scalar_lea.vmem %s8, 80
      %v6914 = vld [vmem:[%s6913] sm:$0xf]
      %v6915 = vld [vmem:[%s6913 + $0x4] sm:$0xf]
      %v6916 = vld [vmem:[%s6913 + $0x8] sm:$0xf]
      %v6917 = vld [vmem:[%s6913 + $0xc] sm:$0xf]
      %s6918 = scalar_lea.vmem %s9, 5
      %v6919 = vld [vmem:[%s6918] sm:$0x1]
      %v6921 = vlaneseq
      %v6922 = vshrl.u32 %v6921, 7
      %v6923 = vsub.s32 0, %v6922
      %v6924 = vrot.slane %v6919, %v6923
      %v6930 = vunpack.c.l.b16 %v6914
      %v6931 = vunpack.c.l.b16 %v6915
      %v6932 = vunpack.c.l.b16 %v6916
      %v6933 = vunpack.c.l.b16 %v6917
      %v6934 = vpack.c.b16 %v6931, %v6930
      %v6935 = vpack.c.b16 %v6933, %v6932
      %6938 = vmatprep.subr.bf16.mxu0 0
      %6939 = vmatpush1.bf16.msra.mxu0 %v6934
      %6940 = vmatprep.subr.bf16.mxu0 0
      %6941 = vmatpush1.bf16.msra.mxu0 %v6935
      %6942 = vmatprep.subr.bf16.mxu0 0
      %6943 = vmatpush1.bf16.msra.mxu0 0
      %6944 = vmatprep.subr.bf16.mxu0 0
      %6945 = vmatpush1.bf16.msra.mxu0 0
      %6946 = vmatprep.subr.bf16.mxu0 0
      %6947 = vmatpush1.bf16.msra.mxu0 0
      %6948 = vmatprep.subr.bf16.mxu0 0
      %6949 = vmatpush1.bf16.msra.mxu0 0
      %6950 = vmatprep.subr.bf16.mxu0 0
      %6951 = vmatpush1.bf16.msra.mxu0 0
      %6952 = vmatprep.subr.bf16.mxu0 0
      %6953 = vmatpush1.bf16.msra.mxu0 0
      %6954 = vmatprep.subr.bf16.mxu0 0
      %6955 = vmatpush1.bf16.msra.mxu0 0
      %6956 = vmatprep.subr.bf16.mxu0 0
      %6957 = vmatpush1.bf16.msra.mxu0 0
      %6958 = vmatprep.subr.bf16.mxu0 0
      %6959 = vmatpush1.bf16.msra.mxu0 0
      %6960 = vmatprep.subr.bf16.mxu0 0
      %6961 = vmatpush1.bf16.msra.mxu0 0
      %6962 = vmatprep.subr.bf16.mxu0 0
      %6963 = vmatpush1.bf16.msra.mxu0 0
      %6964 = vmatprep.subr.bf16.mxu0 0
      %6965 = vmatpush1.bf16.msra.mxu0 0
      %6966 = vmatprep.subr.bf16.mxu0 0
      %6967 = vmatpush1.bf16.msra.mxu0 0
      %6968 = vmatprep.subr.bf16.mxu0 0
      %6969 = vmatpush1.bf16.msra.mxu0 0
      %6970 = vmatprep.mubr.bf16.mxu0 0
      %6971 = vmatmul.mubr.bf16.gmra.mrb[0].mxu0 %v5845
      %v6972 = vpop.f32.mrb[0].mxu0
      %v6973 = vadd.f32 %v6924, %v6972
      %v6974 = vpop.f32.mrb[0].mxu0
      %v6975 = vpop.f32.mrb[0].mxu0
      %v6976 = vadd.f32 %v6924, %v6975
      %v6977 = vpop.f32.mrb[0].mxu0
      %6978 = vmatprep.mubr.bf16.mxu0 0
      %6979 = vmatmul.mubr.bf16.gmra.mrb[0].mxu0 %v5848
      %v6980 = vpop.f32.mrb[0].mxu0
      %v6981 = vadd.f32 %v6924, %v6980
      %v6982 = vpop.f32.mrb[0].mxu0
      %v6983 = vpop.f32.mrb[0].mxu0
      %v6984 = vadd.f32 %v6924, %v6983
      %v6985 = vpop.f32.mrb[0].mxu0
      %6986 = vmatprep.mubr.bf16.mxu0 0
      %6987 = vmatmul.mubr.bf16.gmra.mrb[0].mxu0 %v5851
      %v6988 = vpop.f32.mrb[0].mxu0
      %v6989 = vadd.f32 %v6924, %v6988
      %v6990 = vpop.f32.mrb[0].mxu0
      %v6991 = vpop.f32.mrb[0].mxu0
      %v6992 = vadd.f32 %v6924, %v6991
      %v6993 = vpop.f32.mrb[0].mxu0
      %6994 = vmatprep.mubr.bf16.mxu0 0
      %6995 = vmatmul.mubr.bf16.gmra.mrb[0].mxu0 %v5854
      %v6996 = vpop.f32.mrb[0].mxu0
      %v6997 = vadd.f32 %v6924, %v6996
      %v6998 = vpop.f32.mrb[0].mxu0
      %v6999 = vpop.f32.mrb[0].mxu0
      %v7000 = vadd.f32 %v6924, %v6999
      %v7001 = vpop.f32.mrb[0].mxu0
      %7002 = vmatprep.mubr.bf16.mxu0 0
      %7003 = vmatmul.mubr.bf16.gmra.mrb[0].mxu0 %v5857
      %v7004 = vpop.f32.mrb[0].mxu0
      %v7005 = vadd.f32 %v6924, %v7004
      %v7006 = vpop.f32.mrb[0].mxu0
      %v7007 = vpop.f32.mrb[0].mxu0
      %v7008 = vadd.f32 %v6924, %v7007
      %v7009 = vpop.f32.mrb[0].mxu0
      %7010 = vmatprep.mubr.bf16.mxu0 0
      %7011 = vmatmul.mubr.bf16.gmra.mrb[0].mxu0 %v5860
      %v7012 = vpop.f32.mrb[0].mxu0
      %v7013 = vadd.f32 %v6924, %v7012
      %v7014 = vpop.f32.mrb[0].mxu0
      %v7015 = vpop.f32.mrb[0].mxu0
      %v7016 = vadd.f32 %v6924, %v7015
      %v7017 = vpop.f32.mrb[0].mxu0
      %7018 = vmatprep.mubr.bf16.mxu0 0
      %7019 = vmatmul.mubr.bf16.gmra.mrb[0].mxu0 %v5863
      %v7020 = vpop.f32.mrb[0].mxu0
      %v7021 = vadd.f32 %v6924, %v7020
      %v7022 = vpop.f32.mrb[0].mxu0
      %v7023 = vpop.f32.mrb[0].mxu0
      %v7024 = vadd.f32 %v6924, %v7023
      %v7025 = vpop.f32.mrb[0].mxu0
      %7026 = vmatprep.mubr.bf16.mxu0 0
      %7027 = vmatmul.mubr.bf16.gmra.mrb[0].mxu0 %v5866
      %v7028 = vpop.f32.mrb[0].mxu0
      %v7029 = vadd.f32 %v6924, %v7028
      %v7030 = vpop.f32.mrb[0].mxu0
      %v7031 = vpop.f32.mrb[0].mxu0
      %v7032 = vadd.f32 %v6924, %v7031
      %v7033 = vpop.f32.mrb[0].mxu0
      %7034 = vdwg.mxu0
      %v7035 = vpack.c.bf16 %v6732, %v6729
      %v7036 = vpack.c.bf16 %v6740, %v6737
      %v7037 = vpack.c.bf16 %v6748, %v6745
      %v7038 = vpack.c.bf16 %v6756, %v6753
      %v7039 = vpack.c.bf16 %v6764, %v6761
      %v7040 = vpack.c.bf16 %v6772, %v6769
      %v7041 = vpack.c.bf16 %v6780, %v6777
      %v7042 = vpack.c.bf16 %v6788, %v6785
      %v7043 = vpack.c.bf16 %v6854, %v6851
      %v7044 = vpack.c.bf16 %v6862, %v6859
      %v7045 = vpack.c.bf16 %v6870, %v6867
      %v7046 = vpack.c.bf16 %v6878, %v6875
      %v7047 = vpack.c.bf16 %v6886, %v6883
      %v7048 = vpack.c.bf16 %v6894, %v6891
      %v7049 = vpack.c.bf16 %v6902, %v6899
      %v7050 = vpack.c.bf16 %v6910, %v6907
      %v7052 = vsel %vm1332, %v7035, 0
      %v7055 = vsel %vm1332, %v7036, 0
      %v7058 = vsel %vm1332, %v7037, 0
      %v7061 = vsel %vm1332, %v7038, 0
      %v7064 = vsel %vm1332, %v7039, 0
      %v7067 = vsel %vm1332, %v7040, 0
      %v7070 = vsel %vm1332, %v7041, 0
      %v7073 = vsel %vm1332, %v7042, 0
      %v7076 = vsel %vm1332, %v7043, 0
      %v7079 = vsel %vm1332, %v7044, 0
      %v7082 = vsel %vm1332, %v7045, 0
      %v7085 = vsel %vm1332, %v7046, 0
      %v7088 = vsel %vm1332, %v7047, 0
      %v7091 = vsel %vm1332, %v7048, 0
      %v7094 = vsel %vm1332, %v7049, 0
      %v7097 = vsel %vm1332, %v7050, 0
      %7099 = vmatprep.subr.bf16.mxu0 0
      %7100 = vmatpush1.bf16.xpose.msra.mxu0 %v7076
      %7101 = vmatprep.subr.bf16.mxu0 0
      %7102 = vmatpush1.bf16.xpose.msra.mxu0 %v7079
      %7103 = vmatprep.subr.bf16.mxu0 0
      %7104 = vmatpush1.bf16.xpose.msra.mxu0 %v7082
      %7105 = vmatprep.subr.bf16.mxu0 0
      %7106 = vmatpush1.bf16.xpose.msra.mxu0 %v7085
      %7107 = vmatprep.subr.bf16.mxu0 0
      %7108 = vmatpush1.bf16.xpose.msra.mxu0 %v7088
      %7109 = vmatprep.subr.bf16.mxu0 0
      %7110 = vmatpush1.bf16.xpose.msra.mxu0 %v7091
      %7111 = vmatprep.subr.bf16.mxu0 0
      %7112 = vmatpush1.bf16.xpose.msra.mxu0 %v7094
      %7113 = vmatprep.subr.bf16.mxu0 0
      %7114 = vmatpush1.bf16.xpose.msra.mxu0 %v7097
      %7115 = vmatprep.subr.bf16.mxu0 0
      %7116 = vmatpush1.bf16.xpose.msra.mxu0 0
      %7117 = vmatprep.subr.bf16.mxu0 0
      %7118 = vmatpush1.bf16.xpose.msra.mxu0 0
      %7119 = vmatprep.subr.bf16.mxu0 0
      %7120 = vmatpush1.bf16.xpose.msra.mxu0 0
      %7121 = vmatprep.subr.bf16.mxu0 0
      %7122 = vmatpush1.bf16.xpose.msra.mxu0 0
      %7123 = vmatprep.subr.bf16.mxu0 0
      %7124 = vmatpush1.bf16.xpose.msra.mxu0 0
      %7125 = vmatprep.subr.bf16.mxu0 0
      %7126 = vmatpush1.bf16.xpose.msra.mxu0 0
      %7127 = vmatprep.subr.bf16.mxu0 0
      %7128 = vmatpush1.bf16.xpose.msra.mxu0 0
      %7129 = vmatprep.subr.bf16.mxu0 0
      %7130 = vmatpush1.bf16.xpose.msra.mxu0 0
      %7131 = vmatprep.mubr.bf16.mxu0 0
      %7132 = vmatmul.mubr.bf16.gmra.mrb[0].mxu0 %v7052
      %v7133 = vpop.f32.mrb[0].mxu0
      %v7134 = vadd.f32 0.0, %v7133
      %v7135 = vpop.f32.mrb[0].mxu0
      %v7136 = vpop.f32.mrb[0].mxu0
      %v7137 = vadd.f32 0.0, %v7136
      %v7138 = vpop.f32.mrb[0].mxu0
      %7139 = vmatprep.mubr.bf16.mxu0 0
      %7140 = vmatmul.mubr.bf16.gmra.mrb[0].mxu0 %v7055
      %v7141 = vpop.f32.mrb[0].mxu0
      %v7142 = vadd.f32 0.0, %v7141
      %v7143 = vpop.f32.mrb[0].mxu0
      %v7144 = vpop.f32.mrb[0].mxu0
      %v7145 = vadd.f32 0.0, %v7144
      %v7146 = vpop.f32.mrb[0].mxu0
      %7147 = vmatprep.mubr.bf16.mxu0 0
      %7148 = vmatmul.mubr.bf16.gmra.mrb[0].mxu0 %v7058
      %v7149 = vpop.f32.mrb[0].mxu0
      %v7150 = vadd.f32 0.0, %v7149
      %v7151 = vpop.f32.mrb[0].mxu0
      %v7152 = vpop.f32.mrb[0].mxu0
      %v7153 = vadd.f32 0.0, %v7152
      %v7154 = vpop.f32.mrb[0].mxu0
      %7155 = vmatprep.mubr.bf16.mxu0 0
      %7156 = vmatmul.mubr.bf16.gmra.mrb[0].mxu0 %v7061
      %v7157 = vpop.f32.mrb[0].mxu0
      %v7158 = vadd.f32 0.0, %v7157
      %v7159 = vpop.f32.mrb[0].mxu0
      %v7160 = vpop.f32.mrb[0].mxu0
      %v7161 = vadd.f32 0.0, %v7160
      %v7162 = vpop.f32.mrb[0].mxu0
      %7163 = vmatprep.mubr.bf16.mxu0 0
      %7164 = vmatmul.mubr.bf16.gmra.mrb[0].mxu0 %v7064
      %v7165 = vpop.f32.mrb[0].mxu0
      %v7166 = vadd.f32 0.0, %v7165
      %v7167 = vpop.f32.mrb[0].mxu0
      %v7168 = vpop.f32.mrb[0].mxu0
      %v7169 = vadd.f32 0.0, %v7168
      %v7170 = vpop.f32.mrb[0].mxu0
      %7171 = vmatprep.mubr.bf16.mxu0 0
      %7172 = vmatmul.mubr.bf16.gmra.mrb[0].mxu0 %v7067
      %v7173 = vpop.f32.mrb[0].mxu0
      %v7174 = vadd.f32 0.0, %v7173
      %v7175 = vpop.f32.mrb[0].mxu0
      %v7176 = vpop.f32.mrb[0].mxu0
      %v7177 = vadd.f32 0.0, %v7176
      %v7178 = vpop.f32.mrb[0].mxu0
      %7179 = vmatprep.mubr.bf16.mxu0 0
      %7180 = vmatmul.mubr.bf16.gmra.mrb[0].mxu0 %v7070
      %v7181 = vpop.f32.mrb[0].mxu0
      %v7182 = vadd.f32 0.0, %v7181
      %v7183 = vpop.f32.mrb[0].mxu0
      %v7184 = vpop.f32.mrb[0].mxu0
      %v7185 = vadd.f32 0.0, %v7184
      %v7186 = vpop.f32.mrb[0].mxu0
      %7187 = vmatprep.mubr.bf16.mxu0 0
      %7188 = vmatmul.mubr.bf16.gmra.mrb[0].mxu0 %v7073
      %v7189 = vpop.f32.mrb[0].mxu0
      %v7190 = vadd.f32 0.0, %v7189
      %v7191 = vpop.f32.mrb[0].mxu0
      %v7192 = vpop.f32.mrb[0].mxu0
      %v7193 = vadd.f32 0.0, %v7192
      %v7194 = vpop.f32.mrb[0].mxu0
      %7195 = vdwg.mxu0
      %v7196 = vmul.f32 %v7134, 0.35355338
      %v7197 = vmul.f32 %v7137, 0.35355338
      %v7198 = vmul.f32 %v7142, 0.35355338
      %v7199 = vmul.f32 %v7145, 0.35355338
      %v7200 = vmul.f32 %v7150, 0.35355338
      %v7201 = vmul.f32 %v7153, 0.35355338
      %v7202 = vmul.f32 %v7158, 0.35355338
      %v7203 = vmul.f32 %v7161, 0.35355338
      %v7204 = vmul.f32 %v7166, 0.35355338
      %v7205 = vmul.f32 %v7169, 0.35355338
      %v7206 = vmul.f32 %v7174, 0.35355338
      %v7207 = vmul.f32 %v7177, 0.35355338
      %v7208 = vmul.f32 %v7182, 0.35355338
      %v7209 = vmul.f32 %v7185, 0.35355338
      %v7210 = vmul.f32 %v7190, 0.35355338
      %v7211 = vmul.f32 %v7193, 0.35355338
      %v7212 = vadd.f32 %v7196, %v922
      %v7213 = vadd.f32 %v7197, %v922
      %v7214 = vadd.f32 %v7198, %v922
      %v7215 = vadd.f32 %v7199, %v922
      %v7216 = vadd.f32 %v7200, %v922
      %v7217 = vadd.f32 %v7201, %v922
      %v7218 = vadd.f32 %v7202, %v922
      %v7219 = vadd.f32 %v7203, %v922
      %v7220 = vadd.f32 %v7204, %v922
      %v7221 = vadd.f32 %v7205, %v922
      %v7222 = vadd.f32 %v7206, %v922
      %v7223 = vadd.f32 %v7207, %v922
      %v7224 = vadd.f32 %v7208, %v922
      %v7225 = vadd.f32 %v7209, %v922
      %v7226 = vadd.f32 %v7210, %v922
      %v7227 = vadd.f32 %v7211, %v922
      %7228 = vmax.xlane.f32.xlu0 %v7212
      %v7229 = vpop.xlane.xlu0 %7228
      %7230 = vmax.xlane.f32.xlu0 %v7213
      %v7231 = vpop.xlane.xlu0 %7230
      %7232 = vmax.xlane.f32.xlu0 %v7214
      %v7233 = vpop.xlane.xlu0 %7232
      %7234 = vmax.xlane.f32.xlu0 %v7215
      %v7235 = vpop.xlane.xlu0 %7234
      %7236 = vmax.xlane.f32.xlu0 %v7216
      %v7237 = vpop.xlane.xlu0 %7236
      %7238 = vmax.xlane.f32.xlu0 %v7217
      %v7239 = vpop.xlane.xlu0 %7238
      %7240 = vmax.xlane.f32.xlu0 %v7218
      %v7241 = vpop.xlane.xlu0 %7240
      %7242 = vmax.xlane.f32.xlu0 %v7219
      %v7243 = vpop.xlane.xlu0 %7242
      %7244 = vmax.xlane.f32.xlu0 %v7220
      %v7245 = vpop.xlane.xlu0 %7244
      %7246 = vmax.xlane.f32.xlu0 %v7221
      %v7247 = vpop.xlane.xlu0 %7246
      %7248 = vmax.xlane.f32.xlu0 %v7222
      %v7249 = vpop.xlane.xlu0 %7248
      %7250 = vmax.xlane.f32.xlu0 %v7223
      %v7251 = vpop.xlane.xlu0 %7250
      %7252 = vmax.xlane.f32.xlu0 %v7224
      %v7253 = vpop.xlane.xlu0 %7252
      %7254 = vmax.xlane.f32.xlu0 %v7225
      %v7255 = vpop.xlane.xlu0 %7254
      %7256 = vmax.xlane.f32.xlu0 %v7226
      %v7257 = vpop.xlane.xlu0 %7256
      %7258 = vmax.xlane.f32.xlu0 %v7227
      %v7259 = vpop.xlane.xlu0 %7258
      %v7260 = vsub.f32 %v7212, %v7229
      %v7261 = vsub.f32 %v7213, %v7231
      %v7262 = vsub.f32 %v7214, %v7233
      %v7263 = vsub.f32 %v7215, %v7235
      %v7264 = vsub.f32 %v7216, %v7237
      %v7265 = vsub.f32 %v7217, %v7239
      %v7266 = vsub.f32 %v7218, %v7241
      %v7267 = vsub.f32 %v7219, %v7243
      %v7268 = vsub.f32 %v7220, %v7245
      %v7269 = vsub.f32 %v7221, %v7247
      %v7270 = vsub.f32 %v7222, %v7249
      %v7271 = vsub.f32 %v7223, %v7251
      %v7272 = vsub.f32 %v7224, %v7253
      %v7273 = vsub.f32 %v7225, %v7255
      %v7274 = vsub.f32 %v7226, %v7257
      %v7275 = vsub.f32 %v7227, %v7259
      %v7276 = vmul.f32 %v7260, 1.442695
      %v7277 = vpow.pop %v7276
      %v7278 = vmul.f32 %v7261, 1.442695
      %v7279 = vpow.pop %v7278
      %v7280 = vmul.f32 %v7262, 1.442695
      %v7281 = vpow.pop %v7280
      %v7282 = vmul.f32 %v7263, 1.442695
      %v7283 = vpow.pop %v7282
      %v7284 = vmul.f32 %v7264, 1.442695
      %v7285 = vpow.pop %v7284
      %v7286 = vmul.f32 %v7265, 1.442695
      %v7287 = vpow.pop %v7286
      %v7288 = vmul.f32 %v7266, 1.442695
      %v7289 = vpow.pop %v7288
      %v7290 = vmul.f32 %v7267, 1.442695
      %v7291 = vpow.pop %v7290
      %v7292 = vmul.f32 %v7268, 1.442695
      %v7293 = vpow.pop %v7292
      %v7294 = vmul.f32 %v7269, 1.442695
      %v7295 = vpow.pop %v7294
      %v7296 = vmul.f32 %v7270, 1.442695
      %v7297 = vpow.pop %v7296
      %v7298 = vmul.f32 %v7271, 1.442695
      %v7299 = vpow.pop %v7298
      %v7300 = vmul.f32 %v7272, 1.442695
      %v7301 = vpow.pop %v7300
      %v7302 = vmul.f32 %v7273, 1.442695
      %v7303 = vpow.pop %v7302
      %v7304 = vmul.f32 %v7274, 1.442695
      %v7305 = vpow.pop %v7304
      %v7306 = vmul.f32 %v7275, 1.442695
      %v7307 = vpow.pop %v7306
      %7308 = vadd.xlane.f32.xlu0 %v7277
      %v7309 = vpop.xlane.xlu0 %7308
      %7310 = vadd.xlane.f32.xlu0 %v7279
      %v7311 = vpop.xlane.xlu0 %7310
      %7312 = vadd.xlane.f32.xlu0 %v7281
      %v7313 = vpop.xlane.xlu0 %7312
      %7314 = vadd.xlane.f32.xlu0 %v7283
      %v7315 = vpop.xlane.xlu0 %7314
      %7316 = vadd.xlane.f32.xlu0 %v7285
      %v7317 = vpop.xlane.xlu0 %7316
      %7318 = vadd.xlane.f32.xlu0 %v7287
      %v7319 = vpop.xlane.xlu0 %7318
      %7320 = vadd.xlane.f32.xlu0 %v7289
      %v7321 = vpop.xlane.xlu0 %7320
      %7322 = vadd.xlane.f32.xlu0 %v7291
      %v7323 = vpop.xlane.xlu0 %7322
      %7324 = vadd.xlane.f32.xlu0 %v7293
      %v7325 = vpop.xlane.xlu0 %7324
      %7326 = vadd.xlane.f32.xlu0 %v7295
      %v7327 = vpop.xlane.xlu0 %7326
      %7328 = vadd.xlane.f32.xlu0 %v7297
      %v7329 = vpop.xlane.xlu0 %7328
      %7330 = vadd.xlane.f32.xlu0 %v7299
      %v7331 = vpop.xlane.xlu0 %7330
      %7332 = vadd.xlane.f32.xlu0 %v7301
      %v7333 = vpop.xlane.xlu0 %7332
      %7334 = vadd.xlane.f32.xlu0 %v7303
      %v7335 = vpop.xlane.xlu0 %7334
      %7336 = vadd.xlane.f32.xlu0 %v7305
      %v7337 = vpop.xlane.xlu0 %7336
      %7338 = vadd.xlane.f32.xlu0 %v7307
      %v7339 = vpop.xlane.xlu0 %7338
      %v7340 = vrcp.pop %v7309
      %v7341 = vrcp.pop %v7311
      %v7342 = vrcp.pop %v7313
      %v7343 = vrcp.pop %v7315
      %v7344 = vrcp.pop %v7317
      %v7345 = vrcp.pop %v7319
      %v7346 = vrcp.pop %v7321
      %v7347 = vrcp.pop %v7323
      %v7348 = vrcp.pop %v7325
      %v7349 = vrcp.pop %v7327
      %v7350 = vrcp.pop %v7329
      %v7351 = vrcp.pop %v7331
      %v7352 = vrcp.pop %v7333
      %v7353 = vrcp.pop %v7335
      %v7354 = vrcp.pop %v7337
      %v7355 = vrcp.pop %v7339
      %v7356 = vmul.f32 %v7277, %v7340
      %v7357 = vmul.f32 %v7279, %v7341
      %v7358 = vmul.f32 %v7281, %v7342
      %v7359 = vmul.f32 %v7283, %v7343
      %v7360 = vmul.f32 %v7285, %v7344
      %v7361 = vmul.f32 %v7287, %v7345
      %v7362 = vmul.f32 %v7289, %v7346
      %v7363 = vmul.f32 %v7291, %v7347
      %v7364 = vmul.f32 %v7293, %v7348
      %v7365 = vmul.f32 %v7295, %v7349
      %v7366 = vmul.f32 %v7297, %v7350
      %v7367 = vmul.f32 %v7299, %v7351
      %v7368 = vmul.f32 %v7301, %v7352
      %v7369 = vmul.f32 %v7303, %v7353
      %v7370 = vmul.f32 %v7305, %v7354
      %v7371 = vmul.f32 %v7307, %v7355
      %v7372 = vpack.c.bf16 %v7357, %v7356
      %v7373 = vpack.c.bf16 %v7359, %v7358
      %v7374 = vpack.c.bf16 %v7361, %v7360
      %v7375 = vpack.c.bf16 %v7363, %v7362
      %v7376 = vpack.c.bf16 %v7365, %v7364
      %v7377 = vpack.c.bf16 %v7367, %v7366
      %v7378 = vpack.c.bf16 %v7369, %v7368
      %v7379 = vpack.c.bf16 %v7371, %v7370
      %v7380 = vpack.c.bf16 %v6976, %v6973
      %v7381 = vpack.c.bf16 %v6984, %v6981
      %v7382 = vpack.c.bf16 %v6992, %v6989
      %v7383 = vpack.c.bf16 %v7000, %v6997
      %v7384 = vpack.c.bf16 %v7008, %v7005
      %v7385 = vpack.c.bf16 %v7016, %v7013
      %v7386 = vpack.c.bf16 %v7024, %v7021
      %v7387 = vpack.c.bf16 %v7032, %v7029
      %7388 = vmatprep.subr.bf16.mxu0 0
      %7389 = vmatpush1.bf16.msra.mxu0 %v7380
      %7390 = vmatprep.subr.bf16.mxu0 0
      %7391 = vmatpush1.bf16.msra.mxu0 %v7381
      %7392 = vmatprep.subr.bf16.mxu0 0
      %7393 = vmatpush1.bf16.msra.mxu0 %v7382
      %7394 = vmatprep.subr.bf16.mxu0 0
      %7395 = vmatpush1.bf16.msra.mxu0 %v7383
      %7396 = vmatprep.subr.bf16.mxu0 0
      %7397 = vmatpush1.bf16.msra.mxu0 %v7384
      %7398 = vmatprep.subr.bf16.mxu0 0
      %7399 = vmatpush1.bf16.msra.mxu0 %v7385
      %7400 = vmatprep.subr.bf16.mxu0 0
      %7401 = vmatpush1.bf16.msra.mxu0 %v7386
      %7402 = vmatprep.subr.bf16.mxu0 0
      %7403 = vmatpush1.bf16.msra.mxu0 %v7387
      %7404 = vmatprep.subr.bf16.mxu0 0
      %7405 = vmatpush1.bf16.msra.mxu0 0
      %7406 = vmatprep.subr.bf16.mxu0 0
      %7407 = vmatpush1.bf16.msra.mxu0 0
      %7408 = vmatprep.subr.bf16.mxu0 0
      %7409 = vmatpush1.bf16.msra.mxu0 0
      %7410 = vmatprep.subr.bf16.mxu0 0
      %7411 = vmatpush1.bf16.msra.mxu0 0
      %7412 = vmatprep.subr.bf16.mxu0 0
      %7413 = vmatpush1.bf16.msra.mxu0 0
      %7414 = vmatprep.subr.bf16.mxu0 0
      %7415 = vmatpush1.bf16.msra.mxu0 0
      %7416 = vmatprep.subr.bf16.mxu0 0
      %7417 = vmatpush1.bf16.msra.mxu0 0
      %7418 = vmatprep.subr.bf16.mxu0 0
      %7419 = vmatpush1.bf16.msra.mxu0 0
      %7420 = vmatprep.mubr.bf16.mxu0 0
      %7421 = vmatmul.mubr.bf16.gmra.mrb[0].mxu0 %v7372
      %v7422 = vpop.f32.mrb[0].mxu0
      %v7423 = vadd.f32 0.0, %v7422
      %v7424 = vpop.f32.mrb[0].mxu0
      %v7425 = vpop.f32.mrb[0].mxu0
      %v7426 = vadd.f32 0.0, %v7425
      %v7427 = vpop.f32.mrb[0].mxu0
      %7428 = vmatprep.mubr.bf16.mxu0 0
      %7429 = vmatmul.mubr.bf16.gmra.mrb[0].mxu0 %v7373
      %v7430 = vpop.f32.mrb[0].mxu0
      %v7431 = vadd.f32 0.0, %v7430
      %v7432 = vpop.f32.mrb[0].mxu0
      %v7433 = vpop.f32.mrb[0].mxu0
      %v7434 = vadd.f32 0.0, %v7433
      %v7435 = vpop.f32.mrb[0].mxu0
      %7436 = vmatprep.mubr.bf16.mxu0 0
      %7437 = vmatmul.mubr.bf16.gmra.mrb[0].mxu0 %v7374
      %v7438 = vpop.f32.mrb[0].mxu0
      %v7439 = vadd.f32 0.0, %v7438
      %v7440 = vpop.f32.mrb[0].mxu0
      %v7441 = vpop.f32.mrb[0].mxu0
      %v7442 = vadd.f32 0.0, %v7441
      %v7443 = vpop.f32.mrb[0].mxu0
      %7444 = vmatprep.mubr.bf16.mxu0 0
      %7445 = vmatmul.mubr.bf16.gmra.mrb[0].mxu0 %v7375
      %v7446 = vpop.f32.mrb[0].mxu0
      %v7447 = vadd.f32 0.0, %v7446
      %v7448 = vpop.f32.mrb[0].mxu0
      %v7449 = vpop.f32.mrb[0].mxu0
      %v7450 = vadd.f32 0.0, %v7449
      %v7451 = vpop.f32.mrb[0].mxu0
      %7452 = vmatprep.mubr.bf16.mxu0 0
      %7453 = vmatmul.mubr.bf16.gmra.mrb[0].mxu0 %v7376
      %v7454 = vpop.f32.mrb[0].mxu0
      %v7455 = vadd.f32 0.0, %v7454
      %v7456 = vpop.f32.mrb[0].mxu0
      %v7457 = vpop.f32.mrb[0].mxu0
      %v7458 = vadd.f32 0.0, %v7457
      %v7459 = vpop.f32.mrb[0].mxu0
      %7460 = vmatprep.mubr.bf16.mxu0 0
      %7461 = vmatmul.mubr.bf16.gmra.mrb[0].mxu0 %v7377
      %v7462 = vpop.f32.mrb[0].mxu0
      %v7463 = vadd.f32 0.0, %v7462
      %v7464 = vpop.f32.mrb[0].mxu0
      %v7465 = vpop.f32.mrb[0].mxu0
      %v7466 = vadd.f32 0.0, %v7465
      %v7467 = vpop.f32.mrb[0].mxu0
      %7468 = vmatprep.mubr.bf16.mxu0 0
      %7469 = vmatmul.mubr.bf16.gmra.mrb[0].mxu0 %v7378
      %v7470 = vpop.f32.mrb[0].mxu0
      %v7471 = vadd.f32 0.0, %v7470
      %v7472 = vpop.f32.mrb[0].mxu0
      %v7473 = vpop.f32.mrb[0].mxu0
      %v7474 = vadd.f32 0.0, %v7473
      %v7475 = vpop.f32.mrb[0].mxu0
      %7476 = vmatprep.mubr.bf16.mxu0 0
      %7477 = vmatmul.mubr.bf16.gmra.mrb[0].mxu0 %v7379
      %v7478 = vpop.f32.mrb[0].mxu0
      %v7479 = vadd.f32 0.0, %v7478
      %v7480 = vpop.f32.mrb[0].mxu0
      %v7481 = vpop.f32.mrb[0].mxu0
      %v7482 = vadd.f32 0.0, %v7481
      %v7483 = vpop.f32.mrb[0].mxu0
      %7484 = vdwg.mxu0
      %v7485 = vpack.c.bf16 %v7426, %v7423
      %v7486 = vpack.c.bf16 %v7434, %v7431
      %v7487 = vpack.c.bf16 %v7442, %v7439
      %v7488 = vpack.c.bf16 %v7450, %v7447
      %v7489 = vpack.c.bf16 %v7458, %v7455
      %v7490 = vpack.c.bf16 %v7466, %v7463
      %v7491 = vpack.c.bf16 %v7474, %v7471
      %v7492 = vpack.c.bf16 %v7482, %v7479
      %s7493 = scalar_lea.vmem %s10, 20
      %v7494 = vld [vmem:[%s7493] sm:$0xf]
      %v7496 = vsel %vm1332, %v7485, 0
      %v7499 = vsel %vm1332, %v7486, 0
      %v7502 = vsel %vm1332, %v7487, 0
      %v7505 = vsel %vm1332, %v7488, 0
      %v7508 = vsel %vm1332, %v7489, 0
      %v7511 = vsel %vm1332, %v7490, 0
      %v7514 = vsel %vm1332, %v7491, 0
      %v7517 = vsel %vm1332, %v7492, 0
      %v7520 = vsel %vm2626, %v7494, 0
      %7522 = vmatprep.subr.bf16.mxu0 0
      %7523 = vmatpush1.bf16.msra.mxu0 %v7520
      %7524 = vmatprep.subr.bf16.mxu0 0
      %7525 = vmatpush1.bf16.msra.mxu0 0
      %7526 = vmatprep.subr.bf16.mxu0 0
      %7527 = vmatpush1.bf16.msra.mxu0 0
      %7528 = vmatprep.subr.bf16.mxu0 0
      %7529 = vmatpush1.bf16.msra.mxu0 0
      %7530 = vmatprep.subr.bf16.mxu0 0
      %7531 = vmatpush1.bf16.msra.mxu0 0
      %7532 = vmatprep.subr.bf16.mxu0 0
      %7533 = vmatpush1.bf16.msra.mxu0 0
      %7534 = vmatprep.subr.bf16.mxu0 0
      %7535 = vmatpush1.bf16.msra.mxu0 0
      %7536 = vmatprep.subr.bf16.mxu0 0
      %7537 = vmatpush1.bf16.msra.mxu0 0
      %7538 = vmatprep.subr.bf16.mxu0 0
      %7539 = vmatpush1.bf16.msra.mxu0 0
      %7540 = vmatprep.subr.bf16.mxu0 0
      %7541 = vmatpush1.bf16.msra.mxu0 0
      %7542 = vmatprep.subr.bf16.mxu0 0
      %7543 = vmatpush1.bf16.msra.mxu0 0
      %7544 = vmatprep.subr.bf16.mxu0 0
      %7545 = vmatpush1.bf16.msra.mxu0 0
      %7546 = vmatprep.subr.bf16.mxu0 0
      %7547 = vmatpush1.bf16.msra.mxu0 0
      %7548 = vmatprep.subr.bf16.mxu0 0
      %7549 = vmatpush1.bf16.msra.mxu0 0
      %7550 = vmatprep.subr.bf16.mxu0 0
      %7551 = vmatpush1.bf16.msra.mxu0 0
      %7552 = vmatprep.subr.bf16.mxu0 0
      %7553 = vmatpush1.bf16.msra.mxu0 0
      %7554 = vmatprep.mubr.bf16.mxu0 0
      %7555 = vmatmul.mubr.bf16.gmra.mrb[0].mxu0 %v7496
      %v7556 = vpop.f32.mrb[0].mxu0
      %v7557 = vadd.f32 0.0, %v7556
      %v7558 = vpop.f32.mrb[0].mxu0
      %v7559 = vpop.f32.mrb[0].mxu0
      %v7560 = vadd.f32 0.0, %v7559
      %v7561 = vpop.f32.mrb[0].mxu0
      %7562 = vmatprep.mubr.bf16.mxu0 0
      %7563 = vmatmul.mubr.bf16.gmra.mrb[0].mxu0 %v7499
      %v7564 = vpop.f32.mrb[0].mxu0
      %v7565 = vadd.f32 0.0, %v7564
      %v7566 = vpop.f32.mrb[0].mxu0
      %v7567 = vpop.f32.mrb[0].mxu0
      %v7568 = vadd.f32 0.0, %v7567
      %v7569 = vpop.f32.mrb[0].mxu0
      %7570 = vmatprep.mubr.bf16.mxu0 0
      %7571 = vmatmul.mubr.bf16.gmra.mrb[0].mxu0 %v7502
      %v7572 = vpop.f32.mrb[0].mxu0
      %v7573 = vadd.f32 0.0, %v7572
      %v7574 = vpop.f32.mrb[0].mxu0
      %v7575 = vpop.f32.mrb[0].mxu0
      %v7576 = vadd.f32 0.0, %v7575
      %v7577 = vpop.f32.mrb[0].mxu0
      %7578 = vmatprep.mubr.bf16.mxu0 0
      %7579 = vmatmul.mubr.bf16.gmra.mrb[0].mxu0 %v7505
      %v7580 = vpop.f32.mrb[0].mxu0
      %v7581 = vadd.f32 0.0, %v7580
      %v7582 = vpop.f32.mrb[0].mxu0
      %v7583 = vpop.f32.mrb[0].mxu0
      %v7584 = vadd.f32 0.0, %v7583
      %v7585 = vpop.f32.mrb[0].mxu0
      %7586 = vmatprep.mubr.bf16.mxu0 0
      %7587 = vmatmul.mubr.bf16.gmra.mrb[0].mxu0 %v7508
      %v7588 = vpop.f32.mrb[0].mxu0
      %v7589 = vadd.f32 0.0, %v7588
      %v7590 = vpop.f32.mrb[0].mxu0
      %v7591 = vpop.f32.mrb[0].mxu0
      %v7592 = vadd.f32 0.0, %v7591
      %v7593 = vpop.f32.mrb[0].mxu0
      %7594 = vmatprep.mubr.bf16.mxu0 0
      %7595 = vmatmul.mubr.bf16.gmra.mrb[0].mxu0 %v7511
      %v7596 = vpop.f32.mrb[0].mxu0
      %v7597 = vadd.f32 0.0, %v7596
      %v7598 = vpop.f32.mrb[0].mxu0
      %v7599 = vpop.f32.mrb[0].mxu0
      %v7600 = vadd.f32 0.0, %v7599
      %v7601 = vpop.f32.mrb[0].mxu0
      %7602 = vmatprep.mubr.bf16.mxu0 0
      %7603 = vmatmul.mubr.bf16.gmra.mrb[0].mxu0 %v7514
      %v7604 = vpop.f32.mrb[0].mxu0
      %v7605 = vadd.f32 0.0, %v7604
      %v7606 = vpop.f32.mrb[0].mxu0
      %v7607 = vpop.f32.mrb[0].mxu0
      %v7608 = vadd.f32 0.0, %v7607
      %v7609 = vpop.f32.mrb[0].mxu0
      %7610 = vmatprep.mubr.bf16.mxu0 0
      %7611 = vmatmul.mubr.bf16.gmra.mrb[0].mxu0 %v7517
      %v7612 = vpop.f32.mrb[0].mxu0
      %v7613 = vadd.f32 0.0, %v7612
      %v7614 = vpop.f32.mrb[0].mxu0
      %v7615 = vpop.f32.mrb[0].mxu0
      %v7616 = vadd.f32 0.0, %v7615
      %v7617 = vpop.f32.mrb[0].mxu0
      %7618 = vdwg.mxu0
      %v7620 = vsel %vm1332, %v6659, 0
      %v7623 = vsel %vm1332, %v6660, 0
      %v7626 = vsel %vm1332, %v6661, 0
      %v7629 = vsel %vm1332, %v6662, 0
      %v7632 = vsel %vm1332, %v6663, 0
      %v7635 = vsel %vm1332, %v6664, 0
      %v7638 = vsel %vm1332, %v6665, 0
      %v7641 = vsel %vm1332, %v6666, 0
      %v7644 = vsel %vm2626, %v6668, 0
      %7646 = vmatprep.subr.bf16.mxu0 0
      %7647 = vmatpush1.bf16.msra.mxu0 %v7644
      %7648 = vmatprep.subr.bf16.mxu0 0
      %7649 = vmatpush1.bf16.msra.mxu0 0
      %7650 = vmatprep.subr.bf16.mxu0 0
      %7651 = vmatpush1.bf16.msra.mxu0 0
      %7652 = vmatprep.subr.bf16.mxu0 0
      %7653 = vmatpush1.bf16.msra.mxu0 0
      %7654 = vmatprep.subr.bf16.mxu0 0
      %7655 = vmatpush1.bf16.msra.mxu0 0
      %7656 = vmatprep.subr.bf16.mxu0 0
      %7657 = vmatpush1.bf16.msra.mxu0 0
      %7658 = vmatprep.subr.bf16.mxu0 0
      %7659 = vmatpush1.bf16.msra.mxu0 0
      %7660 = vmatprep.subr.bf16.mxu0 0
      %7661 = vmatpush1.bf16.msra.mxu0 0
      %7662 = vmatprep.subr.bf16.mxu0 0
      %7663 = vmatpush1.bf16.msra.mxu0 0
      %7664 = vmatprep.subr.bf16.mxu0 0
      %7665 = vmatpush1.bf16.msra.mxu0 0
      %7666 = vmatprep.subr.bf16.mxu0 0
      %7667 = vmatpush1.bf16.msra.mxu0 0
      %7668 = vmatprep.subr.bf16.mxu0 0
      %7669 = vmatpush1.bf16.msra.mxu0 0
      %7670 = vmatprep.subr.bf16.mxu0 0
      %7671 = vmatpush1.bf16.msra.mxu0 0
      %7672 = vmatprep.subr.bf16.mxu0 0
      %7673 = vmatpush1.bf16.msra.mxu0 0
      %7674 = vmatprep.subr.bf16.mxu0 0
      %7675 = vmatpush1.bf16.msra.mxu0 0
      %7676 = vmatprep.subr.bf16.mxu0 0
      %7677 = vmatpush1.bf16.msra.mxu0 0
      %7678 = vmatprep.mubr.bf16.mxu0 0
      %7679 = vmatmul.mubr.bf16.gmra.mrb[0].mxu0 %v7620
      %v7680 = vpop.f32.mrb[0].mxu0
      %v7681 = vadd.f32 %v7557, %v7680
      %v7682 = vpop.f32.mrb[0].mxu0
      %v7683 = vpop.f32.mrb[0].mxu0
      %v7684 = vadd.f32 %v7560, %v7683
      %v7685 = vpop.f32.mrb[0].mxu0
      %7686 = vmatprep.mubr.bf16.mxu0 0
      %7687 = vmatmul.mubr.bf16.gmra.mrb[0].mxu0 %v7623
      %v7688 = vpop.f32.mrb[0].mxu0
      %v7689 = vadd.f32 %v7565, %v7688
      %v7690 = vpop.f32.mrb[0].mxu0
      %v7691 = vpop.f32.mrb[0].mxu0
      %v7692 = vadd.f32 %v7568, %v7691
      %v7693 = vpop.f32.mrb[0].mxu0
      %7694 = vmatprep.mubr.bf16.mxu0 0
      %7695 = vmatmul.mubr.bf16.gmra.mrb[0].mxu0 %v7626
      %v7696 = vpop.f32.mrb[0].mxu0
      %v7697 = vadd.f32 %v7573, %v7696
      %v7698 = vpop.f32.mrb[0].mxu0
      %v7699 = vpop.f32.mrb[0].mxu0
      %v7700 = vadd.f32 %v7576, %v7699
      %v7701 = vpop.f32.mrb[0].mxu0
      %7702 = vmatprep.mubr.bf16.mxu0 0
      %7703 = vmatmul.mubr.bf16.gmra.mrb[0].mxu0 %v7629
      %v7704 = vpop.f32.mrb[0].mxu0
      %v7705 = vadd.f32 %v7581, %v7704
      %v7706 = vpop.f32.mrb[0].mxu0
      %v7707 = vpop.f32.mrb[0].mxu0
      %v7708 = vadd.f32 %v7584, %v7707
      %v7709 = vpop.f32.mrb[0].mxu0
      %7710 = vmatprep.mubr.bf16.mxu0 0
      %7711 = vmatmul.mubr.bf16.gmra.mrb[0].mxu0 %v7632
      %v7712 = vpop.f32.mrb[0].mxu0
      %v7713 = vadd.f32 %v7589, %v7712
      %v7714 = vpop.f32.mrb[0].mxu0
      %v7715 = vpop.f32.mrb[0].mxu0
      %v7716 = vadd.f32 %v7592, %v7715
      %v7717 = vpop.f32.mrb[0].mxu0
      %7718 = vmatprep.mubr.bf16.mxu0 0
      %7719 = vmatmul.mubr.bf16.gmra.mrb[0].mxu0 %v7635
      %v7720 = vpop.f32.mrb[0].mxu0
      %v7721 = vadd.f32 %v7597, %v7720
      %v7722 = vpop.f32.mrb[0].mxu0
      %v7723 = vpop.f32.mrb[0].mxu0
      %v7724 = vadd.f32 %v7600, %v7723
      %v7725 = vpop.f32.mrb[0].mxu0
      %7726 = vmatprep.mubr.bf16.mxu0 0
      %7727 = vmatmul.mubr.bf16.gmra.mrb[0].mxu0 %v7638
      %v7728 = vpop.f32.mrb[0].mxu0
      %v7729 = vadd.f32 %v7605, %v7728
      %v7730 = vpop.f32.mrb[0].mxu0
      %v7731 = vpop.f32.mrb[0].mxu0
      %v7732 = vadd.f32 %v7608, %v7731
      %v7733 = vpop.f32.mrb[0].mxu0
      %7734 = vmatprep.mubr.bf16.mxu0 0
      %7735 = vmatmul.mubr.bf16.gmra.mrb[0].mxu0 %v7641
      %v7736 = vpop.f32.mrb[0].mxu0
      %v7737 = vadd.f32 %v7613, %v7736
      %v7738 = vpop.f32.mrb[0].mxu0
      %v7739 = vpop.f32.mrb[0].mxu0
      %v7740 = vadd.f32 %v7616, %v7739
      %v7741 = vpop.f32.mrb[0].mxu0
      %7742 = vdwg.mxu0
      %s7743 = scalar_lea.vmem %s4, 96
      %v7744 = vld [vmem:[%s7743] sm:$0xf]
      %v7745 = vld [vmem:[%s7743 + $0x4] sm:$0xf]
      %v7746 = vld [vmem:[%s7743 + $0x8] sm:$0xf]
      %v7747 = vld [vmem:[%s7743 + $0xc] sm:$0xf]
      %s7748 = scalar_lea.vmem %s5, 6
      %v7749 = vld [vmem:[%s7748] sm:$0x1]
      %v7751 = vlaneseq
      %v7752 = vshrl.u32 %v7751, 7
      %v7753 = vsub.s32 0, %v7752
      %v7754 = vrot.slane %v7749, %v7753
      %v7760 = vunpack.c.l.b16 %v7744
      %v7761 = vunpack.c.l.b16 %v7745
      %v7762 = vunpack.c.l.b16 %v7746
      %v7763 = vunpack.c.l.b16 %v7747
      %v7764 = vpack.c.b16 %v7761, %v7760
      %v7765 = vpack.c.b16 %v7763, %v7762
      %7768 = vmatprep.subr.bf16.mxu0 0
      %7769 = vmatpush1.bf16.msra.mxu0 %v7764
      %7770 = vmatprep.subr.bf16.mxu0 0
      %7771 = vmatpush1.bf16.msra.mxu0 %v7765
      %7772 = vmatprep.subr.bf16.mxu0 0
      %7773 = vmatpush1.bf16.msra.mxu0 0
      %7774 = vmatprep.subr.bf16.mxu0 0
      %7775 = vmatpush1.bf16.msra.mxu0 0
      %7776 = vmatprep.subr.bf16.mxu0 0
      %7777 = vmatpush1.bf16.msra.mxu0 0
      %7778 = vmatprep.subr.bf16.mxu0 0
      %7779 = vmatpush1.bf16.msra.mxu0 0
      %7780 = vmatprep.subr.bf16.mxu0 0
      %7781 = vmatpush1.bf16.msra.mxu0 0
      %7782 = vmatprep.subr.bf16.mxu0 0
      %7783 = vmatpush1.bf16.msra.mxu0 0
      %7784 = vmatprep.subr.bf16.mxu0 0
      %7785 = vmatpush1.bf16.msra.mxu0 0
      %7786 = vmatprep.subr.bf16.mxu0 0
      %7787 = vmatpush1.bf16.msra.mxu0 0
      %7788 = vmatprep.subr.bf16.mxu0 0
      %7789 = vmatpush1.bf16.msra.mxu0 0
      %7790 = vmatprep.subr.bf16.mxu0 0
      %7791 = vmatpush1.bf16.msra.mxu0 0
      %7792 = vmatprep.subr.bf16.mxu0 0
      %7793 = vmatpush1.bf16.msra.mxu0 0
      %7794 = vmatprep.subr.bf16.mxu0 0
      %7795 = vmatpush1.bf16.msra.mxu0 0
      %7796 = vmatprep.subr.bf16.mxu0 0
      %7797 = vmatpush1.bf16.msra.mxu0 0
      %7798 = vmatprep.subr.bf16.mxu0 0
      %7799 = vmatpush1.bf16.msra.mxu0 0
      %7800 = vmatprep.mubr.bf16.mxu0 0
      %7801 = vmatmul.mubr.bf16.gmra.mrb[0].mxu0 %v5845
      %v7802 = vpop.f32.mrb[0].mxu0
      %v7803 = vadd.f32 %v7754, %v7802
      %v7804 = vpop.f32.mrb[0].mxu0
      %v7805 = vpop.f32.mrb[0].mxu0
      %v7806 = vadd.f32 %v7754, %v7805
      %v7807 = vpop.f32.mrb[0].mxu0
      %7808 = vmatprep.mubr.bf16.mxu0 0
      %7809 = vmatmul.mubr.bf16.gmra.mrb[0].mxu0 %v5848
      %v7810 = vpop.f32.mrb[0].mxu0
      %v7811 = vadd.f32 %v7754, %v7810
      %v7812 = vpop.f32.mrb[0].mxu0
      %v7813 = vpop.f32.mrb[0].mxu0
      %v7814 = vadd.f32 %v7754, %v7813
      %v7815 = vpop.f32.mrb[0].mxu0
      %7816 = vmatprep.mubr.bf16.mxu0 0
      %7817 = vmatmul.mubr.bf16.gmra.mrb[0].mxu0 %v5851
      %v7818 = vpop.f32.mrb[0].mxu0
      %v7819 = vadd.f32 %v7754, %v7818
      %v7820 = vpop.f32.mrb[0].mxu0
      %v7821 = vpop.f32.mrb[0].mxu0
      %v7822 = vadd.f32 %v7754, %v7821
      %v7823 = vpop.f32.mrb[0].mxu0
      %7824 = vmatprep.mubr.bf16.mxu0 0
      %7825 = vmatmul.mubr.bf16.gmra.mrb[0].mxu0 %v5854
      %v7826 = vpop.f32.mrb[0].mxu0
      %v7827 = vadd.f32 %v7754, %v7826
      %v7828 = vpop.f32.mrb[0].mxu0
      %v7829 = vpop.f32.mrb[0].mxu0
      %v7830 = vadd.f32 %v7754, %v7829
      %v7831 = vpop.f32.mrb[0].mxu0
      %7832 = vmatprep.mubr.bf16.mxu0 0
      %7833 = vmatmul.mubr.bf16.gmra.mrb[0].mxu0 %v5857
      %v7834 = vpop.f32.mrb[0].mxu0
      %v7835 = vadd.f32 %v7754, %v7834
      %v7836 = vpop.f32.mrb[0].mxu0
      %v7837 = vpop.f32.mrb[0].mxu0
      %v7838 = vadd.f32 %v7754, %v7837
      %v7839 = vpop.f32.mrb[0].mxu0
      %7840 = vmatprep.mubr.bf16.mxu0 0
      %7841 = vmatmul.mubr.bf16.gmra.mrb[0].mxu0 %v5860
      %v7842 = vpop.f32.mrb[0].mxu0
      %v7843 = vadd.f32 %v7754, %v7842
      %v7844 = vpop.f32.mrb[0].mxu0
      %v7845 = vpop.f32.mrb[0].mxu0
      %v7846 = vadd.f32 %v7754, %v7845
      %v7847 = vpop.f32.mrb[0].mxu0
      %7848 = vmatprep.mubr.bf16.mxu0 0
      %7849 = vmatmul.mubr.bf16.gmra.mrb[0].mxu0 %v5863
      %v7850 = vpop.f32.mrb[0].mxu0
      %v7851 = vadd.f32 %v7754, %v7850
      %v7852 = vpop.f32.mrb[0].mxu0
      %v7853 = vpop.f32.mrb[0].mxu0
      %v7854 = vadd.f32 %v7754, %v7853
      %v7855 = vpop.f32.mrb[0].mxu0
      %7856 = vmatprep.mubr.bf16.mxu0 0
      %7857 = vmatmul.mubr.bf16.gmra.mrb[0].mxu0 %v5866
      %v7858 = vpop.f32.mrb[0].mxu0
      %v7859 = vadd.f32 %v7754, %v7858
      %v7860 = vpop.f32.mrb[0].mxu0
      %v7861 = vpop.f32.mrb[0].mxu0
      %v7862 = vadd.f32 %v7754, %v7861
      %v7863 = vpop.f32.mrb[0].mxu0
      %7864 = vdwg.mxu0
      %s7865 = scalar_lea.vmem %s6, 96
      %v7866 = vld [vmem:[%s7865] sm:$0xf]
      %v7867 = vld [vmem:[%s7865 + $0x4] sm:$0xf]
      %v7868 = vld [vmem:[%s7865 + $0x8] sm:$0xf]
      %v7869 = vld [vmem:[%s7865 + $0xc] sm:$0xf]
      %s7870 = scalar_lea.vmem %s7, 6
      %v7871 = vld [vmem:[%s7870] sm:$0x1]
      %v7873 = vlaneseq
      %v7874 = vshrl.u32 %v7873, 7
      %v7875 = vsub.s32 0, %v7874
      %v7876 = vrot.slane %v7871, %v7875
      %v7882 = vunpack.c.l.b16 %v7866
      %v7883 = vunpack.c.l.b16 %v7867
      %v7884 = vunpack.c.l.b16 %v7868
      %v7885 = vunpack.c.l.b16 %v7869
      %v7886 = vpack.c.b16 %v7883, %v7882
      %v7887 = vpack.c.b16 %v7885, %v7884
      %7890 = vmatprep.subr.bf16.mxu0 0
      %7891 = vmatpush1.bf16.msra.mxu0 %v7886
      %7892 = vmatprep.subr.bf16.mxu0 0
      %7893 = vmatpush1.bf16.msra.mxu0 %v7887
      %7894 = vmatprep.subr.bf16.mxu0 0
      %7895 = vmatpush1.bf16.msra.mxu0 0
      %7896 = vmatprep.subr.bf16.mxu0 0
      %7897 = vmatpush1.bf16.msra.mxu0 0
      %7898 = vmatprep.subr.bf16.mxu0 0
      %7899 = vmatpush1.bf16.msra.mxu0 0
      %7900 = vmatprep.subr.bf16.mxu0 0
      %7901 = vmatpush1.bf16.msra.mxu0 0
      %7902 = vmatprep.subr.bf16.mxu0 0
      %7903 = vmatpush1.bf16.msra.mxu0 0
      %7904 = vmatprep.subr.bf16.mxu0 0
      %7905 = vmatpush1.bf16.msra.mxu0 0
      %7906 = vmatprep.subr.bf16.mxu0 0
      %7907 = vmatpush1.bf16.msra.mxu0 0
      %7908 = vmatprep.subr.bf16.mxu0 0
      %7909 = vmatpush1.bf16.msra.mxu0 0
      %7910 = vmatprep.subr.bf16.mxu0 0
      %7911 = vmatpush1.bf16.msra.mxu0 0
      %7912 = vmatprep.subr.bf16.mxu0 0
      %7913 = vmatpush1.bf16.msra.mxu0 0
      %7914 = vmatprep.subr.bf16.mxu0 0
      %7915 = vmatpush1.bf16.msra.mxu0 0
      %7916 = vmatprep.subr.bf16.mxu0 0
      %7917 = vmatpush1.bf16.msra.mxu0 0
      %7918 = vmatprep.subr.bf16.mxu0 0
      %7919 = vmatpush1.bf16.msra.mxu0 0
      %7920 = vmatprep.subr.bf16.mxu0 0
      %7921 = vmatpush1.bf16.msra.mxu0 0
      %7922 = vmatprep.mubr.bf16.mxu0 0
      %7923 = vmatmul.mubr.bf16.gmra.mrb[0].mxu0 %v5845
      %v7924 = vpop.f32.mrb[0].mxu0
      %v7925 = vadd.f32 %v7876, %v7924
      %v7926 = vpop.f32.mrb[0].mxu0
      %v7927 = vpop.f32.mrb[0].mxu0
      %v7928 = vadd.f32 %v7876, %v7927
      %v7929 = vpop.f32.mrb[0].mxu0
      %7930 = vmatprep.mubr.bf16.mxu0 0
      %7931 = vmatmul.mubr.bf16.gmra.mrb[0].mxu0 %v5848
      %v7932 = vpop.f32.mrb[0].mxu0
      %v7933 = vadd.f32 %v7876, %v7932
      %v7934 = vpop.f32.mrb[0].mxu0
      %v7935 = vpop.f32.mrb[0].mxu0
      %v7936 = vadd.f32 %v7876, %v7935
      %v7937 = vpop.f32.mrb[0].mxu0
      %7938 = vmatprep.mubr.bf16.mxu0 0
      %7939 = vmatmul.mubr.bf16.gmra.mrb[0].mxu0 %v5851
      %v7940 = vpop.f32.mrb[0].mxu0
      %v7941 = vadd.f32 %v7876, %v7940
      %v7942 = vpop.f32.mrb[0].mxu0
      %v7943 = vpop.f32.mrb[0].mxu0
      %v7944 = vadd.f32 %v7876, %v7943
      %v7945 = vpop.f32.mrb[0].mxu0
      %7946 = vmatprep.mubr.bf16.mxu0 0
      %7947 = vmatmul.mubr.bf16.gmra.mrb[0].mxu0 %v5854
      %v7948 = vpop.f32.mrb[0].mxu0
      %v7949 = vadd.f32 %v7876, %v7948
      %v7950 = vpop.f32.mrb[0].mxu0
      %v7951 = vpop.f32.mrb[0].mxu0
      %v7952 = vadd.f32 %v7876, %v7951
      %v7953 = vpop.f32.mrb[0].mxu0
      %7954 = vmatprep.mubr.bf16.mxu0 0
      %7955 = vmatmul.mubr.bf16.gmra.mrb[0].mxu0 %v5857
      %v7956 = vpop.f32.mrb[0].mxu0
      %v7957 = vadd.f32 %v7876, %v7956
      %v7958 = vpop.f32.mrb[0].mxu0
      %v7959 = vpop.f32.mrb[0].mxu0
      %v7960 = vadd.f32 %v7876, %v7959
      %v7961 = vpop.f32.mrb[0].mxu0
      %7962 = vmatprep.mubr.bf16.mxu0 0
      %7963 = vmatmul.mubr.bf16.gmra.mrb[0].mxu0 %v5860
      %v7964 = vpop.f32.mrb[0].mxu0
      %v7965 = vadd.f32 %v7876, %v7964
      %v7966 = vpop.f32.mrb[0].mxu0
      %v7967 = vpop.f32.mrb[0].mxu0
      %v7968 = vadd.f32 %v7876, %v7967
      %v7969 = vpop.f32.mrb[0].mxu0
      %7970 = vmatprep.mubr.bf16.mxu0 0
      %7971 = vmatmul.mubr.bf16.gmra.mrb[0].mxu0 %v5863
      %v7972 = vpop.f32.mrb[0].mxu0
      %v7973 = vadd.f32 %v7876, %v7972
      %v7974 = vpop.f32.mrb[0].mxu0
      %v7975 = vpop.f32.mrb[0].mxu0
      %v7976 = vadd.f32 %v7876, %v7975
      %v7977 = vpop.f32.mrb[0].mxu0
      %7978 = vmatprep.mubr.bf16.mxu0 0
      %7979 = vmatmul.mubr.bf16.gmra.mrb[0].mxu0 %v5866
      %v7980 = vpop.f32.mrb[0].mxu0
      %v7981 = vadd.f32 %v7876, %v7980
      %v7982 = vpop.f32.mrb[0].mxu0
      %v7983 = vpop.f32.mrb[0].mxu0
      %v7984 = vadd.f32 %v7876, %v7983
      %v7985 = vpop.f32.mrb[0].mxu0
      %7986 = vdwg.mxu0
      %s7987 = scalar_lea.vmem %s8, 96
      %v7988 = vld [vmem:[%s7987] sm:$0xf]
      %v7989 = vld [vmem:[%s7987 + $0x4] sm:$0xf]
      %v7990 = vld [vmem:[%s7987 + $0x8] sm:$0xf]
      %v7991 = vld [vmem:[%s7987 + $0xc] sm:$0xf]
      %s7992 = scalar_lea.vmem %s9, 6
      %v7993 = vld [vmem:[%s7992] sm:$0x1]
      %v7995 = vlaneseq
      %v7996 = vshrl.u32 %v7995, 7
      %v7997 = vsub.s32 0, %v7996
      %v7998 = vrot.slane %v7993, %v7997
      %v8004 = vunpack.c.l.b16 %v7988
      %v8005 = vunpack.c.l.b16 %v7989
      %v8006 = vunpack.c.l.b16 %v7990
      %v8007 = vunpack.c.l.b16 %v7991
      %v8008 = vpack.c.b16 %v8005, %v8004
      %v8009 = vpack.c.b16 %v8007, %v8006
      %8012 = vmatprep.subr.bf16.mxu0 0
      %8013 = vmatpush1.bf16.msra.mxu0 %v8008
      %8014 = vmatprep.subr.bf16.mxu0 0
      %8015 = vmatpush1.bf16.msra.mxu0 %v8009
      %8016 = vmatprep.subr.bf16.mxu0 0
      %8017 = vmatpush1.bf16.msra.mxu0 0
      %8018 = vmatprep.subr.bf16.mxu0 0
      %8019 = vmatpush1.bf16.msra.mxu0 0
      %8020 = vmatprep.subr.bf16.mxu0 0
      %8021 = vmatpush1.bf16.msra.mxu0 0
      %8022 = vmatprep.subr.bf16.mxu0 0
      %8023 = vmatpush1.bf16.msra.mxu0 0
      %8024 = vmatprep.subr.bf16.mxu0 0
      %8025 = vmatpush1.bf16.msra.mxu0 0
      %8026 = vmatprep.subr.bf16.mxu0 0
      %8027 = vmatpush1.bf16.msra.mxu0 0
      %8028 = vmatprep.subr.bf16.mxu0 0
      %8029 = vmatpush1.bf16.msra.mxu0 0
      %8030 = vmatprep.subr.bf16.mxu0 0
      %8031 = vmatpush1.bf16.msra.mxu0 0
      %8032 = vmatprep.subr.bf16.mxu0 0
      %8033 = vmatpush1.bf16.msra.mxu0 0
      %8034 = vmatprep.subr.bf16.mxu0 0
      %8035 = vmatpush1.bf16.msra.mxu0 0
      %8036 = vmatprep.subr.bf16.mxu0 0
      %8037 = vmatpush1.bf16.msra.mxu0 0
      %8038 = vmatprep.subr.bf16.mxu0 0
      %8039 = vmatpush1.bf16.msra.mxu0 0
      %8040 = vmatprep.subr.bf16.mxu0 0
      %8041 = vmatpush1.bf16.msra.mxu0 0
      %8042 = vmatprep.subr.bf16.mxu0 0
      %8043 = vmatpush1.bf16.msra.mxu0 0
      %8044 = vmatprep.mubr.bf16.mxu0 0
      %8045 = vmatmul.mubr.bf16.gmra.mrb[0].mxu0 %v5845
      %v8046 = vpop.f32.mrb[0].mxu0
      %v8047 = vadd.f32 %v7998, %v8046
      %v8048 = vpop.f32.mrb[0].mxu0
      %v8049 = vpop.f32.mrb[0].mxu0
      %v8050 = vadd.f32 %v7998, %v8049
      %v8051 = vpop.f32.mrb[0].mxu0
      %8052 = vmatprep.mubr.bf16.mxu0 0
      %8053 = vmatmul.mubr.bf16.gmra.mrb[0].mxu0 %v5848
      %v8054 = vpop.f32.mrb[0].mxu0
      %v8055 = vadd.f32 %v7998, %v8054
      %v8056 = vpop.f32.mrb[0].mxu0
      %v8057 = vpop.f32.mrb[0].mxu0
      %v8058 = vadd.f32 %v7998, %v8057
      %v8059 = vpop.f32.mrb[0].mxu0
      %8060 = vmatprep.mubr.bf16.mxu0 0
      %8061 = vmatmul.mubr.bf16.gmra.mrb[0].mxu0 %v5851
      %v8062 = vpop.f32.mrb[0].mxu0
      %v8063 = vadd.f32 %v7998, %v8062
      %v8064 = vpop.f32.mrb[0].mxu0
      %v8065 = vpop.f32.mrb[0].mxu0
      %v8066 = vadd.f32 %v7998, %v8065
      %v8067 = vpop.f32.mrb[0].mxu0
      %8068 = vmatprep.mubr.bf16.mxu0 0
      %8069 = vmatmul.mubr.bf16.gmra.mrb[0].mxu0 %v5854
      %v8070 = vpop.f32.mrb[0].mxu0
      %v8071 = vadd.f32 %v7998, %v8070
      %v8072 = vpop.f32.mrb[0].mxu0
      %v8073 = vpop.f32.mrb[0].mxu0
      %v8074 = vadd.f32 %v7998, %v8073
      %v8075 = vpop.f32.mrb[0].mxu0
      %8076 = vmatprep.mubr.bf16.mxu0 0
      %8077 = vmatmul.mubr.bf16.gmra.mrb[0].mxu0 %v5857
      %v8078 = vpop.f32.mrb[0].mxu0
      %v8079 = vadd.f32 %v7998, %v8078
      %v8080 = vpop.f32.mrb[0].mxu0
      %v8081 = vpop.f32.mrb[0].mxu0
      %v8082 = vadd.f32 %v7998, %v8081
      %v8083 = vpop.f32.mrb[0].mxu0
      %8084 = vmatprep.mubr.bf16.mxu0 0
      %8085 = vmatmul.mubr.bf16.gmra.mrb[0].mxu0 %v5860
      %v8086 = vpop.f32.mrb[0].mxu0
      %v8087 = vadd.f32 %v7998, %v8086
      %v8088 = vpop.f32.mrb[0].mxu0
      %v8089 = vpop.f32.mrb[0].mxu0
      %v8090 = vadd.f32 %v7998, %v8089
      %v8091 = vpop.f32.mrb[0].mxu0
      %8092 = vmatprep.mubr.bf16.mxu0 0
      %8093 = vmatmul.mubr.bf16.gmra.mrb[0].mxu0 %v5863
      %v8094 = vpop.f32.mrb[0].mxu0
      %v8095 = vadd.f32 %v7998, %v8094
      %v8096 = vpop.f32.mrb[0].mxu0
      %v8097 = vpop.f32.mrb[0].mxu0
      %v8098 = vadd.f32 %v7998, %v8097
      %v8099 = vpop.f32.mrb[0].mxu0
      %8100 = vmatprep.mubr.bf16.mxu0 0
      %8101 = vmatmul.mubr.bf16.gmra.mrb[0].mxu0 %v5866
      %v8102 = vpop.f32.mrb[0].mxu0
      %v8103 = vadd.f32 %v7998, %v8102
      %v8104 = vpop.f32.mrb[0].mxu0
      %v8105 = vpop.f32.mrb[0].mxu0
      %v8106 = vadd.f32 %v7998, %v8105
      %v8107 = vpop.f32.mrb[0].mxu0
      %8108 = vdwg.mxu0
      %v8109 = vpack.c.bf16 %v7806, %v7803
      %v8110 = vpack.c.bf16 %v7814, %v7811
      %v8111 = vpack.c.bf16 %v7822, %v7819
      %v8112 = vpack.c.bf16 %v7830, %v7827
      %v8113 = vpack.c.bf16 %v7838, %v7835
      %v8114 = vpack.c.bf16 %v7846, %v7843
      %v8115 = vpack.c.bf16 %v7854, %v7851
      %v8116 = vpack.c.bf16 %v7862, %v7859
      %v8117 = vpack.c.bf16 %v7928, %v7925
      %v8118 = vpack.c.bf16 %v7936, %v7933
      %v8119 = vpack.c.bf16 %v7944, %v7941
      %v8120 = vpack.c.bf16 %v7952, %v7949
      %v8121 = vpack.c.bf16 %v7960, %v7957
      %v8122 = vpack.c.bf16 %v7968, %v7965
      %v8123 = vpack.c.bf16 %v7976, %v7973
      %v8124 = vpack.c.bf16 %v7984, %v7981
      %v8126 = vsel %vm1332, %v8109, 0
      %v8129 = vsel %vm1332, %v8110, 0
      %v8132 = vsel %vm1332, %v8111, 0
      %v8135 = vsel %vm1332, %v8112, 0
      %v8138 = vsel %vm1332, %v8113, 0
      %v8141 = vsel %vm1332, %v8114, 0
      %v8144 = vsel %vm1332, %v8115, 0
      %v8147 = vsel %vm1332, %v8116, 0
      %v8150 = vsel %vm1332, %v8117, 0
      %v8153 = vsel %vm1332, %v8118, 0
      %v8156 = vsel %vm1332, %v8119, 0
      %v8159 = vsel %vm1332, %v8120, 0
      %v8162 = vsel %vm1332, %v8121, 0
      %v8165 = vsel %vm1332, %v8122, 0
      %v8168 = vsel %vm1332, %v8123, 0
      %v8171 = vsel %vm1332, %v8124, 0
      %8173 = vmatprep.subr.bf16.mxu0 0
      %8174 = vmatpush1.bf16.xpose.msra.mxu0 %v8150
      %8175 = vmatprep.subr.bf16.mxu0 0
      %8176 = vmatpush1.bf16.xpose.msra.mxu0 %v8153
      %8177 = vmatprep.subr.bf16.mxu0 0
      %8178 = vmatpush1.bf16.xpose.msra.mxu0 %v8156
      %8179 = vmatprep.subr.bf16.mxu0 0
      %8180 = vmatpush1.bf16.xpose.msra.mxu0 %v8159
      %8181 = vmatprep.subr.bf16.mxu0 0
      %8182 = vmatpush1.bf16.xpose.msra.mxu0 %v8162
      %8183 = vmatprep.subr.bf16.mxu0 0
      %8184 = vmatpush1.bf16.xpose.msra.mxu0 %v8165
      %8185 = vmatprep.subr.bf16.mxu0 0
      %8186 = vmatpush1.bf16.xpose.msra.mxu0 %v8168
      %8187 = vmatprep.subr.bf16.mxu0 0
      %8188 = vmatpush1.bf16.xpose.msra.mxu0 %v8171
      %8189 = vmatprep.subr.bf16.mxu0 0
      %8190 = vmatpush1.bf16.xpose.msra.mxu0 0
      %8191 = vmatprep.subr.bf16.mxu0 0
      %8192 = vmatpush1.bf16.xpose.msra.mxu0 0
      %8193 = vmatprep.subr.bf16.mxu0 0
      %8194 = vmatpush1.bf16.xpose.msra.mxu0 0
      %8195 = vmatprep.subr.bf16.mxu0 0
      %8196 = vmatpush1.bf16.xpose.msra.mxu0 0
      %8197 = vmatprep.subr.bf16.mxu0 0
      %8198 = vmatpush1.bf16.xpose.msra.mxu0 0
      %8199 = vmatprep.subr.bf16.mxu0 0
      %8200 = vmatpush1.bf16.xpose.msra.mxu0 0
      %8201 = vmatprep.subr.bf16.mxu0 0
      %8202 = vmatpush1.bf16.xpose.msra.mxu0 0
      %8203 = vmatprep.subr.bf16.mxu0 0
      %8204 = vmatpush1.bf16.xpose.msra.mxu0 0
      %8205 = vmatprep.mubr.bf16.mxu0 0
      %8206 = vmatmul.mubr.bf16.gmra.mrb[0].mxu0 %v8126
      %v8207 = vpop.f32.mrb[0].mxu0
      %v8208 = vadd.f32 0.0, %v8207
      %v8209 = vpop.f32.mrb[0].mxu0
      %v8210 = vpop.f32.mrb[0].mxu0
      %v8211 = vadd.f32 0.0, %v8210
      %v8212 = vpop.f32.mrb[0].mxu0
      %8213 = vmatprep.mubr.bf16.mxu0 0
      %8214 = vmatmul.mubr.bf16.gmra.mrb[0].mxu0 %v8129
      %v8215 = vpop.f32.mrb[0].mxu0
      %v8216 = vadd.f32 0.0, %v8215
      %v8217 = vpop.f32.mrb[0].mxu0
      %v8218 = vpop.f32.mrb[0].mxu0
      %v8219 = vadd.f32 0.0, %v8218
      %v8220 = vpop.f32.mrb[0].mxu0
      %8221 = vmatprep.mubr.bf16.mxu0 0
      %8222 = vmatmul.mubr.bf16.gmra.mrb[0].mxu0 %v8132
      %v8223 = vpop.f32.mrb[0].mxu0
      %v8224 = vadd.f32 0.0, %v8223
      %v8225 = vpop.f32.mrb[0].mxu0
      %v8226 = vpop.f32.mrb[0].mxu0
      %v8227 = vadd.f32 0.0, %v8226
      %v8228 = vpop.f32.mrb[0].mxu0
      %8229 = vmatprep.mubr.bf16.mxu0 0
      %8230 = vmatmul.mubr.bf16.gmra.mrb[0].mxu0 %v8135
      %v8231 = vpop.f32.mrb[0].mxu0
      %v8232 = vadd.f32 0.0, %v8231
      %v8233 = vpop.f32.mrb[0].mxu0
      %v8234 = vpop.f32.mrb[0].mxu0
      %v8235 = vadd.f32 0.0, %v8234
      %v8236 = vpop.f32.mrb[0].mxu0
      %8237 = vmatprep.mubr.bf16.mxu0 0
      %8238 = vmatmul.mubr.bf16.gmra.mrb[0].mxu0 %v8138
      %v8239 = vpop.f32.mrb[0].mxu0
      %v8240 = vadd.f32 0.0, %v8239
      %v8241 = vpop.f32.mrb[0].mxu0
      %v8242 = vpop.f32.mrb[0].mxu0
      %v8243 = vadd.f32 0.0, %v8242
      %v8244 = vpop.f32.mrb[0].mxu0
      %8245 = vmatprep.mubr.bf16.mxu0 0
      %8246 = vmatmul.mubr.bf16.gmra.mrb[0].mxu0 %v8141
      %v8247 = vpop.f32.mrb[0].mxu0
      %v8248 = vadd.f32 0.0, %v8247
      %v8249 = vpop.f32.mrb[0].mxu0
      %v8250 = vpop.f32.mrb[0].mxu0
      %v8251 = vadd.f32 0.0, %v8250
      %v8252 = vpop.f32.mrb[0].mxu0
      %8253 = vmatprep.mubr.bf16.mxu0 0
      %8254 = vmatmul.mubr.bf16.gmra.mrb[0].mxu0 %v8144
      %v8255 = vpop.f32.mrb[0].mxu0
      %v8256 = vadd.f32 0.0, %v8255
      %v8257 = vpop.f32.mrb[0].mxu0
      %v8258 = vpop.f32.mrb[0].mxu0
      %v8259 = vadd.f32 0.0, %v8258
      %v8260 = vpop.f32.mrb[0].mxu0
      %8261 = vmatprep.mubr.bf16.mxu0 0
      %8262 = vmatmul.mubr.bf16.gmra.mrb[0].mxu0 %v8147
      %v8263 = vpop.f32.mrb[0].mxu0
      %v8264 = vadd.f32 0.0, %v8263
      %v8265 = vpop.f32.mrb[0].mxu0
      %v8266 = vpop.f32.mrb[0].mxu0
      %v8267 = vadd.f32 0.0, %v8266
      %v8268 = vpop.f32.mrb[0].mxu0
      %8269 = vdwg.mxu0
      %v8270 = vmul.f32 %v8208, 0.35355338
      %v8271 = vmul.f32 %v8211, 0.35355338
      %v8272 = vmul.f32 %v8216, 0.35355338
      %v8273 = vmul.f32 %v8219, 0.35355338
      %v8274 = vmul.f32 %v8224, 0.35355338
      %v8275 = vmul.f32 %v8227, 0.35355338
      %v8276 = vmul.f32 %v8232, 0.35355338
      %v8277 = vmul.f32 %v8235, 0.35355338
      %v8278 = vmul.f32 %v8240, 0.35355338
      %v8279 = vmul.f32 %v8243, 0.35355338
      %v8280 = vmul.f32 %v8248, 0.35355338
      %v8281 = vmul.f32 %v8251, 0.35355338
      %v8282 = vmul.f32 %v8256, 0.35355338
      %v8283 = vmul.f32 %v8259, 0.35355338
      %v8284 = vmul.f32 %v8264, 0.35355338
      %v8285 = vmul.f32 %v8267, 0.35355338
      %v8286 = vadd.f32 %v8270, %v922
      %v8287 = vadd.f32 %v8271, %v922
      %v8288 = vadd.f32 %v8272, %v922
      %v8289 = vadd.f32 %v8273, %v922
      %v8290 = vadd.f32 %v8274, %v922
      %v8291 = vadd.f32 %v8275, %v922
      %v8292 = vadd.f32 %v8276, %v922
      %v8293 = vadd.f32 %v8277, %v922
      %v8294 = vadd.f32 %v8278, %v922
      %v8295 = vadd.f32 %v8279, %v922
      %v8296 = vadd.f32 %v8280, %v922
      %v8297 = vadd.f32 %v8281, %v922
      %v8298 = vadd.f32 %v8282, %v922
      %v8299 = vadd.f32 %v8283, %v922
      %v8300 = vadd.f32 %v8284, %v922
      %v8301 = vadd.f32 %v8285, %v922
      %8302 = vmax.xlane.f32.xlu0 %v8286
      %v8303 = vpop.xlane.xlu0 %8302
      %8304 = vmax.xlane.f32.xlu0 %v8287
      %v8305 = vpop.xlane.xlu0 %8304
      %8306 = vmax.xlane.f32.xlu0 %v8288
      %v8307 = vpop.xlane.xlu0 %8306
      %8308 = vmax.xlane.f32.xlu0 %v8289
      %v8309 = vpop.xlane.xlu0 %8308
      %8310 = vmax.xlane.f32.xlu0 %v8290
      %v8311 = vpop.xlane.xlu0 %8310
      %8312 = vmax.xlane.f32.xlu0 %v8291
      %v8313 = vpop.xlane.xlu0 %8312
      %8314 = vmax.xlane.f32.xlu0 %v8292
      %v8315 = vpop.xlane.xlu0 %8314
      %8316 = vmax.xlane.f32.xlu0 %v8293
      %v8317 = vpop.xlane.xlu0 %8316
      %8318 = vmax.xlane.f32.xlu0 %v8294
      %v8319 = vpop.xlane.xlu0 %8318
      %8320 = vmax.xlane.f32.xlu0 %v8295
      %v8321 = vpop.xlane.xlu0 %8320
      %8322 = vmax.xlane.f32.xlu0 %v8296
      %v8323 = vpop.xlane.xlu0 %8322
      %8324 = vmax.xlane.f32.xlu0 %v8297
      %v8325 = vpop.xlane.xlu0 %8324
      %8326 = vmax.xlane.f32.xlu0 %v8298
      %v8327 = vpop.xlane.xlu0 %8326
      %8328 = vmax.xlane.f32.xlu0 %v8299
      %v8329 = vpop.xlane.xlu0 %8328
      %8330 = vmax.xlane.f32.xlu0 %v8300
      %v8331 = vpop.xlane.xlu0 %8330
      %8332 = vmax.xlane.f32.xlu0 %v8301
      %v8333 = vpop.xlane.xlu0 %8332
      %v8334 = vsub.f32 %v8286, %v8303
      %v8335 = vsub.f32 %v8287, %v8305
      %v8336 = vsub.f32 %v8288, %v8307
      %v8337 = vsub.f32 %v8289, %v8309
      %v8338 = vsub.f32 %v8290, %v8311
      %v8339 = vsub.f32 %v8291, %v8313
      %v8340 = vsub.f32 %v8292, %v8315
      %v8341 = vsub.f32 %v8293, %v8317
      %v8342 = vsub.f32 %v8294, %v8319
      %v8343 = vsub.f32 %v8295, %v8321
      %v8344 = vsub.f32 %v8296, %v8323
      %v8345 = vsub.f32 %v8297, %v8325
      %v8346 = vsub.f32 %v8298, %v8327
      %v8347 = vsub.f32 %v8299, %v8329
      %v8348 = vsub.f32 %v8300, %v8331
      %v8349 = vsub.f32 %v8301, %v8333
      %v8350 = vmul.f32 %v8334, 1.442695
      %v8351 = vpow.pop %v8350
      %v8352 = vmul.f32 %v8335, 1.442695
      %v8353 = vpow.pop %v8352
      %v8354 = vmul.f32 %v8336, 1.442695
      %v8355 = vpow.pop %v8354
      %v8356 = vmul.f32 %v8337, 1.442695
      %v8357 = vpow.pop %v8356
      %v8358 = vmul.f32 %v8338, 1.442695
      %v8359 = vpow.pop %v8358
      %v8360 = vmul.f32 %v8339, 1.442695
      %v8361 = vpow.pop %v8360
      %v8362 = vmul.f32 %v8340, 1.442695
      %v8363 = vpow.pop %v8362
      %v8364 = vmul.f32 %v8341, 1.442695
      %v8365 = vpow.pop %v8364
      %v8366 = vmul.f32 %v8342, 1.442695
      %v8367 = vpow.pop %v8366
      %v8368 = vmul.f32 %v8343, 1.442695
      %v8369 = vpow.pop %v8368
      %v8370 = vmul.f32 %v8344, 1.442695
      %v8371 = vpow.pop %v8370
      %v8372 = vmul.f32 %v8345, 1.442695
      %v8373 = vpow.pop %v8372
      %v8374 = vmul.f32 %v8346, 1.442695
      %v8375 = vpow.pop %v8374
      %v8376 = vmul.f32 %v8347, 1.442695
      %v8377 = vpow.pop %v8376
      %v8378 = vmul.f32 %v8348, 1.442695
      %v8379 = vpow.pop %v8378
      %v8380 = vmul.f32 %v8349, 1.442695
      %v8381 = vpow.pop %v8380
      %8382 = vadd.xlane.f32.xlu0 %v8351
      %v8383 = vpop.xlane.xlu0 %8382
      %8384 = vadd.xlane.f32.xlu0 %v8353
      %v8385 = vpop.xlane.xlu0 %8384
      %8386 = vadd.xlane.f32.xlu0 %v8355
      %v8387 = vpop.xlane.xlu0 %8386
      %8388 = vadd.xlane.f32.xlu0 %v8357
      %v8389 = vpop.xlane.xlu0 %8388
      %8390 = vadd.xlane.f32.xlu0 %v8359
      %v8391 = vpop.xlane.xlu0 %8390
      %8392 = vadd.xlane.f32.xlu0 %v8361
      %v8393 = vpop.xlane.xlu0 %8392
      %8394 = vadd.xlane.f32.xlu0 %v8363
      %v8395 = vpop.xlane.xlu0 %8394
      %8396 = vadd.xlane.f32.xlu0 %v8365
      %v8397 = vpop.xlane.xlu0 %8396
      %8398 = vadd.xlane.f32.xlu0 %v8367
      %v8399 = vpop.xlane.xlu0 %8398
      %8400 = vadd.xlane.f32.xlu0 %v8369
      %v8401 = vpop.xlane.xlu0 %8400
      %8402 = vadd.xlane.f32.xlu0 %v8371
      %v8403 = vpop.xlane.xlu0 %8402
      %8404 = vadd.xlane.f32.xlu0 %v8373
      %v8405 = vpop.xlane.xlu0 %8404
      %8406 = vadd.xlane.f32.xlu0 %v8375
      %v8407 = vpop.xlane.xlu0 %8406
      %8408 = vadd.xlane.f32.xlu0 %v8377
      %v8409 = vpop.xlane.xlu0 %8408
      %8410 = vadd.xlane.f32.xlu0 %v8379
      %v8411 = vpop.xlane.xlu0 %8410
      %8412 = vadd.xlane.f32.xlu0 %v8381
      %v8413 = vpop.xlane.xlu0 %8412
      %v8414 = vrcp.pop %v8383
      %v8415 = vrcp.pop %v8385
      %v8416 = vrcp.pop %v8387
      %v8417 = vrcp.pop %v8389
      %v8418 = vrcp.pop %v8391
      %v8419 = vrcp.pop %v8393
      %v8420 = vrcp.pop %v8395
      %v8421 = vrcp.pop %v8397
      %v8422 = vrcp.pop %v8399
      %v8423 = vrcp.pop %v8401
      %v8424 = vrcp.pop %v8403
      %v8425 = vrcp.pop %v8405
      %v8426 = vrcp.pop %v8407
      %v8427 = vrcp.pop %v8409
      %v8428 = vrcp.pop %v8411
      %v8429 = vrcp.pop %v8413
      %v8430 = vmul.f32 %v8351, %v8414
      %v8431 = vmul.f32 %v8353, %v8415
      %v8432 = vmul.f32 %v8355, %v8416
      %v8433 = vmul.f32 %v8357, %v8417
      %v8434 = vmul.f32 %v8359, %v8418
      %v8435 = vmul.f32 %v8361, %v8419
      %v8436 = vmul.f32 %v8363, %v8420
      %v8437 = vmul.f32 %v8365, %v8421
      %v8438 = vmul.f32 %v8367, %v8422
      %v8439 = vmul.f32 %v8369, %v8423
      %v8440 = vmul.f32 %v8371, %v8424
      %v8441 = vmul.f32 %v8373, %v8425
      %v8442 = vmul.f32 %v8375, %v8426
      %v8443 = vmul.f32 %v8377, %v8427
      %v8444 = vmul.f32 %v8379, %v8428
      %v8445 = vmul.f32 %v8381, %v8429
      %v8446 = vpack.c.bf16 %v8431, %v8430
      %v8447 = vpack.c.bf16 %v8433, %v8432
      %v8448 = vpack.c.bf16 %v8435, %v8434
      %v8449 = vpack.c.bf16 %v8437, %v8436
      %v8450 = vpack.c.bf16 %v8439, %v8438
      %v8451 = vpack.c.bf16 %v8441, %v8440
      %v8452 = vpack.c.bf16 %v8443, %v8442
      %v8453 = vpack.c.bf16 %v8445, %v8444
      %v8454 = vpack.c.bf16 %v8050, %v8047
      %v8455 = vpack.c.bf16 %v8058, %v8055
      %v8456 = vpack.c.bf16 %v8066, %v8063
      %v8457 = vpack.c.bf16 %v8074, %v8071
      %v8458 = vpack.c.bf16 %v8082, %v8079
      %v8459 = vpack.c.bf16 %v8090, %v8087
      %v8460 = vpack.c.bf16 %v8098, %v8095
      %v8461 = vpack.c.bf16 %v8106, %v8103
      %8462 = vmatprep.subr.bf16.mxu0 0
      %8463 = vmatpush1.bf16.msra.mxu0 %v8454
      %8464 = vmatprep.subr.bf16.mxu0 0
      %8465 = vmatpush1.bf16.msra.mxu0 %v8455
      %8466 = vmatprep.subr.bf16.mxu0 0
      %8467 = vmatpush1.bf16.msra.mxu0 %v8456
      %8468 = vmatprep.subr.bf16.mxu0 0
      %8469 = vmatpush1.bf16.msra.mxu0 %v8457
      %8470 = vmatprep.subr.bf16.mxu0 0
      %8471 = vmatpush1.bf16.msra.mxu0 %v8458
      %8472 = vmatprep.subr.bf16.mxu0 0
      %8473 = vmatpush1.bf16.msra.mxu0 %v8459
      %8474 = vmatprep.subr.bf16.mxu0 0
      %8475 = vmatpush1.bf16.msra.mxu0 %v8460
      %8476 = vmatprep.subr.bf16.mxu0 0
      %8477 = vmatpush1.bf16.msra.mxu0 %v8461
      %8478 = vmatprep.subr.bf16.mxu0 0
      %8479 = vmatpush1.bf16.msra.mxu0 0
      %8480 = vmatprep.subr.bf16.mxu0 0
      %8481 = vmatpush1.bf16.msra.mxu0 0
      %8482 = vmatprep.subr.bf16.mxu0 0
      %8483 = vmatpush1.bf16.msra.mxu0 0
      %8484 = vmatprep.subr.bf16.mxu0 0
      %8485 = vmatpush1.bf16.msra.mxu0 0
      %8486 = vmatprep.subr.bf16.mxu0 0
      %8487 = vmatpush1.bf16.msra.mxu0 0
      %8488 = vmatprep.subr.bf16.mxu0 0
      %8489 = vmatpush1.bf16.msra.mxu0 0
      %8490 = vmatprep.subr.bf16.mxu0 0
      %8491 = vmatpush1.bf16.msra.mxu0 0
      %8492 = vmatprep.subr.bf16.mxu0 0
      %8493 = vmatpush1.bf16.msra.mxu0 0
      %8494 = vmatprep.mubr.bf16.mxu0 0
      %8495 = vmatmul.mubr.bf16.gmra.mrb[0].mxu0 %v8446
      %v8496 = vpop.f32.mrb[0].mxu0
      %v8497 = vadd.f32 0.0, %v8496
      %v8498 = vpop.f32.mrb[0].mxu0
      %v8499 = vpop.f32.mrb[0].mxu0
      %v8500 = vadd.f32 0.0, %v8499
      %v8501 = vpop.f32.mrb[0].mxu0
      %8502 = vmatprep.mubr.bf16.mxu0 0
      %8503 = vmatmul.mubr.bf16.gmra.mrb[0].mxu0 %v8447
      %v8504 = vpop.f32.mrb[0].mxu0
      %v8505 = vadd.f32 0.0, %v8504
      %v8506 = vpop.f32.mrb[0].mxu0
      %v8507 = vpop.f32.mrb[0].mxu0
      %v8508 = vadd.f32 0.0, %v8507
      %v8509 = vpop.f32.mrb[0].mxu0
      %8510 = vmatprep.mubr.bf16.mxu0 0
      %8511 = vmatmul.mubr.bf16.gmra.mrb[0].mxu0 %v8448
      %v8512 = vpop.f32.mrb[0].mxu0
      %v8513 = vadd.f32 0.0, %v8512
      %v8514 = vpop.f32.mrb[0].mxu0
      %v8515 = vpop.f32.mrb[0].mxu0
      %v8516 = vadd.f32 0.0, %v8515
      %v8517 = vpop.f32.mrb[0].mxu0
      %8518 = vmatprep.mubr.bf16.mxu0 0
      %8519 = vmatmul.mubr.bf16.gmra.mrb[0].mxu0 %v8449
      %v8520 = vpop.f32.mrb[0].mxu0
      %v8521 = vadd.f32 0.0, %v8520
      %v8522 = vpop.f32.mrb[0].mxu0
      %v8523 = vpop.f32.mrb[0].mxu0
      %v8524 = vadd.f32 0.0, %v8523
      %v8525 = vpop.f32.mrb[0].mxu0
      %8526 = vmatprep.mubr.bf16.mxu0 0
      %8527 = vmatmul.mubr.bf16.gmra.mrb[0].mxu0 %v8450
      %v8528 = vpop.f32.mrb[0].mxu0
      %v8529 = vadd.f32 0.0, %v8528
      %v8530 = vpop.f32.mrb[0].mxu0
      %v8531 = vpop.f32.mrb[0].mxu0
      %v8532 = vadd.f32 0.0, %v8531
      %v8533 = vpop.f32.mrb[0].mxu0
      %8534 = vmatprep.mubr.bf16.mxu0 0
      %8535 = vmatmul.mubr.bf16.gmra.mrb[0].mxu0 %v8451
      %v8536 = vpop.f32.mrb[0].mxu0
      %v8537 = vadd.f32 0.0, %v8536
      %v8538 = vpop.f32.mrb[0].mxu0
      %v8539 = vpop.f32.mrb[0].mxu0
      %v8540 = vadd.f32 0.0, %v8539
      %v8541 = vpop.f32.mrb[0].mxu0
      %8542 = vmatprep.mubr.bf16.mxu0 0
      %8543 = vmatmul.mubr.bf16.gmra.mrb[0].mxu0 %v8452
      %v8544 = vpop.f32.mrb[0].mxu0
      %v8545 = vadd.f32 0.0, %v8544
      %v8546 = vpop.f32.mrb[0].mxu0
      %v8547 = vpop.f32.mrb[0].mxu0
      %v8548 = vadd.f32 0.0, %v8547
      %v8549 = vpop.f32.mrb[0].mxu0
      %8550 = vmatprep.mubr.bf16.mxu0 0
      %8551 = vmatmul.mubr.bf16.gmra.mrb[0].mxu0 %v8453
      %v8552 = vpop.f32.mrb[0].mxu0
      %v8553 = vadd.f32 0.0, %v8552
      %v8554 = vpop.f32.mrb[0].mxu0
      %v8555 = vpop.f32.mrb[0].mxu0
      %v8556 = vadd.f32 0.0, %v8555
      %v8557 = vpop.f32.mrb[0].mxu0
      %8558 = vdwg.mxu0
      %v8559 = vpack.c.bf16 %v8500, %v8497
      %v8560 = vpack.c.bf16 %v8508, %v8505
      %v8561 = vpack.c.bf16 %v8516, %v8513
      %v8562 = vpack.c.bf16 %v8524, %v8521
      %v8563 = vpack.c.bf16 %v8532, %v8529
      %v8564 = vpack.c.bf16 %v8540, %v8537
      %v8565 = vpack.c.bf16 %v8548, %v8545
      %v8566 = vpack.c.bf16 %v8556, %v8553
      %s8567 = scalar_lea.vmem %s10, 24
      %v8568 = vld [vmem:[%s8567] sm:$0xf]
      %v8570 = vsel %vm1332, %v8559, 0
      %v8573 = vsel %vm1332, %v8560, 0
      %v8576 = vsel %vm1332, %v8561, 0
      %v8579 = vsel %vm1332, %v8562, 0
      %v8582 = vsel %vm1332, %v8563, 0
      %v8585 = vsel %vm1332, %v8564, 0
      %v8588 = vsel %vm1332, %v8565, 0
      %v8591 = vsel %vm1332, %v8566, 0
      %v8594 = vsel %vm2626, %v8568, 0
      %8596 = vmatprep.subr.bf16.mxu0 0
      %8597 = vmatpush1.bf16.msra.mxu0 %v8594
      %8598 = vmatprep.subr.bf16.mxu0 0
      %8599 = vmatpush1.bf16.msra.mxu0 0
      %8600 = vmatprep.subr.bf16.mxu0 0
      %8601 = vmatpush1.bf16.msra.mxu0 0
      %8602 = vmatprep.subr.bf16.mxu0 0
      %8603 = vmatpush1.bf16.msra.mxu0 0
      %8604 = vmatprep.subr.bf16.mxu0 0
      %8605 = vmatpush1.bf16.msra.mxu0 0
      %8606 = vmatprep.subr.bf16.mxu0 0
      %8607 = vmatpush1.bf16.msra.mxu0 0
      %8608 = vmatprep.subr.bf16.mxu0 0
      %8609 = vmatpush1.bf16.msra.mxu0 0
      %8610 = vmatprep.subr.bf16.mxu0 0
      %8611 = vmatpush1.bf16.msra.mxu0 0
      %8612 = vmatprep.subr.bf16.mxu0 0
      %8613 = vmatpush1.bf16.msra.mxu0 0
      %8614 = vmatprep.subr.bf16.mxu0 0
      %8615 = vmatpush1.bf16.msra.mxu0 0
      %8616 = vmatprep.subr.bf16.mxu0 0
      %8617 = vmatpush1.bf16.msra.mxu0 0
      %8618 = vmatprep.subr.bf16.mxu0 0
      %8619 = vmatpush1.bf16.msra.mxu0 0
      %8620 = vmatprep.subr.bf16.mxu0 0
      %8621 = vmatpush1.bf16.msra.mxu0 0
      %8622 = vmatprep.subr.bf16.mxu0 0
      %8623 = vmatpush1.bf16.msra.mxu0 0
      %8624 = vmatprep.subr.bf16.mxu0 0
      %8625 = vmatpush1.bf16.msra.mxu0 0
      %8626 = vmatprep.subr.bf16.mxu0 0
      %8627 = vmatpush1.bf16.msra.mxu0 0
      %8628 = vmatprep.mubr.bf16.mxu0 0
      %8629 = vmatmul.mubr.bf16.gmra.mrb[0].mxu0 %v8570
      %v8630 = vpop.f32.mrb[0].mxu0
      %v8631 = vadd.f32 0.0, %v8630
      %v8632 = vpop.f32.mrb[0].mxu0
      %v8633 = vpop.f32.mrb[0].mxu0
      %v8634 = vadd.f32 0.0, %v8633
      %v8635 = vpop.f32.mrb[0].mxu0
      %8636 = vmatprep.mubr.bf16.mxu0 0
      %8637 = vmatmul.mubr.bf16.gmra.mrb[0].mxu0 %v8573
      %v8638 = vpop.f32.mrb[0].mxu0
      %v8639 = vadd.f32 0.0, %v8638
      %v8640 = vpop.f32.mrb[0].mxu0
      %v8641 = vpop.f32.mrb[0].mxu0
      %v8642 = vadd.f32 0.0, %v8641
      %v8643 = vpop.f32.mrb[0].mxu0
      %8644 = vmatprep.mubr.bf16.mxu0 0
      %8645 = vmatmul.mubr.bf16.gmra.mrb[0].mxu0 %v8576
      %v8646 = vpop.f32.mrb[0].mxu0
      %v8647 = vadd.f32 0.0, %v8646
      %v8648 = vpop.f32.mrb[0].mxu0
      %v8649 = vpop.f32.mrb[0].mxu0
      %v8650 = vadd.f32 0.0, %v8649
      %v8651 = vpop.f32.mrb[0].mxu0
      %8652 = vmatprep.mubr.bf16.mxu0 0
      %8653 = vmatmul.mubr.bf16.gmra.mrb[0].mxu0 %v8579
      %v8654 = vpop.f32.mrb[0].mxu0
      %v8655 = vadd.f32 0.0, %v8654
      %v8656 = vpop.f32.mrb[0].mxu0
      %v8657 = vpop.f32.mrb[0].mxu0
      %v8658 = vadd.f32 0.0, %v8657
      %v8659 = vpop.f32.mrb[0].mxu0
      %8660 = vmatprep.mubr.bf16.mxu0 0
      %8661 = vmatmul.mubr.bf16.gmra.mrb[0].mxu0 %v8582
      %v8662 = vpop.f32.mrb[0].mxu0
      %v8663 = vadd.f32 0.0, %v8662
      %v8664 = vpop.f32.mrb[0].mxu0
      %v8665 = vpop.f32.mrb[0].mxu0
      %v8666 = vadd.f32 0.0, %v8665
      %v8667 = vpop.f32.mrb[0].mxu0
      %8668 = vmatprep.mubr.bf16.mxu0 0
      %8669 = vmatmul.mubr.bf16.gmra.mrb[0].mxu0 %v8585
      %v8670 = vpop.f32.mrb[0].mxu0
      %v8671 = vadd.f32 0.0, %v8670
      %v8672 = vpop.f32.mrb[0].mxu0
      %v8673 = vpop.f32.mrb[0].mxu0
      %v8674 = vadd.f32 0.0, %v8673
      %v8675 = vpop.f32.mrb[0].mxu0
      %8676 = vmatprep.mubr.bf16.mxu0 0
      %8677 = vmatmul.mubr.bf16.gmra.mrb[0].mxu0 %v8588
      %v8678 = vpop.f32.mrb[0].mxu0
      %v8679 = vadd.f32 0.0, %v8678
      %v8680 = vpop.f32.mrb[0].mxu0
      %v8681 = vpop.f32.mrb[0].mxu0
      %v8682 = vadd.f32 0.0, %v8681
      %v8683 = vpop.f32.mrb[0].mxu0
      %8684 = vmatprep.mubr.bf16.mxu0 0
      %8685 = vmatmul.mubr.bf16.gmra.mrb[0].mxu0 %v8591
      %v8686 = vpop.f32.mrb[0].mxu0
      %v8687 = vadd.f32 0.0, %v8686
      %v8688 = vpop.f32.mrb[0].mxu0
      %v8689 = vpop.f32.mrb[0].mxu0
      %v8690 = vadd.f32 0.0, %v8689
      %v8691 = vpop.f32.mrb[0].mxu0
      %8692 = vdwg.mxu0
      %v8693 = vadd.f32 %v7681, %v8631
      %v8694 = vadd.f32 %v7684, %v8634
      %v8695 = vadd.f32 %v7689, %v8639
      %v8696 = vadd.f32 %v7692, %v8642
      %v8697 = vadd.f32 %v7697, %v8647
      %v8698 = vadd.f32 %v7700, %v8650
      %v8699 = vadd.f32 %v7705, %v8655
      %v8700 = vadd.f32 %v7708, %v8658
      %v8701 = vadd.f32 %v7713, %v8663
      %v8702 = vadd.f32 %v7716, %v8666
      %v8703 = vadd.f32 %v7721, %v8671
      %v8704 = vadd.f32 %v7724, %v8674
      %v8705 = vadd.f32 %v7729, %v8679
      %v8706 = vadd.f32 %v7732, %v8682
      %v8707 = vadd.f32 %v7737, %v8687
      %v8708 = vadd.f32 %v7740, %v8690
      %s8709 = scalar_lea.vmem %s4, 112
      %v8710 = vld [vmem:[%s8709] sm:$0xf]
      %v8711 = vld [vmem:[%s8709 + $0x4] sm:$0xf]
      %v8712 = vld [vmem:[%s8709 + $0x8] sm:$0xf]
      %v8713 = vld [vmem:[%s8709 + $0xc] sm:$0xf]
      %s8714 = scalar_lea.vmem %s5, 7
      %v8715 = vld [vmem:[%s8714] sm:$0x1]
      %v8717 = vlaneseq
      %v8718 = vshrl.u32 %v8717, 7
      %v8719 = vsub.s32 0, %v8718
      %v8720 = vrot.slane %v8715, %v8719
      %v8726 = vunpack.c.l.b16 %v8710
      %v8727 = vunpack.c.l.b16 %v8711
      %v8728 = vunpack.c.l.b16 %v8712
      %v8729 = vunpack.c.l.b16 %v8713
      %v8730 = vpack.c.b16 %v8727, %v8726
      %v8731 = vpack.c.b16 %v8729, %v8728
      %8734 = vmatprep.subr.bf16.mxu0 0
      %8735 = vmatpush1.bf16.msra.mxu0 %v8730
      %8736 = vmatprep.subr.bf16.mxu0 0
      %8737 = vmatpush1.bf16.msra.mxu0 %v8731
      %8738 = vmatprep.subr.bf16.mxu0 0
      %8739 = vmatpush1.bf16.msra.mxu0 0
      %8740 = vmatprep.subr.bf16.mxu0 0
      %8741 = vmatpush1.bf16.msra.mxu0 0
      %8742 = vmatprep.subr.bf16.mxu0 0
      %8743 = vmatpush1.bf16.msra.mxu0 0
      %8744 = vmatprep.subr.bf16.mxu0 0
      %8745 = vmatpush1.bf16.msra.mxu0 0
      %8746 = vmatprep.subr.bf16.mxu0 0
      %8747 = vmatpush1.bf16.msra.mxu0 0
      %8748 = vmatprep.subr.bf16.mxu0 0
      %8749 = vmatpush1.bf16.msra.mxu0 0
      %8750 = vmatprep.subr.bf16.mxu0 0
      %8751 = vmatpush1.bf16.msra.mxu0 0
      %8752 = vmatprep.subr.bf16.mxu0 0
      %8753 = vmatpush1.bf16.msra.mxu0 0
      %8754 = vmatprep.subr.bf16.mxu0 0
      %8755 = vmatpush1.bf16.msra.mxu0 0
      %8756 = vmatprep.subr.bf16.mxu0 0
      %8757 = vmatpush1.bf16.msra.mxu0 0
      %8758 = vmatprep.subr.bf16.mxu0 0
      %8759 = vmatpush1.bf16.msra.mxu0 0
      %8760 = vmatprep.subr.bf16.mxu0 0
      %8761 = vmatpush1.bf16.msra.mxu0 0
      %8762 = vmatprep.subr.bf16.mxu0 0
      %8763 = vmatpush1.bf16.msra.mxu0 0
      %8764 = vmatprep.subr.bf16.mxu0 0
      %8765 = vmatpush1.bf16.msra.mxu0 0
      %8766 = vmatprep.mubr.bf16.mxu0 0
      %8767 = vmatmul.mubr.bf16.gmra.mrb[0].mxu0 %v5845
      %v8768 = vpop.f32.mrb[0].mxu0
      %v8769 = vadd.f32 %v8720, %v8768
      %v8770 = vpop.f32.mrb[0].mxu0
      %v8771 = vpop.f32.mrb[0].mxu0
      %v8772 = vadd.f32 %v8720, %v8771
      %v8773 = vpop.f32.mrb[0].mxu0
      %8774 = vmatprep.mubr.bf16.mxu0 0
      %8775 = vmatmul.mubr.bf16.gmra.mrb[0].mxu0 %v5848
      %v8776 = vpop.f32.mrb[0].mxu0
      %v8777 = vadd.f32 %v8720, %v8776
      %v8778 = vpop.f32.mrb[0].mxu0
      %v8779 = vpop.f32.mrb[0].mxu0
      %v8780 = vadd.f32 %v8720, %v8779
      %v8781 = vpop.f32.mrb[0].mxu0
      %8782 = vmatprep.mubr.bf16.mxu0 0
      %8783 = vmatmul.mubr.bf16.gmra.mrb[0].mxu0 %v5851
      %v8784 = vpop.f32.mrb[0].mxu0
      %v8785 = vadd.f32 %v8720, %v8784
      %v8786 = vpop.f32.mrb[0].mxu0
      %v8787 = vpop.f32.mrb[0].mxu0
      %v8788 = vadd.f32 %v8720, %v8787
      %v8789 = vpop.f32.mrb[0].mxu0
      %8790 = vmatprep.mubr.bf16.mxu0 0
      %8791 = vmatmul.mubr.bf16.gmra.mrb[0].mxu0 %v5854
      %v8792 = vpop.f32.mrb[0].mxu0
      %v8793 = vadd.f32 %v8720, %v8792
      %v8794 = vpop.f32.mrb[0].mxu0
      %v8795 = vpop.f32.mrb[0].mxu0
      %v8796 = vadd.f32 %v8720, %v8795
      %v8797 = vpop.f32.mrb[0].mxu0
      %8798 = vmatprep.mubr.bf16.mxu0 0
      %8799 = vmatmul.mubr.bf16.gmra.mrb[0].mxu0 %v5857
      %v8800 = vpop.f32.mrb[0].mxu0
      %v8801 = vadd.f32 %v8720, %v8800
      %v8802 = vpop.f32.mrb[0].mxu0
      %v8803 = vpop.f32.mrb[0].mxu0
      %v8804 = vadd.f32 %v8720, %v8803
      %v8805 = vpop.f32.mrb[0].mxu0
      %8806 = vmatprep.mubr.bf16.mxu0 0
      %8807 = vmatmul.mubr.bf16.gmra.mrb[0].mxu0 %v5860
      %v8808 = vpop.f32.mrb[0].mxu0
      %v8809 = vadd.f32 %v8720, %v8808
      %v8810 = vpop.f32.mrb[0].mxu0
      %v8811 = vpop.f32.mrb[0].mxu0
      %v8812 = vadd.f32 %v8720, %v8811
      %v8813 = vpop.f32.mrb[0].mxu0
      %8814 = vmatprep.mubr.bf16.mxu0 0
      %8815 = vmatmul.mubr.bf16.gmra.mrb[0].mxu0 %v5863
      %v8816 = vpop.f32.mrb[0].mxu0
      %v8817 = vadd.f32 %v8720, %v8816
      %v8818 = vpop.f32.mrb[0].mxu0
      %v8819 = vpop.f32.mrb[0].mxu0
      %v8820 = vadd.f32 %v8720, %v8819
      %v8821 = vpop.f32.mrb[0].mxu0
      %8822 = vmatprep.mubr.bf16.mxu0 0
      %8823 = vmatmul.mubr.bf16.gmra.mrb[0].mxu0 %v5866
      %v8824 = vpop.f32.mrb[0].mxu0
      %v8825 = vadd.f32 %v8720, %v8824
      %v8826 = vpop.f32.mrb[0].mxu0
      %v8827 = vpop.f32.mrb[0].mxu0
      %v8828 = vadd.f32 %v8720, %v8827
      %v8829 = vpop.f32.mrb[0].mxu0
      %8830 = vdwg.mxu0
      %s8831 = scalar_lea.vmem %s6, 112
      %v8832 = vld [vmem:[%s8831] sm:$0xf]
      %v8833 = vld [vmem:[%s8831 + $0x4] sm:$0xf]
      %v8834 = vld [vmem:[%s8831 + $0x8] sm:$0xf]
      %v8835 = vld [vmem:[%s8831 + $0xc] sm:$0xf]
      %s8836 = scalar_lea.vmem %s7, 7
      %v8837 = vld [vmem:[%s8836] sm:$0x1]
      %v8839 = vlaneseq
      %v8840 = vshrl.u32 %v8839, 7
      %v8841 = vsub.s32 0, %v8840
      %v8842 = vrot.slane %v8837, %v8841
      %v8848 = vunpack.c.l.b16 %v8832
      %v8849 = vunpack.c.l.b16 %v8833
      %v8850 = vunpack.c.l.b16 %v8834
      %v8851 = vunpack.c.l.b16 %v8835
      %v8852 = vpack.c.b16 %v8849, %v8848
      %v8853 = vpack.c.b16 %v8851, %v8850
      %8856 = vmatprep.subr.bf16.mxu0 0
      %8857 = vmatpush1.bf16.msra.mxu0 %v8852
      %8858 = vmatprep.subr.bf16.mxu0 0
      %8859 = vmatpush1.bf16.msra.mxu0 %v8853
      %8860 = vmatprep.subr.bf16.mxu0 0
      %8861 = vmatpush1.bf16.msra.mxu0 0
      %8862 = vmatprep.subr.bf16.mxu0 0
      %8863 = vmatpush1.bf16.msra.mxu0 0
      %8864 = vmatprep.subr.bf16.mxu0 0
      %8865 = vmatpush1.bf16.msra.mxu0 0
      %8866 = vmatprep.subr.bf16.mxu0 0
      %8867 = vmatpush1.bf16.msra.mxu0 0
      %8868 = vmatprep.subr.bf16.mxu0 0
      %8869 = vmatpush1.bf16.msra.mxu0 0
      %8870 = vmatprep.subr.bf16.mxu0 0
      %8871 = vmatpush1.bf16.msra.mxu0 0
      %8872 = vmatprep.subr.bf16.mxu0 0
      %8873 = vmatpush1.bf16.msra.mxu0 0
      %8874 = vmatprep.subr.bf16.mxu0 0
      %8875 = vmatpush1.bf16.msra.mxu0 0
      %8876 = vmatprep.subr.bf16.mxu0 0
      %8877 = vmatpush1.bf16.msra.mxu0 0
      %8878 = vmatprep.subr.bf16.mxu0 0
      %8879 = vmatpush1.bf16.msra.mxu0 0
      %8880 = vmatprep.subr.bf16.mxu0 0
      %8881 = vmatpush1.bf16.msra.mxu0 0
      %8882 = vmatprep.subr.bf16.mxu0 0
      %8883 = vmatpush1.bf16.msra.mxu0 0
      %8884 = vmatprep.subr.bf16.mxu0 0
      %8885 = vmatpush1.bf16.msra.mxu0 0
      %8886 = vmatprep.subr.bf16.mxu0 0
      %8887 = vmatpush1.bf16.msra.mxu0 0
      %8888 = vmatprep.mubr.bf16.mxu0 0
      %8889 = vmatmul.mubr.bf16.gmra.mrb[0].mxu0 %v5845
      %v8890 = vpop.f32.mrb[0].mxu0
      %v8891 = vadd.f32 %v8842, %v8890
      %v8892 = vpop.f32.mrb[0].mxu0
      %v8893 = vpop.f32.mrb[0].mxu0
      %v8894 = vadd.f32 %v8842, %v8893
      %v8895 = vpop.f32.mrb[0].mxu0
      %8896 = vmatprep.mubr.bf16.mxu0 0
      %8897 = vmatmul.mubr.bf16.gmra.mrb[0].mxu0 %v5848
      %v8898 = vpop.f32.mrb[0].mxu0
      %v8899 = vadd.f32 %v8842, %v8898
      %v8900 = vpop.f32.mrb[0].mxu0
      %v8901 = vpop.f32.mrb[0].mxu0
      %v8902 = vadd.f32 %v8842, %v8901
      %v8903 = vpop.f32.mrb[0].mxu0
      %8904 = vmatprep.mubr.bf16.mxu0 0
      %8905 = vmatmul.mubr.bf16.gmra.mrb[0].mxu0 %v5851
      %v8906 = vpop.f32.mrb[0].mxu0
      %v8907 = vadd.f32 %v8842, %v8906
      %v8908 = vpop.f32.mrb[0].mxu0
      %v8909 = vpop.f32.mrb[0].mxu0
      %v8910 = vadd.f32 %v8842, %v8909
      %v8911 = vpop.f32.mrb[0].mxu0
      %8912 = vmatprep.mubr.bf16.mxu0 0
      %8913 = vmatmul.mubr.bf16.gmra.mrb[0].mxu0 %v5854
      %v8914 = vpop.f32.mrb[0].mxu0
      %v8915 = vadd.f32 %v8842, %v8914
      %v8916 = vpop.f32.mrb[0].mxu0
      %v8917 = vpop.f32.mrb[0].mxu0
      %v8918 = vadd.f32 %v8842, %v8917
      %v8919 = vpop.f32.mrb[0].mxu0
      %8920 = vmatprep.mubr.bf16.mxu0 0
      %8921 = vmatmul.mubr.bf16.gmra.mrb[0].mxu0 %v5857
      %v8922 = vpop.f32.mrb[0].mxu0
      %v8923 = vadd.f32 %v8842, %v8922
      %v8924 = vpop.f32.mrb[0].mxu0
      %v8925 = vpop.f32.mrb[0].mxu0
      %v8926 = vadd.f32 %v8842, %v8925
      %v8927 = vpop.f32.mrb[0].mxu0
      %8928 = vmatprep.mubr.bf16.mxu0 0
      %8929 = vmatmul.mubr.bf16.gmra.mrb[0].mxu0 %v5860
      %v8930 = vpop.f32.mrb[0].mxu0
      %v8931 = vadd.f32 %v8842, %v8930
      %v8932 = vpop.f32.mrb[0].mxu0
      %v8933 = vpop.f32.mrb[0].mxu0
      %v8934 = vadd.f32 %v8842, %v8933
      %v8935 = vpop.f32.mrb[0].mxu0
      %8936 = vmatprep.mubr.bf16.mxu0 0
      %8937 = vmatmul.mubr.bf16.gmra.mrb[0].mxu0 %v5863
      %v8938 = vpop.f32.mrb[0].mxu0
      %v8939 = vadd.f32 %v8842, %v8938
      %v8940 = vpop.f32.mrb[0].mxu0
      %v8941 = vpop.f32.mrb[0].mxu0
      %v8942 = vadd.f32 %v8842, %v8941
      %v8943 = vpop.f32.mrb[0].mxu0
      %8944 = vmatprep.mubr.bf16.mxu0 0
      %8945 = vmatmul.mubr.bf16.gmra.mrb[0].mxu0 %v5866
      %v8946 = vpop.f32.mrb[0].mxu0
      %v8947 = vadd.f32 %v8842, %v8946
      %v8948 = vpop.f32.mrb[0].mxu0
      %v8949 = vpop.f32.mrb[0].mxu0
      %v8950 = vadd.f32 %v8842, %v8949
      %v8951 = vpop.f32.mrb[0].mxu0
      %8952 = vdwg.mxu0
      %s8953 = scalar_lea.vmem %s8, 112
      %v8954 = vld [vmem:[%s8953] sm:$0xf]
      %v8955 = vld [vmem:[%s8953 + $0x4] sm:$0xf]
      %v8956 = vld [vmem:[%s8953 + $0x8] sm:$0xf]
      %v8957 = vld [vmem:[%s8953 + $0xc] sm:$0xf]
      %s8958 = scalar_lea.vmem %s9, 7
      %v8959 = vld [vmem:[%s8958] sm:$0x1]
      %v8961 = vlaneseq
      %v8962 = vshrl.u32 %v8961, 7
      %v8963 = vsub.s32 0, %v8962
      %v8964 = vrot.slane %v8959, %v8963
      %v8970 = vunpack.c.l.b16 %v8954
      %v8971 = vunpack.c.l.b16 %v8955
      %v8972 = vunpack.c.l.b16 %v8956
      %v8973 = vunpack.c.l.b16 %v8957
      %v8974 = vpack.c.b16 %v8971, %v8970
      %v8975 = vpack.c.b16 %v8973, %v8972
      %8978 = vmatprep.subr.bf16.mxu0 0
      %8979 = vmatpush1.bf16.msra.mxu0 %v8974
      %8980 = vmatprep.subr.bf16.mxu0 0
      %8981 = vmatpush1.bf16.msra.mxu0 %v8975
      %8982 = vmatprep.subr.bf16.mxu0 0
      %8983 = vmatpush1.bf16.msra.mxu0 0
      %8984 = vmatprep.subr.bf16.mxu0 0
      %8985 = vmatpush1.bf16.msra.mxu0 0
      %8986 = vmatprep.subr.bf16.mxu0 0
      %8987 = vmatpush1.bf16.msra.mxu0 0
      %8988 = vmatprep.subr.bf16.mxu0 0
      %8989 = vmatpush1.bf16.msra.mxu0 0
      %8990 = vmatprep.subr.bf16.mxu0 0
      %8991 = vmatpush1.bf16.msra.mxu0 0
      %8992 = vmatprep.subr.bf16.mxu0 0
      %8993 = vmatpush1.bf16.msra.mxu0 0
      %8994 = vmatprep.subr.bf16.mxu0 0
      %8995 = vmatpush1.bf16.msra.mxu0 0
      %8996 = vmatprep.subr.bf16.mxu0 0
      %8997 = vmatpush1.bf16.msra.mxu0 0
      %8998 = vmatprep.subr.bf16.mxu0 0
      %8999 = vmatpush1.bf16.msra.mxu0 0
      %9000 = vmatprep.subr.bf16.mxu0 0
      %9001 = vmatpush1.bf16.msra.mxu0 0
      %9002 = vmatprep.subr.bf16.mxu0 0
      %9003 = vmatpush1.bf16.msra.mxu0 0
      %9004 = vmatprep.subr.bf16.mxu0 0
      %9005 = vmatpush1.bf16.msra.mxu0 0
      %9006 = vmatprep.subr.bf16.mxu0 0
      %9007 = vmatpush1.bf16.msra.mxu0 0
      %9008 = vmatprep.subr.bf16.mxu0 0
      %9009 = vmatpush1.bf16.msra.mxu0 0
      %9010 = vmatprep.mubr.bf16.mxu0 0
      %9011 = vmatmul.mubr.bf16.gmra.mrb[0].mxu0 %v5845
      %v9012 = vpop.f32.mrb[0].mxu0
      %v9013 = vadd.f32 %v8964, %v9012
      %v9014 = vpop.f32.mrb[0].mxu0
      %v9015 = vpop.f32.mrb[0].mxu0
      %v9016 = vadd.f32 %v8964, %v9015
      %v9017 = vpop.f32.mrb[0].mxu0
      %9018 = vmatprep.mubr.bf16.mxu0 0
      %9019 = vmatmul.mubr.bf16.gmra.mrb[0].mxu0 %v5848
      %v9020 = vpop.f32.mrb[0].mxu0
      %v9021 = vadd.f32 %v8964, %v9020
      %v9022 = vpop.f32.mrb[0].mxu0
      %v9023 = vpop.f32.mrb[0].mxu0
      %v9024 = vadd.f32 %v8964, %v9023
      %v9025 = vpop.f32.mrb[0].mxu0
      %9026 = vmatprep.mubr.bf16.mxu0 0
      %9027 = vmatmul.mubr.bf16.gmra.mrb[0].mxu0 %v5851
      %v9028 = vpop.f32.mrb[0].mxu0
      %v9029 = vadd.f32 %v8964, %v9028
      %v9030 = vpop.f32.mrb[0].mxu0
      %v9031 = vpop.f32.mrb[0].mxu0
      %v9032 = vadd.f32 %v8964, %v9031
      %v9033 = vpop.f32.mrb[0].mxu0
      %9034 = vmatprep.mubr.bf16.mxu0 0
      %9035 = vmatmul.mubr.bf16.gmra.mrb[0].mxu0 %v5854
      %v9036 = vpop.f32.mrb[0].mxu0
      %v9037 = vadd.f32 %v8964, %v9036
      %v9038 = vpop.f32.mrb[0].mxu0
      %v9039 = vpop.f32.mrb[0].mxu0
      %v9040 = vadd.f32 %v8964, %v9039
      %v9041 = vpop.f32.mrb[0].mxu0
      %9042 = vmatprep.mubr.bf16.mxu0 0
      %9043 = vmatmul.mubr.bf16.gmra.mrb[0].mxu0 %v5857
      %v9044 = vpop.f32.mrb[0].mxu0
      %v9045 = vadd.f32 %v8964, %v9044
      %v9046 = vpop.f32.mrb[0].mxu0
      %v9047 = vpop.f32.mrb[0].mxu0
      %v9048 = vadd.f32 %v8964, %v9047
      %v9049 = vpop.f32.mrb[0].mxu0
      %9050 = vmatprep.mubr.bf16.mxu0 0
      %9051 = vmatmul.mubr.bf16.gmra.mrb[0].mxu0 %v5860
      %v9052 = vpop.f32.mrb[0].mxu0
      %v9053 = vadd.f32 %v8964, %v9052
      %v9054 = vpop.f32.mrb[0].mxu0
      %v9055 = vpop.f32.mrb[0].mxu0
      %v9056 = vadd.f32 %v8964, %v9055
      %v9057 = vpop.f32.mrb[0].mxu0
      %9058 = vmatprep.mubr.bf16.mxu0 0
      %9059 = vmatmul.mubr.bf16.gmra.mrb[0].mxu0 %v5863
      %v9060 = vpop.f32.mrb[0].mxu0
      %v9061 = vadd.f32 %v8964, %v9060
      %v9062 = vpop.f32.mrb[0].mxu0
      %v9063 = vpop.f32.mrb[0].mxu0
      %v9064 = vadd.f32 %v8964, %v9063
      %v9065 = vpop.f32.mrb[0].mxu0
      %9066 = vmatprep.mubr.bf16.mxu0 0
      %9067 = vmatmul.mubr.bf16.gmra.mrb[0].mxu0 %v5866
      %v9068 = vpop.f32.mrb[0].mxu0
      %v9069 = vadd.f32 %v8964, %v9068
      %v9070 = vpop.f32.mrb[0].mxu0
      %v9071 = vpop.f32.mrb[0].mxu0
      %v9072 = vadd.f32 %v8964, %v9071
      %v9073 = vpop.f32.mrb[0].mxu0
      %9074 = vdwg.mxu0
      %v9075 = vpack.c.bf16 %v8772, %v8769
      %v9076 = vpack.c.bf16 %v8780, %v8777
      %v9077 = vpack.c.bf16 %v8788, %v8785
      %v9078 = vpack.c.bf16 %v8796, %v8793
      %v9079 = vpack.c.bf16 %v8804, %v8801
      %v9080 = vpack.c.bf16 %v8812, %v8809
      %v9081 = vpack.c.bf16 %v8820, %v8817
      %v9082 = vpack.c.bf16 %v8828, %v8825
      %v9083 = vpack.c.bf16 %v8894, %v8891
      %v9084 = vpack.c.bf16 %v8902, %v8899
      %v9085 = vpack.c.bf16 %v8910, %v8907
      %v9086 = vpack.c.bf16 %v8918, %v8915
      %v9087 = vpack.c.bf16 %v8926, %v8923
      %v9088 = vpack.c.bf16 %v8934, %v8931
      %v9089 = vpack.c.bf16 %v8942, %v8939
      %v9090 = vpack.c.bf16 %v8950, %v8947
      %v9092 = vsel %vm1332, %v9075, 0
      %v9095 = vsel %vm1332, %v9076, 0
      %v9098 = vsel %vm1332, %v9077, 0
      %v9101 = vsel %vm1332, %v9078, 0
      %v9104 = vsel %vm1332, %v9079, 0
      %v9107 = vsel %vm1332, %v9080, 0
      %v9110 = vsel %vm1332, %v9081, 0
      %v9113 = vsel %vm1332, %v9082, 0
      %v9116 = vsel %vm1332, %v9083, 0
      %v9119 = vsel %vm1332, %v9084, 0
      %v9122 = vsel %vm1332, %v9085, 0
      %v9125 = vsel %vm1332, %v9086, 0
      %v9128 = vsel %vm1332, %v9087, 0
      %v9131 = vsel %vm1332, %v9088, 0
      %v9134 = vsel %vm1332, %v9089, 0
      %v9137 = vsel %vm1332, %v9090, 0
      %9139 = vmatprep.subr.bf16.mxu0 0
      %9140 = vmatpush1.bf16.xpose.msra.mxu0 %v9116
      %9141 = vmatprep.subr.bf16.mxu0 0
      %9142 = vmatpush1.bf16.xpose.msra.mxu0 %v9119
      %9143 = vmatprep.subr.bf16.mxu0 0
      %9144 = vmatpush1.bf16.xpose.msra.mxu0 %v9122
      %9145 = vmatprep.subr.bf16.mxu0 0
      %9146 = vmatpush1.bf16.xpose.msra.mxu0 %v9125
      %9147 = vmatprep.subr.bf16.mxu0 0
      %9148 = vmatpush1.bf16.xpose.msra.mxu0 %v9128
      %9149 = vmatprep.subr.bf16.mxu0 0
      %9150 = vmatpush1.bf16.xpose.msra.mxu0 %v9131
      %9151 = vmatprep.subr.bf16.mxu0 0
      %9152 = vmatpush1.bf16.xpose.msra.mxu0 %v9134
      %9153 = vmatprep.subr.bf16.mxu0 0
      %9154 = vmatpush1.bf16.xpose.msra.mxu0 %v9137
      %9155 = vmatprep.subr.bf16.mxu0 0
      %9156 = vmatpush1.bf16.xpose.msra.mxu0 0
      %9157 = vmatprep.subr.bf16.mxu0 0
      %9158 = vmatpush1.bf16.xpose.msra.mxu0 0
      %9159 = vmatprep.subr.bf16.mxu0 0
      %9160 = vmatpush1.bf16.xpose.msra.mxu0 0
      %9161 = vmatprep.subr.bf16.mxu0 0
      %9162 = vmatpush1.bf16.xpose.msra.mxu0 0
      %9163 = vmatprep.subr.bf16.mxu0 0
      %9164 = vmatpush1.bf16.xpose.msra.mxu0 0
      %9165 = vmatprep.subr.bf16.mxu0 0
      %9166 = vmatpush1.bf16.xpose.msra.mxu0 0
      %9167 = vmatprep.subr.bf16.mxu0 0
      %9168 = vmatpush1.bf16.xpose.msra.mxu0 0
      %9169 = vmatprep.subr.bf16.mxu0 0
      %9170 = vmatpush1.bf16.xpose.msra.mxu0 0
      %9171 = vmatprep.mubr.bf16.mxu0 0
      %9172 = vmatmul.mubr.bf16.gmra.mrb[0].mxu0 %v9092
      %v9173 = vpop.f32.mrb[0].mxu0
      %v9174 = vadd.f32 0.0, %v9173
      %v9175 = vpop.f32.mrb[0].mxu0
      %v9176 = vpop.f32.mrb[0].mxu0
      %v9177 = vadd.f32 0.0, %v9176
      %v9178 = vpop.f32.mrb[0].mxu0
      %9179 = vmatprep.mubr.bf16.mxu0 0
      %9180 = vmatmul.mubr.bf16.gmra.mrb[0].mxu0 %v9095
      %v9181 = vpop.f32.mrb[0].mxu0
      %v9182 = vadd.f32 0.0, %v9181
      %v9183 = vpop.f32.mrb[0].mxu0
      %v9184 = vpop.f32.mrb[0].mxu0
      %v9185 = vadd.f32 0.0, %v9184
      %v9186 = vpop.f32.mrb[0].mxu0
      %9187 = vmatprep.mubr.bf16.mxu0 0
      %9188 = vmatmul.mubr.bf16.gmra.mrb[0].mxu0 %v9098
      %v9189 = vpop.f32.mrb[0].mxu0
      %v9190 = vadd.f32 0.0, %v9189
      %v9191 = vpop.f32.mrb[0].mxu0
      %v9192 = vpop.f32.mrb[0].mxu0
      %v9193 = vadd.f32 0.0, %v9192
      %v9194 = vpop.f32.mrb[0].mxu0
      %9195 = vmatprep.mubr.bf16.mxu0 0
      %9196 = vmatmul.mubr.bf16.gmra.mrb[0].mxu0 %v9101
      %v9197 = vpop.f32.mrb[0].mxu0
      %v9198 = vadd.f32 0.0, %v9197
      %v9199 = vpop.f32.mrb[0].mxu0
      %v9200 = vpop.f32.mrb[0].mxu0
      %v9201 = vadd.f32 0.0, %v9200
      %v9202 = vpop.f32.mrb[0].mxu0
      %9203 = vmatprep.mubr.bf16.mxu0 0
      %9204 = vmatmul.mubr.bf16.gmra.mrb[0].mxu0 %v9104
      %v9205 = vpop.f32.mrb[0].mxu0
      %v9206 = vadd.f32 0.0, %v9205
      %v9207 = vpop.f32.mrb[0].mxu0
      %v9208 = vpop.f32.mrb[0].mxu0
      %v9209 = vadd.f32 0.0, %v9208
      %v9210 = vpop.f32.mrb[0].mxu0
      %9211 = vmatprep.mubr.bf16.mxu0 0
      %9212 = vmatmul.mubr.bf16.gmra.mrb[0].mxu0 %v9107
      %v9213 = vpop.f32.mrb[0].mxu0
      %v9214 = vadd.f32 0.0, %v9213
      %v9215 = vpop.f32.mrb[0].mxu0
      %v9216 = vpop.f32.mrb[0].mxu0
      %v9217 = vadd.f32 0.0, %v9216
      %v9218 = vpop.f32.mrb[0].mxu0
      %9219 = vmatprep.mubr.bf16.mxu0 0
      %9220 = vmatmul.mubr.bf16.gmra.mrb[0].mxu0 %v9110
      %v9221 = vpop.f32.mrb[0].mxu0
      %v9222 = vadd.f32 0.0, %v9221
      %v9223 = vpop.f32.mrb[0].mxu0
      %v9224 = vpop.f32.mrb[0].mxu0
      %v9225 = vadd.f32 0.0, %v9224
      %v9226 = vpop.f32.mrb[0].mxu0
      %9227 = vmatprep.mubr.bf16.mxu0 0
      %9228 = vmatmul.mubr.bf16.gmra.mrb[0].mxu0 %v9113
      %v9229 = vpop.f32.mrb[0].mxu0
      %v9230 = vadd.f32 0.0, %v9229
      %v9231 = vpop.f32.mrb[0].mxu0
      %v9232 = vpop.f32.mrb[0].mxu0
      %v9233 = vadd.f32 0.0, %v9232
      %v9234 = vpop.f32.mrb[0].mxu0
      %9235 = vdwg.mxu0
      %v9236 = vmul.f32 %v9174, 0.35355338
      %v9237 = vmul.f32 %v9177, 0.35355338
      %v9238 = vmul.f32 %v9182, 0.35355338
      %v9239 = vmul.f32 %v9185, 0.35355338
      %v9240 = vmul.f32 %v9190, 0.35355338
      %v9241 = vmul.f32 %v9193, 0.35355338
      %v9242 = vmul.f32 %v9198, 0.35355338
      %v9243 = vmul.f32 %v9201, 0.35355338
      %v9244 = vmul.f32 %v9206, 0.35355338
      %v9245 = vmul.f32 %v9209, 0.35355338
      %v9246 = vmul.f32 %v9214, 0.35355338
      %v9247 = vmul.f32 %v9217, 0.35355338
      %v9248 = vmul.f32 %v9222, 0.35355338
      %v9249 = vmul.f32 %v9225, 0.35355338
      %v9250 = vmul.f32 %v9230, 0.35355338
      %v9251 = vmul.f32 %v9233, 0.35355338
      %v9252 = vadd.f32 %v9236, %v922
      %v9253 = vadd.f32 %v9237, %v922
      %v9254 = vadd.f32 %v9238, %v922
      %v9255 = vadd.f32 %v9239, %v922
      %v9256 = vadd.f32 %v9240, %v922
      %v9257 = vadd.f32 %v9241, %v922
      %v9258 = vadd.f32 %v9242, %v922
      %v9259 = vadd.f32 %v9243, %v922
      %v9260 = vadd.f32 %v9244, %v922
      %v9261 = vadd.f32 %v9245, %v922
      %v9262 = vadd.f32 %v9246, %v922
      %v9263 = vadd.f32 %v9247, %v922
      %v9264 = vadd.f32 %v9248, %v922
      %v9265 = vadd.f32 %v9249, %v922
      %v9266 = vadd.f32 %v9250, %v922
      %v9267 = vadd.f32 %v9251, %v922
      %9268 = vmax.xlane.f32.xlu0 %v9252
      %v9269 = vpop.xlane.xlu0 %9268
      %9270 = vmax.xlane.f32.xlu0 %v9253
      %v9271 = vpop.xlane.xlu0 %9270
      %9272 = vmax.xlane.f32.xlu0 %v9254
      %v9273 = vpop.xlane.xlu0 %9272
      %9274 = vmax.xlane.f32.xlu0 %v9255
      %v9275 = vpop.xlane.xlu0 %9274
      %9276 = vmax.xlane.f32.xlu0 %v9256
      %v9277 = vpop.xlane.xlu0 %9276
      %9278 = vmax.xlane.f32.xlu0 %v9257
      %v9279 = vpop.xlane.xlu0 %9278
      %9280 = vmax.xlane.f32.xlu0 %v9258
      %v9281 = vpop.xlane.xlu0 %9280
      %9282 = vmax.xlane.f32.xlu0 %v9259
      %v9283 = vpop.xlane.xlu0 %9282
      %9284 = vmax.xlane.f32.xlu0 %v9260
      %v9285 = vpop.xlane.xlu0 %9284
      %9286 = vmax.xlane.f32.xlu0 %v9261
      %v9287 = vpop.xlane.xlu0 %9286
      %9288 = vmax.xlane.f32.xlu0 %v9262
      %v9289 = vpop.xlane.xlu0 %9288
      %9290 = vmax.xlane.f32.xlu0 %v9263
      %v9291 = vpop.xlane.xlu0 %9290
      %9292 = vmax.xlane.f32.xlu0 %v9264
      %v9293 = vpop.xlane.xlu0 %9292
      %9294 = vmax.xlane.f32.xlu0 %v9265
      %v9295 = vpop.xlane.xlu0 %9294
      %9296 = vmax.xlane.f32.xlu0 %v9266
      %v9297 = vpop.xlane.xlu0 %9296
      %9298 = vmax.xlane.f32.xlu0 %v9267
      %v9299 = vpop.xlane.xlu0 %9298
      %v9300 = vsub.f32 %v9252, %v9269
      %v9301 = vsub.f32 %v9253, %v9271
      %v9302 = vsub.f32 %v9254, %v9273
      %v9303 = vsub.f32 %v9255, %v9275
      %v9304 = vsub.f32 %v9256, %v9277
      %v9305 = vsub.f32 %v9257, %v9279
      %v9306 = vsub.f32 %v9258, %v9281
      %v9307 = vsub.f32 %v9259, %v9283
      %v9308 = vsub.f32 %v9260, %v9285
      %v9309 = vsub.f32 %v9261, %v9287
      %v9310 = vsub.f32 %v9262, %v9289
      %v9311 = vsub.f32 %v9263, %v9291
      %v9312 = vsub.f32 %v9264, %v9293
      %v9313 = vsub.f32 %v9265, %v9295
      %v9314 = vsub.f32 %v9266, %v9297
      %v9315 = vsub.f32 %v9267, %v9299
      %v9316 = vmul.f32 %v9300, 1.442695
      %v9317 = vpow.pop %v9316
      %v9318 = vmul.f32 %v9301, 1.442695
      %v9319 = vpow.pop %v9318
      %v9320 = vmul.f32 %v9302, 1.442695
      %v9321 = vpow.pop %v9320
      %v9322 = vmul.f32 %v9303, 1.442695
      %v9323 = vpow.pop %v9322
      %v9324 = vmul.f32 %v9304, 1.442695
      %v9325 = vpow.pop %v9324
      %v9326 = vmul.f32 %v9305, 1.442695
      %v9327 = vpow.pop %v9326
      %v9328 = vmul.f32 %v9306, 1.442695
      %v9329 = vpow.pop %v9328
      %v9330 = vmul.f32 %v9307, 1.442695
      %v9331 = vpow.pop %v9330
      %v9332 = vmul.f32 %v9308, 1.442695
      %v9333 = vpow.pop %v9332
      %v9334 = vmul.f32 %v9309, 1.442695
      %v9335 = vpow.pop %v9334
      %v9336 = vmul.f32 %v9310, 1.442695
      %v9337 = vpow.pop %v9336
      %v9338 = vmul.f32 %v9311, 1.442695
      %v9339 = vpow.pop %v9338
      %v9340 = vmul.f32 %v9312, 1.442695
      %v9341 = vpow.pop %v9340
      %v9342 = vmul.f32 %v9313, 1.442695
      %v9343 = vpow.pop %v9342
      %v9344 = vmul.f32 %v9314, 1.442695
      %v9345 = vpow.pop %v9344
      %v9346 = vmul.f32 %v9315, 1.442695
      %v9347 = vpow.pop %v9346
      %9348 = vadd.xlane.f32.xlu0 %v9317
      %v9349 = vpop.xlane.xlu0 %9348
      %9350 = vadd.xlane.f32.xlu0 %v9319
      %v9351 = vpop.xlane.xlu0 %9350
      %9352 = vadd.xlane.f32.xlu0 %v9321
      %v9353 = vpop.xlane.xlu0 %9352
      %9354 = vadd.xlane.f32.xlu0 %v9323
      %v9355 = vpop.xlane.xlu0 %9354
      %9356 = vadd.xlane.f32.xlu0 %v9325
      %v9357 = vpop.xlane.xlu0 %9356
      %9358 = vadd.xlane.f32.xlu0 %v9327
      %v9359 = vpop.xlane.xlu0 %9358
      %9360 = vadd.xlane.f32.xlu0 %v9329
      %v9361 = vpop.xlane.xlu0 %9360
      %9362 = vadd.xlane.f32.xlu0 %v9331
      %v9363 = vpop.xlane.xlu0 %9362
      %9364 = vadd.xlane.f32.xlu0 %v9333
      %v9365 = vpop.xlane.xlu0 %9364
      %9366 = vadd.xlane.f32.xlu0 %v9335
      %v9367 = vpop.xlane.xlu0 %9366
      %9368 = vadd.xlane.f32.xlu0 %v9337
      %v9369 = vpop.xlane.xlu0 %9368
      %9370 = vadd.xlane.f32.xlu0 %v9339
      %v9371 = vpop.xlane.xlu0 %9370
      %9372 = vadd.xlane.f32.xlu0 %v9341
      %v9373 = vpop.xlane.xlu0 %9372
      %9374 = vadd.xlane.f32.xlu0 %v9343
      %v9375 = vpop.xlane.xlu0 %9374
      %9376 = vadd.xlane.f32.xlu0 %v9345
      %v9377 = vpop.xlane.xlu0 %9376
      %9378 = vadd.xlane.f32.xlu0 %v9347
      %v9379 = vpop.xlane.xlu0 %9378
      %v9380 = vrcp.pop %v9349
      %v9381 = vrcp.pop %v9351
      %v9382 = vrcp.pop %v9353
      %v9383 = vrcp.pop %v9355
      %v9384 = vrcp.pop %v9357
      %v9385 = vrcp.pop %v9359
      %v9386 = vrcp.pop %v9361
      %v9387 = vrcp.pop %v9363
      %v9388 = vrcp.pop %v9365
      %v9389 = vrcp.pop %v9367
      %v9390 = vrcp.pop %v9369
      %v9391 = vrcp.pop %v9371
      %v9392 = vrcp.pop %v9373
      %v9393 = vrcp.pop %v9375
      %v9394 = vrcp.pop %v9377
      %v9395 = vrcp.pop %v9379
      %v9396 = vmul.f32 %v9317, %v9380
      %v9397 = vmul.f32 %v9319, %v9381
      %v9398 = vmul.f32 %v9321, %v9382
      %v9399 = vmul.f32 %v9323, %v9383
      %v9400 = vmul.f32 %v9325, %v9384
      %v9401 = vmul.f32 %v9327, %v9385
      %v9402 = vmul.f32 %v9329, %v9386
      %v9403 = vmul.f32 %v9331, %v9387
      %v9404 = vmul.f32 %v9333, %v9388
      %v9405 = vmul.f32 %v9335, %v9389
      %v9406 = vmul.f32 %v9337, %v9390
      %v9407 = vmul.f32 %v9339, %v9391
      %v9408 = vmul.f32 %v9341, %v9392
      %v9409 = vmul.f32 %v9343, %v9393
      %v9410 = vmul.f32 %v9345, %v9394
      %v9411 = vmul.f32 %v9347, %v9395
      %v9412 = vpack.c.bf16 %v9397, %v9396
      %v9413 = vpack.c.bf16 %v9399, %v9398
      %v9414 = vpack.c.bf16 %v9401, %v9400
      %v9415 = vpack.c.bf16 %v9403, %v9402
      %v9416 = vpack.c.bf16 %v9405, %v9404
      %v9417 = vpack.c.bf16 %v9407, %v9406
      %v9418 = vpack.c.bf16 %v9409, %v9408
      %v9419 = vpack.c.bf16 %v9411, %v9410
      %v9420 = vpack.c.bf16 %v9016, %v9013
      %v9421 = vpack.c.bf16 %v9024, %v9021
      %v9422 = vpack.c.bf16 %v9032, %v9029
      %v9423 = vpack.c.bf16 %v9040, %v9037
      %v9424 = vpack.c.bf16 %v9048, %v9045
      %v9425 = vpack.c.bf16 %v9056, %v9053
      %v9426 = vpack.c.bf16 %v9064, %v9061
      %v9427 = vpack.c.bf16 %v9072, %v9069
      %9428 = vmatprep.subr.bf16.mxu0 0
      %9429 = vmatpush1.bf16.msra.mxu0 %v9420
      %9430 = vmatprep.subr.bf16.mxu0 0
      %9431 = vmatpush1.bf16.msra.mxu0 %v9421
      %9432 = vmatprep.subr.bf16.mxu0 0
      %9433 = vmatpush1.bf16.msra.mxu0 %v9422
      %9434 = vmatprep.subr.bf16.mxu0 0
      %9435 = vmatpush1.bf16.msra.mxu0 %v9423
      %9436 = vmatprep.subr.bf16.mxu0 0
      %9437 = vmatpush1.bf16.msra.mxu0 %v9424
      %9438 = vmatprep.subr.bf16.mxu0 0
      %9439 = vmatpush1.bf16.msra.mxu0 %v9425
      %9440 = vmatprep.subr.bf16.mxu0 0
      %9441 = vmatpush1.bf16.msra.mxu0 %v9426
      %9442 = vmatprep.subr.bf16.mxu0 0
      %9443 = vmatpush1.bf16.msra.mxu0 %v9427
      %9444 = vmatprep.subr.bf16.mxu0 0
      %9445 = vmatpush1.bf16.msra.mxu0 0
      %9446 = vmatprep.subr.bf16.mxu0 0
      %9447 = vmatpush1.bf16.msra.mxu0 0
      %9448 = vmatprep.subr.bf16.mxu0 0
      %9449 = vmatpush1.bf16.msra.mxu0 0
      %9450 = vmatprep.subr.bf16.mxu0 0
      %9451 = vmatpush1.bf16.msra.mxu0 0
      %9452 = vmatprep.subr.bf16.mxu0 0
      %9453 = vmatpush1.bf16.msra.mxu0 0
      %9454 = vmatprep.subr.bf16.mxu0 0
      %9455 = vmatpush1.bf16.msra.mxu0 0
      %9456 = vmatprep.subr.bf16.mxu0 0
      %9457 = vmatpush1.bf16.msra.mxu0 0
      %9458 = vmatprep.subr.bf16.mxu0 0
      %9459 = vmatpush1.bf16.msra.mxu0 0
      %9460 = vmatprep.mubr.bf16.mxu0 0
      %9461 = vmatmul.mubr.bf16.gmra.mrb[0].mxu0 %v9412
      %v9462 = vpop.f32.mrb[0].mxu0
      %v9463 = vadd.f32 0.0, %v9462
      %v9464 = vpop.f32.mrb[0].mxu0
      %v9465 = vpop.f32.mrb[0].mxu0
      %v9466 = vadd.f32 0.0, %v9465
      %v9467 = vpop.f32.mrb[0].mxu0
      %9468 = vmatprep.mubr.bf16.mxu0 0
      %9469 = vmatmul.mubr.bf16.gmra.mrb[0].mxu0 %v9413
      %v9470 = vpop.f32.mrb[0].mxu0
      %v9471 = vadd.f32 0.0, %v9470
      %v9472 = vpop.f32.mrb[0].mxu0
      %v9473 = vpop.f32.mrb[0].mxu0
      %v9474 = vadd.f32 0.0, %v9473
      %v9475 = vpop.f32.mrb[0].mxu0
      %9476 = vmatprep.mubr.bf16.mxu0 0
      %9477 = vmatmul.mubr.bf16.gmra.mrb[0].mxu0 %v9414
      %v9478 = vpop.f32.mrb[0].mxu0
      %v9479 = vadd.f32 0.0, %v9478
      %v9480 = vpop.f32.mrb[0].mxu0
      %v9481 = vpop.f32.mrb[0].mxu0
      %v9482 = vadd.f32 0.0, %v9481
      %v9483 = vpop.f32.mrb[0].mxu0
      %9484 = vmatprep.mubr.bf16.mxu0 0
      %9485 = vmatmul.mubr.bf16.gmra.mrb[0].mxu0 %v9415
      %v9486 = vpop.f32.mrb[0].mxu0
      %v9487 = vadd.f32 0.0, %v9486
      %v9488 = vpop.f32.mrb[0].mxu0
      %v9489 = vpop.f32.mrb[0].mxu0
      %v9490 = vadd.f32 0.0, %v9489
      %v9491 = vpop.f32.mrb[0].mxu0
      %9492 = vmatprep.mubr.bf16.mxu0 0
      %9493 = vmatmul.mubr.bf16.gmra.mrb[0].mxu0 %v9416
      %v9494 = vpop.f32.mrb[0].mxu0
      %v9495 = vadd.f32 0.0, %v9494
      %v9496 = vpop.f32.mrb[0].mxu0
      %v9497 = vpop.f32.mrb[0].mxu0
      %v9498 = vadd.f32 0.0, %v9497
      %v9499 = vpop.f32.mrb[0].mxu0
      %9500 = vmatprep.mubr.bf16.mxu0 0
      %9501 = vmatmul.mubr.bf16.gmra.mrb[0].mxu0 %v9417
      %v9502 = vpop.f32.mrb[0].mxu0
      %v9503 = vadd.f32 0.0, %v9502
      %v9504 = vpop.f32.mrb[0].mxu0
      %v9505 = vpop.f32.mrb[0].mxu0
      %v9506 = vadd.f32 0.0, %v9505
      %v9507 = vpop.f32.mrb[0].mxu0
      %9508 = vmatprep.mubr.bf16.mxu0 0
      %9509 = vmatmul.mubr.bf16.gmra.mrb[0].mxu0 %v9418
      %v9510 = vpop.f32.mrb[0].mxu0
      %v9511 = vadd.f32 0.0, %v9510
      %v9512 = vpop.f32.mrb[0].mxu0
      %v9513 = vpop.f32.mrb[0].mxu0
      %v9514 = vadd.f32 0.0, %v9513
      %v9515 = vpop.f32.mrb[0].mxu0
      %9516 = vmatprep.mubr.bf16.mxu0 0
      %9517 = vmatmul.mubr.bf16.gmra.mrb[0].mxu0 %v9419
      %v9518 = vpop.f32.mrb[0].mxu0
      %v9519 = vadd.f32 0.0, %v9518
      %v9520 = vpop.f32.mrb[0].mxu0
      %v9521 = vpop.f32.mrb[0].mxu0
      %v9522 = vadd.f32 0.0, %v9521
      %v9523 = vpop.f32.mrb[0].mxu0
      %9524 = vdwg.mxu0
      %v9525 = vpack.c.bf16 %v9466, %v9463
      %v9526 = vpack.c.bf16 %v9474, %v9471
      %v9527 = vpack.c.bf16 %v9482, %v9479
      %v9528 = vpack.c.bf16 %v9490, %v9487
      %v9529 = vpack.c.bf16 %v9498, %v9495
      %v9530 = vpack.c.bf16 %v9506, %v9503
      %v9531 = vpack.c.bf16 %v9514, %v9511
      %v9532 = vpack.c.bf16 %v9522, %v9519
      %s9533 = scalar_lea.vmem %s10, 28
      %v9534 = vld [vmem:[%s9533] sm:$0xf]
      %v9536 = vsel %vm1332, %v9525, 0
      %v9539 = vsel %vm1332, %v9526, 0
      %v9542 = vsel %vm1332, %v9527, 0
      %v9545 = vsel %vm1332, %v9528, 0
      %v9548 = vsel %vm1332, %v9529, 0
      %v9551 = vsel %vm1332, %v9530, 0
      %v9554 = vsel %vm1332, %v9531, 0
      %v9557 = vsel %vm1332, %v9532, 0
      %v9560 = vsel %vm2626, %v9534, 0
      %9562 = vmatprep.subr.bf16.mxu0 0
      %9563 = vmatpush1.bf16.msra.mxu0 %v9560
      %9564 = vmatprep.subr.bf16.mxu0 0
      %9565 = vmatpush1.bf16.msra.mxu0 0
      %9566 = vmatprep.subr.bf16.mxu0 0
      %9567 = vmatpush1.bf16.msra.mxu0 0
      %9568 = vmatprep.subr.bf16.mxu0 0
      %9569 = vmatpush1.bf16.msra.mxu0 0
      %9570 = vmatprep.subr.bf16.mxu0 0
      %9571 = vmatpush1.bf16.msra.mxu0 0
      %9572 = vmatprep.subr.bf16.mxu0 0
      %9573 = vmatpush1.bf16.msra.mxu0 0
      %9574 = vmatprep.subr.bf16.mxu0 0
      %9575 = vmatpush1.bf16.msra.mxu0 0
      %9576 = vmatprep.subr.bf16.mxu0 0
      %9577 = vmatpush1.bf16.msra.mxu0 0
      %9578 = vmatprep.subr.bf16.mxu0 0
      %9579 = vmatpush1.bf16.msra.mxu0 0
      %9580 = vmatprep.subr.bf16.mxu0 0
      %9581 = vmatpush1.bf16.msra.mxu0 0
      %9582 = vmatprep.subr.bf16.mxu0 0
      %9583 = vmatpush1.bf16.msra.mxu0 0
      %9584 = vmatprep.subr.bf16.mxu0 0
      %9585 = vmatpush1.bf16.msra.mxu0 0
      %9586 = vmatprep.subr.bf16.mxu0 0
      %9587 = vmatpush1.bf16.msra.mxu0 0
      %9588 = vmatprep.subr.bf16.mxu0 0
      %9589 = vmatpush1.bf16.msra.mxu0 0
      %9590 = vmatprep.subr.bf16.mxu0 0
      %9591 = vmatpush1.bf16.msra.mxu0 0
      %9592 = vmatprep.subr.bf16.mxu0 0
      %9593 = vmatpush1.bf16.msra.mxu0 0
      %9594 = vmatprep.mubr.bf16.mxu0 0
      %9595 = vmatmul.mubr.bf16.gmra.mrb[0].mxu0 %v9536
      %v9596 = vpop.f32.mrb[0].mxu0
      %v9597 = vadd.f32 0.0, %v9596
      %v9598 = vpop.f32.mrb[0].mxu0
      %v9599 = vpop.f32.mrb[0].mxu0
      %v9600 = vadd.f32 0.0, %v9599
      %v9601 = vpop.f32.mrb[0].mxu0
      %9602 = vmatprep.mubr.bf16.mxu0 0
      %9603 = vmatmul.mubr.bf16.gmra.mrb[0].mxu0 %v9539
      %v9604 = vpop.f32.mrb[0].mxu0
      %v9605 = vadd.f32 0.0, %v9604
      %v9606 = vpop.f32.mrb[0].mxu0
      %v9607 = vpop.f32.mrb[0].mxu0
      %v9608 = vadd.f32 0.0, %v9607
      %v9609 = vpop.f32.mrb[0].mxu0
      %9610 = vmatprep.mubr.bf16.mxu0 0
      %9611 = vmatmul.mubr.bf16.gmra.mrb[0].mxu0 %v9542
      %v9612 = vpop.f32.mrb[0].mxu0
      %v9613 = vadd.f32 0.0, %v9612
      %v9614 = vpop.f32.mrb[0].mxu0
      %v9615 = vpop.f32.mrb[0].mxu0
      %v9616 = vadd.f32 0.0, %v9615
      %v9617 = vpop.f32.mrb[0].mxu0
      %9618 = vmatprep.mubr.bf16.mxu0 0
      %9619 = vmatmul.mubr.bf16.gmra.mrb[0].mxu0 %v9545
      %v9620 = vpop.f32.mrb[0].mxu0
      %v9621 = vadd.f32 0.0, %v9620
      %v9622 = vpop.f32.mrb[0].mxu0
      %v9623 = vpop.f32.mrb[0].mxu0
      %v9624 = vadd.f32 0.0, %v9623
      %v9625 = vpop.f32.mrb[0].mxu0
      %9626 = vmatprep.mubr.bf16.mxu0 0
      %9627 = vmatmul.mubr.bf16.gmra.mrb[0].mxu0 %v9548
      %v9628 = vpop.f32.mrb[0].mxu0
      %v9629 = vadd.f32 0.0, %v9628
      %v9630 = vpop.f32.mrb[0].mxu0
      %v9631 = vpop.f32.mrb[0].mxu0
      %v9632 = vadd.f32 0.0, %v9631
      %v9633 = vpop.f32.mrb[0].mxu0
      %9634 = vmatprep.mubr.bf16.mxu0 0
      %9635 = vmatmul.mubr.bf16.gmra.mrb[0].mxu0 %v9551
      %v9636 = vpop.f32.mrb[0].mxu0
      %v9637 = vadd.f32 0.0, %v9636
      %v9638 = vpop.f32.mrb[0].mxu0
      %v9639 = vpop.f32.mrb[0].mxu0
      %v9640 = vadd.f32 0.0, %v9639
      %v9641 = vpop.f32.mrb[0].mxu0
      %9642 = vmatprep.mubr.bf16.mxu0 0
      %9643 = vmatmul.mubr.bf16.gmra.mrb[0].mxu0 %v9554
      %v9644 = vpop.f32.mrb[0].mxu0
      %v9645 = vadd.f32 0.0, %v9644
      %v9646 = vpop.f32.mrb[0].mxu0
      %v9647 = vpop.f32.mrb[0].mxu0
      %v9648 = vadd.f32 0.0, %v9647
      %v9649 = vpop.f32.mrb[0].mxu0
      %9650 = vmatprep.mubr.bf16.mxu0 0
      %9651 = vmatmul.mubr.bf16.gmra.mrb[0].mxu0 %v9557
      %v9652 = vpop.f32.mrb[0].mxu0
      %v9653 = vadd.f32 0.0, %v9652
      %v9654 = vpop.f32.mrb[0].mxu0
      %v9655 = vpop.f32.mrb[0].mxu0
      %v9656 = vadd.f32 0.0, %v9655
      %v9657 = vpop.f32.mrb[0].mxu0
      %9658 = vdwg.mxu0
      %v9659 = vadd.f32 %v8693, %v9597
      %v9660 = vadd.f32 %v8694, %v9600
      %v9661 = vadd.f32 %v8695, %v9605
      %v9662 = vadd.f32 %v8696, %v9608
      %v9663 = vadd.f32 %v8697, %v9613
      %v9664 = vadd.f32 %v8698, %v9616
      %v9665 = vadd.f32 %v8699, %v9621
      %v9666 = vadd.f32 %v8700, %v9624
      %v9667 = vadd.f32 %v8701, %v9629
      %v9668 = vadd.f32 %v8702, %v9632
      %v9669 = vadd.f32 %v8703, %v9637
      %v9670 = vadd.f32 %v8704, %v9640
      %v9671 = vadd.f32 %v8705, %v9645
      %v9672 = vadd.f32 %v8706, %v9648
      %v9673 = vadd.f32 %v8707, %v9653
      %v9674 = vadd.f32 %v8708, %v9656
      %s9675 = scalar_lea.vmem %s11, 1
      %v9676 = vld [vmem:[%s9675] sm:$0x1]
      %v9678 = vlaneseq
      %v9679 = vshrl.u32 %v9678, 7
      %v9680 = vsub.s32 0, %v9679
      %v9681 = vrot.slane %v9676, %v9680
      %v9683 = vadd.f32 %v9659, %v9681
      %v9684 = vadd.f32 %v9660, %v9681
      %v9685 = vadd.f32 %v9661, %v9681
      %v9686 = vadd.f32 %v9662, %v9681
      %v9687 = vadd.f32 %v9663, %v9681
      %v9688 = vadd.f32 %v9664, %v9681
      %v9689 = vadd.f32 %v9665, %v9681
      %v9690 = vadd.f32 %v9666, %v9681
      %v9691 = vadd.f32 %v9667, %v9681
      %v9692 = vadd.f32 %v9668, %v9681
      %v9693 = vadd.f32 %v9669, %v9681
      %v9694 = vadd.f32 %v9670, %v9681
      %v9695 = vadd.f32 %v9671, %v9681
      %v9696 = vadd.f32 %v9672, %v9681
      %v9697 = vadd.f32 %v9673, %v9681
      %v9698 = vadd.f32 %v9674, %v9681
      %v9699 = vadd.f32 %v5795, %v9683
      %v9700 = vadd.f32 %v5796, %v9684
      %v9701 = vadd.f32 %v5797, %v9685
      %v9702 = vadd.f32 %v5798, %v9686
      %v9703 = vadd.f32 %v5799, %v9687
      %v9704 = vadd.f32 %v5800, %v9688
      %v9705 = vadd.f32 %v5801, %v9689
      %v9706 = vadd.f32 %v5802, %v9690
      %v9707 = vadd.f32 %v5803, %v9691
      %v9708 = vadd.f32 %v5804, %v9692
      %v9709 = vadd.f32 %v5805, %v9693
      %v9710 = vadd.f32 %v5806, %v9694
      %v9711 = vadd.f32 %v5807, %v9695
      %v9712 = vadd.f32 %v5808, %v9696
      %v9713 = vadd.f32 %v5809, %v9697
      %v9714 = vadd.f32 %v5810, %v9698
      %s9715 = scalar_lea.vmem %s12, 1
      %v9716 = vld [vmem:[%s9715] sm:$0x1]
      %s9717 = scalar_lea.vmem %s13, 1
      %v9718 = vld [vmem:[%s9717] sm:$0x1]
      %v9719 = vsel %vm663, %v9699, 0.0
      %9720 = vadd.xlane.f32.xlu0 %v9719
      %v9721 = vpop.xlane.xlu0 %9720
      %v9722 = vsel %vm663, %v9700, 0.0
      %9723 = vadd.xlane.f32.xlu0 %v9722
      %v9724 = vpop.xlane.xlu0 %9723
      %v9725 = vsel %vm663, %v9701, 0.0
      %9726 = vadd.xlane.f32.xlu0 %v9725
      %v9727 = vpop.xlane.xlu0 %9726
      %v9728 = vsel %vm663, %v9702, 0.0
      %9729 = vadd.xlane.f32.xlu0 %v9728
      %v9730 = vpop.xlane.xlu0 %9729
      %v9731 = vsel %vm663, %v9703, 0.0
      %9732 = vadd.xlane.f32.xlu0 %v9731
      %v9733 = vpop.xlane.xlu0 %9732
      %v9734 = vsel %vm663, %v9704, 0.0
      %9735 = vadd.xlane.f32.xlu0 %v9734
      %v9736 = vpop.xlane.xlu0 %9735
      %v9737 = vsel %vm663, %v9705, 0.0
      %9738 = vadd.xlane.f32.xlu0 %v9737
      %v9739 = vpop.xlane.xlu0 %9738
      %v9740 = vsel %vm663, %v9706, 0.0
      %9741 = vadd.xlane.f32.xlu0 %v9740
      %v9742 = vpop.xlane.xlu0 %9741
      %v9743 = vsel %vm663, %v9707, 0.0
      %9744 = vadd.xlane.f32.xlu0 %v9743
      %v9745 = vpop.xlane.xlu0 %9744
      %v9746 = vsel %vm663, %v9708, 0.0
      %9747 = vadd.xlane.f32.xlu0 %v9746
      %v9748 = vpop.xlane.xlu0 %9747
      %v9749 = vsel %vm663, %v9709, 0.0
      %9750 = vadd.xlane.f32.xlu0 %v9749
      %v9751 = vpop.xlane.xlu0 %9750
      %v9752 = vsel %vm663, %v9710, 0.0
      %9753 = vadd.xlane.f32.xlu0 %v9752
      %v9754 = vpop.xlane.xlu0 %9753
      %v9755 = vsel %vm663, %v9711, 0.0
      %9756 = vadd.xlane.f32.xlu0 %v9755
      %v9757 = vpop.xlane.xlu0 %9756
      %v9758 = vsel %vm663, %v9712, 0.0
      %9759 = vadd.xlane.f32.xlu0 %v9758
      %v9760 = vpop.xlane.xlu0 %9759
      %v9761 = vsel %vm663, %v9713, 0.0
      %9762 = vadd.xlane.f32.xlu0 %v9761
      %v9763 = vpop.xlane.xlu0 %9762
      %v9764 = vsel %vm663, %v9714, 0.0
      %9765 = vadd.xlane.f32.xlu0 %v9764
      %v9766 = vpop.xlane.xlu0 %9765
      %v9767 = vmul.f32 %v9721, %v712
      %v9768 = vmul.f32 %v9724, %v712
      %v9769 = vmul.f32 %v9727, %v712
      %v9770 = vmul.f32 %v9730, %v712
      %v9771 = vmul.f32 %v9733, %v712
      %v9772 = vmul.f32 %v9736, %v712
      %v9773 = vmul.f32 %v9739, %v712
      %v9774 = vmul.f32 %v9742, %v712
      %v9775 = vmul.f32 %v9745, %v712
      %v9776 = vmul.f32 %v9748, %v712
      %v9777 = vmul.f32 %v9751, %v712
      %v9778 = vmul.f32 %v9754, %v712
      %v9779 = vmul.f32 %v9757, %v712
      %v9780 = vmul.f32 %v9760, %v712
      %v9781 = vmul.f32 %v9763, %v712
      %v9782 = vmul.f32 %v9766, %v712
      %v9783 = vsub.f32 %v9699, %v9767
      %v9784 = vsub.f32 %v9700, %v9768
      %v9785 = vsub.f32 %v9701, %v9769
      %v9786 = vsub.f32 %v9702, %v9770
      %v9787 = vsub.f32 %v9703, %v9771
      %v9788 = vsub.f32 %v9704, %v9772
      %v9789 = vsub.f32 %v9705, %v9773
      %v9790 = vsub.f32 %v9706, %v9774
      %v9791 = vsub.f32 %v9707, %v9775
      %v9792 = vsub.f32 %v9708, %v9776
      %v9793 = vsub.f32 %v9709, %v9777
      %v9794 = vsub.f32 %v9710, %v9778
      %v9795 = vsub.f32 %v9711, %v9779
      %v9796 = vsub.f32 %v9712, %v9780
      %v9797 = vsub.f32 %v9713, %v9781
      %v9798 = vsub.f32 %v9714, %v9782
      %v9799 = vmul.f32 %v9783, %v9783
      %v9800 = vmul.f32 %v9784, %v9784
      %v9801 = vmul.f32 %v9785, %v9785
      %v9802 = vmul.f32 %v9786, %v9786
      %v9803 = vmul.f32 %v9787, %v9787
      %v9804 = vmul.f32 %v9788, %v9788
      %v9805 = vmul.f32 %v9789, %v9789
      %v9806 = vmul.f32 %v9790, %v9790
      %v9807 = vmul.f32 %v9791, %v9791
      %v9808 = vmul.f32 %v9792, %v9792
      %v9809 = vmul.f32 %v9793, %v9793
      %v9810 = vmul.f32 %v9794, %v9794
      %v9811 = vmul.f32 %v9795, %v9795
      %v9812 = vmul.f32 %v9796, %v9796
      %v9813 = vmul.f32 %v9797, %v9797
      %v9814 = vmul.f32 %v9798, %v9798
      %v9815 = vsel %vm663, %v9799, 0.0
      %9816 = vadd.xlane.f32.xlu0 %v9815
      %v9817 = vpop.xlane.xlu0 %9816
      %v9818 = vsel %vm663, %v9800, 0.0
      %9819 = vadd.xlane.f32.xlu0 %v9818
      %v9820 = vpop.xlane.xlu0 %9819
      %v9821 = vsel %vm663, %v9801, 0.0
      %9822 = vadd.xlane.f32.xlu0 %v9821
      %v9823 = vpop.xlane.xlu0 %9822
      %v9824 = vsel %vm663, %v9802, 0.0
      %9825 = vadd.xlane.f32.xlu0 %v9824
      %v9826 = vpop.xlane.xlu0 %9825
      %v9827 = vsel %vm663, %v9803, 0.0
      %9828 = vadd.xlane.f32.xlu0 %v9827
      %v9829 = vpop.xlane.xlu0 %9828
      %v9830 = vsel %vm663, %v9804, 0.0
      %9831 = vadd.xlane.f32.xlu0 %v9830
      %v9832 = vpop.xlane.xlu0 %9831
      %v9833 = vsel %vm663, %v9805, 0.0
      %9834 = vadd.xlane.f32.xlu0 %v9833
      %v9835 = vpop.xlane.xlu0 %9834
      %v9836 = vsel %vm663, %v9806, 0.0
      %9837 = vadd.xlane.f32.xlu0 %v9836
      %v9838 = vpop.xlane.xlu0 %9837
      %v9839 = vsel %vm663, %v9807, 0.0
      %9840 = vadd.xlane.f32.xlu0 %v9839
      %v9841 = vpop.xlane.xlu0 %9840
      %v9842 = vsel %vm663, %v9808, 0.0
      %9843 = vadd.xlane.f32.xlu0 %v9842
      %v9844 = vpop.xlane.xlu0 %9843
      %v9845 = vsel %vm663, %v9809, 0.0
      %9846 = vadd.xlane.f32.xlu0 %v9845
      %v9847 = vpop.xlane.xlu0 %9846
      %v9848 = vsel %vm663, %v9810, 0.0
      %9849 = vadd.xlane.f32.xlu0 %v9848
      %v9850 = vpop.xlane.xlu0 %9849
      %v9851 = vsel %vm663, %v9811, 0.0
      %9852 = vadd.xlane.f32.xlu0 %v9851
      %v9853 = vpop.xlane.xlu0 %9852
      %v9854 = vsel %vm663, %v9812, 0.0
      %9855 = vadd.xlane.f32.xlu0 %v9854
      %v9856 = vpop.xlane.xlu0 %9855
      %v9857 = vsel %vm663, %v9813, 0.0
      %9858 = vadd.xlane.f32.xlu0 %v9857
      %v9859 = vpop.xlane.xlu0 %9858
      %v9860 = vsel %vm663, %v9814, 0.0
      %9861 = vadd.xlane.f32.xlu0 %v9860
      %v9862 = vpop.xlane.xlu0 %9861
      %v9863 = vmul.f32 %v9817, %v712
      %v9864 = vmul.f32 %v9820, %v712
      %v9865 = vmul.f32 %v9823, %v712
      %v9866 = vmul.f32 %v9826, %v712
      %v9867 = vmul.f32 %v9829, %v712
      %v9868 = vmul.f32 %v9832, %v712
      %v9869 = vmul.f32 %v9835, %v712
      %v9870 = vmul.f32 %v9838, %v712
      %v9871 = vmul.f32 %v9841, %v712
      %v9872 = vmul.f32 %v9844, %v712
      %v9873 = vmul.f32 %v9847, %v712
      %v9874 = vmul.f32 %v9850, %v712
      %v9875 = vmul.f32 %v9853, %v712
      %v9876 = vmul.f32 %v9856, %v712
      %v9877 = vmul.f32 %v9859, %v712
      %v9878 = vmul.f32 %v9862, %v712
      %v9879 = vadd.f32 %v9863, 1e-12
      %v9880 = vadd.f32 %v9864, 1e-12
      %v9881 = vadd.f32 %v9865, 1e-12
      %v9882 = vadd.f32 %v9866, 1e-12
      %v9883 = vadd.f32 %v9867, 1e-12
      %v9884 = vadd.f32 %v9868, 1e-12
      %v9885 = vadd.f32 %v9869, 1e-12
      %v9886 = vadd.f32 %v9870, 1e-12
      %v9887 = vadd.f32 %v9871, 1e-12
      %v9888 = vadd.f32 %v9872, 1e-12
      %v9889 = vadd.f32 %v9873, 1e-12
      %v9890 = vadd.f32 %v9874, 1e-12
      %v9891 = vadd.f32 %v9875, 1e-12
      %v9892 = vadd.f32 %v9876, 1e-12
      %v9893 = vadd.f32 %v9877, 1e-12
      %v9894 = vadd.f32 %v9878, 1e-12
      %v9895 = vrsqrt.pop %v9879
      %v9896 = vrsqrt.pop %v9880
      %v9897 = vrsqrt.pop %v9881
      %v9898 = vrsqrt.pop %v9882
      %v9899 = vrsqrt.pop %v9883
      %v9900 = vrsqrt.pop %v9884
      %v9901 = vrsqrt.pop %v9885
      %v9902 = vrsqrt.pop %v9886
      %v9903 = vrsqrt.pop %v9887
      %v9904 = vrsqrt.pop %v9888
      %v9905 = vrsqrt.pop %v9889
      %v9906 = vrsqrt.pop %v9890
      %v9907 = vrsqrt.pop %v9891
      %v9908 = vrsqrt.pop %v9892
      %v9909 = vrsqrt.pop %v9893
      %v9910 = vrsqrt.pop %v9894
      %v9911 = vmul.f32 %v9783, %v9895
      %v9912 = vmul.f32 %v9784, %v9896
      %v9913 = vmul.f32 %v9785, %v9897
      %v9914 = vmul.f32 %v9786, %v9898
      %v9915 = vmul.f32 %v9787, %v9899
      %v9916 = vmul.f32 %v9788, %v9900
      %v9917 = vmul.f32 %v9789, %v9901
      %v9918 = vmul.f32 %v9790, %v9902
      %v9919 = vmul.f32 %v9791, %v9903
      %v9920 = vmul.f32 %v9792, %v9904
      %v9921 = vmul.f32 %v9793, %v9905
      %v9922 = vmul.f32 %v9794, %v9906
      %v9923 = vmul.f32 %v9795, %v9907
      %v9924 = vmul.f32 %v9796, %v9908
      %v9925 = vmul.f32 %v9797, %v9909
      %v9926 = vmul.f32 %v9798, %v9910
      %v9928 = vlaneseq
      %v9929 = vshrl.u32 %v9928, 7
      %v9930 = vsub.s32 0, %v9929
      %v9931 = vrot.slane %v9716, %v9930
      %v9933 = vmul.f32 %v9911, %v9931
      %v9934 = vmul.f32 %v9912, %v9931
      %v9935 = vmul.f32 %v9913, %v9931
      %v9936 = vmul.f32 %v9914, %v9931
      %v9937 = vmul.f32 %v9915, %v9931
      %v9938 = vmul.f32 %v9916, %v9931
      %v9939 = vmul.f32 %v9917, %v9931
      %v9940 = vmul.f32 %v9918, %v9931
      %v9941 = vmul.f32 %v9919, %v9931
      %v9942 = vmul.f32 %v9920, %v9931
      %v9943 = vmul.f32 %v9921, %v9931
      %v9944 = vmul.f32 %v9922, %v9931
      %v9945 = vmul.f32 %v9923, %v9931
      %v9946 = vmul.f32 %v9924, %v9931
      %v9947 = vmul.f32 %v9925, %v9931
      %v9948 = vmul.f32 %v9926, %v9931
      %v9950 = vlaneseq
      %v9951 = vshrl.u32 %v9950, 7
      %v9952 = vsub.s32 0, %v9951
      %v9953 = vrot.slane %v9718, %v9952
      %v9955 = vadd.f32 %v9933, %v9953
      %v9956 = vadd.f32 %v9934, %v9953
      %v9957 = vadd.f32 %v9935, %v9953
      %v9958 = vadd.f32 %v9936, %v9953
      %v9959 = vadd.f32 %v9937, %v9953
      %v9960 = vadd.f32 %v9938, %v9953
      %v9961 = vadd.f32 %v9939, %v9953
      %v9962 = vadd.f32 %v9940, %v9953
      %v9963 = vadd.f32 %v9941, %v9953
      %v9964 = vadd.f32 %v9942, %v9953
      %v9965 = vadd.f32 %v9943, %v9953
      %v9966 = vadd.f32 %v9944, %v9953
      %v9967 = vadd.f32 %v9945, %v9953
      %v9968 = vadd.f32 %v9946, %v9953
      %v9969 = vadd.f32 %v9947, %v9953
      %v9970 = vadd.f32 %v9948, %v9953
      %v9971 = vpack.c.bf16 %v9956, %v9955
      %v9972 = vpack.c.bf16 %v9958, %v9957
      %v9973 = vpack.c.bf16 %v9960, %v9959
      %v9974 = vpack.c.bf16 %v9962, %v9961
      %v9975 = vpack.c.bf16 %v9964, %v9963
      %v9976 = vpack.c.bf16 %v9966, %v9965
      %v9977 = vpack.c.bf16 %v9968, %v9967
      %v9978 = vpack.c.bf16 %v9970, %v9969
      %s9979 = scalar_lea.vmem %s14, 16
      %v9980 = vld [vmem:[%s9979] sm:$0xf]
      %v9981 = vld [vmem:[%s9979 + $0x4] sm:$0xf]
      %v9982 = vld [vmem:[%s9979 + $0x8] sm:$0xf]
      %v9983 = vld [vmem:[%s9979 + $0xc] sm:$0xf]
      %s9984 = scalar_lea.vmem %s15, 1
      %v9985 = vld [vmem:[%s9984] sm:$0x1]
      %v9987 = vlaneseq
      %v9988 = vshrl.u32 %v9987, 7
      %v9989 = vsub.s32 0, %v9988
      %v9990 = vrot.slane %v9985, %v9989
      %v9996 = vunpack.c.l.b16 %v9980
      %v9997 = vunpack.c.l.b16 %v9981
      %v9998 = vunpack.c.l.b16 %v9982
      %v9999 = vunpack.c.l.b16 %v9983
      %v10000 = vpack.c.b16 %v9997, %v9996
      %v10001 = vpack.c.b16 %v9999, %v9998
      %v10005 = vsel %vm663, %v9971, 0
      %v10008 = vsel %vm663, %v9972, 0
      %v10011 = vsel %vm663, %v9973, 0
      %v10014 = vsel %vm663, %v9974, 0
      %v10017 = vsel %vm663, %v9975, 0
      %v10020 = vsel %vm663, %v9976, 0
      %v10023 = vsel %vm663, %v9977, 0
      %v10026 = vsel %vm663, %v9978, 0
      %10028 = vmatprep.subr.bf16.mxu0 0
      %10029 = vmatpush1.bf16.msra.mxu0 %v10000
      %10030 = vmatprep.subr.bf16.mxu0 0
      %10031 = vmatpush1.bf16.msra.mxu0 %v10001
      %10032 = vmatprep.subr.bf16.mxu0 0
      %10033 = vmatpush1.bf16.msra.mxu0 0
      %10034 = vmatprep.subr.bf16.mxu0 0
      %10035 = vmatpush1.bf16.msra.mxu0 0
      %10036 = vmatprep.subr.bf16.mxu0 0
      %10037 = vmatpush1.bf16.msra.mxu0 0
      %10038 = vmatprep.subr.bf16.mxu0 0
      %10039 = vmatpush1.bf16.msra.mxu0 0
      %10040 = vmatprep.subr.bf16.mxu0 0
      %10041 = vmatpush1.bf16.msra.mxu0 0
      %10042 = vmatprep.subr.bf16.mxu0 0
      %10043 = vmatpush1.bf16.msra.mxu0 0
      %10044 = vmatprep.subr.bf16.mxu0 0
      %10045 = vmatpush1.bf16.msra.mxu0 0
      %10046 = vmatprep.subr.bf16.mxu0 0
      %10047 = vmatpush1.bf16.msra.mxu0 0
      %10048 = vmatprep.subr.bf16.mxu0 0
      %10049 = vmatpush1.bf16.msra.mxu0 0
      %10050 = vmatprep.subr.bf16.mxu0 0
      %10051 = vmatpush1.bf16.msra.mxu0 0
      %10052 = vmatprep.subr.bf16.mxu0 0
      %10053 = vmatpush1.bf16.msra.mxu0 0
      %10054 = vmatprep.subr.bf16.mxu0 0
      %10055 = vmatpush1.bf16.msra.mxu0 0
      %10056 = vmatprep.subr.bf16.mxu0 0
      %10057 = vmatpush1.bf16.msra.mxu0 0
      %10058 = vmatprep.subr.bf16.mxu0 0
      %10059 = vmatpush1.bf16.msra.mxu0 0
      %10060 = vmatprep.mubr.bf16.mxu0 0
      %10061 = vmatmul.mubr.bf16.gmra.mrb[0].mxu0 %v10005
      %v10062 = vpop.f32.mrb[0].mxu0
      %v10063 = vadd.f32 %v9990, %v10062
      %v10064 = vpop.f32.mrb[0].mxu0
      %v10065 = vpop.f32.mrb[0].mxu0
      %v10066 = vadd.f32 %v9990, %v10065
      %v10067 = vpop.f32.mrb[0].mxu0
      %10068 = vmatprep.mubr.bf16.mxu0 0
      %10069 = vmatmul.mubr.bf16.gmra.mrb[0].mxu0 %v10008
      %v10070 = vpop.f32.mrb[0].mxu0
      %v10071 = vadd.f32 %v9990, %v10070
      %v10072 = vpop.f32.mrb[0].mxu0
      %v10073 = vpop.f32.mrb[0].mxu0
      %v10074 = vadd.f32 %v9990, %v10073
      %v10075 = vpop.f32.mrb[0].mxu0
      %10076 = vmatprep.mubr.bf16.mxu0 0
      %10077 = vmatmul.mubr.bf16.gmra.mrb[0].mxu0 %v10011
      %v10078 = vpop.f32.mrb[0].mxu0
      %v10079 = vadd.f32 %v9990, %v10078
      %v10080 = vpop.f32.mrb[0].mxu0
      %v10081 = vpop.f32.mrb[0].mxu0
      %v10082 = vadd.f32 %v9990, %v10081
      %v10083 = vpop.f32.mrb[0].mxu0
      %10084 = vmatprep.mubr.bf16.mxu0 0
      %10085 = vmatmul.mubr.bf16.gmra.mrb[0].mxu0 %v10014
      %v10086 = vpop.f32.mrb[0].mxu0
      %v10087 = vadd.f32 %v9990, %v10086
      %v10088 = vpop.f32.mrb[0].mxu0
      %v10089 = vpop.f32.mrb[0].mxu0
      %v10090 = vadd.f32 %v9990, %v10089
      %v10091 = vpop.f32.mrb[0].mxu0
      %10092 = vmatprep.mubr.bf16.mxu0 0
      %10093 = vmatmul.mubr.bf16.gmra.mrb[0].mxu0 %v10017
      %v10094 = vpop.f32.mrb[0].mxu0
      %v10095 = vadd.f32 %v9990, %v10094
      %v10096 = vpop.f32.mrb[0].mxu0
      %v10097 = vpop.f32.mrb[0].mxu0
      %v10098 = vadd.f32 %v9990, %v10097
      %v10099 = vpop.f32.mrb[0].mxu0
      %10100 = vmatprep.mubr.bf16.mxu0 0
      %10101 = vmatmul.mubr.bf16.gmra.mrb[0].mxu0 %v10020
      %v10102 = vpop.f32.mrb[0].mxu0
      %v10103 = vadd.f32 %v9990, %v10102
      %v10104 = vpop.f32.mrb[0].mxu0
      %v10105 = vpop.f32.mrb[0].mxu0
      %v10106 = vadd.f32 %v9990, %v10105
      %v10107 = vpop.f32.mrb[0].mxu0
      %10108 = vmatprep.mubr.bf16.mxu0 0
      %10109 = vmatmul.mubr.bf16.gmra.mrb[0].mxu0 %v10023
      %v10110 = vpop.f32.mrb[0].mxu0
      %v10111 = vadd.f32 %v9990, %v10110
      %v10112 = vpop.f32.mrb[0].mxu0
      %v10113 = vpop.f32.mrb[0].mxu0
      %v10114 = vadd.f32 %v9990, %v10113
      %v10115 = vpop.f32.mrb[0].mxu0
      %10116 = vmatprep.mubr.bf16.mxu0 0
      %10117 = vmatmul.mubr.bf16.gmra.mrb[0].mxu0 %v10026
      %v10118 = vpop.f32.mrb[0].mxu0
      %v10119 = vadd.f32 %v9990, %v10118
      %v10120 = vpop.f32.mrb[0].mxu0
      %v10121 = vpop.f32.mrb[0].mxu0
      %v10122 = vadd.f32 %v9990, %v10121
      %v10123 = vpop.f32.mrb[0].mxu0
      %10124 = vdwg.mxu0
      %v10125 = vmul.f32 %v10063, 0.5
      %v10126 = vmul.f32 %v10066, 0.5
      %v10127 = vmul.f32 %v10071, 0.5
      %v10128 = vmul.f32 %v10074, 0.5
      %v10129 = vmul.f32 %v10079, 0.5
      %v10130 = vmul.f32 %v10082, 0.5
      %v10131 = vmul.f32 %v10087, 0.5
      %v10132 = vmul.f32 %v10090, 0.5
      %v10133 = vmul.f32 %v10095, 0.5
      %v10134 = vmul.f32 %v10098, 0.5
      %v10135 = vmul.f32 %v10103, 0.5
      %v10136 = vmul.f32 %v10106, 0.5
      %v10137 = vmul.f32 %v10111, 0.5
      %v10138 = vmul.f32 %v10114, 0.5
      %v10139 = vmul.f32 %v10119, 0.5
      %v10140 = vmul.f32 %v10122, 0.5
      %v10141 = vmul.f32 %v10063, 0.044715
      %v10142 = vmul.f32 %v10066, 0.044715
      %v10143 = vmul.f32 %v10071, 0.044715
      %v10144 = vmul.f32 %v10074, 0.044715
      %v10145 = vmul.f32 %v10079, 0.044715
      %v10146 = vmul.f32 %v10082, 0.044715
      %v10147 = vmul.f32 %v10087, 0.044715
      %v10148 = vmul.f32 %v10090, 0.044715
      %v10149 = vmul.f32 %v10095, 0.044715
      %v10150 = vmul.f32 %v10098, 0.044715
      %v10151 = vmul.f32 %v10103, 0.044715
      %v10152 = vmul.f32 %v10106, 0.044715
      %v10153 = vmul.f32 %v10111, 0.044715
      %v10154 = vmul.f32 %v10114, 0.044715
      %v10155 = vmul.f32 %v10119, 0.044715
      %v10156 = vmul.f32 %v10122, 0.044715
      %v10157 = vmul.f32 %v10141, %v10063
      %v10158 = vmul.f32 %v10142, %v10066
      %v10159 = vmul.f32 %v10143, %v10071
      %v10160 = vmul.f32 %v10144, %v10074
      %v10161 = vmul.f32 %v10145, %v10079
      %v10162 = vmul.f32 %v10146, %v10082
      %v10163 = vmul.f32 %v10147, %v10087
      %v10164 = vmul.f32 %v10148, %v10090
      %v10165 = vmul.f32 %v10149, %v10095
      %v10166 = vmul.f32 %v10150, %v10098
      %v10167 = vmul.f32 %v10151, %v10103
      %v10168 = vmul.f32 %v10152, %v10106
      %v10169 = vmul.f32 %v10153, %v10111
      %v10170 = vmul.f32 %v10154, %v10114
      %v10171 = vmul.f32 %v10155, %v10119
      %v10172 = vmul.f32 %v10156, %v10122
      %v10173 = vmul.f32 %v10157, %v10063
      %v10174 = vmul.f32 %v10158, %v10066
      %v10175 = vmul.f32 %v10159, %v10071
      %v10176 = vmul.f32 %v10160, %v10074
      %v10177 = vmul.f32 %v10161, %v10079
      %v10178 = vmul.f32 %v10162, %v10082
      %v10179 = vmul.f32 %v10163, %v10087
      %v10180 = vmul.f32 %v10164, %v10090
      %v10181 = vmul.f32 %v10165, %v10095
      %v10182 = vmul.f32 %v10166, %v10098
      %v10183 = vmul.f32 %v10167, %v10103
      %v10184 = vmul.f32 %v10168, %v10106
      %v10185 = vmul.f32 %v10169, %v10111
      %v10186 = vmul.f32 %v10170, %v10114
      %v10187 = vmul.f32 %v10171, %v10119
      %v10188 = vmul.f32 %v10172, %v10122
      %v10189 = vadd.f32 %v10063, %v10173
      %v10190 = vadd.f32 %v10066, %v10174
      %v10191 = vadd.f32 %v10071, %v10175
      %v10192 = vadd.f32 %v10074, %v10176
      %v10193 = vadd.f32 %v10079, %v10177
      %v10194 = vadd.f32 %v10082, %v10178
      %v10195 = vadd.f32 %v10087, %v10179
      %v10196 = vadd.f32 %v10090, %v10180
      %v10197 = vadd.f32 %v10095, %v10181
      %v10198 = vadd.f32 %v10098, %v10182
      %v10199 = vadd.f32 %v10103, %v10183
      %v10200 = vadd.f32 %v10106, %v10184
      %v10201 = vadd.f32 %v10111, %v10185
      %v10202 = vadd.f32 %v10114, %v10186
      %v10203 = vadd.f32 %v10119, %v10187
      %v10204 = vadd.f32 %v10122, %v10188
      %v10205 = vmul.f32 %v10189, 0.7978846
      %v10206 = vmul.f32 %v10190, 0.7978846
      %v10207 = vmul.f32 %v10191, 0.7978846
      %v10208 = vmul.f32 %v10192, 0.7978846
      %v10209 = vmul.f32 %v10193, 0.7978846
      %v10210 = vmul.f32 %v10194, 0.7978846
      %v10211 = vmul.f32 %v10195, 0.7978846
      %v10212 = vmul.f32 %v10196, 0.7978846
      %v10213 = vmul.f32 %v10197, 0.7978846
      %v10214 = vmul.f32 %v10198, 0.7978846
      %v10215 = vmul.f32 %v10199, 0.7978846
      %v10216 = vmul.f32 %v10200, 0.7978846
      %v10217 = vmul.f32 %v10201, 0.7978846
      %v10218 = vmul.f32 %v10202, 0.7978846
      %v10219 = vmul.f32 %v10203, 0.7978846
      %v10220 = vmul.f32 %v10204, 0.7978846
      %v10221 = vtanh.pop %v10205
      %v10222 = vtanh.pop %v10206
      %v10223 = vtanh.pop %v10207
      %v10224 = vtanh.pop %v10208
      %v10225 = vtanh.pop %v10209
      %v10226 = vtanh.pop %v10210
      %v10227 = vtanh.pop %v10211
      %v10228 = vtanh.pop %v10212
      %v10229 = vtanh.pop %v10213
      %v10230 = vtanh.pop %v10214
      %v10231 = vtanh.pop %v10215
      %v10232 = vtanh.pop %v10216
      %v10233 = vtanh.pop %v10217
      %v10234 = vtanh.pop %v10218
      %v10235 = vtanh.pop %v10219
      %v10236 = vtanh.pop %v10220
      %v10237 = vadd.f32 %v10221, 1.0
      %v10238 = vadd.f32 %v10222, 1.0
      %v10239 = vadd.f32 %v10223, 1.0
      %v10240 = vadd.f32 %v10224, 1.0
      %v10241 = vadd.f32 %v10225, 1.0
      %v10242 = vadd.f32 %v10226, 1.0
      %v10243 = vadd.f32 %v10227, 1.0
      %v10244 = vadd.f32 %v10228, 1.0
      %v10245 = vadd.f32 %v10229, 1.0
      %v10246 = vadd.f32 %v10230, 1.0
      %v10247 = vadd.f32 %v10231, 1.0
      %v10248 = vadd.f32 %v10232, 1.0
      %v10249 = vadd.f32 %v10233, 1.0
      %v10250 = vadd.f32 %v10234, 1.0
      %v10251 = vadd.f32 %v10235, 1.0
      %v10252 = vadd.f32 %v10236, 1.0
      %v10253 = vmul.f32 %v10125, %v10237
      %v10254 = vmul.f32 %v10126, %v10238
      %v10255 = vmul.f32 %v10127, %v10239
      %v10256 = vmul.f32 %v10128, %v10240
      %v10257 = vmul.f32 %v10129, %v10241
      %v10258 = vmul.f32 %v10130, %v10242
      %v10259 = vmul.f32 %v10131, %v10243
      %v10260 = vmul.f32 %v10132, %v10244
      %v10261 = vmul.f32 %v10133, %v10245
      %v10262 = vmul.f32 %v10134, %v10246
      %v10263 = vmul.f32 %v10135, %v10247
      %v10264 = vmul.f32 %v10136, %v10248
      %v10265 = vmul.f32 %v10137, %v10249
      %v10266 = vmul.f32 %v10138, %v10250
      %v10267 = vmul.f32 %v10139, %v10251
      %v10268 = vmul.f32 %v10140, %v10252
      %v10269 = vpack.c.bf16 %v10254, %v10253
      %v10270 = vpack.c.bf16 %v10256, %v10255
      %v10271 = vpack.c.bf16 %v10258, %v10257
      %v10272 = vpack.c.bf16 %v10260, %v10259
      %v10273 = vpack.c.bf16 %v10262, %v10261
      %v10274 = vpack.c.bf16 %v10264, %v10263
      %v10275 = vpack.c.bf16 %v10266, %v10265
      %v10276 = vpack.c.bf16 %v10268, %v10267
      %s10277 = scalar_lea.vmem %s16, 32
      %v10278 = vld [vmem:[%s10277] sm:$0xf]
      %v10279 = vld [vmem:[%s10277 + $0x4] sm:$0xf]
      %v10280 = vld [vmem:[%s10277 + $0x8] sm:$0xf]
      %v10281 = vld [vmem:[%s10277 + $0xc] sm:$0xf]
      %v10282 = vld [vmem:[%s10277 + $0x10] sm:$0xf]
      %v10283 = vld [vmem:[%s10277 + $0x14] sm:$0xf]
      %v10284 = vld [vmem:[%s10277 + $0x18] sm:$0xf]
      %v10285 = vld [vmem:[%s10277 + $0x1c] sm:$0xf]
      %s10286 = scalar_lea.vmem %s17, 1
      %v10287 = vld [vmem:[%s10286] sm:$0x1]
      %v10289 = vlaneseq
      %v10290 = vshrl.u32 %v10289, 7
      %v10291 = vsub.s32 0, %v10290
      %v10292 = vrot.slane %v10287, %v10291
      %v10302 = vunpack.c.l.b16 %v10278
      %v10303 = vunpack.c.l.b16 %v10279
      %v10304 = vunpack.c.l.b16 %v10280
      %v10305 = vunpack.c.l.b16 %v10281
      %v10306 = vunpack.c.l.b16 %v10282
      %v10307 = vunpack.c.l.b16 %v10283
      %v10308 = vunpack.c.l.b16 %v10284
      %v10309 = vunpack.c.l.b16 %v10285
      %v10310 = vpack.c.b16 %v10303, %v10302
      %v10311 = vpack.c.b16 %v10305, %v10304
      %v10312 = vpack.c.b16 %v10307, %v10306
      %v10313 = vpack.c.b16 %v10309, %v10308
      %v10319 = vsel %vm5419, %v10269, 0
      %v10322 = vsel %vm5419, %v10270, 0
      %v10325 = vsel %vm5419, %v10271, 0
      %v10328 = vsel %vm5419, %v10272, 0
      %v10331 = vsel %vm5419, %v10273, 0
      %v10334 = vsel %vm5419, %v10274, 0
      %v10337 = vsel %vm5419, %v10275, 0
      %v10340 = vsel %vm5419, %v10276, 0
      %10342 = vmatprep.subr.bf16.mxu0 0
      %10343 = vmatpush1.bf16.msra.mxu0 %v10310
      %10344 = vmatprep.subr.bf16.mxu0 0
      %10345 = vmatpush1.bf16.msra.mxu0 %v10311
      %10346 = vmatprep.subr.bf16.mxu0 0
      %10347 = vmatpush1.bf16.msra.mxu0 %v10312
      %10348 = vmatprep.subr.bf16.mxu0 0
      %10349 = vmatpush1.bf16.msra.mxu0 %v10313
      %10350 = vmatprep.subr.bf16.mxu0 0
      %10351 = vmatpush1.bf16.msra.mxu0 0
      %10352 = vmatprep.subr.bf16.mxu0 0
      %10353 = vmatpush1.bf16.msra.mxu0 0
      %10354 = vmatprep.subr.bf16.mxu0 0
      %10355 = vmatpush1.bf16.msra.mxu0 0
      %10356 = vmatprep.subr.bf16.mxu0 0
      %10357 = vmatpush1.bf16.msra.mxu0 0
      %10358 = vmatprep.subr.bf16.mxu0 0
      %10359 = vmatpush1.bf16.msra.mxu0 0
      %10360 = vmatprep.subr.bf16.mxu0 0
      %10361 = vmatpush1.bf16.msra.mxu0 0
      %10362 = vmatprep.subr.bf16.mxu0 0
      %10363 = vmatpush1.bf16.msra.mxu0 0
      %10364 = vmatprep.subr.bf16.mxu0 0
      %10365 = vmatpush1.bf16.msra.mxu0 0
      %10366 = vmatprep.subr.bf16.mxu0 0
      %10367 = vmatpush1.bf16.msra.mxu0 0
      %10368 = vmatprep.subr.bf16.mxu0 0
      %10369 = vmatpush1.bf16.msra.mxu0 0
      %10370 = vmatprep.subr.bf16.mxu0 0
      %10371 = vmatpush1.bf16.msra.mxu0 0
      %10372 = vmatprep.subr.bf16.mxu0 0
      %10373 = vmatpush1.bf16.msra.mxu0 0
      %10374 = vmatprep.mubr.bf16.mxu0 0
      %10375 = vmatmul.mubr.bf16.gmra.mrb[0].mxu0 %v10319
      %v10376 = vpop.f32.mrb[0].mxu0
      %v10377 = vadd.f32 %v10292, %v10376
      %v10378 = vpop.f32.mrb[0].mxu0
      %v10379 = vpop.f32.mrb[0].mxu0
      %v10380 = vadd.f32 %v10292, %v10379
      %v10381 = vpop.f32.mrb[0].mxu0
      %10382 = vmatprep.mubr.bf16.mxu0 0
      %10383 = vmatmul.mubr.bf16.gmra.mrb[0].mxu0 %v10322
      %v10384 = vpop.f32.mrb[0].mxu0
      %v10385 = vadd.f32 %v10292, %v10384
      %v10386 = vpop.f32.mrb[0].mxu0
      %v10387 = vpop.f32.mrb[0].mxu0
      %v10388 = vadd.f32 %v10292, %v10387
      %v10389 = vpop.f32.mrb[0].mxu0
      %10390 = vmatprep.mubr.bf16.mxu0 0
      %10391 = vmatmul.mubr.bf16.gmra.mrb[0].mxu0 %v10325
      %v10392 = vpop.f32.mrb[0].mxu0
      %v10393 = vadd.f32 %v10292, %v10392
      %v10394 = vpop.f32.mrb[0].mxu0
      %v10395 = vpop.f32.mrb[0].mxu0
      %v10396 = vadd.f32 %v10292, %v10395
      %v10397 = vpop.f32.mrb[0].mxu0
      %10398 = vmatprep.mubr.bf16.mxu0 0
      %10399 = vmatmul.mubr.bf16.gmra.mrb[0].mxu0 %v10328
      %v10400 = vpop.f32.mrb[0].mxu0
      %v10401 = vadd.f32 %v10292, %v10400
      %v10402 = vpop.f32.mrb[0].mxu0
      %v10403 = vpop.f32.mrb[0].mxu0
      %v10404 = vadd.f32 %v10292, %v10403
      %v10405 = vpop.f32.mrb[0].mxu0
      %10406 = vmatprep.mubr.bf16.mxu0 0
      %10407 = vmatmul.mubr.bf16.gmra.mrb[0].mxu0 %v10331
      %v10408 = vpop.f32.mrb[0].mxu0
      %v10409 = vadd.f32 %v10292, %v10408
      %v10410 = vpop.f32.mrb[0].mxu0
      %v10411 = vpop.f32.mrb[0].mxu0
      %v10412 = vadd.f32 %v10292, %v10411
      %v10413 = vpop.f32.mrb[0].mxu0
      %10414 = vmatprep.mubr.bf16.mxu0 0
      %10415 = vmatmul.mubr.bf16.gmra.mrb[0].mxu0 %v10334
      %v10416 = vpop.f32.mrb[0].mxu0
      %v10417 = vadd.f32 %v10292, %v10416
      %v10418 = vpop.f32.mrb[0].mxu0
      %v10419 = vpop.f32.mrb[0].mxu0
      %v10420 = vadd.f32 %v10292, %v10419
      %v10421 = vpop.f32.mrb[0].mxu0
      %10422 = vmatprep.mubr.bf16.mxu0 0
      %10423 = vmatmul.mubr.bf16.gmra.mrb[0].mxu0 %v10337
      %v10424 = vpop.f32.mrb[0].mxu0
      %v10425 = vadd.f32 %v10292, %v10424
      %v10426 = vpop.f32.mrb[0].mxu0
      %v10427 = vpop.f32.mrb[0].mxu0
      %v10428 = vadd.f32 %v10292, %v10427
      %v10429 = vpop.f32.mrb[0].mxu0
      %10430 = vmatprep.mubr.bf16.mxu0 0
      %10431 = vmatmul.mubr.bf16.gmra.mrb[0].mxu0 %v10340
      %v10432 = vpop.f32.mrb[0].mxu0
      %v10433 = vadd.f32 %v10292, %v10432
      %v10434 = vpop.f32.mrb[0].mxu0
      %v10435 = vpop.f32.mrb[0].mxu0
      %v10436 = vadd.f32 %v10292, %v10435
      %v10437 = vpop.f32.mrb[0].mxu0
      %10438 = vdwg.mxu0
      %v10439 = vadd.f32 %v9955, %v10377
      %v10440 = vadd.f32 %v9956, %v10380
      %v10441 = vadd.f32 %v9957, %v10385
      %v10442 = vadd.f32 %v9958, %v10388
      %v10443 = vadd.f32 %v9959, %v10393
      %v10444 = vadd.f32 %v9960, %v10396
      %v10445 = vadd.f32 %v9961, %v10401
      %v10446 = vadd.f32 %v9962, %v10404
      %v10447 = vadd.f32 %v9963, %v10409
      %v10448 = vadd.f32 %v9964, %v10412
      %v10449 = vadd.f32 %v9965, %v10417
      %v10450 = vadd.f32 %v9966, %v10420
      %v10451 = vadd.f32 %v9967, %v10425
      %v10452 = vadd.f32 %v9968, %v10428
      %v10453 = vadd.f32 %v9969, %v10433
      %v10454 = vadd.f32 %v9970, %v10436
      %s10455 = scalar_lea.vmem %s18, 1
      %v10456 = vld [vmem:[%s10455] sm:$0x1]
      %s10457 = scalar_lea.vmem %s19, 1
      %v10458 = vld [vmem:[%s10457] sm:$0x1]
      %v10459 = vsel %vm663, %v10439, 0.0
      %10460 = vadd.xlane.f32.xlu0 %v10459
      %v10461 = vpop.xlane.xlu0 %10460
      %v10462 = vsel %vm663, %v10440, 0.0
      %10463 = vadd.xlane.f32.xlu0 %v10462
      %v10464 = vpop.xlane.xlu0 %10463
      %v10465 = vsel %vm663, %v10441, 0.0
      %10466 = vadd.xlane.f32.xlu0 %v10465
      %v10467 = vpop.xlane.xlu0 %10466
      %v10468 = vsel %vm663, %v10442, 0.0
      %10469 = vadd.xlane.f32.xlu0 %v10468
      %v10470 = vpop.xlane.xlu0 %10469
      %v10471 = vsel %vm663, %v10443, 0.0
      %10472 = vadd.xlane.f32.xlu0 %v10471
      %v10473 = vpop.xlane.xlu0 %10472
      %v10474 = vsel %vm663, %v10444, 0.0
      %10475 = vadd.xlane.f32.xlu0 %v10474
      %v10476 = vpop.xlane.xlu0 %10475
      %v10477 = vsel %vm663, %v10445, 0.0
      %10478 = vadd.xlane.f32.xlu0 %v10477
      %v10479 = vpop.xlane.xlu0 %10478
      %v10480 = vsel %vm663, %v10446, 0.0
      %10481 = vadd.xlane.f32.xlu0 %v10480
      %v10482 = vpop.xlane.xlu0 %10481
      %v10483 = vsel %vm663, %v10447, 0.0
      %10484 = vadd.xlane.f32.xlu0 %v10483
      %v10485 = vpop.xlane.xlu0 %10484
      %v10486 = vsel %vm663, %v10448, 0.0
      %10487 = vadd.xlane.f32.xlu0 %v10486
      %v10488 = vpop.xlane.xlu0 %10487
      %v10489 = vsel %vm663, %v10449, 0.0
      %10490 = vadd.xlane.f32.xlu0 %v10489
      %v10491 = vpop.xlane.xlu0 %10490
      %v10492 = vsel %vm663, %v10450, 0.0
      %10493 = vadd.xlane.f32.xlu0 %v10492
      %v10494 = vpop.xlane.xlu0 %10493
      %v10495 = vsel %vm663, %v10451, 0.0
      %10496 = vadd.xlane.f32.xlu0 %v10495
      %v10497 = vpop.xlane.xlu0 %10496
      %v10498 = vsel %vm663, %v10452, 0.0
      %10499 = vadd.xlane.f32.xlu0 %v10498
      %v10500 = vpop.xlane.xlu0 %10499
      %v10501 = vsel %vm663, %v10453, 0.0
      %10502 = vadd.xlane.f32.xlu0 %v10501
      %v10503 = vpop.xlane.xlu0 %10502
      %v10504 = vsel %vm663, %v10454, 0.0
      %10505 = vadd.xlane.f32.xlu0 %v10504
      %v10506 = vpop.xlane.xlu0 %10505
      %v10507 = vmul.f32 %v10461, %v712
      %v10508 = vmul.f32 %v10464, %v712
      %v10509 = vmul.f32 %v10467, %v712
      %v10510 = vmul.f32 %v10470, %v712
      %v10511 = vmul.f32 %v10473, %v712
      %v10512 = vmul.f32 %v10476, %v712
      %v10513 = vmul.f32 %v10479, %v712
      %v10514 = vmul.f32 %v10482, %v712
      %v10515 = vmul.f32 %v10485, %v712
      %v10516 = vmul.f32 %v10488, %v712
      %v10517 = vmul.f32 %v10491, %v712
      %v10518 = vmul.f32 %v10494, %v712
      %v10519 = vmul.f32 %v10497, %v712
      %v10520 = vmul.f32 %v10500, %v712
      %v10521 = vmul.f32 %v10503, %v712
      %v10522 = vmul.f32 %v10506, %v712
      %v10523 = vsub.f32 %v10439, %v10507
      %v10524 = vsub.f32 %v10440, %v10508
      %v10525 = vsub.f32 %v10441, %v10509
      %v10526 = vsub.f32 %v10442, %v10510
      %v10527 = vsub.f32 %v10443, %v10511
      %v10528 = vsub.f32 %v10444, %v10512
      %v10529 = vsub.f32 %v10445, %v10513
      %v10530 = vsub.f32 %v10446, %v10514
      %v10531 = vsub.f32 %v10447, %v10515
      %v10532 = vsub.f32 %v10448, %v10516
      %v10533 = vsub.f32 %v10449, %v10517
      %v10534 = vsub.f32 %v10450, %v10518
      %v10535 = vsub.f32 %v10451, %v10519
      %v10536 = vsub.f32 %v10452, %v10520
      %v10537 = vsub.f32 %v10453, %v10521
      %v10538 = vsub.f32 %v10454, %v10522
      %v10539 = vmul.f32 %v10523, %v10523
      %v10540 = vmul.f32 %v10524, %v10524
      %v10541 = vmul.f32 %v10525, %v10525
      %v10542 = vmul.f32 %v10526, %v10526
      %v10543 = vmul.f32 %v10527, %v10527
      %v10544 = vmul.f32 %v10528, %v10528
      %v10545 = vmul.f32 %v10529, %v10529
      %v10546 = vmul.f32 %v10530, %v10530
      %v10547 = vmul.f32 %v10531, %v10531
      %v10548 = vmul.f32 %v10532, %v10532
      %v10549 = vmul.f32 %v10533, %v10533
      %v10550 = vmul.f32 %v10534, %v10534
      %v10551 = vmul.f32 %v10535, %v10535
      %v10552 = vmul.f32 %v10536, %v10536
      %v10553 = vmul.f32 %v10537, %v10537
      %v10554 = vmul.f32 %v10538, %v10538
      %v10555 = vsel %vm663, %v10539, 0.0
      %10556 = vadd.xlane.f32.xlu0 %v10555
      %v10557 = vpop.xlane.xlu0 %10556
      %v10558 = vsel %vm663, %v10540, 0.0
      %10559 = vadd.xlane.f32.xlu0 %v10558
      %v10560 = vpop.xlane.xlu0 %10559
      %v10561 = vsel %vm663, %v10541, 0.0
      %10562 = vadd.xlane.f32.xlu0 %v10561
      %v10563 = vpop.xlane.xlu0 %10562
      %v10564 = vsel %vm663, %v10542, 0.0
      %10565 = vadd.xlane.f32.xlu0 %v10564
      %v10566 = vpop.xlane.xlu0 %10565
      %v10567 = vsel %vm663, %v10543, 0.0
      %10568 = vadd.xlane.f32.xlu0 %v10567
      %v10569 = vpop.xlane.xlu0 %10568
      %v10570 = vsel %vm663, %v10544, 0.0
      %10571 = vadd.xlane.f32.xlu0 %v10570
      %v10572 = vpop.xlane.xlu0 %10571
      %v10573 = vsel %vm663, %v10545, 0.0
      %10574 = vadd.xlane.f32.xlu0 %v10573
      %v10575 = vpop.xlane.xlu0 %10574
      %v10576 = vsel %vm663, %v10546, 0.0
      %10577 = vadd.xlane.f32.xlu0 %v10576
      %v10578 = vpop.xlane.xlu0 %10577
      %v10579 = vsel %vm663, %v10547, 0.0
      %10580 = vadd.xlane.f32.xlu0 %v10579
      %v10581 = vpop.xlane.xlu0 %10580
      %v10582 = vsel %vm663, %v10548, 0.0
      %10583 = vadd.xlane.f32.xlu0 %v10582
      %v10584 = vpop.xlane.xlu0 %10583
      %v10585 = vsel %vm663, %v10549, 0.0
      %10586 = vadd.xlane.f32.xlu0 %v10585
      %v10587 = vpop.xlane.xlu0 %10586
      %v10588 = vsel %vm663, %v10550, 0.0
      %10589 = vadd.xlane.f32.xlu0 %v10588
      %v10590 = vpop.xlane.xlu0 %10589
      %v10591 = vsel %vm663, %v10551, 0.0
      %10592 = vadd.xlane.f32.xlu0 %v10591
      %v10593 = vpop.xlane.xlu0 %10592
      %v10594 = vsel %vm663, %v10552, 0.0
      %10595 = vadd.xlane.f32.xlu0 %v10594
      %v10596 = vpop.xlane.xlu0 %10595
      %v10597 = vsel %vm663, %v10553, 0.0
      %10598 = vadd.xlane.f32.xlu0 %v10597
      %v10599 = vpop.xlane.xlu0 %10598
      %v10600 = vsel %vm663, %v10554, 0.0
      %10601 = vadd.xlane.f32.xlu0 %v10600
      %v10602 = vpop.xlane.xlu0 %10601
      %v10603 = vmul.f32 %v10557, %v712
      %v10604 = vmul.f32 %v10560, %v712
      %v10605 = vmul.f32 %v10563, %v712
      %v10606 = vmul.f32 %v10566, %v712
      %v10607 = vmul.f32 %v10569, %v712
      %v10608 = vmul.f32 %v10572, %v712
      %v10609 = vmul.f32 %v10575, %v712
      %v10610 = vmul.f32 %v10578, %v712
      %v10611 = vmul.f32 %v10581, %v712
      %v10612 = vmul.f32 %v10584, %v712
      %v10613 = vmul.f32 %v10587, %v712
      %v10614 = vmul.f32 %v10590, %v712
      %v10615 = vmul.f32 %v10593, %v712
      %v10616 = vmul.f32 %v10596, %v712
      %v10617 = vmul.f32 %v10599, %v712
      %v10618 = vmul.f32 %v10602, %v712
      %v10619 = vadd.f32 %v10603, 1e-12
      %v10620 = vadd.f32 %v10604, 1e-12
      %v10621 = vadd.f32 %v10605, 1e-12
      %v10622 = vadd.f32 %v10606, 1e-12
      %v10623 = vadd.f32 %v10607, 1e-12
      %v10624 = vadd.f32 %v10608, 1e-12
      %v10625 = vadd.f32 %v10609, 1e-12
      %v10626 = vadd.f32 %v10610, 1e-12
      %v10627 = vadd.f32 %v10611, 1e-12
      %v10628 = vadd.f32 %v10612, 1e-12
      %v10629 = vadd.f32 %v10613, 1e-12
      %v10630 = vadd.f32 %v10614, 1e-12
      %v10631 = vadd.f32 %v10615, 1e-12
      %v10632 = vadd.f32 %v10616, 1e-12
      %v10633 = vadd.f32 %v10617, 1e-12
      %v10634 = vadd.f32 %v10618, 1e-12
      %v10635 = vrsqrt.pop %v10619
      %v10636 = vrsqrt.pop %v10620
      %v10637 = vrsqrt.pop %v10621
      %v10638 = vrsqrt.pop %v10622
      %v10639 = vrsqrt.pop %v10623
      %v10640 = vrsqrt.pop %v10624
      %v10641 = vrsqrt.pop %v10625
      %v10642 = vrsqrt.pop %v10626
      %v10643 = vrsqrt.pop %v10627
      %v10644 = vrsqrt.pop %v10628
      %v10645 = vrsqrt.pop %v10629
      %v10646 = vrsqrt.pop %v10630
      %v10647 = vrsqrt.pop %v10631
      %v10648 = vrsqrt.pop %v10632
      %v10649 = vrsqrt.pop %v10633
      %v10650 = vrsqrt.pop %v10634
      %v10651 = vmul.f32 %v10523, %v10635
      %v10652 = vmul.f32 %v10524, %v10636
      %v10653 = vmul.f32 %v10525, %v10637
      %v10654 = vmul.f32 %v10526, %v10638
      %v10655 = vmul.f32 %v10527, %v10639
      %v10656 = vmul.f32 %v10528, %v10640
      %v10657 = vmul.f32 %v10529, %v10641
      %v10658 = vmul.f32 %v10530, %v10642
      %v10659 = vmul.f32 %v10531, %v10643
      %v10660 = vmul.f32 %v10532, %v10644
      %v10661 = vmul.f32 %v10533, %v10645
      %v10662 = vmul.f32 %v10534, %v10646
      %v10663 = vmul.f32 %v10535, %v10647
      %v10664 = vmul.f32 %v10536, %v10648
      %v10665 = vmul.f32 %v10537, %v10649
      %v10666 = vmul.f32 %v10538, %v10650
      %v10668 = vlaneseq
      %v10669 = vshrl.u32 %v10668, 7
      %v10670 = vsub.s32 0, %v10669
      %v10671 = vrot.slane %v10456, %v10670
      %v10673 = vmul.f32 %v10651, %v10671
      %v10674 = vmul.f32 %v10652, %v10671
      %v10675 = vmul.f32 %v10653, %v10671
      %v10676 = vmul.f32 %v10654, %v10671
      %v10677 = vmul.f32 %v10655, %v10671
      %v10678 = vmul.f32 %v10656, %v10671
      %v10679 = vmul.f32 %v10657, %v10671
      %v10680 = vmul.f32 %v10658, %v10671
      %v10681 = vmul.f32 %v10659, %v10671
      %v10682 = vmul.f32 %v10660, %v10671
      %v10683 = vmul.f32 %v10661, %v10671
      %v10684 = vmul.f32 %v10662, %v10671
      %v10685 = vmul.f32 %v10663, %v10671
      %v10686 = vmul.f32 %v10664, %v10671
      %v10687 = vmul.f32 %v10665, %v10671
      %v10688 = vmul.f32 %v10666, %v10671
      %v10690 = vlaneseq
      %v10691 = vshrl.u32 %v10690, 7
      %v10692 = vsub.s32 0, %v10691
      %v10693 = vrot.slane %v10458, %v10692
      %v10695 = vadd.f32 %v10673, %v10693
      %v10696 = vadd.f32 %v10674, %v10693
      %v10697 = vadd.f32 %v10675, %v10693
      %v10698 = vadd.f32 %v10676, %v10693
      %v10699 = vadd.f32 %v10677, %v10693
      %v10700 = vadd.f32 %v10678, %v10693
      %v10701 = vadd.f32 %v10679, %v10693
      %v10702 = vadd.f32 %v10680, %v10693
      %v10703 = vadd.f32 %v10681, %v10693
      %v10704 = vadd.f32 %v10682, %v10693
      %v10705 = vadd.f32 %v10683, %v10693
      %v10706 = vadd.f32 %v10684, %v10693
      %v10707 = vadd.f32 %v10685, %v10693
      %v10708 = vadd.f32 %v10686, %v10693
      %v10709 = vadd.f32 %v10687, %v10693
      %v10710 = vadd.f32 %v10688, %v10693
      %10711 = vst.msk [vmem:[%s643] sm:$0xff] %vm663, %v10695
      %10712 = vst.msk [vmem:[%s643 + $0x8] sm:$0xff] %vm663, %v10696
      %10713 = vst.msk [vmem:[%s643 + $0x10] sm:$0xff] %vm663, %v10697
      %10714 = vst.msk [vmem:[%s643 + $0x18] sm:$0xff] %vm663, %v10698
      %10715 = vst.msk [vmem:[%s643 + $0x20] sm:$0xff] %vm663, %v10699
      %10716 = vst.msk [vmem:[%s643 + $0x28] sm:$0xff] %vm663, %v10700
      %10717 = vst.msk [vmem:[%s643 + $0x30] sm:$0xff] %vm663, %v10701
      %10718 = vst.msk [vmem:[%s643 + $0x38] sm:$0xff] %vm663, %v10702
      %10719 = vst.msk [vmem:[%s643 + $0x40] sm:$0xff] %vm663, %v10703
      %10720 = vst.msk [vmem:[%s643 + $0x48] sm:$0xff] %vm663, %v10704
      %10721 = vst.msk [vmem:[%s643 + $0x50] sm:$0xff] %vm663, %v10705
      %10722 = vst.msk [vmem:[%s643 + $0x58] sm:$0xff] %vm663, %v10706
      %10723 = vst.msk [vmem:[%s643 + $0x60] sm:$0xff] %vm663, %v10707
      %10724 = vst.msk [vmem:[%s643 + $0x68] sm:$0xff] %vm663, %v10708
      %10725 = vst.msk [vmem:[%s643 + $0x70] sm:$0xff] %vm663, %v10709
      %10726 = vst.msk [vmem:[%s643 + $0x78] sm:$0xff] %vm663, %v10710
      %p10727 = scmp.lt.s32.totalorder %s31, 1
      %s10728 = scalar_select %p10727, %s31, 1
      %s10729 = smul.addr %s10728, 16
      %s10730 = smul.addr %s10729, 8
      %s10731 = scalar_lea.vmem %s20, %s10730
      // Predicated region
      $region101: #{bert_forward.1} parent=99 // pred_check
        %p10732 = pneg %p479
      $region102: #{bert_forward.1} parent=99 // pred_check_branch
        %10734 = sbr.rel (%p10732) target = $region104
      $region103: #{bert_forward.1} parent=99 // pred_region
        _
      $region104: #{bert_forward.1} parent=99 // pred_fallthru
        _
    $region100: #{bert_forward.1} parent=5 // pred_fallthru
      _
    %p10735 = scmp.le.s32.totalorder 2, %s26
    // Predicated region
    $region105: #{bert_forward.1} parent=5 // pred_check
      %p10736 = pneg %p10735
    $region106: #{bert_forward.1} parent=5 // pred_check_branch
      %10738 = sbr.rel (%p10736) target = $region108
    $region107: #{bert_forward.1} parent=5 // pred_region
      %s10739 = ssub.s32 %s26, 2
      // Predicated region
      $region109: #{bert_forward.1} parent=107 // pred_check
        %p10740 = pneg %p485
      $region110: #{bert_forward.1} parent=107 // pred_check_branch
        %10742 = sbr.rel (%p10740) target = $region112
      $region111: #{bert_forward.1} parent=107 // pred_region
        %p10743 = scmp.lt.s32.totalorder %s32, 1
        %s10744 = scalar_select %p10743, %s32, 1
        %s10745 = smul.addr %s10744, 16
        %s10746 = smul.addr %s10745, 8
        %s10747 = scalar_lea.vmem %s20, %s10746
      $region112: #{bert_forward.1} parent=107 // pred_fallthru
        _
    $region108: #{bert_forward.1} parent=5 // pred_fallthru
      _
  $region6: #{bert_forward.1} parent=0 // loop_footer
    %s30 = sadd.s32 1, %s26
  $region7: #{bert_forward.1} parent=0 // loop_footer_branch
    %25 = sbr.rel target = $region3
  $region8: #{bert_forward.1} parent=0 // loop_exit
    _

</llo_original>
